<compile_context>
chip_gen: v7x
topology: tpu7x:2x2x1
jax: 0.10.0
libtpu: 0.0.40
codegen_flags: <defaults>
</compile_context>

<pallas_src>
import functools
import math

import jax
import jax.numpy as jnp
from jax import lax
from jax.experimental import pallas as pl
from jax.experimental.pallas import tpu as pltpu  # noqa: F401  (TPU backend)

# ----------------------------- model config ---------------------------------
VOCAB_SIZES = (11, 7, 13)      # categorical vocab sizes
EMB_DIMS = (4, 4, 8)           # embedding dims (sum = 16)
N_NUM = 4                      # numeric features
LSTM_HIDDEN = (32, 32)         # rnn stack hidden sizes
D_MODEL = 32                   # transformer_input_size
NHEAD = 4
D_FF = 64
N_TR_LAYERS = 2
OUT_DIM = 5                    # output_dim
OUT_PAD = 128                  # lane-dense padded logits width (sliced back to OUT_DIM)
LN_EPS = 1e-5

# TODO(synk): dropout layers (transformer + LinBnReLu) are identity in eval mode and are
# not implemented; the final LinBnReLu is assumed to apply ReLU to the logits (as its
# name implies) — drop the last jnp.maximum if the real LinBnReLu omits the activation.


# ----------------------------- fused Pallas kernel ---------------------------
def _model_kernel(*refs, T, B):
    """Whole post-embedding forward pass.  Activations are (T*B, F) time-major flat
    (row index = t*B + b); everything lives in VMEM for the duration of the call."""
    idx = 0
    x_ref = refs[idx]; idx += 1
    mask_ref = refs[idx]; idx += 1                      # (T*B, T*B) cross-batch additive mask
    lstm_refs = []
    for _ in range(len(LSTM_HIDDEN)):
        lstm_refs.append(refs[idx:idx + 3]); idx += 3   # (wih, whh, b)
    proj_w_ref, proj_b_ref = refs[idx:idx + 2]; idx += 2
    tr_refs = []
    for _ in range(N_TR_LAYERS):
        tr_refs.append(refs[idx:idx + 12]); idx += 12
    fc1_w_ref, fc1_b_ref, fc2_w_ref, fc2_b_ref = refs[idx:idx + 4]; idx += 4
    out_ref = refs[idx]

    f32 = jnp.float32

    def matmul(a, b):
        return jnp.dot(a, b, preferred_element_type=f32)

    # ---------------- LSTM stack: x = ReLU(cat(lstm(x), x)) ----------------
    x = x_ref[...]                                      # (T*B, D0)
    for wih_ref, whh_ref, b_ref in lstm_refs:
        whh = whh_ref[...]
        H = whh.shape[0]
        # Hoisted input projection (no recurrent dependency): one (T*B, D)x(D, 4H) matmul.
        gx = matmul(x, wih_ref[...]) + b_ref[...]       # (T*B, 4H)
        h = jnp.zeros((B, H), f32)
        c = jnp.zeros((B, H), f32)
        hs = []
        for t in range(T):                              # fully unrolled (T static)
            gates = gx[t * B:(t + 1) * B, :] + matmul(h, whh)      # (B, 4H), order i,f,g,o
            i_g = jax.nn.sigmoid(gates[:, 0 * H:1 * H])
            f_g = jax.nn.sigmoid(gates[:, 1 * H:2 * H])
            g_g = jnp.tanh(gates[:, 2 * H:3 * H])
            o_g = jax.nn.sigmoid(gates[:, 3 * H:4 * H])
            c = f_g * c + i_g * g_g
            h = o_g * jnp.tanh(c)
            hs.append(h)
        h_seq = jnp.concatenate(hs, axis=0)             # (T*B, H), time-major flat
        x = jnp.maximum(jnp.concatenate([h_seq, x], axis=-1), 0.0)

    # ---------------- projection + ReLU ----------------
    x = jnp.maximum(matmul(x, proj_w_ref[...]) + proj_b_ref[...], 0.0)   # (T*B, E)

    # ---------------- transformer encoder (post-norm, relu FFN) ----------------
    hd = D_MODEL // NHEAD
    scale = 1.0 / math.sqrt(hd)
    attn_bias = mask_ref[...]                           # 0 within a batch row, -1e30 across

    def layer_norm(z, g_ref, b_ref):
        mu = jnp.mean(z, axis=-1, keepdims=True)
        var = jnp.mean(jnp.square(z - mu), axis=-1, keepdims=True)
        return (z - mu) * lax.rsqrt(var + LN_EPS) * g_ref[...] + b_ref[...]

    for (wqkv, bqkv, wo, bo, ln1_g, ln1_b, w1, b1, w2, b2, ln2_g, ln2_b) in tr_refs:
        qkv = matmul(x, wqkv[...]) + bqkv[...]          # (T*B, 3E)
        q = qkv[:, 0:D_MODEL]
        k = qkv[:, D_MODEL:2 * D_MODEL]
        v = qkv[:, 2 * D_MODEL:3 * D_MODEL]
        # All heads + all batch rows in one body: scores over the full (T*B) slab with an
        # additive mask killing cross-batch terms (exactly per-(batch, head) attention).
        ctx_heads = []
        for hh in range(NHEAD):
            qh = q[:, hh * hd:(hh + 1) * hd]
            kh = k[:, hh * hd:(hh + 1) * hd]
            vh = v[:, hh * hd:(hh + 1) * hd]
            s = lax.dot_general(qh, kh, (((1,), (1,)), ((), ())),
                                preferred_element_type=f32) * scale + attn_bias
            m = jnp.max(s, axis=-1, keepdims=True)
            p = jnp.exp(s - m)
            p = p * pl.reciprocal(jnp.sum(p, axis=-1, keepdims=True), approx=True)
            ctx_heads.append(matmul(p, vh))             # (T*B, hd)
        ctx = jnp.concatenate(ctx_heads, axis=-1)       # (T*B, E)
        attn_out = matmul(ctx, wo[...]) + bo[...]
        h1 = layer_norm(x + attn_out, ln1_g, ln1_b)     # norm1(x + attn)
        ff = jnp.maximum(matmul(h1, w1[...]) + b1[...], 0.0)
        ff = matmul(ff, w2[...]) + b2[...]
        x = layer_norm(h1 + ff, ln2_g, ln2_b)           # norm2(h1 + ffn)

    # ---------------- fc head: LinBnReLu(E,512) -> LinBnReLu(512,out) ----------------
    y = jnp.maximum(matmul(x, fc1_w_ref[...]) + fc1_b_ref[...], 0.0)
    y = jnp.maximum(matmul(y, fc2_w_ref[...]) + fc2_b_ref[...], 0.0)    # (T*B, OUT_PAD)
    out_ref[...] = y                                    # lane-dense (16, 128) store


# ----------------------------- parameters -----------------------------------
def init_params(key):
    keys = iter(jax.random.split(key, 128))

    def nrm(shape, s=0.1):
        return jax.random.normal(next(keys), shape, jnp.float32) * s

    p = {}
    p['emb'] = [nrm((V, E)) for V, E in zip(VOCAB_SIZES, EMB_DIMS)]

    p['lstm'] = []
    din = N_NUM + sum(EMB_DIMS)
    for H in LSTM_HIDDEN:
        p['lstm'].append(dict(wih=nrm((din, 4 * H)),
                              whh=nrm((H, 4 * H)),
                              b=nrm((4 * H,))))          # b = b_ih + b_hh (combined)
        din = H + din                                    # concat residual

    p['proj_w'] = nrm((din, D_MODEL))
    p['proj_b'] = nrm((D_MODEL,))

    p['tr'] = []
    for _ in range(N_TR_LAYERS):
        p['tr'].append(dict(
            wqkv=nrm((D_MODEL, 3 * D_MODEL)), bqkv=nrm((3 * D_MODEL,)),
            wo=nrm((D_MODEL, D_MODEL)), bo=nrm((D_MODEL,)),
            w1=nrm((D_MODEL, D_FF)), b1=nrm((D_FF,)),
            w2=nrm((D_FF, D_MODEL)), b2=nrm((D_MODEL,)),
            ln1_g=jnp.ones((D_MODEL,), jnp.float32), ln1_b=jnp.zeros((D_MODEL,), jnp.float32),
            ln2_g=jnp.ones((D_MODEL,), jnp.float32), ln2_b=jnp.zeros((D_MODEL,), jnp.float32)))

    p['fc1_w'] = nrm((D_MODEL, 512))
    p['fc1_b'] = nrm((512,))
    p['fc2_w'] = nrm((512, OUT_DIM))
    p['fc2_b'] = nrm((OUT_DIM,))
    return p


# ----------------------------- forward (single fused pallas_call) ------------
@jax.jit
def forward(params, x_cat, x_num):
    B, T, _ = x_num.shape
    D0 = N_NUM + sum(EMB_DIMS)

    # embedding lookups (glue gather) + concat [num, cat_embs]; time-major flat layout
    embs = [jnp.take(params['emb'][i], x_cat[:, :, i], axis=0)
            for i in range(len(params['emb']))]
    x = jnp.concatenate([x_num] + embs, axis=-1)                  # (B, T, D0)
    x_tm = jnp.transpose(x, (1, 0, 2)).reshape(T * B, D0)         # row = t*B + b

    # cross-batch additive attention mask (constant-folded by XLA under jit)
    rb = jnp.arange(T * B, dtype=jnp.int32) % B
    attn_bias = jnp.where(rb[:, None] == rb[None, :], 0.0, -1e30).astype(jnp.float32)

    # lane-dense final linear: pad (512, OUT_DIM) -> (512, OUT_PAD); sliced back below
    fc2_w = jnp.zeros((params['fc2_w'].shape[0], OUT_PAD), jnp.float32
                      ).at[:, :OUT_DIM].set(params['fc2_w'])
    fc2_b = jnp.zeros((OUT_PAD,), jnp.float32).at[:OUT_DIM].set(params['fc2_b'])

    args = [x_tm, attn_bias]
    for lp in params['lstm']:
        args += [lp['wih'], lp['whh'], lp['b'].reshape(1, -1)]
    args += [params['proj_w'], params['proj_b'].reshape(1, -1)]
    for tp in params['tr']:
        args += [tp['wqkv'], tp['bqkv'].reshape(1, -1),
                 tp['wo'], tp['bo'].reshape(1, -1),
                 tp['ln1_g'].reshape(1, -1), tp['ln1_b'].reshape(1, -1),
                 tp['w1'], tp['b1'].reshape(1, -1),
                 tp['w2'], tp['b2'].reshape(1, -1),
                 tp['ln2_g'].reshape(1, -1), tp['ln2_b'].reshape(1, -1)]
    args += [params['fc1_w'], params['fc1_b'].reshape(1, -1), fc2_w, fc2_b.reshape(1, -1)]

    out = pl.pallas_call(
        functools.partial(_model_kernel, T=T, B=B),
        out_shape=jax.ShapeDtypeStruct((T * B, OUT_PAD), jnp.float32),
    )(*args)

    # back to (B, T, OUT_DIM)
    return out.reshape(T, B, OUT_PAD)[:, :, :OUT_DIM].transpose(1, 0, 2)


# ----------------------------- pure-JAX reference ----------------------------
def _ref_forward(params, x_cat, x_num):
    embs = [params['emb'][i][x_cat[:, :, i]] for i in range(len(params['emb']))]
    x = jnp.concatenate([x_num] + embs, axis=-1)
    for lp in params['lstm']:
        x_res = x
        B, T, _ = x.shape
        H = lp['whh'].shape[0]

        def step(carry, xt, lp=lp, H=H):
            h, c = carry
            g = xt @ lp['wih'] + h @ lp['whh'] + lp['b']
            i = jax.nn.sigmoid(g[:, :H])
            f = jax.nn.sigmoid(g[:, H:2 * H])
            gg = jnp.tanh(g[:, 2 * H:3 * H])
            o = jax.nn.sigmoid(g[:, 3 * H:])
            c = f * c + i * gg
            h = o * jnp.tanh(c)
            return (h, c), h

        (_, _), hs = lax.scan(step,
                              (jnp.zeros((B, H)), jnp.zeros((B, H))),
                              jnp.transpose(x, (1, 0, 2)))
        h_seq = jnp.transpose(hs, (1, 0, 2))
        x = jnp.maximum(jnp.concatenate([h_seq, x_res], axis=-1), 0.0)

    x = jnp.maximum(x @ params['proj_w'] + params['proj_b'], 0.0)
    B, T, E = x.shape
    hd = E // NHEAD

    def ln(z, g, b):
        m = z.mean(-1, keepdims=True)
        v = ((z - m) ** 2).mean(-1, keepdims=True)
        return (z - m) / jnp.sqrt(v + LN_EPS) * g + b

    for tp in params['tr']:
        qkv = x @ tp['wqkv'] + tp['bqkv']
        q, k, v = [a.reshape(B, T, NHEAD, hd).transpose(0, 2, 1, 3)
                   for a in jnp.split(qkv, 3, axis=-1)]
        s = jnp.einsum('bhqd,bhkd->bhqk', q, k) / math.sqrt(hd)
        p = jax.nn.softmax(s, axis=-1)
        ctx = jnp.einsum('bhqk,bhkd->bhqd', p, v).transpose(0, 2, 1, 3).reshape(B, T, E)
        attn = ctx @ tp['wo'] + tp['bo']
        h1 = ln(x + attn, tp['ln1_g'], tp['ln1_b'])
        ff = jnp.maximum(h1 @ tp['w1'] + tp['b1'], 0.0) @ tp['w2'] + tp['b2']
        x = ln(h1 + ff, tp['ln2_g'], tp['ln2_b'])

    y = jnp.maximum(x @ params['fc1_w'] + params['fc1_b'], 0.0)
    y = jnp.maximum(y @ params['fc2_w'] + params['fc2_b'], 0.0)
    return y


# ----------------------------- main ------------------------------------------
if __name__ == "__main__":
    key = jax.random.PRNGKey(0)
    pkey, ckey, nkey = jax.random.split(key, 3)
    params = init_params(pkey)

    B, T = 2, 8
    x_cat = jnp.stack(
        [jax.random.randint(jax.random.fold_in(ckey, i), (B, T), 0, V)
         for i, V in enumerate(VOCAB_SIZES)], axis=-1)               # (B, T, n_cat) int32
    x_num = jax.random.normal(nkey, (B, T, N_NUM), jnp.float32)      # (B, T, n_num)

    out = forward(params, x_cat, x_num)
    out = jax.block_until_ready(out)
    assert out.shape == (B, T, OUT_DIM)

    ref = _ref_forward(params, x_cat, x_num)
    max_err = float(jnp.max(jnp.abs(out - ref)))
    assert jnp.allclose(out, ref, atol=5e-3, rtol=5e-3), max_err

    print("KERNEL_OK")
</pallas_src>

<mosaic_0001>
module attributes {stable_mosaic.version = 11 : i64} {
  func.func @_model_kernel(%arg0: memref<16x20xf32, #tpu.memory_space<vmem>>, %arg1: memref<16x16xf32, #tpu.memory_space<vmem>>, %arg2: memref<20x128xf32, #tpu.memory_space<vmem>>, %arg3: memref<32x128xf32, #tpu.memory_space<vmem>>, %arg4: memref<1x128xf32, #tpu.memory_space<vmem>>, %arg5: memref<52x128xf32, #tpu.memory_space<vmem>>, %arg6: memref<32x128xf32, #tpu.memory_space<vmem>>, %arg7: memref<1x128xf32, #tpu.memory_space<vmem>>, %arg8: memref<84x32xf32, #tpu.memory_space<vmem>>, %arg9: memref<1x32xf32, #tpu.memory_space<vmem>>, %arg10: memref<32x96xf32, #tpu.memory_space<vmem>>, %arg11: memref<1x96xf32, #tpu.memory_space<vmem>>, %arg12: memref<32x32xf32, #tpu.memory_space<vmem>>, %arg13: memref<1x32xf32, #tpu.memory_space<vmem>>, %arg14: memref<1x32xf32, #tpu.memory_space<vmem>>, %arg15: memref<1x32xf32, #tpu.memory_space<vmem>>, %arg16: memref<32x64xf32, #tpu.memory_space<vmem>>, %arg17: memref<1x64xf32, #tpu.memory_space<vmem>>, %arg18: memref<64x32xf32, #tpu.memory_space<vmem>>, %arg19: memref<1x32xf32, #tpu.memory_space<vmem>>, %arg20: memref<1x32xf32, #tpu.memory_space<vmem>>, %arg21: memref<1x32xf32, #tpu.memory_space<vmem>>, %arg22: memref<32x96xf32, #tpu.memory_space<vmem>>, %arg23: memref<1x96xf32, #tpu.memory_space<vmem>>, %arg24: memref<32x32xf32, #tpu.memory_space<vmem>>, %arg25: memref<1x32xf32, #tpu.memory_space<vmem>>, %arg26: memref<1x32xf32, #tpu.memory_space<vmem>>, %arg27: memref<1x32xf32, #tpu.memory_space<vmem>>, %arg28: memref<32x64xf32, #tpu.memory_space<vmem>>, %arg29: memref<1x64xf32, #tpu.memory_space<vmem>>, %arg30: memref<64x32xf32, #tpu.memory_space<vmem>>, %arg31: memref<1x32xf32, #tpu.memory_space<vmem>>, %arg32: memref<1x32xf32, #tpu.memory_space<vmem>>, %arg33: memref<1x32xf32, #tpu.memory_space<vmem>>, %arg34: memref<32x512xf32, #tpu.memory_space<vmem>>, %arg35: memref<1x512xf32, #tpu.memory_space<vmem>>, %arg36: memref<512x128xf32, #tpu.memory_space<vmem>>, %arg37: memref<1x128xf32, #tpu.memory_space<vmem>>, %arg38: memref<16x128xf32, #tpu.memory_space<vmem>>) attributes {dimension_semantics = [], scalar_prefetch = 0 : i64, scratch_operands = 0 : i64, tpu.core_type = #tpu.core_type<tc>} {
    %c0 = arith.constant 0 : index
    %c0_0 = arith.constant 0 : index
    %0 = vector.load %arg0[%c0, %c0_0] : memref<16x20xf32, #tpu.memory_space<vmem>>, vector<16x20xf32>
    %c0_1 = arith.constant 0 : index
    %c0_2 = arith.constant 0 : index
    %1 = vector.load %arg3[%c0_1, %c0_2] : memref<32x128xf32, #tpu.memory_space<vmem>>, vector<32x128xf32>
    %c0_3 = arith.constant 0 : index
    %c0_4 = arith.constant 0 : index
    %2 = vector.load %arg2[%c0_3, %c0_4] : memref<20x128xf32, #tpu.memory_space<vmem>>, vector<20x128xf32>
    %cst = arith.constant dense<0.000000e+00> : vector<16x128xf32>
    %3 = tpu.matmul %0, %2, %cst {dimension_numbers = #tpu.dot_dimension_numbers<[1], [0], [0], [1], [0, 0, 1, 1], [], []>} : vector<16x20xf32>, vector<20x128xf32>, vector<16x128xf32> -> vector<16x128xf32>
    %c0_5 = arith.constant 0 : index
    %c0_6 = arith.constant 0 : index
    %4 = vector.load %arg4[%c0_5, %c0_6] : memref<1x128xf32, #tpu.memory_space<vmem>>, vector<1x128xf32>
    %5 = vector.broadcast %4 : vector<1x128xf32> to vector<16x128xf32>
    %6 = arith.addf %3, %5 : vector<16x128xf32>
    %cst_7 = arith.constant 0.000000e+00 : f32
    %7 = vector.broadcast %cst_7 : f32 to vector<2x32xf32>
    %cst_8 = arith.constant 0.000000e+00 : f32
    %8 = vector.broadcast %cst_8 : f32 to vector<2x32xf32>
    %9 = vector.extract_strided_slice %6 {offsets = [0, 0], sizes = [2, 128], strides = [1, 1]} : vector<16x128xf32> to vector<2x128xf32>
    %cst_9 = arith.constant dense<0.000000e+00> : vector<2x128xf32>
    %10 = tpu.matmul %7, %1, %cst_9 {dimension_numbers = #tpu.dot_dimension_numbers<[1], [0], [0], [1], [0, 0, 1, 1], [], []>} : vector<2x32xf32>, vector<32x128xf32>, vector<2x128xf32> -> vector<2x128xf32>
    %11 = arith.addf %9, %10 : vector<2x128xf32>
    %12 = vector.extract_strided_slice %11 {offsets = [0, 0], sizes = [2, 32], strides = [1, 1]} : vector<2x128xf32> to vector<2x32xf32>
    %13 = arith.negf %12 : vector<2x32xf32>
    %14 = math.exp %13 : vector<2x32xf32>
    %cst_10 = arith.constant 1.000000e+00 : f32
    %15 = vector.broadcast %cst_10 : f32 to vector<2x32xf32>
    %16 = arith.addf %15, %14 : vector<2x32xf32>
    %17 = arith.divf %15, %16 : vector<2x32xf32>
    %18 = vector.extract_strided_slice %11 {offsets = [0, 32], sizes = [2, 32], strides = [1, 1]} : vector<2x128xf32> to vector<2x32xf32>
    %19 = arith.negf %18 : vector<2x32xf32>
    %20 = math.exp %19 : vector<2x32xf32>
    %cst_11 = arith.constant 1.000000e+00 : f32
    %21 = vector.broadcast %cst_11 : f32 to vector<2x32xf32>
    %22 = arith.addf %21, %20 : vector<2x32xf32>
    %23 = arith.divf %21, %22 : vector<2x32xf32>
    %24 = vector.extract_strided_slice %11 {offsets = [0, 64], sizes = [2, 32], strides = [1, 1]} : vector<2x128xf32> to vector<2x32xf32>
    %25 = math.tanh %24 : vector<2x32xf32>
    %26 = vector.extract_strided_slice %11 {offsets = [0, 96], sizes = [2, 32], strides = [1, 1]} : vector<2x128xf32> to vector<2x32xf32>
    %27 = arith.negf %26 : vector<2x32xf32>
    %28 = math.exp %27 : vector<2x32xf32>
    %cst_12 = arith.constant 1.000000e+00 : f32
    %29 = vector.broadcast %cst_12 : f32 to vector<2x32xf32>
    %30 = arith.addf %29, %28 : vector<2x32xf32>
    %31 = arith.divf %29, %30 : vector<2x32xf32>
    %32 = arith.mulf %23, %8 : vector<2x32xf32>
    %33 = arith.mulf %17, %25 : vector<2x32xf32>
    %34 = arith.addf %32, %33 : vector<2x32xf32>
    %35 = math.tanh %34 : vector<2x32xf32>
    %36 = arith.mulf %31, %35 : vector<2x32xf32>
    %37 = vector.extract_strided_slice %6 {offsets = [2, 0], sizes = [2, 128], strides = [1, 1]} : vector<16x128xf32> to vector<2x128xf32>
    %cst_13 = arith.constant dense<0.000000e+00> : vector<2x128xf32>
    %38 = tpu.matmul %36, %1, %cst_13 {dimension_numbers = #tpu.dot_dimension_numbers<[1], [0], [0], [1], [0, 0, 1, 1], [], []>} : vector<2x32xf32>, vector<32x128xf32>, vector<2x128xf32> -> vector<2x128xf32>
    %39 = arith.addf %37, %38 : vector<2x128xf32>
    %40 = vector.extract_strided_slice %39 {offsets = [0, 0], sizes = [2, 32], strides = [1, 1]} : vector<2x128xf32> to vector<2x32xf32>
    %41 = arith.negf %40 : vector<2x32xf32>
    %42 = math.exp %41 : vector<2x32xf32>
    %cst_14 = arith.constant 1.000000e+00 : f32
    %43 = vector.broadcast %cst_14 : f32 to vector<2x32xf32>
    %44 = arith.addf %43, %42 : vector<2x32xf32>
    %45 = arith.divf %43, %44 : vector<2x32xf32>
    %46 = vector.extract_strided_slice %39 {offsets = [0, 32], sizes = [2, 32], strides = [1, 1]} : vector<2x128xf32> to vector<2x32xf32>
    %47 = arith.negf %46 : vector<2x32xf32>
    %48 = math.exp %47 : vector<2x32xf32>
    %cst_15 = arith.constant 1.000000e+00 : f32
    %49 = vector.broadcast %cst_15 : f32 to vector<2x32xf32>
    %50 = arith.addf %49, %48 : vector<2x32xf32>
    %51 = arith.divf %49, %50 : vector<2x32xf32>
    %52 = vector.extract_strided_slice %39 {offsets = [0, 64], sizes = [2, 32], strides = [1, 1]} : vector<2x128xf32> to vector<2x32xf32>
    %53 = math.tanh %52 : vector<2x32xf32>
    %54 = vector.extract_strided_slice %39 {offsets = [0, 96], sizes = [2, 32], strides = [1, 1]} : vector<2x128xf32> to vector<2x32xf32>
    %55 = arith.negf %54 : vector<2x32xf32>
    %56 = math.exp %55 : vector<2x32xf32>
    %cst_16 = arith.constant 1.000000e+00 : f32
    %57 = vector.broadcast %cst_16 : f32 to vector<2x32xf32>
    %58 = arith.addf %57, %56 : vector<2x32xf32>
    %59 = arith.divf %57, %58 : vector<2x32xf32>
    %60 = arith.mulf %51, %34 : vector<2x32xf32>
    %61 = arith.mulf %45, %53 : vector<2x32xf32>
    %62 = arith.addf %60, %61 : vector<2x32xf32>
    %63 = math.tanh %62 : vector<2x32xf32>
    %64 = arith.mulf %59, %63 : vector<2x32xf32>
    %65 = vector.extract_strided_slice %6 {offsets = [4, 0], sizes = [2, 128], strides = [1, 1]} : vector<16x128xf32> to vector<2x128xf32>
    %cst_17 = arith.constant dense<0.000000e+00> : vector<2x128xf32>
    %66 = tpu.matmul %64, %1, %cst_17 {dimension_numbers = #tpu.dot_dimension_numbers<[1], [0], [0], [1], [0, 0, 1, 1], [], []>} : vector<2x32xf32>, vector<32x128xf32>, vector<2x128xf32> -> vector<2x128xf32>
    %67 = arith.addf %65, %66 : vector<2x128xf32>
    %68 = vector.extract_strided_slice %67 {offsets = [0, 0], sizes = [2, 32], strides = [1, 1]} : vector<2x128xf32> to vector<2x32xf32>
    %69 = arith.negf %68 : vector<2x32xf32>
    %70 = math.exp %69 : vector<2x32xf32>
    %cst_18 = arith.constant 1.000000e+00 : f32
    %71 = vector.broadcast %cst_18 : f32 to vector<2x32xf32>
    %72 = arith.addf %71, %70 : vector<2x32xf32>
    %73 = arith.divf %71, %72 : vector<2x32xf32>
    %74 = vector.extract_strided_slice %67 {offsets = [0, 32], sizes = [2, 32], strides = [1, 1]} : vector<2x128xf32> to vector<2x32xf32>
    %75 = arith.negf %74 : vector<2x32xf32>
    %76 = math.exp %75 : vector<2x32xf32>
    %cst_19 = arith.constant 1.000000e+00 : f32
    %77 = vector.broadcast %cst_19 : f32 to vector<2x32xf32>
    %78 = arith.addf %77, %76 : vector<2x32xf32>
    %79 = arith.divf %77, %78 : vector<2x32xf32>
    %80 = vector.extract_strided_slice %67 {offsets = [0, 64], sizes = [2, 32], strides = [1, 1]} : vector<2x128xf32> to vector<2x32xf32>
    %81 = math.tanh %80 : vector<2x32xf32>
    %82 = vector.extract_strided_slice %67 {offsets = [0, 96], sizes = [2, 32], strides = [1, 1]} : vector<2x128xf32> to vector<2x32xf32>
    %83 = arith.negf %82 : vector<2x32xf32>
    %84 = math.exp %83 : vector<2x32xf32>
    %cst_20 = arith.constant 1.000000e+00 : f32
    %85 = vector.broadcast %cst_20 : f32 to vector<2x32xf32>
    %86 = arith.addf %85, %84 : vector<2x32xf32>
    %87 = arith.divf %85, %86 : vector<2x32xf32>
    %88 = arith.mulf %79, %62 : vector<2x32xf32>
    %89 = arith.mulf %73, %81 : vector<2x32xf32>
    %90 = arith.addf %88, %89 : vector<2x32xf32>
    %91 = math.tanh %90 : vector<2x32xf32>
    %92 = arith.mulf %87, %91 : vector<2x32xf32>
    %93 = vector.extract_strided_slice %6 {offsets = [6, 0], sizes = [2, 128], strides = [1, 1]} : vector<16x128xf32> to vector<2x128xf32>
    %cst_21 = arith.constant dense<0.000000e+00> : vector<2x128xf32>
    %94 = tpu.matmul %92, %1, %cst_21 {dimension_numbers = #tpu.dot_dimension_numbers<[1], [0], [0], [1], [0, 0, 1, 1], [], []>} : vector<2x32xf32>, vector<32x128xf32>, vector<2x128xf32> -> vector<2x128xf32>
    %95 = arith.addf %93, %94 : vector<2x128xf32>
    %96 = vector.extract_strided_slice %95 {offsets = [0, 0], sizes = [2, 32], strides = [1, 1]} : vector<2x128xf32> to vector<2x32xf32>
    %97 = arith.negf %96 : vector<2x32xf32>
    %98 = math.exp %97 : vector<2x32xf32>
    %cst_22 = arith.constant 1.000000e+00 : f32
    %99 = vector.broadcast %cst_22 : f32 to vector<2x32xf32>
    %100 = arith.addf %99, %98 : vector<2x32xf32>
    %101 = arith.divf %99, %100 : vector<2x32xf32>
    %102 = vector.extract_strided_slice %95 {offsets = [0, 32], sizes = [2, 32], strides = [1, 1]} : vector<2x128xf32> to vector<2x32xf32>
    %103 = arith.negf %102 : vector<2x32xf32>
    %104 = math.exp %103 : vector<2x32xf32>
    %cst_23 = arith.constant 1.000000e+00 : f32
    %105 = vector.broadcast %cst_23 : f32 to vector<2x32xf32>
    %106 = arith.addf %105, %104 : vector<2x32xf32>
    %107 = arith.divf %105, %106 : vector<2x32xf32>
    %108 = vector.extract_strided_slice %95 {offsets = [0, 64], sizes = [2, 32], strides = [1, 1]} : vector<2x128xf32> to vector<2x32xf32>
    %109 = math.tanh %108 : vector<2x32xf32>
    %110 = vector.extract_strided_slice %95 {offsets = [0, 96], sizes = [2, 32], strides = [1, 1]} : vector<2x128xf32> to vector<2x32xf32>
    %111 = arith.negf %110 : vector<2x32xf32>
    %112 = math.exp %111 : vector<2x32xf32>
    %cst_24 = arith.constant 1.000000e+00 : f32
    %113 = vector.broadcast %cst_24 : f32 to vector<2x32xf32>
    %114 = arith.addf %113, %112 : vector<2x32xf32>
    %115 = arith.divf %113, %114 : vector<2x32xf32>
    %116 = arith.mulf %107, %90 : vector<2x32xf32>
    %117 = arith.mulf %101, %109 : vector<2x32xf32>
    %118 = arith.addf %116, %117 : vector<2x32xf32>
    %119 = math.tanh %118 : vector<2x32xf32>
    %120 = arith.mulf %115, %119 : vector<2x32xf32>
    %121 = vector.extract_strided_slice %6 {offsets = [8, 0], sizes = [2, 128], strides = [1, 1]} : vector<16x128xf32> to vector<2x128xf32>
    %cst_25 = arith.constant dense<0.000000e+00> : vector<2x128xf32>
    %122 = tpu.matmul %120, %1, %cst_25 {dimension_numbers = #tpu.dot_dimension_numbers<[1], [0], [0], [1], [0, 0, 1, 1], [], []>} : vector<2x32xf32>, vector<32x128xf32>, vector<2x128xf32> -> vector<2x128xf32>
    %123 = arith.addf %121, %122 : vector<2x128xf32>
    %124 = vector.extract_strided_slice %123 {offsets = [0, 0], sizes = [2, 32], strides = [1, 1]} : vector<2x128xf32> to vector<2x32xf32>
    %125 = arith.negf %124 : vector<2x32xf32>
    %126 = math.exp %125 : vector<2x32xf32>
    %cst_26 = arith.constant 1.000000e+00 : f32
    %127 = vector.broadcast %cst_26 : f32 to vector<2x32xf32>
    %128 = arith.addf %127, %126 : vector<2x32xf32>
    %129 = arith.divf %127, %128 : vector<2x32xf32>
    %130 = vector.extract_strided_slice %123 {offsets = [0, 32], sizes = [2, 32], strides = [1, 1]} : vector<2x128xf32> to vector<2x32xf32>
    %131 = arith.negf %130 : vector<2x32xf32>
    %132 = math.exp %131 : vector<2x32xf32>
    %cst_27 = arith.constant 1.000000e+00 : f32
    %133 = vector.broadcast %cst_27 : f32 to vector<2x32xf32>
    %134 = arith.addf %133, %132 : vector<2x32xf32>
    %135 = arith.divf %133, %134 : vector<2x32xf32>
    %136 = vector.extract_strided_slice %123 {offsets = [0, 64], sizes = [2, 32], strides = [1, 1]} : vector<2x128xf32> to vector<2x32xf32>
    %137 = math.tanh %136 : vector<2x32xf32>
    %138 = vector.extract_strided_slice %123 {offsets = [0, 96], sizes = [2, 32], strides = [1, 1]} : vector<2x128xf32> to vector<2x32xf32>
    %139 = arith.negf %138 : vector<2x32xf32>
    %140 = math.exp %139 : vector<2x32xf32>
    %cst_28 = arith.constant 1.000000e+00 : f32
    %141 = vector.broadcast %cst_28 : f32 to vector<2x32xf32>
    %142 = arith.addf %141, %140 : vector<2x32xf32>
    %143 = arith.divf %141, %142 : vector<2x32xf32>
    %144 = arith.mulf %135, %118 : vector<2x32xf32>
    %145 = arith.mulf %129, %137 : vector<2x32xf32>
    %146 = arith.addf %144, %145 : vector<2x32xf32>
    %147 = math.tanh %146 : vector<2x32xf32>
    %148 = arith.mulf %143, %147 : vector<2x32xf32>
    %149 = vector.extract_strided_slice %6 {offsets = [10, 0], sizes = [2, 128], strides = [1, 1]} : vector<16x128xf32> to vector<2x128xf32>
    %cst_29 = arith.constant dense<0.000000e+00> : vector<2x128xf32>
    %150 = tpu.matmul %148, %1, %cst_29 {dimension_numbers = #tpu.dot_dimension_numbers<[1], [0], [0], [1], [0, 0, 1, 1], [], []>} : vector<2x32xf32>, vector<32x128xf32>, vector<2x128xf32> -> vector<2x128xf32>
    %151 = arith.addf %149, %150 : vector<2x128xf32>
    %152 = vector.extract_strided_slice %151 {offsets = [0, 0], sizes = [2, 32], strides = [1, 1]} : vector<2x128xf32> to vector<2x32xf32>
    %153 = arith.negf %152 : vector<2x32xf32>
    %154 = math.exp %153 : vector<2x32xf32>
    %cst_30 = arith.constant 1.000000e+00 : f32
    %155 = vector.broadcast %cst_30 : f32 to vector<2x32xf32>
    %156 = arith.addf %155, %154 : vector<2x32xf32>
    %157 = arith.divf %155, %156 : vector<2x32xf32>
    %158 = vector.extract_strided_slice %151 {offsets = [0, 32], sizes = [2, 32], strides = [1, 1]} : vector<2x128xf32> to vector<2x32xf32>
    %159 = arith.negf %158 : vector<2x32xf32>
    %160 = math.exp %159 : vector<2x32xf32>
    %cst_31 = arith.constant 1.000000e+00 : f32
    %161 = vector.broadcast %cst_31 : f32 to vector<2x32xf32>
    %162 = arith.addf %161, %160 : vector<2x32xf32>
    %163 = arith.divf %161, %162 : vector<2x32xf32>
    %164 = vector.extract_strided_slice %151 {offsets = [0, 64], sizes = [2, 32], strides = [1, 1]} : vector<2x128xf32> to vector<2x32xf32>
    %165 = math.tanh %164 : vector<2x32xf32>
    %166 = vector.extract_strided_slice %151 {offsets = [0, 96], sizes = [2, 32], strides = [1, 1]} : vector<2x128xf32> to vector<2x32xf32>
    %167 = arith.negf %166 : vector<2x32xf32>
    %168 = math.exp %167 : vector<2x32xf32>
    %cst_32 = arith.constant 1.000000e+00 : f32
    %169 = vector.broadcast %cst_32 : f32 to vector<2x32xf32>
    %170 = arith.addf %169, %168 : vector<2x32xf32>
    %171 = arith.divf %169, %170 : vector<2x32xf32>
    %172 = arith.mulf %163, %146 : vector<2x32xf32>
    %173 = arith.mulf %157, %165 : vector<2x32xf32>
    %174 = arith.addf %172, %173 : vector<2x32xf32>
    %175 = math.tanh %174 : vector<2x32xf32>
    %176 = arith.mulf %171, %175 : vector<2x32xf32>
    %177 = vector.extract_strided_slice %6 {offsets = [12, 0], sizes = [2, 128], strides = [1, 1]} : vector<16x128xf32> to vector<2x128xf32>
    %cst_33 = arith.constant dense<0.000000e+00> : vector<2x128xf32>
    %178 = tpu.matmul %176, %1, %cst_33 {dimension_numbers = #tpu.dot_dimension_numbers<[1], [0], [0], [1], [0, 0, 1, 1], [], []>} : vector<2x32xf32>, vector<32x128xf32>, vector<2x128xf32> -> vector<2x128xf32>
    %179 = arith.addf %177, %178 : vector<2x128xf32>
    %180 = vector.extract_strided_slice %179 {offsets = [0, 0], sizes = [2, 32], strides = [1, 1]} : vector<2x128xf32> to vector<2x32xf32>
    %181 = arith.negf %180 : vector<2x32xf32>
    %182 = math.exp %181 : vector<2x32xf32>
    %cst_34 = arith.constant 1.000000e+00 : f32
    %183 = vector.broadcast %cst_34 : f32 to vector<2x32xf32>
    %184 = arith.addf %183, %182 : vector<2x32xf32>
    %185 = arith.divf %183, %184 : vector<2x32xf32>
    %186 = vector.extract_strided_slice %179 {offsets = [0, 32], sizes = [2, 32], strides = [1, 1]} : vector<2x128xf32> to vector<2x32xf32>
    %187 = arith.negf %186 : vector<2x32xf32>
    %188 = math.exp %187 : vector<2x32xf32>
    %cst_35 = arith.constant 1.000000e+00 : f32
    %189 = vector.broadcast %cst_35 : f32 to vector<2x32xf32>
    %190 = arith.addf %189, %188 : vector<2x32xf32>
    %191 = arith.divf %189, %190 : vector<2x32xf32>
    %192 = vector.extract_strided_slice %179 {offsets = [0, 64], sizes = [2, 32], strides = [1, 1]} : vector<2x128xf32> to vector<2x32xf32>
    %193 = math.tanh %192 : vector<2x32xf32>
    %194 = vector.extract_strided_slice %179 {offsets = [0, 96], sizes = [2, 32], strides = [1, 1]} : vector<2x128xf32> to vector<2x32xf32>
    %195 = arith.negf %194 : vector<2x32xf32>
    %196 = math.exp %195 : vector<2x32xf32>
    %cst_36 = arith.constant 1.000000e+00 : f32
    %197 = vector.broadcast %cst_36 : f32 to vector<2x32xf32>
    %198 = arith.addf %197, %196 : vector<2x32xf32>
    %199 = arith.divf %197, %198 : vector<2x32xf32>
    %200 = arith.mulf %191, %174 : vector<2x32xf32>
    %201 = arith.mulf %185, %193 : vector<2x32xf32>
    %202 = arith.addf %200, %201 : vector<2x32xf32>
    %203 = math.tanh %202 : vector<2x32xf32>
    %204 = arith.mulf %199, %203 : vector<2x32xf32>
    %205 = vector.extract_strided_slice %6 {offsets = [14, 0], sizes = [2, 128], strides = [1, 1]} : vector<16x128xf32> to vector<2x128xf32>
    %cst_37 = arith.constant dense<0.000000e+00> : vector<2x128xf32>
    %206 = tpu.matmul %204, %1, %cst_37 {dimension_numbers = #tpu.dot_dimension_numbers<[1], [0], [0], [1], [0, 0, 1, 1], [], []>} : vector<2x32xf32>, vector<32x128xf32>, vector<2x128xf32> -> vector<2x128xf32>
    %207 = arith.addf %205, %206 : vector<2x128xf32>
    %208 = vector.extract_strided_slice %207 {offsets = [0, 0], sizes = [2, 32], strides = [1, 1]} : vector<2x128xf32> to vector<2x32xf32>
    %209 = arith.negf %208 : vector<2x32xf32>
    %210 = math.exp %209 : vector<2x32xf32>
    %cst_38 = arith.constant 1.000000e+00 : f32
    %211 = vector.broadcast %cst_38 : f32 to vector<2x32xf32>
    %212 = arith.addf %211, %210 : vector<2x32xf32>
    %213 = arith.divf %211, %212 : vector<2x32xf32>
    %214 = vector.extract_strided_slice %207 {offsets = [0, 32], sizes = [2, 32], strides = [1, 1]} : vector<2x128xf32> to vector<2x32xf32>
    %215 = arith.negf %214 : vector<2x32xf32>
    %216 = math.exp %215 : vector<2x32xf32>
    %cst_39 = arith.constant 1.000000e+00 : f32
    %217 = vector.broadcast %cst_39 : f32 to vector<2x32xf32>
    %218 = arith.addf %217, %216 : vector<2x32xf32>
    %219 = arith.divf %217, %218 : vector<2x32xf32>
    %220 = vector.extract_strided_slice %207 {offsets = [0, 64], sizes = [2, 32], strides = [1, 1]} : vector<2x128xf32> to vector<2x32xf32>
    %221 = math.tanh %220 : vector<2x32xf32>
    %222 = vector.extract_strided_slice %207 {offsets = [0, 96], sizes = [2, 32], strides = [1, 1]} : vector<2x128xf32> to vector<2x32xf32>
    %223 = arith.negf %222 : vector<2x32xf32>
    %224 = math.exp %223 : vector<2x32xf32>
    %cst_40 = arith.constant 1.000000e+00 : f32
    %225 = vector.broadcast %cst_40 : f32 to vector<2x32xf32>
    %226 = arith.addf %225, %224 : vector<2x32xf32>
    %227 = arith.divf %225, %226 : vector<2x32xf32>
    %228 = arith.mulf %219, %202 : vector<2x32xf32>
    %229 = arith.mulf %213, %221 : vector<2x32xf32>
    %230 = arith.addf %228, %229 : vector<2x32xf32>
    %231 = math.tanh %230 : vector<2x32xf32>
    %232 = arith.mulf %227, %231 : vector<2x32xf32>
    %233 = tpu.concatenate %36, %64, %92, %120, %148, %176, %204, %232 in 0 : vector<2x32xf32>, vector<2x32xf32>, vector<2x32xf32>, vector<2x32xf32>, vector<2x32xf32>, vector<2x32xf32>, vector<2x32xf32>, vector<2x32xf32> -> vector<16x32xf32>
    %234 = tpu.concatenate %233, %0 in 1 : vector<16x32xf32>, vector<16x20xf32> -> vector<16x52xf32>
    %cst_41 = arith.constant 0.000000e+00 : f32
    %235 = vector.broadcast %cst_41 : f32 to vector<16x52xf32>
    %236 = arith.maximumf %234, %235 : vector<16x52xf32>
    %c0_42 = arith.constant 0 : index
    %c0_43 = arith.constant 0 : index
    %237 = vector.load %arg6[%c0_42, %c0_43] : memref<32x128xf32, #tpu.memory_space<vmem>>, vector<32x128xf32>
    %c0_44 = arith.constant 0 : index
    %c0_45 = arith.constant 0 : index
    %238 = vector.load %arg5[%c0_44, %c0_45] : memref<52x128xf32, #tpu.memory_space<vmem>>, vector<52x128xf32>
    %cst_46 = arith.constant dense<0.000000e+00> : vector<16x128xf32>
    %239 = tpu.matmul %236, %238, %cst_46 {dimension_numbers = #tpu.dot_dimension_numbers<[1], [0], [0], [1], [0, 0, 1, 1], [], []>} : vector<16x52xf32>, vector<52x128xf32>, vector<16x128xf32> -> vector<16x128xf32>
    %c0_47 = arith.constant 0 : index
    %c0_48 = arith.constant 0 : index
    %240 = vector.load %arg7[%c0_47, %c0_48] : memref<1x128xf32, #tpu.memory_space<vmem>>, vector<1x128xf32>
    %241 = vector.broadcast %240 : vector<1x128xf32> to vector<16x128xf32>
    %242 = arith.addf %239, %241 : vector<16x128xf32>
    %cst_49 = arith.constant 0.000000e+00 : f32
    %243 = vector.broadcast %cst_49 : f32 to vector<2x32xf32>
    %cst_50 = arith.constant 0.000000e+00 : f32
    %244 = vector.broadcast %cst_50 : f32 to vector<2x32xf32>
    %245 = vector.extract_strided_slice %242 {offsets = [0, 0], sizes = [2, 128], strides = [1, 1]} : vector<16x128xf32> to vector<2x128xf32>
    %cst_51 = arith.constant dense<0.000000e+00> : vector<2x128xf32>
    %246 = tpu.matmul %243, %237, %cst_51 {dimension_numbers = #tpu.dot_dimension_numbers<[1], [0], [0], [1], [0, 0, 1, 1], [], []>} : vector<2x32xf32>, vector<32x128xf32>, vector<2x128xf32> -> vector<2x128xf32>
    %247 = arith.addf %245, %246 : vector<2x128xf32>
    %248 = vector.extract_strided_slice %247 {offsets = [0, 0], sizes = [2, 32], strides = [1, 1]} : vector<2x128xf32> to vector<2x32xf32>
    %249 = arith.negf %248 : vector<2x32xf32>
    %250 = math.exp %249 : vector<2x32xf32>
    %cst_52 = arith.constant 1.000000e+00 : f32
    %251 = vector.broadcast %cst_52 : f32 to vector<2x32xf32>
    %252 = arith.addf %251, %250 : vector<2x32xf32>
    %253 = arith.divf %251, %252 : vector<2x32xf32>
    %254 = vector.extract_strided_slice %247 {offsets = [0, 32], sizes = [2, 32], strides = [1, 1]} : vector<2x128xf32> to vector<2x32xf32>
    %255 = arith.negf %254 : vector<2x32xf32>
    %256 = math.exp %255 : vector<2x32xf32>
    %cst_53 = arith.constant 1.000000e+00 : f32
    %257 = vector.broadcast %cst_53 : f32 to vector<2x32xf32>
    %258 = arith.addf %257, %256 : vector<2x32xf32>
    %259 = arith.divf %257, %258 : vector<2x32xf32>
    %260 = vector.extract_strided_slice %247 {offsets = [0, 64], sizes = [2, 32], strides = [1, 1]} : vector<2x128xf32> to vector<2x32xf32>
    %261 = math.tanh %260 : vector<2x32xf32>
    %262 = vector.extract_strided_slice %247 {offsets = [0, 96], sizes = [2, 32], strides = [1, 1]} : vector<2x128xf32> to vector<2x32xf32>
    %263 = arith.negf %262 : vector<2x32xf32>
    %264 = math.exp %263 : vector<2x32xf32>
    %cst_54 = arith.constant 1.000000e+00 : f32
    %265 = vector.broadcast %cst_54 : f32 to vector<2x32xf32>
    %266 = arith.addf %265, %264 : vector<2x32xf32>
    %267 = arith.divf %265, %266 : vector<2x32xf32>
    %268 = arith.mulf %259, %244 : vector<2x32xf32>
    %269 = arith.mulf %253, %261 : vector<2x32xf32>
    %270 = arith.addf %268, %269 : vector<2x32xf32>
    %271 = math.tanh %270 : vector<2x32xf32>
    %272 = arith.mulf %267, %271 : vector<2x32xf32>
    %273 = vector.extract_strided_slice %242 {offsets = [2, 0], sizes = [2, 128], strides = [1, 1]} : vector<16x128xf32> to vector<2x128xf32>
    %cst_55 = arith.constant dense<0.000000e+00> : vector<2x128xf32>
    %274 = tpu.matmul %272, %237, %cst_55 {dimension_numbers = #tpu.dot_dimension_numbers<[1], [0], [0], [1], [0, 0, 1, 1], [], []>} : vector<2x32xf32>, vector<32x128xf32>, vector<2x128xf32> -> vector<2x128xf32>
    %275 = arith.addf %273, %274 : vector<2x128xf32>
    %276 = vector.extract_strided_slice %275 {offsets = [0, 0], sizes = [2, 32], strides = [1, 1]} : vector<2x128xf32> to vector<2x32xf32>
    %277 = arith.negf %276 : vector<2x32xf32>
    %278 = math.exp %277 : vector<2x32xf32>
    %cst_56 = arith.constant 1.000000e+00 : f32
    %279 = vector.broadcast %cst_56 : f32 to vector<2x32xf32>
    %280 = arith.addf %279, %278 : vector<2x32xf32>
    %281 = arith.divf %279, %280 : vector<2x32xf32>
    %282 = vector.extract_strided_slice %275 {offsets = [0, 32], sizes = [2, 32], strides = [1, 1]} : vector<2x128xf32> to vector<2x32xf32>
    %283 = arith.negf %282 : vector<2x32xf32>
    %284 = math.exp %283 : vector<2x32xf32>
    %cst_57 = arith.constant 1.000000e+00 : f32
    %285 = vector.broadcast %cst_57 : f32 to vector<2x32xf32>
    %286 = arith.addf %285, %284 : vector<2x32xf32>
    %287 = arith.divf %285, %286 : vector<2x32xf32>
    %288 = vector.extract_strided_slice %275 {offsets = [0, 64], sizes = [2, 32], strides = [1, 1]} : vector<2x128xf32> to vector<2x32xf32>
    %289 = math.tanh %288 : vector<2x32xf32>
    %290 = vector.extract_strided_slice %275 {offsets = [0, 96], sizes = [2, 32], strides = [1, 1]} : vector<2x128xf32> to vector<2x32xf32>
    %291 = arith.negf %290 : vector<2x32xf32>
    %292 = math.exp %291 : vector<2x32xf32>
    %cst_58 = arith.constant 1.000000e+00 : f32
    %293 = vector.broadcast %cst_58 : f32 to vector<2x32xf32>
    %294 = arith.addf %293, %292 : vector<2x32xf32>
    %295 = arith.divf %293, %294 : vector<2x32xf32>
    %296 = arith.mulf %287, %270 : vector<2x32xf32>
    %297 = arith.mulf %281, %289 : vector<2x32xf32>
    %298 = arith.addf %296, %297 : vector<2x32xf32>
    %299 = math.tanh %298 : vector<2x32xf32>
    %300 = arith.mulf %295, %299 : vector<2x32xf32>
    %301 = vector.extract_strided_slice %242 {offsets = [4, 0], sizes = [2, 128], strides = [1, 1]} : vector<16x128xf32> to vector<2x128xf32>
    %cst_59 = arith.constant dense<0.000000e+00> : vector<2x128xf32>
    %302 = tpu.matmul %300, %237, %cst_59 {dimension_numbers = #tpu.dot_dimension_numbers<[1], [0], [0], [1], [0, 0, 1, 1], [], []>} : vector<2x32xf32>, vector<32x128xf32>, vector<2x128xf32> -> vector<2x128xf32>
    %303 = arith.addf %301, %302 : vector<2x128xf32>
    %304 = vector.extract_strided_slice %303 {offsets = [0, 0], sizes = [2, 32], strides = [1, 1]} : vector<2x128xf32> to vector<2x32xf32>
    %305 = arith.negf %304 : vector<2x32xf32>
    %306 = math.exp %305 : vector<2x32xf32>
    %cst_60 = arith.constant 1.000000e+00 : f32
    %307 = vector.broadcast %cst_60 : f32 to vector<2x32xf32>
    %308 = arith.addf %307, %306 : vector<2x32xf32>
    %309 = arith.divf %307, %308 : vector<2x32xf32>
    %310 = vector.extract_strided_slice %303 {offsets = [0, 32], sizes = [2, 32], strides = [1, 1]} : vector<2x128xf32> to vector<2x32xf32>
    %311 = arith.negf %310 : vector<2x32xf32>
    %312 = math.exp %311 : vector<2x32xf32>
    %cst_61 = arith.constant 1.000000e+00 : f32
    %313 = vector.broadcast %cst_61 : f32 to vector<2x32xf32>
    %314 = arith.addf %313, %312 : vector<2x32xf32>
    %315 = arith.divf %313, %314 : vector<2x32xf32>
    %316 = vector.extract_strided_slice %303 {offsets = [0, 64], sizes = [2, 32], strides = [1, 1]} : vector<2x128xf32> to vector<2x32xf32>
    %317 = math.tanh %316 : vector<2x32xf32>
    %318 = vector.extract_strided_slice %303 {offsets = [0, 96], sizes = [2, 32], strides = [1, 1]} : vector<2x128xf32> to vector<2x32xf32>
    %319 = arith.negf %318 : vector<2x32xf32>
    %320 = math.exp %319 : vector<2x32xf32>
    %cst_62 = arith.constant 1.000000e+00 : f32
    %321 = vector.broadcast %cst_62 : f32 to vector<2x32xf32>
    %322 = arith.addf %321, %320 : vector<2x32xf32>
    %323 = arith.divf %321, %322 : vector<2x32xf32>
    %324 = arith.mulf %315, %298 : vector<2x32xf32>
    %325 = arith.mulf %309, %317 : vector<2x32xf32>
    %326 = arith.addf %324, %325 : vector<2x32xf32>
    %327 = math.tanh %326 : vector<2x32xf32>
    %328 = arith.mulf %323, %327 : vector<2x32xf32>
    %329 = vector.extract_strided_slice %242 {offsets = [6, 0], sizes = [2, 128], strides = [1, 1]} : vector<16x128xf32> to vector<2x128xf32>
    %cst_63 = arith.constant dense<0.000000e+00> : vector<2x128xf32>
    %330 = tpu.matmul %328, %237, %cst_63 {dimension_numbers = #tpu.dot_dimension_numbers<[1], [0], [0], [1], [0, 0, 1, 1], [], []>} : vector<2x32xf32>, vector<32x128xf32>, vector<2x128xf32> -> vector<2x128xf32>
    %331 = arith.addf %329, %330 : vector<2x128xf32>
    %332 = vector.extract_strided_slice %331 {offsets = [0, 0], sizes = [2, 32], strides = [1, 1]} : vector<2x128xf32> to vector<2x32xf32>
    %333 = arith.negf %332 : vector<2x32xf32>
    %334 = math.exp %333 : vector<2x32xf32>
    %cst_64 = arith.constant 1.000000e+00 : f32
    %335 = vector.broadcast %cst_64 : f32 to vector<2x32xf32>
    %336 = arith.addf %335, %334 : vector<2x32xf32>
    %337 = arith.divf %335, %336 : vector<2x32xf32>
    %338 = vector.extract_strided_slice %331 {offsets = [0, 32], sizes = [2, 32], strides = [1, 1]} : vector<2x128xf32> to vector<2x32xf32>
    %339 = arith.negf %338 : vector<2x32xf32>
    %340 = math.exp %339 : vector<2x32xf32>
    %cst_65 = arith.constant 1.000000e+00 : f32
    %341 = vector.broadcast %cst_65 : f32 to vector<2x32xf32>
    %342 = arith.addf %341, %340 : vector<2x32xf32>
    %343 = arith.divf %341, %342 : vector<2x32xf32>
    %344 = vector.extract_strided_slice %331 {offsets = [0, 64], sizes = [2, 32], strides = [1, 1]} : vector<2x128xf32> to vector<2x32xf32>
    %345 = math.tanh %344 : vector<2x32xf32>
    %346 = vector.extract_strided_slice %331 {offsets = [0, 96], sizes = [2, 32], strides = [1, 1]} : vector<2x128xf32> to vector<2x32xf32>
    %347 = arith.negf %346 : vector<2x32xf32>
    %348 = math.exp %347 : vector<2x32xf32>
    %cst_66 = arith.constant 1.000000e+00 : f32
    %349 = vector.broadcast %cst_66 : f32 to vector<2x32xf32>
    %350 = arith.addf %349, %348 : vector<2x32xf32>
    %351 = arith.divf %349, %350 : vector<2x32xf32>
    %352 = arith.mulf %343, %326 : vector<2x32xf32>
    %353 = arith.mulf %337, %345 : vector<2x32xf32>
    %354 = arith.addf %352, %353 : vector<2x32xf32>
    %355 = math.tanh %354 : vector<2x32xf32>
    %356 = arith.mulf %351, %355 : vector<2x32xf32>
    %357 = vector.extract_strided_slice %242 {offsets = [8, 0], sizes = [2, 128], strides = [1, 1]} : vector<16x128xf32> to vector<2x128xf32>
    %cst_67 = arith.constant dense<0.000000e+00> : vector<2x128xf32>
    %358 = tpu.matmul %356, %237, %cst_67 {dimension_numbers = #tpu.dot_dimension_numbers<[1], [0], [0], [1], [0, 0, 1, 1], [], []>} : vector<2x32xf32>, vector<32x128xf32>, vector<2x128xf32> -> vector<2x128xf32>
    %359 = arith.addf %357, %358 : vector<2x128xf32>
    %360 = vector.extract_strided_slice %359 {offsets = [0, 0], sizes = [2, 32], strides = [1, 1]} : vector<2x128xf32> to vector<2x32xf32>
    %361 = arith.negf %360 : vector<2x32xf32>
    %362 = math.exp %361 : vector<2x32xf32>
    %cst_68 = arith.constant 1.000000e+00 : f32
    %363 = vector.broadcast %cst_68 : f32 to vector<2x32xf32>
    %364 = arith.addf %363, %362 : vector<2x32xf32>
    %365 = arith.divf %363, %364 : vector<2x32xf32>
    %366 = vector.extract_strided_slice %359 {offsets = [0, 32], sizes = [2, 32], strides = [1, 1]} : vector<2x128xf32> to vector<2x32xf32>
    %367 = arith.negf %366 : vector<2x32xf32>
    %368 = math.exp %367 : vector<2x32xf32>
    %cst_69 = arith.constant 1.000000e+00 : f32
    %369 = vector.broadcast %cst_69 : f32 to vector<2x32xf32>
    %370 = arith.addf %369, %368 : vector<2x32xf32>
    %371 = arith.divf %369, %370 : vector<2x32xf32>
    %372 = vector.extract_strided_slice %359 {offsets = [0, 64], sizes = [2, 32], strides = [1, 1]} : vector<2x128xf32> to vector<2x32xf32>
    %373 = math.tanh %372 : vector<2x32xf32>
    %374 = vector.extract_strided_slice %359 {offsets = [0, 96], sizes = [2, 32], strides = [1, 1]} : vector<2x128xf32> to vector<2x32xf32>
    %375 = arith.negf %374 : vector<2x32xf32>
    %376 = math.exp %375 : vector<2x32xf32>
    %cst_70 = arith.constant 1.000000e+00 : f32
    %377 = vector.broadcast %cst_70 : f32 to vector<2x32xf32>
    %378 = arith.addf %377, %376 : vector<2x32xf32>
    %379 = arith.divf %377, %378 : vector<2x32xf32>
    %380 = arith.mulf %371, %354 : vector<2x32xf32>
    %381 = arith.mulf %365, %373 : vector<2x32xf32>
    %382 = arith.addf %380, %381 : vector<2x32xf32>
    %383 = math.tanh %382 : vector<2x32xf32>
    %384 = arith.mulf %379, %383 : vector<2x32xf32>
    %385 = vector.extract_strided_slice %242 {offsets = [10, 0], sizes = [2, 128], strides = [1, 1]} : vector<16x128xf32> to vector<2x128xf32>
    %cst_71 = arith.constant dense<0.000000e+00> : vector<2x128xf32>
    %386 = tpu.matmul %384, %237, %cst_71 {dimension_numbers = #tpu.dot_dimension_numbers<[1], [0], [0], [1], [0, 0, 1, 1], [], []>} : vector<2x32xf32>, vector<32x128xf32>, vector<2x128xf32> -> vector<2x128xf32>
    %387 = arith.addf %385, %386 : vector<2x128xf32>
    %388 = vector.extract_strided_slice %387 {offsets = [0, 0], sizes = [2, 32], strides = [1, 1]} : vector<2x128xf32> to vector<2x32xf32>
    %389 = arith.negf %388 : vector<2x32xf32>
    %390 = math.exp %389 : vector<2x32xf32>
    %cst_72 = arith.constant 1.000000e+00 : f32
    %391 = vector.broadcast %cst_72 : f32 to vector<2x32xf32>
    %392 = arith.addf %391, %390 : vector<2x32xf32>
    %393 = arith.divf %391, %392 : vector<2x32xf32>
    %394 = vector.extract_strided_slice %387 {offsets = [0, 32], sizes = [2, 32], strides = [1, 1]} : vector<2x128xf32> to vector<2x32xf32>
    %395 = arith.negf %394 : vector<2x32xf32>
    %396 = math.exp %395 : vector<2x32xf32>
    %cst_73 = arith.constant 1.000000e+00 : f32
    %397 = vector.broadcast %cst_73 : f32 to vector<2x32xf32>
    %398 = arith.addf %397, %396 : vector<2x32xf32>
    %399 = arith.divf %397, %398 : vector<2x32xf32>
    %400 = vector.extract_strided_slice %387 {offsets = [0, 64], sizes = [2, 32], strides = [1, 1]} : vector<2x128xf32> to vector<2x32xf32>
    %401 = math.tanh %400 : vector<2x32xf32>
    %402 = vector.extract_strided_slice %387 {offsets = [0, 96], sizes = [2, 32], strides = [1, 1]} : vector<2x128xf32> to vector<2x32xf32>
    %403 = arith.negf %402 : vector<2x32xf32>
    %404 = math.exp %403 : vector<2x32xf32>
    %cst_74 = arith.constant 1.000000e+00 : f32
    %405 = vector.broadcast %cst_74 : f32 to vector<2x32xf32>
    %406 = arith.addf %405, %404 : vector<2x32xf32>
    %407 = arith.divf %405, %406 : vector<2x32xf32>
    %408 = arith.mulf %399, %382 : vector<2x32xf32>
    %409 = arith.mulf %393, %401 : vector<2x32xf32>
    %410 = arith.addf %408, %409 : vector<2x32xf32>
    %411 = math.tanh %410 : vector<2x32xf32>
    %412 = arith.mulf %407, %411 : vector<2x32xf32>
    %413 = vector.extract_strided_slice %242 {offsets = [12, 0], sizes = [2, 128], strides = [1, 1]} : vector<16x128xf32> to vector<2x128xf32>
    %cst_75 = arith.constant dense<0.000000e+00> : vector<2x128xf32>
    %414 = tpu.matmul %412, %237, %cst_75 {dimension_numbers = #tpu.dot_dimension_numbers<[1], [0], [0], [1], [0, 0, 1, 1], [], []>} : vector<2x32xf32>, vector<32x128xf32>, vector<2x128xf32> -> vector<2x128xf32>
    %415 = arith.addf %413, %414 : vector<2x128xf32>
    %416 = vector.extract_strided_slice %415 {offsets = [0, 0], sizes = [2, 32], strides = [1, 1]} : vector<2x128xf32> to vector<2x32xf32>
    %417 = arith.negf %416 : vector<2x32xf32>
    %418 = math.exp %417 : vector<2x32xf32>
    %cst_76 = arith.constant 1.000000e+00 : f32
    %419 = vector.broadcast %cst_76 : f32 to vector<2x32xf32>
    %420 = arith.addf %419, %418 : vector<2x32xf32>
    %421 = arith.divf %419, %420 : vector<2x32xf32>
    %422 = vector.extract_strided_slice %415 {offsets = [0, 32], sizes = [2, 32], strides = [1, 1]} : vector<2x128xf32> to vector<2x32xf32>
    %423 = arith.negf %422 : vector<2x32xf32>
    %424 = math.exp %423 : vector<2x32xf32>
    %cst_77 = arith.constant 1.000000e+00 : f32
    %425 = vector.broadcast %cst_77 : f32 to vector<2x32xf32>
    %426 = arith.addf %425, %424 : vector<2x32xf32>
    %427 = arith.divf %425, %426 : vector<2x32xf32>
    %428 = vector.extract_strided_slice %415 {offsets = [0, 64], sizes = [2, 32], strides = [1, 1]} : vector<2x128xf32> to vector<2x32xf32>
    %429 = math.tanh %428 : vector<2x32xf32>
    %430 = vector.extract_strided_slice %415 {offsets = [0, 96], sizes = [2, 32], strides = [1, 1]} : vector<2x128xf32> to vector<2x32xf32>
    %431 = arith.negf %430 : vector<2x32xf32>
    %432 = math.exp %431 : vector<2x32xf32>
    %cst_78 = arith.constant 1.000000e+00 : f32
    %433 = vector.broadcast %cst_78 : f32 to vector<2x32xf32>
    %434 = arith.addf %433, %432 : vector<2x32xf32>
    %435 = arith.divf %433, %434 : vector<2x32xf32>
    %436 = arith.mulf %427, %410 : vector<2x32xf32>
    %437 = arith.mulf %421, %429 : vector<2x32xf32>
    %438 = arith.addf %436, %437 : vector<2x32xf32>
    %439 = math.tanh %438 : vector<2x32xf32>
    %440 = arith.mulf %435, %439 : vector<2x32xf32>
    %441 = vector.extract_strided_slice %242 {offsets = [14, 0], sizes = [2, 128], strides = [1, 1]} : vector<16x128xf32> to vector<2x128xf32>
    %cst_79 = arith.constant dense<0.000000e+00> : vector<2x128xf32>
    %442 = tpu.matmul %440, %237, %cst_79 {dimension_numbers = #tpu.dot_dimension_numbers<[1], [0], [0], [1], [0, 0, 1, 1], [], []>} : vector<2x32xf32>, vector<32x128xf32>, vector<2x128xf32> -> vector<2x128xf32>
    %443 = arith.addf %441, %442 : vector<2x128xf32>
    %444 = vector.extract_strided_slice %443 {offsets = [0, 0], sizes = [2, 32], strides = [1, 1]} : vector<2x128xf32> to vector<2x32xf32>
    %445 = arith.negf %444 : vector<2x32xf32>
    %446 = math.exp %445 : vector<2x32xf32>
    %cst_80 = arith.constant 1.000000e+00 : f32
    %447 = vector.broadcast %cst_80 : f32 to vector<2x32xf32>
    %448 = arith.addf %447, %446 : vector<2x32xf32>
    %449 = arith.divf %447, %448 : vector<2x32xf32>
    %450 = vector.extract_strided_slice %443 {offsets = [0, 32], sizes = [2, 32], strides = [1, 1]} : vector<2x128xf32> to vector<2x32xf32>
    %451 = arith.negf %450 : vector<2x32xf32>
    %452 = math.exp %451 : vector<2x32xf32>
    %cst_81 = arith.constant 1.000000e+00 : f32
    %453 = vector.broadcast %cst_81 : f32 to vector<2x32xf32>
    %454 = arith.addf %453, %452 : vector<2x32xf32>
    %455 = arith.divf %453, %454 : vector<2x32xf32>
    %456 = vector.extract_strided_slice %443 {offsets = [0, 64], sizes = [2, 32], strides = [1, 1]} : vector<2x128xf32> to vector<2x32xf32>
    %457 = math.tanh %456 : vector<2x32xf32>
    %458 = vector.extract_strided_slice %443 {offsets = [0, 96], sizes = [2, 32], strides = [1, 1]} : vector<2x128xf32> to vector<2x32xf32>
    %459 = arith.negf %458 : vector<2x32xf32>
    %460 = math.exp %459 : vector<2x32xf32>
    %cst_82 = arith.constant 1.000000e+00 : f32
    %461 = vector.broadcast %cst_82 : f32 to vector<2x32xf32>
    %462 = arith.addf %461, %460 : vector<2x32xf32>
    %463 = arith.divf %461, %462 : vector<2x32xf32>
    %464 = arith.mulf %455, %438 : vector<2x32xf32>
    %465 = arith.mulf %449, %457 : vector<2x32xf32>
    %466 = arith.addf %464, %465 : vector<2x32xf32>
    %467 = math.tanh %466 : vector<2x32xf32>
    %468 = arith.mulf %463, %467 : vector<2x32xf32>
    %469 = tpu.concatenate %272, %300, %328, %356, %384, %412, %440, %468 in 0 : vector<2x32xf32>, vector<2x32xf32>, vector<2x32xf32>, vector<2x32xf32>, vector<2x32xf32>, vector<2x32xf32>, vector<2x32xf32>, vector<2x32xf32> -> vector<16x32xf32>
    %470 = tpu.concatenate %469, %236 in 1 : vector<16x32xf32>, vector<16x52xf32> -> vector<16x84xf32>
    %cst_83 = arith.constant 0.000000e+00 : f32
    %471 = vector.broadcast %cst_83 : f32 to vector<16x84xf32>
    %472 = arith.maximumf %470, %471 : vector<16x84xf32>
    %c0_84 = arith.constant 0 : index
    %c0_85 = arith.constant 0 : index
    %473 = vector.load %arg8[%c0_84, %c0_85] : memref<84x32xf32, #tpu.memory_space<vmem>>, vector<84x32xf32>
    %cst_86 = arith.constant dense<0.000000e+00> : vector<16x32xf32>
    %474 = tpu.matmul %472, %473, %cst_86 {dimension_numbers = #tpu.dot_dimension_numbers<[1], [0], [0], [1], [0, 0, 1, 1], [], []>} : vector<16x84xf32>, vector<84x32xf32>, vector<16x32xf32> -> vector<16x32xf32>
    %c0_87 = arith.constant 0 : index
    %c0_88 = arith.constant 0 : index
    %475 = vector.load %arg9[%c0_87, %c0_88] : memref<1x32xf32, #tpu.memory_space<vmem>>, vector<1x32xf32>
    %476 = vector.broadcast %475 : vector<1x32xf32> to vector<16x32xf32>
    %477 = arith.addf %474, %476 : vector<16x32xf32>
    %cst_89 = arith.constant 0.000000e+00 : f32
    %478 = vector.broadcast %cst_89 : f32 to vector<16x32xf32>
    %479 = arith.maximumf %477, %478 : vector<16x32xf32>
    %c0_90 = arith.constant 0 : index
    %c0_91 = arith.constant 0 : index
    %480 = vector.load %arg1[%c0_90, %c0_91] : memref<16x16xf32, #tpu.memory_space<vmem>>, vector<16x16xf32>
    %c0_92 = arith.constant 0 : index
    %c0_93 = arith.constant 0 : index
    %481 = vector.load %arg10[%c0_92, %c0_93] : memref<32x96xf32, #tpu.memory_space<vmem>>, vector<32x96xf32>
    %cst_94 = arith.constant dense<0.000000e+00> : vector<16x96xf32>
    %482 = tpu.matmul %479, %481, %cst_94 {dimension_numbers = #tpu.dot_dimension_numbers<[1], [0], [0], [1], [0, 0, 1, 1], [], []>} : vector<16x32xf32>, vector<32x96xf32>, vector<16x96xf32> -> vector<16x96xf32>
    %c0_95 = arith.constant 0 : index
    %c0_96 = arith.constant 0 : index
    %483 = vector.load %arg11[%c0_95, %c0_96] : memref<1x96xf32, #tpu.memory_space<vmem>>, vector<1x96xf32>
    %484 = vector.broadcast %483 : vector<1x96xf32> to vector<16x96xf32>
    %485 = arith.addf %482, %484 : vector<16x96xf32>
    %486 = vector.extract_strided_slice %485 {offsets = [0, 0], sizes = [16, 32], strides = [1, 1]} : vector<16x96xf32> to vector<16x32xf32>
    %487 = vector.extract_strided_slice %485 {offsets = [0, 32], sizes = [16, 32], strides = [1, 1]} : vector<16x96xf32> to vector<16x32xf32>
    %488 = vector.extract_strided_slice %485 {offsets = [0, 64], sizes = [16, 32], strides = [1, 1]} : vector<16x96xf32> to vector<16x32xf32>
    %489 = vector.extract_strided_slice %486 {offsets = [0, 0], sizes = [16, 8], strides = [1, 1]} : vector<16x32xf32> to vector<16x8xf32>
    %490 = vector.extract_strided_slice %487 {offsets = [0, 0], sizes = [16, 8], strides = [1, 1]} : vector<16x32xf32> to vector<16x8xf32>
    %491 = vector.extract_strided_slice %488 {offsets = [0, 0], sizes = [16, 8], strides = [1, 1]} : vector<16x32xf32> to vector<16x8xf32>
    %cst_97 = arith.constant dense<0.000000e+00> : vector<16x16xf32>
    %492 = tpu.matmul %489, %490, %cst_97 {dimension_numbers = #tpu.dot_dimension_numbers<[1], [1], [0], [0], [0, 0, 1, 0], [], []>} : vector<16x8xf32>, vector<16x8xf32>, vector<16x16xf32> -> vector<16x16xf32>
    %cst_98 = arith.constant 0.353553385 : f32
    %493 = vector.broadcast %cst_98 : f32 to vector<16x16xf32>
    %494 = arith.mulf %492, %493 : vector<16x16xf32>
    %495 = arith.addf %494, %480 : vector<16x16xf32>
    %cst_99 = arith.constant dense<0xFF800000> : vector<16xf32>
    %496 = vector.multi_reduction <maximumf>, %495, %cst_99 [1] : vector<16x16xf32> to vector<16xf32>
    %497 = vector.shape_cast %496 : vector<16xf32> to vector<16x1xf32>
    %498 = vector.broadcast %497 : vector<16x1xf32> to vector<16x16xf32>
    %499 = arith.subf %495, %498 : vector<16x16xf32>
    %500 = math.exp %499 : vector<16x16xf32>
    %cst_100 = arith.constant dense<0.000000e+00> : vector<16xf32>
    %501 = vector.multi_reduction <add>, %500, %cst_100 [1] : vector<16x16xf32> to vector<16xf32>
    %502 = vector.shape_cast %501 : vector<16xf32> to vector<16x1xf32>
    %503 = tpu.reciprocal %502 {approx = true} : vector<16x1xf32> -> vector<16x1xf32>
    %504 = vector.broadcast %503 : vector<16x1xf32> to vector<16x16xf32>
    %505 = arith.mulf %500, %504 : vector<16x16xf32>
    %cst_101 = arith.constant dense<0.000000e+00> : vector<16x8xf32>
    %506 = tpu.matmul %505, %491, %cst_101 {dimension_numbers = #tpu.dot_dimension_numbers<[1], [0], [0], [1], [0, 0, 1, 1], [], []>} : vector<16x16xf32>, vector<16x8xf32>, vector<16x8xf32> -> vector<16x8xf32>
    %507 = vector.extract_strided_slice %486 {offsets = [0, 8], sizes = [16, 8], strides = [1, 1]} : vector<16x32xf32> to vector<16x8xf32>
    %508 = vector.extract_strided_slice %487 {offsets = [0, 8], sizes = [16, 8], strides = [1, 1]} : vector<16x32xf32> to vector<16x8xf32>
    %509 = vector.extract_strided_slice %488 {offsets = [0, 8], sizes = [16, 8], strides = [1, 1]} : vector<16x32xf32> to vector<16x8xf32>
    %cst_102 = arith.constant dense<0.000000e+00> : vector<16x16xf32>
    %510 = tpu.matmul %507, %508, %cst_102 {dimension_numbers = #tpu.dot_dimension_numbers<[1], [1], [0], [0], [0, 0, 1, 0], [], []>} : vector<16x8xf32>, vector<16x8xf32>, vector<16x16xf32> -> vector<16x16xf32>
    %cst_103 = arith.constant 0.353553385 : f32
    %511 = vector.broadcast %cst_103 : f32 to vector<16x16xf32>
    %512 = arith.mulf %510, %511 : vector<16x16xf32>
    %513 = arith.addf %512, %480 : vector<16x16xf32>
    %cst_104 = arith.constant dense<0xFF800000> : vector<16xf32>
    %514 = vector.multi_reduction <maximumf>, %513, %cst_104 [1] : vector<16x16xf32> to vector<16xf32>
    %515 = vector.shape_cast %514 : vector<16xf32> to vector<16x1xf32>
    %516 = vector.broadcast %515 : vector<16x1xf32> to vector<16x16xf32>
    %517 = arith.subf %513, %516 : vector<16x16xf32>
    %518 = math.exp %517 : vector<16x16xf32>
    %cst_105 = arith.constant dense<0.000000e+00> : vector<16xf32>
    %519 = vector.multi_reduction <add>, %518, %cst_105 [1] : vector<16x16xf32> to vector<16xf32>
    %520 = vector.shape_cast %519 : vector<16xf32> to vector<16x1xf32>
    %521 = tpu.reciprocal %520 {approx = true} : vector<16x1xf32> -> vector<16x1xf32>
    %522 = vector.broadcast %521 : vector<16x1xf32> to vector<16x16xf32>
    %523 = arith.mulf %518, %522 : vector<16x16xf32>
    %cst_106 = arith.constant dense<0.000000e+00> : vector<16x8xf32>
    %524 = tpu.matmul %523, %509, %cst_106 {dimension_numbers = #tpu.dot_dimension_numbers<[1], [0], [0], [1], [0, 0, 1, 1], [], []>} : vector<16x16xf32>, vector<16x8xf32>, vector<16x8xf32> -> vector<16x8xf32>
    %525 = vector.extract_strided_slice %486 {offsets = [0, 16], sizes = [16, 8], strides = [1, 1]} : vector<16x32xf32> to vector<16x8xf32>
    %526 = vector.extract_strided_slice %487 {offsets = [0, 16], sizes = [16, 8], strides = [1, 1]} : vector<16x32xf32> to vector<16x8xf32>
    %527 = vector.extract_strided_slice %488 {offsets = [0, 16], sizes = [16, 8], strides = [1, 1]} : vector<16x32xf32> to vector<16x8xf32>
    %cst_107 = arith.constant dense<0.000000e+00> : vector<16x16xf32>
    %528 = tpu.matmul %525, %526, %cst_107 {dimension_numbers = #tpu.dot_dimension_numbers<[1], [1], [0], [0], [0, 0, 1, 0], [], []>} : vector<16x8xf32>, vector<16x8xf32>, vector<16x16xf32> -> vector<16x16xf32>
    %cst_108 = arith.constant 0.353553385 : f32
    %529 = vector.broadcast %cst_108 : f32 to vector<16x16xf32>
    %530 = arith.mulf %528, %529 : vector<16x16xf32>
    %531 = arith.addf %530, %480 : vector<16x16xf32>
    %cst_109 = arith.constant dense<0xFF800000> : vector<16xf32>
    %532 = vector.multi_reduction <maximumf>, %531, %cst_109 [1] : vector<16x16xf32> to vector<16xf32>
    %533 = vector.shape_cast %532 : vector<16xf32> to vector<16x1xf32>
    %534 = vector.broadcast %533 : vector<16x1xf32> to vector<16x16xf32>
    %535 = arith.subf %531, %534 : vector<16x16xf32>
    %536 = math.exp %535 : vector<16x16xf32>
    %cst_110 = arith.constant dense<0.000000e+00> : vector<16xf32>
    %537 = vector.multi_reduction <add>, %536, %cst_110 [1] : vector<16x16xf32> to vector<16xf32>
    %538 = vector.shape_cast %537 : vector<16xf32> to vector<16x1xf32>
    %539 = tpu.reciprocal %538 {approx = true} : vector<16x1xf32> -> vector<16x1xf32>
    %540 = vector.broadcast %539 : vector<16x1xf32> to vector<16x16xf32>
    %541 = arith.mulf %536, %540 : vector<16x16xf32>
    %cst_111 = arith.constant dense<0.000000e+00> : vector<16x8xf32>
    %542 = tpu.matmul %541, %527, %cst_111 {dimension_numbers = #tpu.dot_dimension_numbers<[1], [0], [0], [1], [0, 0, 1, 1], [], []>} : vector<16x16xf32>, vector<16x8xf32>, vector<16x8xf32> -> vector<16x8xf32>
    %543 = vector.extract_strided_slice %486 {offsets = [0, 24], sizes = [16, 8], strides = [1, 1]} : vector<16x32xf32> to vector<16x8xf32>
    %544 = vector.extract_strided_slice %487 {offsets = [0, 24], sizes = [16, 8], strides = [1, 1]} : vector<16x32xf32> to vector<16x8xf32>
    %545 = vector.extract_strided_slice %488 {offsets = [0, 24], sizes = [16, 8], strides = [1, 1]} : vector<16x32xf32> to vector<16x8xf32>
    %cst_112 = arith.constant dense<0.000000e+00> : vector<16x16xf32>
    %546 = tpu.matmul %543, %544, %cst_112 {dimension_numbers = #tpu.dot_dimension_numbers<[1], [1], [0], [0], [0, 0, 1, 0], [], []>} : vector<16x8xf32>, vector<16x8xf32>, vector<16x16xf32> -> vector<16x16xf32>
    %cst_113 = arith.constant 0.353553385 : f32
    %547 = vector.broadcast %cst_113 : f32 to vector<16x16xf32>
    %548 = arith.mulf %546, %547 : vector<16x16xf32>
    %549 = arith.addf %548, %480 : vector<16x16xf32>
    %cst_114 = arith.constant dense<0xFF800000> : vector<16xf32>
    %550 = vector.multi_reduction <maximumf>, %549, %cst_114 [1] : vector<16x16xf32> to vector<16xf32>
    %551 = vector.shape_cast %550 : vector<16xf32> to vector<16x1xf32>
    %552 = vector.broadcast %551 : vector<16x1xf32> to vector<16x16xf32>
    %553 = arith.subf %549, %552 : vector<16x16xf32>
    %554 = math.exp %553 : vector<16x16xf32>
    %cst_115 = arith.constant dense<0.000000e+00> : vector<16xf32>
    %555 = vector.multi_reduction <add>, %554, %cst_115 [1] : vector<16x16xf32> to vector<16xf32>
    %556 = vector.shape_cast %555 : vector<16xf32> to vector<16x1xf32>
    %557 = tpu.reciprocal %556 {approx = true} : vector<16x1xf32> -> vector<16x1xf32>
    %558 = vector.broadcast %557 : vector<16x1xf32> to vector<16x16xf32>
    %559 = arith.mulf %554, %558 : vector<16x16xf32>
    %cst_116 = arith.constant dense<0.000000e+00> : vector<16x8xf32>
    %560 = tpu.matmul %559, %545, %cst_116 {dimension_numbers = #tpu.dot_dimension_numbers<[1], [0], [0], [1], [0, 0, 1, 1], [], []>} : vector<16x16xf32>, vector<16x8xf32>, vector<16x8xf32> -> vector<16x8xf32>
    %561 = tpu.concatenate %506, %524, %542, %560 in 1 : vector<16x8xf32>, vector<16x8xf32>, vector<16x8xf32>, vector<16x8xf32> -> vector<16x32xf32>
    %c0_117 = arith.constant 0 : index
    %c0_118 = arith.constant 0 : index
    %562 = vector.load %arg12[%c0_117, %c0_118] : memref<32x32xf32, #tpu.memory_space<vmem>>, vector<32x32xf32>
    %cst_119 = arith.constant dense<0.000000e+00> : vector<16x32xf32>
    %563 = tpu.matmul %561, %562, %cst_119 {dimension_numbers = #tpu.dot_dimension_numbers<[1], [0], [0], [1], [0, 0, 1, 1], [], []>} : vector<16x32xf32>, vector<32x32xf32>, vector<16x32xf32> -> vector<16x32xf32>
    %c0_120 = arith.constant 0 : index
    %c0_121 = arith.constant 0 : index
    %564 = vector.load %arg13[%c0_120, %c0_121] : memref<1x32xf32, #tpu.memory_space<vmem>>, vector<1x32xf32>
    %565 = vector.broadcast %564 : vector<1x32xf32> to vector<16x32xf32>
    %566 = arith.addf %563, %565 : vector<16x32xf32>
    %567 = arith.addf %479, %566 : vector<16x32xf32>
    %cst_122 = arith.constant dense<0.000000e+00> : vector<16xf32>
    %568 = vector.multi_reduction <add>, %567, %cst_122 [1] : vector<16x32xf32> to vector<16xf32>
    %569 = vector.shape_cast %568 : vector<16xf32> to vector<16x1xf32>
    %cst_123 = arith.constant 3.200000e+01 : f32
    %570 = vector.broadcast %cst_123 : f32 to vector<16x1xf32>
    %571 = arith.divf %569, %570 : vector<16x1xf32>
    %572 = vector.broadcast %571 : vector<16x1xf32> to vector<16x32xf32>
    %573 = arith.subf %567, %572 : vector<16x32xf32>
    %574 = arith.mulf %573, %573 : vector<16x32xf32>
    %cst_124 = arith.constant dense<0.000000e+00> : vector<16xf32>
    %575 = vector.multi_reduction <add>, %574, %cst_124 [1] : vector<16x32xf32> to vector<16xf32>
    %576 = vector.shape_cast %575 : vector<16xf32> to vector<16x1xf32>
    %cst_125 = arith.constant 3.200000e+01 : f32
    %577 = vector.broadcast %cst_125 : f32 to vector<16x1xf32>
    %578 = arith.divf %576, %577 : vector<16x1xf32>
    %579 = vector.broadcast %571 : vector<16x1xf32> to vector<16x32xf32>
    %580 = arith.subf %567, %579 : vector<16x32xf32>
    %cst_126 = arith.constant 9.99999974E-6 : f32
    %581 = vector.broadcast %cst_126 : f32 to vector<16x1xf32>
    %582 = arith.addf %578, %581 : vector<16x1xf32>
    %583 = math.rsqrt %582 : vector<16x1xf32>
    %584 = vector.broadcast %583 : vector<16x1xf32> to vector<16x32xf32>
    %585 = arith.mulf %580, %584 : vector<16x32xf32>
    %c0_127 = arith.constant 0 : index
    %c0_128 = arith.constant 0 : index
    %586 = vector.load %arg14[%c0_127, %c0_128] : memref<1x32xf32, #tpu.memory_space<vmem>>, vector<1x32xf32>
    %587 = vector.broadcast %586 : vector<1x32xf32> to vector<16x32xf32>
    %588 = arith.mulf %585, %587 : vector<16x32xf32>
    %c0_129 = arith.constant 0 : index
    %c0_130 = arith.constant 0 : index
    %589 = vector.load %arg15[%c0_129, %c0_130] : memref<1x32xf32, #tpu.memory_space<vmem>>, vector<1x32xf32>
    %590 = vector.broadcast %589 : vector<1x32xf32> to vector<16x32xf32>
    %591 = arith.addf %588, %590 : vector<16x32xf32>
    %c0_131 = arith.constant 0 : index
    %c0_132 = arith.constant 0 : index
    %592 = vector.load %arg16[%c0_131, %c0_132] : memref<32x64xf32, #tpu.memory_space<vmem>>, vector<32x64xf32>
    %cst_133 = arith.constant dense<0.000000e+00> : vector<16x64xf32>
    %593 = tpu.matmul %591, %592, %cst_133 {dimension_numbers = #tpu.dot_dimension_numbers<[1], [0], [0], [1], [0, 0, 1, 1], [], []>} : vector<16x32xf32>, vector<32x64xf32>, vector<16x64xf32> -> vector<16x64xf32>
    %c0_134 = arith.constant 0 : index
    %c0_135 = arith.constant 0 : index
    %594 = vector.load %arg17[%c0_134, %c0_135] : memref<1x64xf32, #tpu.memory_space<vmem>>, vector<1x64xf32>
    %595 = vector.broadcast %594 : vector<1x64xf32> to vector<16x64xf32>
    %596 = arith.addf %593, %595 : vector<16x64xf32>
    %cst_136 = arith.constant 0.000000e+00 : f32
    %597 = vector.broadcast %cst_136 : f32 to vector<16x64xf32>
    %598 = arith.maximumf %596, %597 : vector<16x64xf32>
    %c0_137 = arith.constant 0 : index
    %c0_138 = arith.constant 0 : index
    %599 = vector.load %arg18[%c0_137, %c0_138] : memref<64x32xf32, #tpu.memory_space<vmem>>, vector<64x32xf32>
    %cst_139 = arith.constant dense<0.000000e+00> : vector<16x32xf32>
    %600 = tpu.matmul %598, %599, %cst_139 {dimension_numbers = #tpu.dot_dimension_numbers<[1], [0], [0], [1], [0, 0, 1, 1], [], []>} : vector<16x64xf32>, vector<64x32xf32>, vector<16x32xf32> -> vector<16x32xf32>
    %c0_140 = arith.constant 0 : index
    %c0_141 = arith.constant 0 : index
    %601 = vector.load %arg19[%c0_140, %c0_141] : memref<1x32xf32, #tpu.memory_space<vmem>>, vector<1x32xf32>
    %602 = vector.broadcast %601 : vector<1x32xf32> to vector<16x32xf32>
    %603 = arith.addf %600, %602 : vector<16x32xf32>
    %604 = arith.addf %591, %603 : vector<16x32xf32>
    %cst_142 = arith.constant dense<0.000000e+00> : vector<16xf32>
    %605 = vector.multi_reduction <add>, %604, %cst_142 [1] : vector<16x32xf32> to vector<16xf32>
    %606 = vector.shape_cast %605 : vector<16xf32> to vector<16x1xf32>
    %cst_143 = arith.constant 3.200000e+01 : f32
    %607 = vector.broadcast %cst_143 : f32 to vector<16x1xf32>
    %608 = arith.divf %606, %607 : vector<16x1xf32>
    %609 = vector.broadcast %608 : vector<16x1xf32> to vector<16x32xf32>
    %610 = arith.subf %604, %609 : vector<16x32xf32>
    %611 = arith.mulf %610, %610 : vector<16x32xf32>
    %cst_144 = arith.constant dense<0.000000e+00> : vector<16xf32>
    %612 = vector.multi_reduction <add>, %611, %cst_144 [1] : vector<16x32xf32> to vector<16xf32>
    %613 = vector.shape_cast %612 : vector<16xf32> to vector<16x1xf32>
    %cst_145 = arith.constant 3.200000e+01 : f32
    %614 = vector.broadcast %cst_145 : f32 to vector<16x1xf32>
    %615 = arith.divf %613, %614 : vector<16x1xf32>
    %616 = vector.broadcast %608 : vector<16x1xf32> to vector<16x32xf32>
    %617 = arith.subf %604, %616 : vector<16x32xf32>
    %cst_146 = arith.constant 9.99999974E-6 : f32
    %618 = vector.broadcast %cst_146 : f32 to vector<16x1xf32>
    %619 = arith.addf %615, %618 : vector<16x1xf32>
    %620 = math.rsqrt %619 : vector<16x1xf32>
    %621 = vector.broadcast %620 : vector<16x1xf32> to vector<16x32xf32>
    %622 = arith.mulf %617, %621 : vector<16x32xf32>
    %c0_147 = arith.constant 0 : index
    %c0_148 = arith.constant 0 : index
    %623 = vector.load %arg20[%c0_147, %c0_148] : memref<1x32xf32, #tpu.memory_space<vmem>>, vector<1x32xf32>
    %624 = vector.broadcast %623 : vector<1x32xf32> to vector<16x32xf32>
    %625 = arith.mulf %622, %624 : vector<16x32xf32>
    %c0_149 = arith.constant 0 : index
    %c0_150 = arith.constant 0 : index
    %626 = vector.load %arg21[%c0_149, %c0_150] : memref<1x32xf32, #tpu.memory_space<vmem>>, vector<1x32xf32>
    %627 = vector.broadcast %626 : vector<1x32xf32> to vector<16x32xf32>
    %628 = arith.addf %625, %627 : vector<16x32xf32>
    %c0_151 = arith.constant 0 : index
    %c0_152 = arith.constant 0 : index
    %629 = vector.load %arg22[%c0_151, %c0_152] : memref<32x96xf32, #tpu.memory_space<vmem>>, vector<32x96xf32>
    %cst_153 = arith.constant dense<0.000000e+00> : vector<16x96xf32>
    %630 = tpu.matmul %628, %629, %cst_153 {dimension_numbers = #tpu.dot_dimension_numbers<[1], [0], [0], [1], [0, 0, 1, 1], [], []>} : vector<16x32xf32>, vector<32x96xf32>, vector<16x96xf32> -> vector<16x96xf32>
    %c0_154 = arith.constant 0 : index
    %c0_155 = arith.constant 0 : index
    %631 = vector.load %arg23[%c0_154, %c0_155] : memref<1x96xf32, #tpu.memory_space<vmem>>, vector<1x96xf32>
    %632 = vector.broadcast %631 : vector<1x96xf32> to vector<16x96xf32>
    %633 = arith.addf %630, %632 : vector<16x96xf32>
    %634 = vector.extract_strided_slice %633 {offsets = [0, 0], sizes = [16, 32], strides = [1, 1]} : vector<16x96xf32> to vector<16x32xf32>
    %635 = vector.extract_strided_slice %633 {offsets = [0, 32], sizes = [16, 32], strides = [1, 1]} : vector<16x96xf32> to vector<16x32xf32>
    %636 = vector.extract_strided_slice %633 {offsets = [0, 64], sizes = [16, 32], strides = [1, 1]} : vector<16x96xf32> to vector<16x32xf32>
    %637 = vector.extract_strided_slice %634 {offsets = [0, 0], sizes = [16, 8], strides = [1, 1]} : vector<16x32xf32> to vector<16x8xf32>
    %638 = vector.extract_strided_slice %635 {offsets = [0, 0], sizes = [16, 8], strides = [1, 1]} : vector<16x32xf32> to vector<16x8xf32>
    %639 = vector.extract_strided_slice %636 {offsets = [0, 0], sizes = [16, 8], strides = [1, 1]} : vector<16x32xf32> to vector<16x8xf32>
    %cst_156 = arith.constant dense<0.000000e+00> : vector<16x16xf32>
    %640 = tpu.matmul %637, %638, %cst_156 {dimension_numbers = #tpu.dot_dimension_numbers<[1], [1], [0], [0], [0, 0, 1, 0], [], []>} : vector<16x8xf32>, vector<16x8xf32>, vector<16x16xf32> -> vector<16x16xf32>
    %cst_157 = arith.constant 0.353553385 : f32
    %641 = vector.broadcast %cst_157 : f32 to vector<16x16xf32>
    %642 = arith.mulf %640, %641 : vector<16x16xf32>
    %643 = arith.addf %642, %480 : vector<16x16xf32>
    %cst_158 = arith.constant dense<0xFF800000> : vector<16xf32>
    %644 = vector.multi_reduction <maximumf>, %643, %cst_158 [1] : vector<16x16xf32> to vector<16xf32>
    %645 = vector.shape_cast %644 : vector<16xf32> to vector<16x1xf32>
    %646 = vector.broadcast %645 : vector<16x1xf32> to vector<16x16xf32>
    %647 = arith.subf %643, %646 : vector<16x16xf32>
    %648 = math.exp %647 : vector<16x16xf32>
    %cst_159 = arith.constant dense<0.000000e+00> : vector<16xf32>
    %649 = vector.multi_reduction <add>, %648, %cst_159 [1] : vector<16x16xf32> to vector<16xf32>
    %650 = vector.shape_cast %649 : vector<16xf32> to vector<16x1xf32>
    %651 = tpu.reciprocal %650 {approx = true} : vector<16x1xf32> -> vector<16x1xf32>
    %652 = vector.broadcast %651 : vector<16x1xf32> to vector<16x16xf32>
    %653 = arith.mulf %648, %652 : vector<16x16xf32>
    %cst_160 = arith.constant dense<0.000000e+00> : vector<16x8xf32>
    %654 = tpu.matmul %653, %639, %cst_160 {dimension_numbers = #tpu.dot_dimension_numbers<[1], [0], [0], [1], [0, 0, 1, 1], [], []>} : vector<16x16xf32>, vector<16x8xf32>, vector<16x8xf32> -> vector<16x8xf32>
    %655 = vector.extract_strided_slice %634 {offsets = [0, 8], sizes = [16, 8], strides = [1, 1]} : vector<16x32xf32> to vector<16x8xf32>
    %656 = vector.extract_strided_slice %635 {offsets = [0, 8], sizes = [16, 8], strides = [1, 1]} : vector<16x32xf32> to vector<16x8xf32>
    %657 = vector.extract_strided_slice %636 {offsets = [0, 8], sizes = [16, 8], strides = [1, 1]} : vector<16x32xf32> to vector<16x8xf32>
    %cst_161 = arith.constant dense<0.000000e+00> : vector<16x16xf32>
    %658 = tpu.matmul %655, %656, %cst_161 {dimension_numbers = #tpu.dot_dimension_numbers<[1], [1], [0], [0], [0, 0, 1, 0], [], []>} : vector<16x8xf32>, vector<16x8xf32>, vector<16x16xf32> -> vector<16x16xf32>
    %cst_162 = arith.constant 0.353553385 : f32
    %659 = vector.broadcast %cst_162 : f32 to vector<16x16xf32>
    %660 = arith.mulf %658, %659 : vector<16x16xf32>
    %661 = arith.addf %660, %480 : vector<16x16xf32>
    %cst_163 = arith.constant dense<0xFF800000> : vector<16xf32>
    %662 = vector.multi_reduction <maximumf>, %661, %cst_163 [1] : vector<16x16xf32> to vector<16xf32>
    %663 = vector.shape_cast %662 : vector<16xf32> to vector<16x1xf32>
    %664 = vector.broadcast %663 : vector<16x1xf32> to vector<16x16xf32>
    %665 = arith.subf %661, %664 : vector<16x16xf32>
    %666 = math.exp %665 : vector<16x16xf32>
    %cst_164 = arith.constant dense<0.000000e+00> : vector<16xf32>
    %667 = vector.multi_reduction <add>, %666, %cst_164 [1] : vector<16x16xf32> to vector<16xf32>
    %668 = vector.shape_cast %667 : vector<16xf32> to vector<16x1xf32>
    %669 = tpu.reciprocal %668 {approx = true} : vector<16x1xf32> -> vector<16x1xf32>
    %670 = vector.broadcast %669 : vector<16x1xf32> to vector<16x16xf32>
    %671 = arith.mulf %666, %670 : vector<16x16xf32>
    %cst_165 = arith.constant dense<0.000000e+00> : vector<16x8xf32>
    %672 = tpu.matmul %671, %657, %cst_165 {dimension_numbers = #tpu.dot_dimension_numbers<[1], [0], [0], [1], [0, 0, 1, 1], [], []>} : vector<16x16xf32>, vector<16x8xf32>, vector<16x8xf32> -> vector<16x8xf32>
    %673 = vector.extract_strided_slice %634 {offsets = [0, 16], sizes = [16, 8], strides = [1, 1]} : vector<16x32xf32> to vector<16x8xf32>
    %674 = vector.extract_strided_slice %635 {offsets = [0, 16], sizes = [16, 8], strides = [1, 1]} : vector<16x32xf32> to vector<16x8xf32>
    %675 = vector.extract_strided_slice %636 {offsets = [0, 16], sizes = [16, 8], strides = [1, 1]} : vector<16x32xf32> to vector<16x8xf32>
    %cst_166 = arith.constant dense<0.000000e+00> : vector<16x16xf32>
    %676 = tpu.matmul %673, %674, %cst_166 {dimension_numbers = #tpu.dot_dimension_numbers<[1], [1], [0], [0], [0, 0, 1, 0], [], []>} : vector<16x8xf32>, vector<16x8xf32>, vector<16x16xf32> -> vector<16x16xf32>
    %cst_167 = arith.constant 0.353553385 : f32
    %677 = vector.broadcast %cst_167 : f32 to vector<16x16xf32>
    %678 = arith.mulf %676, %677 : vector<16x16xf32>
    %679 = arith.addf %678, %480 : vector<16x16xf32>
    %cst_168 = arith.constant dense<0xFF800000> : vector<16xf32>
    %680 = vector.multi_reduction <maximumf>, %679, %cst_168 [1] : vector<16x16xf32> to vector<16xf32>
    %681 = vector.shape_cast %680 : vector<16xf32> to vector<16x1xf32>
    %682 = vector.broadcast %681 : vector<16x1xf32> to vector<16x16xf32>
    %683 = arith.subf %679, %682 : vector<16x16xf32>
    %684 = math.exp %683 : vector<16x16xf32>
    %cst_169 = arith.constant dense<0.000000e+00> : vector<16xf32>
    %685 = vector.multi_reduction <add>, %684, %cst_169 [1] : vector<16x16xf32> to vector<16xf32>
    %686 = vector.shape_cast %685 : vector<16xf32> to vector<16x1xf32>
    %687 = tpu.reciprocal %686 {approx = true} : vector<16x1xf32> -> vector<16x1xf32>
    %688 = vector.broadcast %687 : vector<16x1xf32> to vector<16x16xf32>
    %689 = arith.mulf %684, %688 : vector<16x16xf32>
    %cst_170 = arith.constant dense<0.000000e+00> : vector<16x8xf32>
    %690 = tpu.matmul %689, %675, %cst_170 {dimension_numbers = #tpu.dot_dimension_numbers<[1], [0], [0], [1], [0, 0, 1, 1], [], []>} : vector<16x16xf32>, vector<16x8xf32>, vector<16x8xf32> -> vector<16x8xf32>
    %691 = vector.extract_strided_slice %634 {offsets = [0, 24], sizes = [16, 8], strides = [1, 1]} : vector<16x32xf32> to vector<16x8xf32>
    %692 = vector.extract_strided_slice %635 {offsets = [0, 24], sizes = [16, 8], strides = [1, 1]} : vector<16x32xf32> to vector<16x8xf32>
    %693 = vector.extract_strided_slice %636 {offsets = [0, 24], sizes = [16, 8], strides = [1, 1]} : vector<16x32xf32> to vector<16x8xf32>
    %cst_171 = arith.constant dense<0.000000e+00> : vector<16x16xf32>
    %694 = tpu.matmul %691, %692, %cst_171 {dimension_numbers = #tpu.dot_dimension_numbers<[1], [1], [0], [0], [0, 0, 1, 0], [], []>} : vector<16x8xf32>, vector<16x8xf32>, vector<16x16xf32> -> vector<16x16xf32>
    %cst_172 = arith.constant 0.353553385 : f32
    %695 = vector.broadcast %cst_172 : f32 to vector<16x16xf32>
    %696 = arith.mulf %694, %695 : vector<16x16xf32>
    %697 = arith.addf %696, %480 : vector<16x16xf32>
    %cst_173 = arith.constant dense<0xFF800000> : vector<16xf32>
    %698 = vector.multi_reduction <maximumf>, %697, %cst_173 [1] : vector<16x16xf32> to vector<16xf32>
    %699 = vector.shape_cast %698 : vector<16xf32> to vector<16x1xf32>
    %700 = vector.broadcast %699 : vector<16x1xf32> to vector<16x16xf32>
    %701 = arith.subf %697, %700 : vector<16x16xf32>
    %702 = math.exp %701 : vector<16x16xf32>
    %cst_174 = arith.constant dense<0.000000e+00> : vector<16xf32>
    %703 = vector.multi_reduction <add>, %702, %cst_174 [1] : vector<16x16xf32> to vector<16xf32>
    %704 = vector.shape_cast %703 : vector<16xf32> to vector<16x1xf32>
    %705 = tpu.reciprocal %704 {approx = true} : vector<16x1xf32> -> vector<16x1xf32>
    %706 = vector.broadcast %705 : vector<16x1xf32> to vector<16x16xf32>
    %707 = arith.mulf %702, %706 : vector<16x16xf32>
    %cst_175 = arith.constant dense<0.000000e+00> : vector<16x8xf32>
    %708 = tpu.matmul %707, %693, %cst_175 {dimension_numbers = #tpu.dot_dimension_numbers<[1], [0], [0], [1], [0, 0, 1, 1], [], []>} : vector<16x16xf32>, vector<16x8xf32>, vector<16x8xf32> -> vector<16x8xf32>
    %709 = tpu.concatenate %654, %672, %690, %708 in 1 : vector<16x8xf32>, vector<16x8xf32>, vector<16x8xf32>, vector<16x8xf32> -> vector<16x32xf32>
    %c0_176 = arith.constant 0 : index
    %c0_177 = arith.constant 0 : index
    %710 = vector.load %arg24[%c0_176, %c0_177] : memref<32x32xf32, #tpu.memory_space<vmem>>, vector<32x32xf32>
    %cst_178 = arith.constant dense<0.000000e+00> : vector<16x32xf32>
    %711 = tpu.matmul %709, %710, %cst_178 {dimension_numbers = #tpu.dot_dimension_numbers<[1], [0], [0], [1], [0, 0, 1, 1], [], []>} : vector<16x32xf32>, vector<32x32xf32>, vector<16x32xf32> -> vector<16x32xf32>
    %c0_179 = arith.constant 0 : index
    %c0_180 = arith.constant 0 : index
    %712 = vector.load %arg25[%c0_179, %c0_180] : memref<1x32xf32, #tpu.memory_space<vmem>>, vector<1x32xf32>
    %713 = vector.broadcast %712 : vector<1x32xf32> to vector<16x32xf32>
    %714 = arith.addf %711, %713 : vector<16x32xf32>
    %715 = arith.addf %628, %714 : vector<16x32xf32>
    %cst_181 = arith.constant dense<0.000000e+00> : vector<16xf32>
    %716 = vector.multi_reduction <add>, %715, %cst_181 [1] : vector<16x32xf32> to vector<16xf32>
    %717 = vector.shape_cast %716 : vector<16xf32> to vector<16x1xf32>
    %cst_182 = arith.constant 3.200000e+01 : f32
    %718 = vector.broadcast %cst_182 : f32 to vector<16x1xf32>
    %719 = arith.divf %717, %718 : vector<16x1xf32>
    %720 = vector.broadcast %719 : vector<16x1xf32> to vector<16x32xf32>
    %721 = arith.subf %715, %720 : vector<16x32xf32>
    %722 = arith.mulf %721, %721 : vector<16x32xf32>
    %cst_183 = arith.constant dense<0.000000e+00> : vector<16xf32>
    %723 = vector.multi_reduction <add>, %722, %cst_183 [1] : vector<16x32xf32> to vector<16xf32>
    %724 = vector.shape_cast %723 : vector<16xf32> to vector<16x1xf32>
    %cst_184 = arith.constant 3.200000e+01 : f32
    %725 = vector.broadcast %cst_184 : f32 to vector<16x1xf32>
    %726 = arith.divf %724, %725 : vector<16x1xf32>
    %727 = vector.broadcast %719 : vector<16x1xf32> to vector<16x32xf32>
    %728 = arith.subf %715, %727 : vector<16x32xf32>
    %cst_185 = arith.constant 9.99999974E-6 : f32
    %729 = vector.broadcast %cst_185 : f32 to vector<16x1xf32>
    %730 = arith.addf %726, %729 : vector<16x1xf32>
    %731 = math.rsqrt %730 : vector<16x1xf32>
    %732 = vector.broadcast %731 : vector<16x1xf32> to vector<16x32xf32>
    %733 = arith.mulf %728, %732 : vector<16x32xf32>
    %c0_186 = arith.constant 0 : index
    %c0_187 = arith.constant 0 : index
    %734 = vector.load %arg26[%c0_186, %c0_187] : memref<1x32xf32, #tpu.memory_space<vmem>>, vector<1x32xf32>
    %735 = vector.broadcast %734 : vector<1x32xf32> to vector<16x32xf32>
    %736 = arith.mulf %733, %735 : vector<16x32xf32>
    %c0_188 = arith.constant 0 : index
    %c0_189 = arith.constant 0 : index
    %737 = vector.load %arg27[%c0_188, %c0_189] : memref<1x32xf32, #tpu.memory_space<vmem>>, vector<1x32xf32>
    %738 = vector.broadcast %737 : vector<1x32xf32> to vector<16x32xf32>
    %739 = arith.addf %736, %738 : vector<16x32xf32>
    %c0_190 = arith.constant 0 : index
    %c0_191 = arith.constant 0 : index
    %740 = vector.load %arg28[%c0_190, %c0_191] : memref<32x64xf32, #tpu.memory_space<vmem>>, vector<32x64xf32>
    %cst_192 = arith.constant dense<0.000000e+00> : vector<16x64xf32>
    %741 = tpu.matmul %739, %740, %cst_192 {dimension_numbers = #tpu.dot_dimension_numbers<[1], [0], [0], [1], [0, 0, 1, 1], [], []>} : vector<16x32xf32>, vector<32x64xf32>, vector<16x64xf32> -> vector<16x64xf32>
    %c0_193 = arith.constant 0 : index
    %c0_194 = arith.constant 0 : index
    %742 = vector.load %arg29[%c0_193, %c0_194] : memref<1x64xf32, #tpu.memory_space<vmem>>, vector<1x64xf32>
    %743 = vector.broadcast %742 : vector<1x64xf32> to vector<16x64xf32>
    %744 = arith.addf %741, %743 : vector<16x64xf32>
    %cst_195 = arith.constant 0.000000e+00 : f32
    %745 = vector.broadcast %cst_195 : f32 to vector<16x64xf32>
    %746 = arith.maximumf %744, %745 : vector<16x64xf32>
    %c0_196 = arith.constant 0 : index
    %c0_197 = arith.constant 0 : index
    %747 = vector.load %arg30[%c0_196, %c0_197] : memref<64x32xf32, #tpu.memory_space<vmem>>, vector<64x32xf32>
    %cst_198 = arith.constant dense<0.000000e+00> : vector<16x32xf32>
    %748 = tpu.matmul %746, %747, %cst_198 {dimension_numbers = #tpu.dot_dimension_numbers<[1], [0], [0], [1], [0, 0, 1, 1], [], []>} : vector<16x64xf32>, vector<64x32xf32>, vector<16x32xf32> -> vector<16x32xf32>
    %c0_199 = arith.constant 0 : index
    %c0_200 = arith.constant 0 : index
    %749 = vector.load %arg31[%c0_199, %c0_200] : memref<1x32xf32, #tpu.memory_space<vmem>>, vector<1x32xf32>
    %750 = vector.broadcast %749 : vector<1x32xf32> to vector<16x32xf32>
    %751 = arith.addf %748, %750 : vector<16x32xf32>
    %752 = arith.addf %739, %751 : vector<16x32xf32>
    %cst_201 = arith.constant dense<0.000000e+00> : vector<16xf32>
    %753 = vector.multi_reduction <add>, %752, %cst_201 [1] : vector<16x32xf32> to vector<16xf32>
    %754 = vector.shape_cast %753 : vector<16xf32> to vector<16x1xf32>
    %cst_202 = arith.constant 3.200000e+01 : f32
    %755 = vector.broadcast %cst_202 : f32 to vector<16x1xf32>
    %756 = arith.divf %754, %755 : vector<16x1xf32>
    %757 = vector.broadcast %756 : vector<16x1xf32> to vector<16x32xf32>
    %758 = arith.subf %752, %757 : vector<16x32xf32>
    %759 = arith.mulf %758, %758 : vector<16x32xf32>
    %cst_203 = arith.constant dense<0.000000e+00> : vector<16xf32>
    %760 = vector.multi_reduction <add>, %759, %cst_203 [1] : vector<16x32xf32> to vector<16xf32>
    %761 = vector.shape_cast %760 : vector<16xf32> to vector<16x1xf32>
    %cst_204 = arith.constant 3.200000e+01 : f32
    %762 = vector.broadcast %cst_204 : f32 to vector<16x1xf32>
    %763 = arith.divf %761, %762 : vector<16x1xf32>
    %764 = vector.broadcast %756 : vector<16x1xf32> to vector<16x32xf32>
    %765 = arith.subf %752, %764 : vector<16x32xf32>
    %cst_205 = arith.constant 9.99999974E-6 : f32
    %766 = vector.broadcast %cst_205 : f32 to vector<16x1xf32>
    %767 = arith.addf %763, %766 : vector<16x1xf32>
    %768 = math.rsqrt %767 : vector<16x1xf32>
    %769 = vector.broadcast %768 : vector<16x1xf32> to vector<16x32xf32>
    %770 = arith.mulf %765, %769 : vector<16x32xf32>
    %c0_206 = arith.constant 0 : index
    %c0_207 = arith.constant 0 : index
    %771 = vector.load %arg32[%c0_206, %c0_207] : memref<1x32xf32, #tpu.memory_space<vmem>>, vector<1x32xf32>
    %772 = vector.broadcast %771 : vector<1x32xf32> to vector<16x32xf32>
    %773 = arith.mulf %770, %772 : vector<16x32xf32>
    %c0_208 = arith.constant 0 : index
    %c0_209 = arith.constant 0 : index
    %774 = vector.load %arg33[%c0_208, %c0_209] : memref<1x32xf32, #tpu.memory_space<vmem>>, vector<1x32xf32>
    %775 = vector.broadcast %774 : vector<1x32xf32> to vector<16x32xf32>
    %776 = arith.addf %773, %775 : vector<16x32xf32>
    %c0_210 = arith.constant 0 : index
    %c0_211 = arith.constant 0 : index
    %777 = vector.load %arg34[%c0_210, %c0_211] : memref<32x512xf32, #tpu.memory_space<vmem>>, vector<32x512xf32>
    %cst_212 = arith.constant dense<0.000000e+00> : vector<16x512xf32>
    %778 = tpu.matmul %776, %777, %cst_212 {dimension_numbers = #tpu.dot_dimension_numbers<[1], [0], [0], [1], [0, 0, 1, 1], [], []>} : vector<16x32xf32>, vector<32x512xf32>, vector<16x512xf32> -> vector<16x512xf32>
    %c0_213 = arith.constant 0 : index
    %c0_214 = arith.constant 0 : index
    %779 = vector.load %arg35[%c0_213, %c0_214] : memref<1x512xf32, #tpu.memory_space<vmem>>, vector<1x512xf32>
    %780 = vector.broadcast %779 : vector<1x512xf32> to vector<16x512xf32>
    %781 = arith.addf %778, %780 : vector<16x512xf32>
    %cst_215 = arith.constant 0.000000e+00 : f32
    %782 = vector.broadcast %cst_215 : f32 to vector<16x512xf32>
    %783 = arith.maximumf %781, %782 : vector<16x512xf32>
    %c0_216 = arith.constant 0 : index
    %c0_217 = arith.constant 0 : index
    %784 = vector.load %arg36[%c0_216, %c0_217] : memref<512x128xf32, #tpu.memory_space<vmem>>, vector<512x128xf32>
    %cst_218 = arith.constant dense<0.000000e+00> : vector<16x128xf32>
    %785 = tpu.matmul %783, %784, %cst_218 {dimension_numbers = #tpu.dot_dimension_numbers<[1], [0], [0], [1], [0, 0, 1, 1], [], []>} : vector<16x512xf32>, vector<512x128xf32>, vector<16x128xf32> -> vector<16x128xf32>
    %c0_219 = arith.constant 0 : index
    %c0_220 = arith.constant 0 : index
    %786 = vector.load %arg37[%c0_219, %c0_220] : memref<1x128xf32, #tpu.memory_space<vmem>>, vector<1x128xf32>
    %787 = vector.broadcast %786 : vector<1x128xf32> to vector<16x128xf32>
    %788 = arith.addf %785, %787 : vector<16x128xf32>
    %cst_221 = arith.constant 0.000000e+00 : f32
    %789 = vector.broadcast %cst_221 : f32 to vector<16x128xf32>
    %790 = arith.maximumf %788, %789 : vector<16x128xf32>
    %c0_222 = arith.constant 0 : index
    %c0_223 = arith.constant 0 : index
    %791 = vector.load %arg38[%c0_222, %c0_223] : memref<16x128xf32, #tpu.memory_space<vmem>>, vector<16x128xf32>
    tpu.vector_store %arg38[%c0_222, %c0_223], %790 {strides = array<i32>} : memref<16x128xf32, #tpu.memory_space<vmem>>, vector<16x128xf32>,
    return
  }
}

</mosaic_0001>

<llo_original>
// kernel: forward.1
$region0: #{forward.1}
  #allocation0 [shape = 'u32[]', space=smem, size = 0x4, offset = 0x4, fixed_abs, tag = 'smem constant byte address 0x4 - core index']
  #allocation1 [shape = 'u32[144,128]{1,0:T(1,128)}', space=vmem, size = 0x12000, scoped, tag = 'internal scratch']
  %s0 = inlined_call_operand.smem [shape: u32[39], index: -1, kind: input, shape index: {}]
  %s1 = sld [smem:[%s0]]
  %s2 = scalar_lea.smem %s0, 1
  %s3 = sld [smem:[%s2]]
  %s4 = scalar_lea.smem %s0, 2
  %s5 = sld [smem:[%s4]]
  %s6 = scalar_lea.smem %s0, 3
  %s7 = sld [smem:[%s6]]
  %s8 = scalar_lea.smem %s0, 4
  %s9 = sld [smem:[%s8]]
  %s10 = scalar_lea.smem %s0, 5
  %s11 = sld [smem:[%s10]]
  %s12 = scalar_lea.smem %s0, 6
  %s13 = sld [smem:[%s12]]
  %s14 = scalar_lea.smem %s0, 7
  %s15 = sld [smem:[%s14]]
  %s16 = scalar_lea.smem %s0, 8
  %s17 = sld [smem:[%s16]]
  %s18 = scalar_lea.smem %s0, 9
  %s19 = sld [smem:[%s18]]
  %s20 = scalar_lea.smem %s0, 10
  %s21 = sld [smem:[%s20]]
  %s22 = scalar_lea.smem %s0, 11
  %s23 = sld [smem:[%s22]]
  %s24 = scalar_lea.smem %s0, 12
  %s25 = sld [smem:[%s24]]
  %s26 = scalar_lea.smem %s0, 13
  %s27 = sld [smem:[%s26]]
  %s28 = scalar_lea.smem %s0, 14
  %s29 = sld [smem:[%s28]]
  %s30 = scalar_lea.smem %s0, 15
  %s31 = sld [smem:[%s30]]
  %s32 = scalar_lea.smem %s0, 16
  %s33 = sld [smem:[%s32]]
  %s34 = scalar_lea.smem %s0, 17
  %s35 = sld [smem:[%s34]]
  %s36 = scalar_lea.smem %s0, 18
  %s37 = sld [smem:[%s36]]
  %s38 = scalar_lea.smem %s0, 19
  %s39 = sld [smem:[%s38]]
  %s40 = scalar_lea.smem %s0, 20
  %s41 = sld [smem:[%s40]]
  %s42 = scalar_lea.smem %s0, 21
  %s43 = sld [smem:[%s42]]
  %s44 = scalar_lea.smem %s0, 22
  %s45 = sld [smem:[%s44]]
  %s46 = scalar_lea.smem %s0, 23
  %s47 = sld [smem:[%s46]]
  %s48 = scalar_lea.smem %s0, 24
  %s49 = sld [smem:[%s48]]
  %s50 = scalar_lea.smem %s0, 25
  %s51 = sld [smem:[%s50]]
  %s52 = scalar_lea.smem %s0, 26
  %s53 = sld [smem:[%s52]]
  %s54 = scalar_lea.smem %s0, 27
  %s55 = sld [smem:[%s54]]
  %s56 = scalar_lea.smem %s0, 28
  %s57 = sld [smem:[%s56]]
  %s58 = scalar_lea.smem %s0, 29
  %s59 = sld [smem:[%s58]]
  %s60 = scalar_lea.smem %s0, 30
  %s61 = sld [smem:[%s60]]
  %s62 = scalar_lea.smem %s0, 31
  %s63 = sld [smem:[%s62]]
  %s64 = scalar_lea.smem %s0, 32
  %s65 = sld [smem:[%s64]]
  %s66 = scalar_lea.smem %s0, 33
  %s67 = sld [smem:[%s66]]
  %s68 = scalar_lea.smem %s0, 34
  %s69 = sld [smem:[%s68]]
  %s70 = scalar_lea.smem %s0, 35
  %s71 = sld [smem:[%s70]]
  %s72 = scalar_lea.smem %s0, 36
  %s73 = sld [smem:[%s72]]
  %s74 = scalar_lea.smem %s0, 37
  %s75 = sld [smem:[%s74]]
  %s76 = scalar_lea.smem %s0, 38
  %s77 = sld [smem:[%s76]]
  %s78 = sld [smem:[#allocation0]]
  $region162: #{forward.1} parent=0
    _
  %s80 = ssub.s32 1, %s78
  %s81 = scalar_select 0, %s80, %s78
  // Predicated region
  $region2: #{forward.1} parent=0 // pred_check
    _
  $region3: #{forward.1} parent=0 // pred_check_branch
    %83 = sbr.rel (0) target = $region5
  $region4: #{forward.1} parent=0 // pred_region
    _
  $region5: #{forward.1} parent=0 // pred_fallthru
    _
  // Predicated region
  $region6: #{forward.1} parent=0 // pred_check
    _
  $region7: #{forward.1} parent=0 // pred_check_branch
    %85 = sbr.rel (0) target = $region9
  $region8: #{forward.1} parent=0 // pred_region
    _
  $region9: #{forward.1} parent=0 // pred_fallthru
    _
  // Predicated region
  $region10: #{forward.1} parent=0 // pred_check
    _
  $region11: #{forward.1} parent=0 // pred_check_branch
    %87 = sbr.rel (0) target = $region13
  $region12: #{forward.1} parent=0 // pred_region
    _
  $region13: #{forward.1} parent=0 // pred_fallthru
    _
  // Predicated region
  $region14: #{forward.1} parent=0 // pred_check
    _
  $region15: #{forward.1} parent=0 // pred_check_branch
    %89 = sbr.rel (0) target = $region17
  $region16: #{forward.1} parent=0 // pred_region
    _
  $region17: #{forward.1} parent=0 // pred_fallthru
    _
  // Predicated region
  $region18: #{forward.1} parent=0 // pred_check
    _
  $region19: #{forward.1} parent=0 // pred_check_branch
    %91 = sbr.rel (0) target = $region21
  $region20: #{forward.1} parent=0 // pred_region
    _
  $region21: #{forward.1} parent=0 // pred_fallthru
    _
  // Predicated region
  $region22: #{forward.1} parent=0 // pred_check
    _
  $region23: #{forward.1} parent=0 // pred_check_branch
    %93 = sbr.rel (0) target = $region25
  $region24: #{forward.1} parent=0 // pred_region
    _
  $region25: #{forward.1} parent=0 // pred_fallthru
    _
  // Predicated region
  $region26: #{forward.1} parent=0 // pred_check
    _
  $region27: #{forward.1} parent=0 // pred_check_branch
    %95 = sbr.rel (0) target = $region29
  $region28: #{forward.1} parent=0 // pred_region
    _
  $region29: #{forward.1} parent=0 // pred_fallthru
    _
  // Predicated region
  $region30: #{forward.1} parent=0 // pred_check
    _
  $region31: #{forward.1} parent=0 // pred_check_branch
    %97 = sbr.rel (0) target = $region33
  $region32: #{forward.1} parent=0 // pred_region
    _
  $region33: #{forward.1} parent=0 // pred_fallthru
    _
  // Predicated region
  $region34: #{forward.1} parent=0 // pred_check
    _
  $region35: #{forward.1} parent=0 // pred_check_branch
    %99 = sbr.rel (0) target = $region37
  $region36: #{forward.1} parent=0 // pred_region
    _
  $region37: #{forward.1} parent=0 // pred_fallthru
    _
  // Predicated region
  $region38: #{forward.1} parent=0 // pred_check
    _
  $region39: #{forward.1} parent=0 // pred_check_branch
    %101 = sbr.rel (0) target = $region41
  $region40: #{forward.1} parent=0 // pred_region
    _
  $region41: #{forward.1} parent=0 // pred_fallthru
    _
  // Predicated region
  $region42: #{forward.1} parent=0 // pred_check
    _
  $region43: #{forward.1} parent=0 // pred_check_branch
    %103 = sbr.rel (0) target = $region45
  $region44: #{forward.1} parent=0 // pred_region
    _
  $region45: #{forward.1} parent=0 // pred_fallthru
    _
  // Predicated region
  $region46: #{forward.1} parent=0 // pred_check
    _
  $region47: #{forward.1} parent=0 // pred_check_branch
    %105 = sbr.rel (0) target = $region49
  $region48: #{forward.1} parent=0 // pred_region
    _
  $region49: #{forward.1} parent=0 // pred_fallthru
    _
  // Predicated region
  $region50: #{forward.1} parent=0 // pred_check
    _
  $region51: #{forward.1} parent=0 // pred_check_branch
    %107 = sbr.rel (0) target = $region53
  $region52: #{forward.1} parent=0 // pred_region
    _
  $region53: #{forward.1} parent=0 // pred_fallthru
    _
  // Predicated region
  $region54: #{forward.1} parent=0 // pred_check
    _
  $region55: #{forward.1} parent=0 // pred_check_branch
    %109 = sbr.rel (0) target = $region57
  $region56: #{forward.1} parent=0 // pred_region
    _
  $region57: #{forward.1} parent=0 // pred_fallthru
    _
  // Predicated region
  $region58: #{forward.1} parent=0 // pred_check
    _
  $region59: #{forward.1} parent=0 // pred_check_branch
    %111 = sbr.rel (0) target = $region61
  $region60: #{forward.1} parent=0 // pred_region
    _
  $region61: #{forward.1} parent=0 // pred_fallthru
    _
  // Predicated region
  $region62: #{forward.1} parent=0 // pred_check
    _
  $region63: #{forward.1} parent=0 // pred_check_branch
    %113 = sbr.rel (0) target = $region65
  $region64: #{forward.1} parent=0 // pred_region
    _
  $region65: #{forward.1} parent=0 // pred_fallthru
    _
  // Predicated region
  $region66: #{forward.1} parent=0 // pred_check
    _
  $region67: #{forward.1} parent=0 // pred_check_branch
    %115 = sbr.rel (0) target = $region69
  $region68: #{forward.1} parent=0 // pred_region
    _
  $region69: #{forward.1} parent=0 // pred_fallthru
    _
  // Predicated region
  $region70: #{forward.1} parent=0 // pred_check
    _
  $region71: #{forward.1} parent=0 // pred_check_branch
    %117 = sbr.rel (0) target = $region73
  $region72: #{forward.1} parent=0 // pred_region
    _
  $region73: #{forward.1} parent=0 // pred_fallthru
    _
  // Predicated region
  $region74: #{forward.1} parent=0 // pred_check
    _
  $region75: #{forward.1} parent=0 // pred_check_branch
    %119 = sbr.rel (0) target = $region77
  $region76: #{forward.1} parent=0 // pred_region
    _
  $region77: #{forward.1} parent=0 // pred_fallthru
    _
  // Predicated region
  $region78: #{forward.1} parent=0 // pred_check
    _
  $region79: #{forward.1} parent=0 // pred_check_branch
    %121 = sbr.rel (0) target = $region81
  $region80: #{forward.1} parent=0 // pred_region
    _
  $region81: #{forward.1} parent=0 // pred_fallthru
    _
  // Predicated region
  $region82: #{forward.1} parent=0 // pred_check
    _
  $region83: #{forward.1} parent=0 // pred_check_branch
    %123 = sbr.rel (0) target = $region85
  $region84: #{forward.1} parent=0 // pred_region
    _
  $region85: #{forward.1} parent=0 // pred_fallthru
    _
  // Predicated region
  $region86: #{forward.1} parent=0 // pred_check
    _
  $region87: #{forward.1} parent=0 // pred_check_branch
    %125 = sbr.rel (0) target = $region89
  $region88: #{forward.1} parent=0 // pred_region
    _
  $region89: #{forward.1} parent=0 // pred_fallthru
    _
  // Predicated region
  $region90: #{forward.1} parent=0 // pred_check
    _
  $region91: #{forward.1} parent=0 // pred_check_branch
    %127 = sbr.rel (0) target = $region93
  $region92: #{forward.1} parent=0 // pred_region
    _
  $region93: #{forward.1} parent=0 // pred_fallthru
    _
  // Predicated region
  $region94: #{forward.1} parent=0 // pred_check
    _
  $region95: #{forward.1} parent=0 // pred_check_branch
    %129 = sbr.rel (0) target = $region97
  $region96: #{forward.1} parent=0 // pred_region
    _
  $region97: #{forward.1} parent=0 // pred_fallthru
    _
  // Predicated region
  $region98: #{forward.1} parent=0 // pred_check
    _
  $region99: #{forward.1} parent=0 // pred_check_branch
    %131 = sbr.rel (0) target = $region101
  $region100: #{forward.1} parent=0 // pred_region
    _
  $region101: #{forward.1} parent=0 // pred_fallthru
    _
  // Predicated region
  $region102: #{forward.1} parent=0 // pred_check
    _
  $region103: #{forward.1} parent=0 // pred_check_branch
    %133 = sbr.rel (0) target = $region105
  $region104: #{forward.1} parent=0 // pred_region
    _
  $region105: #{forward.1} parent=0 // pred_fallthru
    _
  // Predicated region
  $region106: #{forward.1} parent=0 // pred_check
    _
  $region107: #{forward.1} parent=0 // pred_check_branch
    %135 = sbr.rel (0) target = $region109
  $region108: #{forward.1} parent=0 // pred_region
    _
  $region109: #{forward.1} parent=0 // pred_fallthru
    _
  // Predicated region
  $region110: #{forward.1} parent=0 // pred_check
    _
  $region111: #{forward.1} parent=0 // pred_check_branch
    %137 = sbr.rel (0) target = $region113
  $region112: #{forward.1} parent=0 // pred_region
    _
  $region113: #{forward.1} parent=0 // pred_fallthru
    _
  // Predicated region
  $region114: #{forward.1} parent=0 // pred_check
    _
  $region115: #{forward.1} parent=0 // pred_check_branch
    %139 = sbr.rel (0) target = $region117
  $region116: #{forward.1} parent=0 // pred_region
    _
  $region117: #{forward.1} parent=0 // pred_fallthru
    _
  // Predicated region
  $region118: #{forward.1} parent=0 // pred_check
    _
  $region119: #{forward.1} parent=0 // pred_check_branch
    %141 = sbr.rel (0) target = $region121
  $region120: #{forward.1} parent=0 // pred_region
    _
  $region121: #{forward.1} parent=0 // pred_fallthru
    _
  // Predicated region
  $region122: #{forward.1} parent=0 // pred_check
    _
  $region123: #{forward.1} parent=0 // pred_check_branch
    %143 = sbr.rel (0) target = $region125
  $region124: #{forward.1} parent=0 // pred_region
    _
  $region125: #{forward.1} parent=0 // pred_fallthru
    _
  // Predicated region
  $region126: #{forward.1} parent=0 // pred_check
    _
  $region127: #{forward.1} parent=0 // pred_check_branch
    %145 = sbr.rel (0) target = $region129
  $region128: #{forward.1} parent=0 // pred_region
    _
  $region129: #{forward.1} parent=0 // pred_fallthru
    _
  // Predicated region
  $region130: #{forward.1} parent=0 // pred_check
    _
  $region131: #{forward.1} parent=0 // pred_check_branch
    %147 = sbr.rel (0) target = $region133
  $region132: #{forward.1} parent=0 // pred_region
    _
  $region133: #{forward.1} parent=0 // pred_fallthru
    _
  // Predicated region
  $region134: #{forward.1} parent=0 // pred_check
    _
  $region135: #{forward.1} parent=0 // pred_check_branch
    %149 = sbr.rel (0) target = $region137
  $region136: #{forward.1} parent=0 // pred_region
    _
  $region137: #{forward.1} parent=0 // pred_fallthru
    _
  // Predicated region
  $region138: #{forward.1} parent=0 // pred_check
    _
  $region139: #{forward.1} parent=0 // pred_check_branch
    %151 = sbr.rel (0) target = $region141
  $region140: #{forward.1} parent=0 // pred_region
    _
  $region141: #{forward.1} parent=0 // pred_fallthru
    _
  // Predicated region
  $region142: #{forward.1} parent=0 // pred_check
    _
  $region143: #{forward.1} parent=0 // pred_check_branch
    %153 = sbr.rel (0) target = $region145
  $region144: #{forward.1} parent=0 // pred_region
    _
  $region145: #{forward.1} parent=0 // pred_fallthru
    _
  // Predicated region
  $region146: #{forward.1} parent=0 // pred_check
    _
  $region147: #{forward.1} parent=0 // pred_check_branch
    %155 = sbr.rel (0) target = $region149
  $region148: #{forward.1} parent=0 // pred_region
    _
  $region149: #{forward.1} parent=0 // pred_fallthru
    _
  // Predicated region
  $region150: #{forward.1} parent=0 // pred_check
    _
  $region151: #{forward.1} parent=0 // pred_check_branch
    %157 = sbr.rel (0) target = $region153
  $region152: #{forward.1} parent=0 // pred_region
    _
  $region153: #{forward.1} parent=0 // pred_fallthru
    _
  %v158 = vld [vmem:[%s1] sm:$0xff]
  %v159 = vld [vmem:[%s1 + $0x8] sm:$0xff]
  %v160 = vld [vmem:[%s7] sm:$0xff]
  %v161 = vld [vmem:[%s7 + $0x8] sm:$0xff]
  %v162 = vld [vmem:[%s7 + $0x10] sm:$0xff]
  %v163 = vld [vmem:[%s7 + $0x18] sm:$0xff]
  %v164 = vld [vmem:[%s5] sm:$0xff]
  %v165 = vld [vmem:[%s5 + $0x8] sm:$0xff]
  %v166 = vld [vmem:[%s5 + $0x10] sm:$0xf]
  %v167 = vld [vmem:[%s9] sm:$0x1]
  %v169 = vlaneseq
  %v170 = vshrl.u32 %v169, 7
  %v171 = vsub.s32 0, %v170
  %v172 = vrot.slane %v167, %v171
  %vm174 = vcmask 162816
  %v176 = vsel %vm174, %v158, 0
  %v179 = vsel %vm174, %v159, 0
  %vm181 = vcmask 1043456
  %v183 = vsel %vm181, %v166, 0
  %185 = vmatprep.subr.mxu0 0.0
  %186 = vmatpush1.msra.mxu0 %v164
  %187 = vmatprep.subr.mxu0 0.0
  %188 = vmatpush1.msra.mxu0 %v165
  %189 = vmatprep.subr.mxu0 0.0
  %190 = vmatpush1.msra.mxu0 %v183
  %191 = vmatprep.subr.mxu0 0.0
  %192 = vmatpush1.msra.mxu0 0.0
  %193 = vmatprep.subr.mxu0 0.0
  %194 = vmatpush1.msra.mxu0 0.0
  %195 = vmatprep.subr.mxu0 0.0
  %196 = vmatpush1.msra.mxu0 0.0
  %197 = vmatprep.subr.mxu0 0.0
  %198 = vmatpush1.msra.mxu0 0.0
  %199 = vmatprep.subr.mxu0 0.0
  %200 = vmatpush1.msra.mxu0 0.0
  %201 = vmatprep.subr.mxu0 0.0
  %202 = vmatpush1.msra.mxu0 0.0
  %203 = vmatprep.subr.mxu0 0.0
  %204 = vmatpush1.msra.mxu0 0.0
  %205 = vmatprep.subr.mxu0 0.0
  %206 = vmatpush1.msra.mxu0 0.0
  %207 = vmatprep.subr.mxu0 0.0
  %208 = vmatpush1.msra.mxu0 0.0
  %209 = vmatprep.subr.mxu0 0.0
  %210 = vmatpush1.msra.mxu0 0.0
  %211 = vmatprep.subr.mxu0 0.0
  %212 = vmatpush1.msra.mxu0 0.0
  %213 = vmatprep.subr.mxu0 0.0
  %214 = vmatpush1.msra.mxu0 0.0
  %215 = vmatprep.subr.mxu0 0.0
  %216 = vmatpush1.msra.mxu0 0.0
  %217 = vmatprep.subr.mxu0 0.0
  %218 = vmatpush1.msra.mxu0 0.0
  %219 = vmatprep.subr.mxu0 0.0
  %220 = vmatpush1.msra.mxu0 0.0
  %221 = vmatprep.subr.mxu0 0.0
  %222 = vmatpush1.msra.mxu0 0.0
  %223 = vmatprep.subr.mxu0 0.0
  %224 = vmatpush1.msra.mxu0 0.0
  %225 = vmatprep.subr.mxu0 0.0
  %226 = vmatpush1.msra.mxu0 0.0
  %227 = vmatprep.subr.mxu0 0.0
  %228 = vmatpush1.msra.mxu0 0.0
  %229 = vmatprep.subr.mxu0 0.0
  %230 = vmatpush1.msra.mxu0 0.0
  %231 = vmatprep.subr.mxu0 0.0
  %232 = vmatpush1.msra.mxu0 0.0
  %233 = vmatprep.subr.mxu0 0.0
  %234 = vmatpush1.msra.mxu0 0.0
  %235 = vmatprep.subr.mxu0 0.0
  %236 = vmatpush1.msra.mxu0 0.0
  %237 = vmatprep.subr.mxu0 0.0
  %238 = vmatpush1.msra.mxu0 0.0
  %239 = vmatprep.subr.mxu0 0.0
  %240 = vmatpush1.msra.mxu0 0.0
  %241 = vmatprep.subr.mxu0 0.0
  %242 = vmatpush1.msra.mxu0 0.0
  %243 = vmatprep.subr.mxu0 0.0
  %244 = vmatpush1.msra.mxu0 0.0
  %245 = vmatprep.subr.mxu0 0.0
  %246 = vmatpush1.msra.mxu0 0.0
  %247 = vmatprep.subr.mxu0 0.0
  %248 = vmatpush1.msra.mxu0 0.0
  %249 = vmatprep.mubr.f32.mxu0 0.0
  %250 = vmatmul.mubr.f32.gmra.mrb[0].mxu0 %v176
  %v251 = vpop.f32.mrb[0].mxu0
  %v252 = vadd.f32 %v172, %v251
  %v253 = vpop.f32.mrb[0].mxu0
  %254 = vmatprep.mubr.f32.mxu0 0.0
  %255 = vmatmul.mubr.f32.gmra.mrb[0].mxu0 %v179
  %v256 = vpop.f32.mrb[0].mxu0
  %v257 = vadd.f32 %v172, %v256
  %v258 = vpop.f32.mrb[0].mxu0
  %259 = vdwg.mxu0
  %vm260 = vcmask 261120
  %v262 = vsel %vm260, 0.0, 0
  %264 = vmatprep.subr.mxu0 0.0
  %265 = vmatpush1.msra.mxu0 %v160
  %266 = vmatprep.subr.mxu0 0.0
  %267 = vmatpush1.msra.mxu0 %v161
  %268 = vmatprep.subr.mxu0 0.0
  %269 = vmatpush1.msra.mxu0 %v162
  %270 = vmatprep.subr.mxu0 0.0
  %271 = vmatpush1.msra.mxu0 %v163
  %272 = vmatprep.subr.mxu0 0.0
  %273 = vmatpush1.msra.mxu0 0.0
  %274 = vmatprep.subr.mxu0 0.0
  %275 = vmatpush1.msra.mxu0 0.0
  %276 = vmatprep.subr.mxu0 0.0
  %277 = vmatpush1.msra.mxu0 0.0
  %278 = vmatprep.subr.mxu0 0.0
  %279 = vmatpush1.msra.mxu0 0.0
  %280 = vmatprep.subr.mxu0 0.0
  %281 = vmatpush1.msra.mxu0 0.0
  %282 = vmatprep.subr.mxu0 0.0
  %283 = vmatpush1.msra.mxu0 0.0
  %284 = vmatprep.subr.mxu0 0.0
  %285 = vmatpush1.msra.mxu0 0.0
  %286 = vmatprep.subr.mxu0 0.0
  %287 = vmatpush1.msra.mxu0 0.0
  %288 = vmatprep.subr.mxu0 0.0
  %289 = vmatpush1.msra.mxu0 0.0
  %290 = vmatprep.subr.mxu0 0.0
  %291 = vmatpush1.msra.mxu0 0.0
  %292 = vmatprep.subr.mxu0 0.0
  %293 = vmatpush1.msra.mxu0 0.0
  %294 = vmatprep.subr.mxu0 0.0
  %295 = vmatpush1.msra.mxu0 0.0
  %296 = vmatprep.subr.mxu0 0.0
  %297 = vmatpush1.msra.mxu0 0.0
  %298 = vmatprep.subr.mxu0 0.0
  %299 = vmatpush1.msra.mxu0 0.0
  %300 = vmatprep.subr.mxu0 0.0
  %301 = vmatpush1.msra.mxu0 0.0
  %302 = vmatprep.subr.mxu0 0.0
  %303 = vmatpush1.msra.mxu0 0.0
  %304 = vmatprep.subr.mxu0 0.0
  %305 = vmatpush1.msra.mxu0 0.0
  %306 = vmatprep.subr.mxu0 0.0
  %307 = vmatpush1.msra.mxu0 0.0
  %308 = vmatprep.subr.mxu0 0.0
  %309 = vmatpush1.msra.mxu0 0.0
  %310 = vmatprep.subr.mxu0 0.0
  %311 = vmatpush1.msra.mxu0 0.0
  %312 = vmatprep.subr.mxu0 0.0
  %313 = vmatpush1.msra.mxu0 0.0
  %314 = vmatprep.subr.mxu0 0.0
  %315 = vmatpush1.msra.mxu0 0.0
  %316 = vmatprep.subr.mxu0 0.0
  %317 = vmatpush1.msra.mxu0 0.0
  %318 = vmatprep.subr.mxu0 0.0
  %319 = vmatpush1.msra.mxu0 0.0
  %320 = vmatprep.subr.mxu0 0.0
  %321 = vmatpush1.msra.mxu0 0.0
  %322 = vmatprep.subr.mxu0 0.0
  %323 = vmatpush1.msra.mxu0 0.0
  %324 = vmatprep.subr.mxu0 0.0
  %325 = vmatpush1.msra.mxu0 0.0
  %326 = vmatprep.subr.mxu0 0.0
  %327 = vmatpush1.msra.mxu0 0.0
  %328 = vmatprep.mubr.f32.mxu0 0.0
  %329 = vmatmul.mubr.f32.gmra.mrb[0].mxu0 %v262
  %v330 = vpop.f32.mrb[0].mxu0
  %v331 = vadd.f32 0.0, %v330
  %v332 = vpop.f32.mrb[0].mxu0
  %333 = vdwg.mxu0
  %v334 = vadd.f32 %v252, %v331
  %v335 = vxor.u32 %v334, 2147483648
  %v336 = vmul.f32 %v335, 1.442695
  %v337 = vpow.pop %v336
  %v338 = vadd.f32 %v337, 1.0
  %v339 = vrcp.pop %v338
  %v340 = vmul.f32 1.0, %v339
  %v341 = vtanh.pop %v334
  %v342 = vmul.f32 %v340, 0.0
  %344 = vrot.lane.b32.xlu0 %v341, 64
  %v345 = vpop.permute.xlu0 %344
  %v347 = vmul.f32 %v340, %v345
  %349 = vrot.lane.b32.xlu0 %v347, 32
  %v350 = vpop.permute.xlu0 %349
  %v352 = vadd.f32 %v342, %v350
  %v353 = vtanh.pop %v352
  %355 = vrot.lane.b32.xlu0 %v353, 64
  %v356 = vpop.permute.xlu0 %355
  %v358 = vmul.f32 %v340, %v356
  %360 = vrot.lane.b32.xlu0 %v358, 32
  %v361 = vpop.permute.xlu0 %360
  %v362 = vsel %vm260, %v361, 0
  %364 = vmatprep.subr.mxu0 0.0
  %365 = vmatpush1.msra.mxu0 %v160
  %366 = vmatprep.subr.mxu0 0.0
  %367 = vmatpush1.msra.mxu0 %v161
  %368 = vmatprep.subr.mxu0 0.0
  %369 = vmatpush1.msra.mxu0 %v162
  %370 = vmatprep.subr.mxu0 0.0
  %371 = vmatpush1.msra.mxu0 %v163
  %372 = vmatprep.subr.mxu0 0.0
  %373 = vmatpush1.msra.mxu0 0.0
  %374 = vmatprep.subr.mxu0 0.0
  %375 = vmatpush1.msra.mxu0 0.0
  %376 = vmatprep.subr.mxu0 0.0
  %377 = vmatpush1.msra.mxu0 0.0
  %378 = vmatprep.subr.mxu0 0.0
  %379 = vmatpush1.msra.mxu0 0.0
  %380 = vmatprep.subr.mxu0 0.0
  %381 = vmatpush1.msra.mxu0 0.0
  %382 = vmatprep.subr.mxu0 0.0
  %383 = vmatpush1.msra.mxu0 0.0
  %384 = vmatprep.subr.mxu0 0.0
  %385 = vmatpush1.msra.mxu0 0.0
  %386 = vmatprep.subr.mxu0 0.0
  %387 = vmatpush1.msra.mxu0 0.0
  %388 = vmatprep.subr.mxu0 0.0
  %389 = vmatpush1.msra.mxu0 0.0
  %390 = vmatprep.subr.mxu0 0.0
  %391 = vmatpush1.msra.mxu0 0.0
  %392 = vmatprep.subr.mxu0 0.0
  %393 = vmatpush1.msra.mxu0 0.0
  %394 = vmatprep.subr.mxu0 0.0
  %395 = vmatpush1.msra.mxu0 0.0
  %396 = vmatprep.subr.mxu0 0.0
  %397 = vmatpush1.msra.mxu0 0.0
  %398 = vmatprep.subr.mxu0 0.0
  %399 = vmatpush1.msra.mxu0 0.0
  %400 = vmatprep.subr.mxu0 0.0
  %401 = vmatpush1.msra.mxu0 0.0
  %402 = vmatprep.subr.mxu0 0.0
  %403 = vmatpush1.msra.mxu0 0.0
  %404 = vmatprep.subr.mxu0 0.0
  %405 = vmatpush1.msra.mxu0 0.0
  %406 = vmatprep.subr.mxu0 0.0
  %407 = vmatpush1.msra.mxu0 0.0
  %408 = vmatprep.subr.mxu0 0.0
  %409 = vmatpush1.msra.mxu0 0.0
  %410 = vmatprep.subr.mxu0 0.0
  %411 = vmatpush1.msra.mxu0 0.0
  %412 = vmatprep.subr.mxu0 0.0
  %413 = vmatpush1.msra.mxu0 0.0
  %414 = vmatprep.subr.mxu0 0.0
  %415 = vmatpush1.msra.mxu0 0.0
  %416 = vmatprep.subr.mxu0 0.0
  %417 = vmatpush1.msra.mxu0 0.0
  %418 = vmatprep.subr.mxu0 0.0
  %419 = vmatpush1.msra.mxu0 0.0
  %420 = vmatprep.subr.mxu0 0.0
  %421 = vmatpush1.msra.mxu0 0.0
  %422 = vmatprep.subr.mxu0 0.0
  %423 = vmatpush1.msra.mxu0 0.0
  %424 = vmatprep.subr.mxu0 0.0
  %425 = vmatpush1.msra.mxu0 0.0
  %426 = vmatprep.subr.mxu0 0.0
  %427 = vmatpush1.msra.mxu0 0.0
  %428 = vmatprep.mubr.f32.mxu0 0.0
  %429 = vmatmul.mubr.f32.gmra.mrb[0].mxu0 %v362
  %v430 = vpop.f32.mrb[0].mxu0
  %v431 = vadd.f32 0.0, %v430
  %v432 = vpop.f32.mrb[0].mxu0
  %433 = vdwg.mxu0
  %v435 = vrot.slane %v431, 6
  %v437 = vadd.f32 %v252, %v435
  %v438 = vxor.u32 %v437, 2147483648
  %v439 = vmul.f32 %v438, 1.442695
  %v440 = vpow.pop %v439
  %v441 = vadd.f32 %v440, 1.0
  %v442 = vrcp.pop %v441
  %v443 = vmul.f32 1.0, %v442
  %v444 = vtanh.pop %v437
  %v446 = vrot.slane %v352, 6
  %v448 = vmul.f32 %v443, %v446
  %450 = vrot.lane.b32.xlu0 %v444, 64
  %v451 = vpop.permute.xlu0 %450
  %v453 = vmul.f32 %v443, %v451
  %455 = vrot.lane.b32.xlu0 %v453, 32
  %v456 = vpop.permute.xlu0 %455
  %v458 = vadd.f32 %v448, %v456
  %v459 = vtanh.pop %v458
  %461 = vrot.lane.b32.xlu0 %v459, 64
  %v462 = vpop.permute.xlu0 %461
  %v464 = vmul.f32 %v443, %v462
  %v466 = vrot.slane %v464, 2
  %467 = vrot.lane.b32.xlu0 %v466, 32
  %v468 = vpop.permute.xlu0 %467
  %v469 = vsel %vm260, %v468, 0
  %471 = vmatprep.subr.mxu0 0.0
  %472 = vmatpush1.msra.mxu0 %v160
  %473 = vmatprep.subr.mxu0 0.0
  %474 = vmatpush1.msra.mxu0 %v161
  %475 = vmatprep.subr.mxu0 0.0
  %476 = vmatpush1.msra.mxu0 %v162
  %477 = vmatprep.subr.mxu0 0.0
  %478 = vmatpush1.msra.mxu0 %v163
  %479 = vmatprep.subr.mxu0 0.0
  %480 = vmatpush1.msra.mxu0 0.0
  %481 = vmatprep.subr.mxu0 0.0
  %482 = vmatpush1.msra.mxu0 0.0
  %483 = vmatprep.subr.mxu0 0.0
  %484 = vmatpush1.msra.mxu0 0.0
  %485 = vmatprep.subr.mxu0 0.0
  %486 = vmatpush1.msra.mxu0 0.0
  %487 = vmatprep.subr.mxu0 0.0
  %488 = vmatpush1.msra.mxu0 0.0
  %489 = vmatprep.subr.mxu0 0.0
  %490 = vmatpush1.msra.mxu0 0.0
  %491 = vmatprep.subr.mxu0 0.0
  %492 = vmatpush1.msra.mxu0 0.0
  %493 = vmatprep.subr.mxu0 0.0
  %494 = vmatpush1.msra.mxu0 0.0
  %495 = vmatprep.subr.mxu0 0.0
  %496 = vmatpush1.msra.mxu0 0.0
  %497 = vmatprep.subr.mxu0 0.0
  %498 = vmatpush1.msra.mxu0 0.0
  %499 = vmatprep.subr.mxu0 0.0
  %500 = vmatpush1.msra.mxu0 0.0
  %501 = vmatprep.subr.mxu0 0.0
  %502 = vmatpush1.msra.mxu0 0.0
  %503 = vmatprep.subr.mxu0 0.0
  %504 = vmatpush1.msra.mxu0 0.0
  %505 = vmatprep.subr.mxu0 0.0
  %506 = vmatpush1.msra.mxu0 0.0
  %507 = vmatprep.subr.mxu0 0.0
  %508 = vmatpush1.msra.mxu0 0.0
  %509 = vmatprep.subr.mxu0 0.0
  %510 = vmatpush1.msra.mxu0 0.0
  %511 = vmatprep.subr.mxu0 0.0
  %512 = vmatpush1.msra.mxu0 0.0
  %513 = vmatprep.subr.mxu0 0.0
  %514 = vmatpush1.msra.mxu0 0.0
  %515 = vmatprep.subr.mxu0 0.0
  %516 = vmatpush1.msra.mxu0 0.0
  %517 = vmatprep.subr.mxu0 0.0
  %518 = vmatpush1.msra.mxu0 0.0
  %519 = vmatprep.subr.mxu0 0.0
  %520 = vmatpush1.msra.mxu0 0.0
  %521 = vmatprep.subr.mxu0 0.0
  %522 = vmatpush1.msra.mxu0 0.0
  %523 = vmatprep.subr.mxu0 0.0
  %524 = vmatpush1.msra.mxu0 0.0
  %525 = vmatprep.subr.mxu0 0.0
  %526 = vmatpush1.msra.mxu0 0.0
  %527 = vmatprep.subr.mxu0 0.0
  %528 = vmatpush1.msra.mxu0 0.0
  %529 = vmatprep.subr.mxu0 0.0
  %530 = vmatpush1.msra.mxu0 0.0
  %531 = vmatprep.subr.mxu0 0.0
  %532 = vmatpush1.msra.mxu0 0.0
  %533 = vmatprep.subr.mxu0 0.0
  %534 = vmatpush1.msra.mxu0 0.0
  %535 = vmatprep.mubr.f32.mxu0 0.0
  %536 = vmatmul.mubr.f32.gmra.mrb[0].mxu0 %v469
  %v537 = vpop.f32.mrb[0].mxu0
  %v538 = vadd.f32 0.0, %v537
  %v539 = vpop.f32.mrb[0].mxu0
  %540 = vdwg.mxu0
  %v542 = vrot.slane %v538, 4
  %v544 = vadd.f32 %v252, %v542
  %v545 = vxor.u32 %v544, 2147483648
  %v546 = vmul.f32 %v545, 1.442695
  %v547 = vpow.pop %v546
  %v548 = vadd.f32 %v547, 1.0
  %v549 = vrcp.pop %v548
  %v550 = vmul.f32 1.0, %v549
  %v551 = vtanh.pop %v544
  %v553 = vrot.slane %v458, 6
  %v555 = vmul.f32 %v550, %v553
  %557 = vrot.lane.b32.xlu0 %v551, 64
  %v558 = vpop.permute.xlu0 %557
  %v560 = vmul.f32 %v550, %v558
  %562 = vrot.lane.b32.xlu0 %v560, 32
  %v563 = vpop.permute.xlu0 %562
  %v565 = vadd.f32 %v555, %v563
  %v566 = vtanh.pop %v565
  %568 = vrot.lane.b32.xlu0 %v566, 64
  %v569 = vpop.permute.xlu0 %568
  %v571 = vmul.f32 %v550, %v569
  %v573 = vrot.slane %v571, 4
  %574 = vrot.lane.b32.xlu0 %v573, 32
  %v575 = vpop.permute.xlu0 %574
  %v576 = vsel %vm260, %v575, 0
  %578 = vmatprep.subr.mxu0 0.0
  %579 = vmatpush1.msra.mxu0 %v160
  %580 = vmatprep.subr.mxu0 0.0
  %581 = vmatpush1.msra.mxu0 %v161
  %582 = vmatprep.subr.mxu0 0.0
  %583 = vmatpush1.msra.mxu0 %v162
  %584 = vmatprep.subr.mxu0 0.0
  %585 = vmatpush1.msra.mxu0 %v163
  %586 = vmatprep.subr.mxu0 0.0
  %587 = vmatpush1.msra.mxu0 0.0
  %588 = vmatprep.subr.mxu0 0.0
  %589 = vmatpush1.msra.mxu0 0.0
  %590 = vmatprep.subr.mxu0 0.0
  %591 = vmatpush1.msra.mxu0 0.0
  %592 = vmatprep.subr.mxu0 0.0
  %593 = vmatpush1.msra.mxu0 0.0
  %594 = vmatprep.subr.mxu0 0.0
  %595 = vmatpush1.msra.mxu0 0.0
  %596 = vmatprep.subr.mxu0 0.0
  %597 = vmatpush1.msra.mxu0 0.0
  %598 = vmatprep.subr.mxu0 0.0
  %599 = vmatpush1.msra.mxu0 0.0
  %600 = vmatprep.subr.mxu0 0.0
  %601 = vmatpush1.msra.mxu0 0.0
  %602 = vmatprep.subr.mxu0 0.0
  %603 = vmatpush1.msra.mxu0 0.0
  %604 = vmatprep.subr.mxu0 0.0
  %605 = vmatpush1.msra.mxu0 0.0
  %606 = vmatprep.subr.mxu0 0.0
  %607 = vmatpush1.msra.mxu0 0.0
  %608 = vmatprep.subr.mxu0 0.0
  %609 = vmatpush1.msra.mxu0 0.0
  %610 = vmatprep.subr.mxu0 0.0
  %611 = vmatpush1.msra.mxu0 0.0
  %612 = vmatprep.subr.mxu0 0.0
  %613 = vmatpush1.msra.mxu0 0.0
  %614 = vmatprep.subr.mxu0 0.0
  %615 = vmatpush1.msra.mxu0 0.0
  %616 = vmatprep.subr.mxu0 0.0
  %617 = vmatpush1.msra.mxu0 0.0
  %618 = vmatprep.subr.mxu0 0.0
  %619 = vmatpush1.msra.mxu0 0.0
  %620 = vmatprep.subr.mxu0 0.0
  %621 = vmatpush1.msra.mxu0 0.0
  %622 = vmatprep.subr.mxu0 0.0
  %623 = vmatpush1.msra.mxu0 0.0
  %624 = vmatprep.subr.mxu0 0.0
  %625 = vmatpush1.msra.mxu0 0.0
  %626 = vmatprep.subr.mxu0 0.0
  %627 = vmatpush1.msra.mxu0 0.0
  %628 = vmatprep.subr.mxu0 0.0
  %629 = vmatpush1.msra.mxu0 0.0
  %630 = vmatprep.subr.mxu0 0.0
  %631 = vmatpush1.msra.mxu0 0.0
  %632 = vmatprep.subr.mxu0 0.0
  %633 = vmatpush1.msra.mxu0 0.0
  %634 = vmatprep.subr.mxu0 0.0
  %635 = vmatpush1.msra.mxu0 0.0
  %636 = vmatprep.subr.mxu0 0.0
  %637 = vmatpush1.msra.mxu0 0.0
  %638 = vmatprep.subr.mxu0 0.0
  %639 = vmatpush1.msra.mxu0 0.0
  %640 = vmatprep.subr.mxu0 0.0
  %641 = vmatpush1.msra.mxu0 0.0
  %642 = vmatprep.mubr.f32.mxu0 0.0
  %643 = vmatmul.mubr.f32.gmra.mrb[0].mxu0 %v576
  %v644 = vpop.f32.mrb[0].mxu0
  %v645 = vadd.f32 0.0, %v644
  %v646 = vpop.f32.mrb[0].mxu0
  %647 = vdwg.mxu0
  %v649 = vrot.slane %v645, 2
  %v651 = vadd.f32 %v252, %v649
  %v652 = vxor.u32 %v651, 2147483648
  %v653 = vmul.f32 %v652, 1.442695
  %v654 = vpow.pop %v653
  %v655 = vadd.f32 %v654, 1.0
  %v656 = vrcp.pop %v655
  %v657 = vmul.f32 1.0, %v656
  %v658 = vtanh.pop %v651
  %v660 = vrot.slane %v565, 6
  %v662 = vmul.f32 %v657, %v660
  %664 = vrot.lane.b32.xlu0 %v658, 64
  %v665 = vpop.permute.xlu0 %664
  %v667 = vmul.f32 %v657, %v665
  %669 = vrot.lane.b32.xlu0 %v667, 32
  %v670 = vpop.permute.xlu0 %669
  %v672 = vadd.f32 %v662, %v670
  %v673 = vtanh.pop %v672
  %675 = vrot.lane.b32.xlu0 %v673, 64
  %v676 = vpop.permute.xlu0 %675
  %v678 = vmul.f32 %v657, %v676
  %v680 = vrot.slane %v678, 6
  %681 = vrot.lane.b32.xlu0 %v680, 32
  %v682 = vpop.permute.xlu0 %681
  %v683 = vsel %vm260, %v682, 0
  %685 = vmatprep.subr.mxu0 0.0
  %686 = vmatpush1.msra.mxu0 %v160
  %687 = vmatprep.subr.mxu0 0.0
  %688 = vmatpush1.msra.mxu0 %v161
  %689 = vmatprep.subr.mxu0 0.0
  %690 = vmatpush1.msra.mxu0 %v162
  %691 = vmatprep.subr.mxu0 0.0
  %692 = vmatpush1.msra.mxu0 %v163
  %693 = vmatprep.subr.mxu0 0.0
  %694 = vmatpush1.msra.mxu0 0.0
  %695 = vmatprep.subr.mxu0 0.0
  %696 = vmatpush1.msra.mxu0 0.0
  %697 = vmatprep.subr.mxu0 0.0
  %698 = vmatpush1.msra.mxu0 0.0
  %699 = vmatprep.subr.mxu0 0.0
  %700 = vmatpush1.msra.mxu0 0.0
  %701 = vmatprep.subr.mxu0 0.0
  %702 = vmatpush1.msra.mxu0 0.0
  %703 = vmatprep.subr.mxu0 0.0
  %704 = vmatpush1.msra.mxu0 0.0
  %705 = vmatprep.subr.mxu0 0.0
  %706 = vmatpush1.msra.mxu0 0.0
  %707 = vmatprep.subr.mxu0 0.0
  %708 = vmatpush1.msra.mxu0 0.0
  %709 = vmatprep.subr.mxu0 0.0
  %710 = vmatpush1.msra.mxu0 0.0
  %711 = vmatprep.subr.mxu0 0.0
  %712 = vmatpush1.msra.mxu0 0.0
  %713 = vmatprep.subr.mxu0 0.0
  %714 = vmatpush1.msra.mxu0 0.0
  %715 = vmatprep.subr.mxu0 0.0
  %716 = vmatpush1.msra.mxu0 0.0
  %717 = vmatprep.subr.mxu0 0.0
  %718 = vmatpush1.msra.mxu0 0.0
  %719 = vmatprep.subr.mxu0 0.0
  %720 = vmatpush1.msra.mxu0 0.0
  %721 = vmatprep.subr.mxu0 0.0
  %722 = vmatpush1.msra.mxu0 0.0
  %723 = vmatprep.subr.mxu0 0.0
  %724 = vmatpush1.msra.mxu0 0.0
  %725 = vmatprep.subr.mxu0 0.0
  %726 = vmatpush1.msra.mxu0 0.0
  %727 = vmatprep.subr.mxu0 0.0
  %728 = vmatpush1.msra.mxu0 0.0
  %729 = vmatprep.subr.mxu0 0.0
  %730 = vmatpush1.msra.mxu0 0.0
  %731 = vmatprep.subr.mxu0 0.0
  %732 = vmatpush1.msra.mxu0 0.0
  %733 = vmatprep.subr.mxu0 0.0
  %734 = vmatpush1.msra.mxu0 0.0
  %735 = vmatprep.subr.mxu0 0.0
  %736 = vmatpush1.msra.mxu0 0.0
  %737 = vmatprep.subr.mxu0 0.0
  %738 = vmatpush1.msra.mxu0 0.0
  %739 = vmatprep.subr.mxu0 0.0
  %740 = vmatpush1.msra.mxu0 0.0
  %741 = vmatprep.subr.mxu0 0.0
  %742 = vmatpush1.msra.mxu0 0.0
  %743 = vmatprep.subr.mxu0 0.0
  %744 = vmatpush1.msra.mxu0 0.0
  %745 = vmatprep.subr.mxu0 0.0
  %746 = vmatpush1.msra.mxu0 0.0
  %747 = vmatprep.subr.mxu0 0.0
  %748 = vmatpush1.msra.mxu0 0.0
  %749 = vmatprep.mubr.f32.mxu0 0.0
  %750 = vmatmul.mubr.f32.gmra.mrb[0].mxu0 %v683
  %v751 = vpop.f32.mrb[0].mxu0
  %v752 = vadd.f32 0.0, %v751
  %v753 = vpop.f32.mrb[0].mxu0
  %754 = vdwg.mxu0
  %v755 = vadd.f32 %v257, %v752
  %v756 = vxor.u32 %v755, 2147483648
  %v757 = vmul.f32 %v756, 1.442695
  %v758 = vpow.pop %v757
  %v759 = vadd.f32 %v758, 1.0
  %v760 = vrcp.pop %v759
  %v761 = vmul.f32 1.0, %v760
  %v762 = vtanh.pop %v755
  %v764 = vrot.slane %v672, 6
  %v766 = vmul.f32 %v761, %v764
  %768 = vrot.lane.b32.xlu0 %v762, 64
  %v769 = vpop.permute.xlu0 %768
  %v771 = vmul.f32 %v761, %v769
  %773 = vrot.lane.b32.xlu0 %v771, 32
  %v774 = vpop.permute.xlu0 %773
  %v776 = vadd.f32 %v766, %v774
  %v777 = vtanh.pop %v776
  %779 = vrot.lane.b32.xlu0 %v777, 64
  %v780 = vpop.permute.xlu0 %779
  %v782 = vmul.f32 %v761, %v780
  %784 = vrot.lane.b32.xlu0 %v782, 32
  %v785 = vpop.permute.xlu0 %784
  %v786 = vsel %vm260, %v785, 0
  %788 = vmatprep.subr.mxu0 0.0
  %789 = vmatpush1.msra.mxu0 %v160
  %790 = vmatprep.subr.mxu0 0.0
  %791 = vmatpush1.msra.mxu0 %v161
  %792 = vmatprep.subr.mxu0 0.0
  %793 = vmatpush1.msra.mxu0 %v162
  %794 = vmatprep.subr.mxu0 0.0
  %795 = vmatpush1.msra.mxu0 %v163
  %796 = vmatprep.subr.mxu0 0.0
  %797 = vmatpush1.msra.mxu0 0.0
  %798 = vmatprep.subr.mxu0 0.0
  %799 = vmatpush1.msra.mxu0 0.0
  %800 = vmatprep.subr.mxu0 0.0
  %801 = vmatpush1.msra.mxu0 0.0
  %802 = vmatprep.subr.mxu0 0.0
  %803 = vmatpush1.msra.mxu0 0.0
  %804 = vmatprep.subr.mxu0 0.0
  %805 = vmatpush1.msra.mxu0 0.0
  %806 = vmatprep.subr.mxu0 0.0
  %807 = vmatpush1.msra.mxu0 0.0
  %808 = vmatprep.subr.mxu0 0.0
  %809 = vmatpush1.msra.mxu0 0.0
  %810 = vmatprep.subr.mxu0 0.0
  %811 = vmatpush1.msra.mxu0 0.0
  %812 = vmatprep.subr.mxu0 0.0
  %813 = vmatpush1.msra.mxu0 0.0
  %814 = vmatprep.subr.mxu0 0.0
  %815 = vmatpush1.msra.mxu0 0.0
  %816 = vmatprep.subr.mxu0 0.0
  %817 = vmatpush1.msra.mxu0 0.0
  %818 = vmatprep.subr.mxu0 0.0
  %819 = vmatpush1.msra.mxu0 0.0
  %820 = vmatprep.subr.mxu0 0.0
  %821 = vmatpush1.msra.mxu0 0.0
  %822 = vmatprep.subr.mxu0 0.0
  %823 = vmatpush1.msra.mxu0 0.0
  %824 = vmatprep.subr.mxu0 0.0
  %825 = vmatpush1.msra.mxu0 0.0
  %826 = vmatprep.subr.mxu0 0.0
  %827 = vmatpush1.msra.mxu0 0.0
  %828 = vmatprep.subr.mxu0 0.0
  %829 = vmatpush1.msra.mxu0 0.0
  %830 = vmatprep.subr.mxu0 0.0
  %831 = vmatpush1.msra.mxu0 0.0
  %832 = vmatprep.subr.mxu0 0.0
  %833 = vmatpush1.msra.mxu0 0.0
  %834 = vmatprep.subr.mxu0 0.0
  %835 = vmatpush1.msra.mxu0 0.0
  %836 = vmatprep.subr.mxu0 0.0
  %837 = vmatpush1.msra.mxu0 0.0
  %838 = vmatprep.subr.mxu0 0.0
  %839 = vmatpush1.msra.mxu0 0.0
  %840 = vmatprep.subr.mxu0 0.0
  %841 = vmatpush1.msra.mxu0 0.0
  %842 = vmatprep.subr.mxu0 0.0
  %843 = vmatpush1.msra.mxu0 0.0
  %844 = vmatprep.subr.mxu0 0.0
  %845 = vmatpush1.msra.mxu0 0.0
  %846 = vmatprep.subr.mxu0 0.0
  %847 = vmatpush1.msra.mxu0 0.0
  %848 = vmatprep.subr.mxu0 0.0
  %849 = vmatpush1.msra.mxu0 0.0
  %850 = vmatprep.subr.mxu0 0.0
  %851 = vmatpush1.msra.mxu0 0.0
  %852 = vmatprep.mubr.f32.mxu0 0.0
  %853 = vmatmul.mubr.f32.gmra.mrb[0].mxu0 %v786
  %v854 = vpop.f32.mrb[0].mxu0
  %v855 = vadd.f32 0.0, %v854
  %v856 = vpop.f32.mrb[0].mxu0
  %857 = vdwg.mxu0
  %v859 = vrot.slane %v855, 6
  %v861 = vadd.f32 %v257, %v859
  %v862 = vxor.u32 %v861, 2147483648
  %v863 = vmul.f32 %v862, 1.442695
  %v864 = vpow.pop %v863
  %v865 = vadd.f32 %v864, 1.0
  %v866 = vrcp.pop %v865
  %v867 = vmul.f32 1.0, %v866
  %v868 = vtanh.pop %v861
  %v870 = vrot.slane %v776, 6
  %v872 = vmul.f32 %v867, %v870
  %874 = vrot.lane.b32.xlu0 %v868, 64
  %v875 = vpop.permute.xlu0 %874
  %v877 = vmul.f32 %v867, %v875
  %879 = vrot.lane.b32.xlu0 %v877, 32
  %v880 = vpop.permute.xlu0 %879
  %v882 = vadd.f32 %v872, %v880
  %v883 = vtanh.pop %v882
  %885 = vrot.lane.b32.xlu0 %v883, 64
  %v886 = vpop.permute.xlu0 %885
  %v888 = vmul.f32 %v867, %v886
  %v890 = vrot.slane %v888, 2
  %891 = vrot.lane.b32.xlu0 %v890, 32
  %v892 = vpop.permute.xlu0 %891
  %v893 = vsel %vm260, %v892, 0
  %895 = vmatprep.subr.mxu0 0.0
  %896 = vmatpush1.msra.mxu0 %v160
  %897 = vmatprep.subr.mxu0 0.0
  %898 = vmatpush1.msra.mxu0 %v161
  %899 = vmatprep.subr.mxu0 0.0
  %900 = vmatpush1.msra.mxu0 %v162
  %901 = vmatprep.subr.mxu0 0.0
  %902 = vmatpush1.msra.mxu0 %v163
  %903 = vmatprep.subr.mxu0 0.0
  %904 = vmatpush1.msra.mxu0 0.0
  %905 = vmatprep.subr.mxu0 0.0
  %906 = vmatpush1.msra.mxu0 0.0
  %907 = vmatprep.subr.mxu0 0.0
  %908 = vmatpush1.msra.mxu0 0.0
  %909 = vmatprep.subr.mxu0 0.0
  %910 = vmatpush1.msra.mxu0 0.0
  %911 = vmatprep.subr.mxu0 0.0
  %912 = vmatpush1.msra.mxu0 0.0
  %913 = vmatprep.subr.mxu0 0.0
  %914 = vmatpush1.msra.mxu0 0.0
  %915 = vmatprep.subr.mxu0 0.0
  %916 = vmatpush1.msra.mxu0 0.0
  %917 = vmatprep.subr.mxu0 0.0
  %918 = vmatpush1.msra.mxu0 0.0
  %919 = vmatprep.subr.mxu0 0.0
  %920 = vmatpush1.msra.mxu0 0.0
  %921 = vmatprep.subr.mxu0 0.0
  %922 = vmatpush1.msra.mxu0 0.0
  %923 = vmatprep.subr.mxu0 0.0
  %924 = vmatpush1.msra.mxu0 0.0
  %925 = vmatprep.subr.mxu0 0.0
  %926 = vmatpush1.msra.mxu0 0.0
  %927 = vmatprep.subr.mxu0 0.0
  %928 = vmatpush1.msra.mxu0 0.0
  %929 = vmatprep.subr.mxu0 0.0
  %930 = vmatpush1.msra.mxu0 0.0
  %931 = vmatprep.subr.mxu0 0.0
  %932 = vmatpush1.msra.mxu0 0.0
  %933 = vmatprep.subr.mxu0 0.0
  %934 = vmatpush1.msra.mxu0 0.0
  %935 = vmatprep.subr.mxu0 0.0
  %936 = vmatpush1.msra.mxu0 0.0
  %937 = vmatprep.subr.mxu0 0.0
  %938 = vmatpush1.msra.mxu0 0.0
  %939 = vmatprep.subr.mxu0 0.0
  %940 = vmatpush1.msra.mxu0 0.0
  %941 = vmatprep.subr.mxu0 0.0
  %942 = vmatpush1.msra.mxu0 0.0
  %943 = vmatprep.subr.mxu0 0.0
  %944 = vmatpush1.msra.mxu0 0.0
  %945 = vmatprep.subr.mxu0 0.0
  %946 = vmatpush1.msra.mxu0 0.0
  %947 = vmatprep.subr.mxu0 0.0
  %948 = vmatpush1.msra.mxu0 0.0
  %949 = vmatprep.subr.mxu0 0.0
  %950 = vmatpush1.msra.mxu0 0.0
  %951 = vmatprep.subr.mxu0 0.0
  %952 = vmatpush1.msra.mxu0 0.0
  %953 = vmatprep.subr.mxu0 0.0
  %954 = vmatpush1.msra.mxu0 0.0
  %955 = vmatprep.subr.mxu0 0.0
  %956 = vmatpush1.msra.mxu0 0.0
  %957 = vmatprep.subr.mxu0 0.0
  %958 = vmatpush1.msra.mxu0 0.0
  %959 = vmatprep.mubr.f32.mxu0 0.0
  %960 = vmatmul.mubr.f32.gmra.mrb[0].mxu0 %v893
  %v961 = vpop.f32.mrb[0].mxu0
  %v962 = vadd.f32 0.0, %v961
  %v963 = vpop.f32.mrb[0].mxu0
  %964 = vdwg.mxu0
  %v966 = vrot.slane %v962, 4
  %v968 = vadd.f32 %v257, %v966
  %v969 = vxor.u32 %v968, 2147483648
  %v970 = vmul.f32 %v969, 1.442695
  %v971 = vpow.pop %v970
  %v972 = vadd.f32 %v971, 1.0
  %v973 = vrcp.pop %v972
  %v974 = vmul.f32 1.0, %v973
  %v975 = vtanh.pop %v968
  %v977 = vrot.slane %v882, 6
  %v979 = vmul.f32 %v974, %v977
  %981 = vrot.lane.b32.xlu0 %v975, 64
  %v982 = vpop.permute.xlu0 %981
  %v984 = vmul.f32 %v974, %v982
  %986 = vrot.lane.b32.xlu0 %v984, 32
  %v987 = vpop.permute.xlu0 %986
  %v989 = vadd.f32 %v979, %v987
  %v990 = vtanh.pop %v989
  %992 = vrot.lane.b32.xlu0 %v990, 64
  %v993 = vpop.permute.xlu0 %992
  %v995 = vmul.f32 %v974, %v993
  %v997 = vrot.slane %v995, 4
  %998 = vrot.lane.b32.xlu0 %v997, 32
  %v999 = vpop.permute.xlu0 %998
  %v1000 = vsel %vm260, %v999, 0
  %1002 = vmatprep.subr.mxu0 0.0
  %1003 = vmatpush1.msra.mxu0 %v160
  %1004 = vmatprep.subr.mxu0 0.0
  %1005 = vmatpush1.msra.mxu0 %v161
  %1006 = vmatprep.subr.mxu0 0.0
  %1007 = vmatpush1.msra.mxu0 %v162
  %1008 = vmatprep.subr.mxu0 0.0
  %1009 = vmatpush1.msra.mxu0 %v163
  %1010 = vmatprep.subr.mxu0 0.0
  %1011 = vmatpush1.msra.mxu0 0.0
  %1012 = vmatprep.subr.mxu0 0.0
  %1013 = vmatpush1.msra.mxu0 0.0
  %1014 = vmatprep.subr.mxu0 0.0
  %1015 = vmatpush1.msra.mxu0 0.0
  %1016 = vmatprep.subr.mxu0 0.0
  %1017 = vmatpush1.msra.mxu0 0.0
  %1018 = vmatprep.subr.mxu0 0.0
  %1019 = vmatpush1.msra.mxu0 0.0
  %1020 = vmatprep.subr.mxu0 0.0
  %1021 = vmatpush1.msra.mxu0 0.0
  %1022 = vmatprep.subr.mxu0 0.0
  %1023 = vmatpush1.msra.mxu0 0.0
  %1024 = vmatprep.subr.mxu0 0.0
  %1025 = vmatpush1.msra.mxu0 0.0
  %1026 = vmatprep.subr.mxu0 0.0
  %1027 = vmatpush1.msra.mxu0 0.0
  %1028 = vmatprep.subr.mxu0 0.0
  %1029 = vmatpush1.msra.mxu0 0.0
  %1030 = vmatprep.subr.mxu0 0.0
  %1031 = vmatpush1.msra.mxu0 0.0
  %1032 = vmatprep.subr.mxu0 0.0
  %1033 = vmatpush1.msra.mxu0 0.0
  %1034 = vmatprep.subr.mxu0 0.0
  %1035 = vmatpush1.msra.mxu0 0.0
  %1036 = vmatprep.subr.mxu0 0.0
  %1037 = vmatpush1.msra.mxu0 0.0
  %1038 = vmatprep.subr.mxu0 0.0
  %1039 = vmatpush1.msra.mxu0 0.0
  %1040 = vmatprep.subr.mxu0 0.0
  %1041 = vmatpush1.msra.mxu0 0.0
  %1042 = vmatprep.subr.mxu0 0.0
  %1043 = vmatpush1.msra.mxu0 0.0
  %1044 = vmatprep.subr.mxu0 0.0
  %1045 = vmatpush1.msra.mxu0 0.0
  %1046 = vmatprep.subr.mxu0 0.0
  %1047 = vmatpush1.msra.mxu0 0.0
  %1048 = vmatprep.subr.mxu0 0.0
  %1049 = vmatpush1.msra.mxu0 0.0
  %1050 = vmatprep.subr.mxu0 0.0
  %1051 = vmatpush1.msra.mxu0 0.0
  %1052 = vmatprep.subr.mxu0 0.0
  %1053 = vmatpush1.msra.mxu0 0.0
  %1054 = vmatprep.subr.mxu0 0.0
  %1055 = vmatpush1.msra.mxu0 0.0
  %1056 = vmatprep.subr.mxu0 0.0
  %1057 = vmatpush1.msra.mxu0 0.0
  %1058 = vmatprep.subr.mxu0 0.0
  %1059 = vmatpush1.msra.mxu0 0.0
  %1060 = vmatprep.subr.mxu0 0.0
  %1061 = vmatpush1.msra.mxu0 0.0
  %1062 = vmatprep.subr.mxu0 0.0
  %1063 = vmatpush1.msra.mxu0 0.0
  %1064 = vmatprep.subr.mxu0 0.0
  %1065 = vmatpush1.msra.mxu0 0.0
  %1066 = vmatprep.mubr.f32.mxu0 0.0
  %1067 = vmatmul.mubr.f32.gmra.mrb[0].mxu0 %v1000
  %v1068 = vpop.f32.mrb[0].mxu0
  %v1069 = vadd.f32 0.0, %v1068
  %v1070 = vpop.f32.mrb[0].mxu0
  %1071 = vdwg.mxu0
  %v1073 = vrot.slane %v1069, 2
  %v1075 = vadd.f32 %v257, %v1073
  %v1076 = vxor.u32 %v1075, 2147483648
  %v1077 = vmul.f32 %v1076, 1.442695
  %v1078 = vpow.pop %v1077
  %v1079 = vadd.f32 %v1078, 1.0
  %v1080 = vrcp.pop %v1079
  %v1081 = vmul.f32 1.0, %v1080
  %v1082 = vtanh.pop %v1075
  %v1084 = vrot.slane %v989, 6
  %v1086 = vmul.f32 %v1081, %v1084
  %1088 = vrot.lane.b32.xlu0 %v1082, 64
  %v1089 = vpop.permute.xlu0 %1088
  %v1091 = vmul.f32 %v1081, %v1089
  %1093 = vrot.lane.b32.xlu0 %v1091, 32
  %v1094 = vpop.permute.xlu0 %1093
  %v1096 = vadd.f32 %v1086, %v1094
  %v1097 = vtanh.pop %v1096
  %1099 = vrot.lane.b32.xlu0 %v1097, 64
  %v1100 = vpop.permute.xlu0 %1099
  %v1102 = vmul.f32 %v1081, %v1100
  %vm1103 = vcmask 1041408
  %v1104 = vsel %vm1103, %v358, %v464
  %v1105 = vsel %vm181, %v1104, %v571
  %vm1106 = vcmask 1045504
  %v1107 = vsel %vm1106, %v1105, %v678
  %v1108 = vsel %vm1103, %v782, %v888
  %v1109 = vsel %vm181, %v1108, %v995
  %v1110 = vsel %vm1106, %v1109, %v1102
  %1113 = vrot.lane.b32.xlu0 %v1107, 32
  %v1114 = vpop.permute.xlu0 %1113
  %1115 = vrot.lane.b32.xlu0 %v1110, 32
  %v1116 = vpop.permute.xlu0 %1115
  %1119 = vrot.lane.b32.xlu0 %v158, 32
  %v1120 = vpop.permute.xlu0 %1119
  %1121 = vrot.lane.b32.xlu0 %v159, 32
  %v1122 = vpop.permute.xlu0 %1121
  %v1125 = vsel %vm260, %v1114, %v1120
  %v1126 = vsel %vm260, %v1116, %v1122
  %v1127 = vmax.f32 %v1125, 0.0
  %v1128 = vmax.f32 %v1126, 0.0
  %v1129 = vld [vmem:[%s13] sm:$0xff]
  %v1130 = vld [vmem:[%s13 + $0x8] sm:$0xff]
  %v1131 = vld [vmem:[%s13 + $0x10] sm:$0xff]
  %v1132 = vld [vmem:[%s13 + $0x18] sm:$0xff]
  %v1133 = vld [vmem:[%s11] sm:$0xff]
  %v1134 = vld [vmem:[%s11 + $0x8] sm:$0xff]
  %v1135 = vld [vmem:[%s11 + $0x10] sm:$0xff]
  %v1136 = vld [vmem:[%s11 + $0x18] sm:$0xff]
  %v1137 = vld [vmem:[%s11 + $0x20] sm:$0xff]
  %v1138 = vld [vmem:[%s11 + $0x28] sm:$0xff]
  %v1139 = vld [vmem:[%s11 + $0x30] sm:$0xf]
  %v1140 = vld [vmem:[%s15] sm:$0x1]
  %v1142 = vlaneseq
  %v1143 = vshrl.u32 %v1142, 7
  %v1144 = vsub.s32 0, %v1143
  %v1145 = vrot.slane %v1140, %v1144
  %vm1147 = vcmask 424960
  %v1149 = vsel %vm1147, %v1127, 0
  %v1152 = vsel %vm1147, %v1128, 0
  %v1155 = vsel %vm181, %v1139, 0
  %1157 = vmatprep.subr.mxu0 0.0
  %1158 = vmatpush1.msra.mxu0 %v1133
  %1159 = vmatprep.subr.mxu0 0.0
  %1160 = vmatpush1.msra.mxu0 %v1134
  %1161 = vmatprep.subr.mxu0 0.0
  %1162 = vmatpush1.msra.mxu0 %v1135
  %1163 = vmatprep.subr.mxu0 0.0
  %1164 = vmatpush1.msra.mxu0 %v1136
  %1165 = vmatprep.subr.mxu0 0.0
  %1166 = vmatpush1.msra.mxu0 %v1137
  %1167 = vmatprep.subr.mxu0 0.0
  %1168 = vmatpush1.msra.mxu0 %v1138
  %1169 = vmatprep.subr.mxu0 0.0
  %1170 = vmatpush1.msra.mxu0 %v1155
  %1171 = vmatprep.subr.mxu0 0.0
  %1172 = vmatpush1.msra.mxu0 0.0
  %1173 = vmatprep.subr.mxu0 0.0
  %1174 = vmatpush1.msra.mxu0 0.0
  %1175 = vmatprep.subr.mxu0 0.0
  %1176 = vmatpush1.msra.mxu0 0.0
  %1177 = vmatprep.subr.mxu0 0.0
  %1178 = vmatpush1.msra.mxu0 0.0
  %1179 = vmatprep.subr.mxu0 0.0
  %1180 = vmatpush1.msra.mxu0 0.0
  %1181 = vmatprep.subr.mxu0 0.0
  %1182 = vmatpush1.msra.mxu0 0.0
  %1183 = vmatprep.subr.mxu0 0.0
  %1184 = vmatpush1.msra.mxu0 0.0
  %1185 = vmatprep.subr.mxu0 0.0
  %1186 = vmatpush1.msra.mxu0 0.0
  %1187 = vmatprep.subr.mxu0 0.0
  %1188 = vmatpush1.msra.mxu0 0.0
  %1189 = vmatprep.subr.mxu0 0.0
  %1190 = vmatpush1.msra.mxu0 0.0
  %1191 = vmatprep.subr.mxu0 0.0
  %1192 = vmatpush1.msra.mxu0 0.0
  %1193 = vmatprep.subr.mxu0 0.0
  %1194 = vmatpush1.msra.mxu0 0.0
  %1195 = vmatprep.subr.mxu0 0.0
  %1196 = vmatpush1.msra.mxu0 0.0
  %1197 = vmatprep.subr.mxu0 0.0
  %1198 = vmatpush1.msra.mxu0 0.0
  %1199 = vmatprep.subr.mxu0 0.0
  %1200 = vmatpush1.msra.mxu0 0.0
  %1201 = vmatprep.subr.mxu0 0.0
  %1202 = vmatpush1.msra.mxu0 0.0
  %1203 = vmatprep.subr.mxu0 0.0
  %1204 = vmatpush1.msra.mxu0 0.0
  %1205 = vmatprep.subr.mxu0 0.0
  %1206 = vmatpush1.msra.mxu0 0.0
  %1207 = vmatprep.subr.mxu0 0.0
  %1208 = vmatpush1.msra.mxu0 0.0
  %1209 = vmatprep.subr.mxu0 0.0
  %1210 = vmatpush1.msra.mxu0 0.0
  %1211 = vmatprep.subr.mxu0 0.0
  %1212 = vmatpush1.msra.mxu0 0.0
  %1213 = vmatprep.subr.mxu0 0.0
  %1214 = vmatpush1.msra.mxu0 0.0
  %1215 = vmatprep.subr.mxu0 0.0
  %1216 = vmatpush1.msra.mxu0 0.0
  %1217 = vmatprep.subr.mxu0 0.0
  %1218 = vmatpush1.msra.mxu0 0.0
  %1219 = vmatprep.subr.mxu0 0.0
  %1220 = vmatpush1.msra.mxu0 0.0
  %1221 = vmatprep.mubr.f32.mxu0 0.0
  %1222 = vmatmul.mubr.f32.gmra.mrb[0].mxu0 %v1149
  %v1223 = vpop.f32.mrb[0].mxu0
  %v1224 = vadd.f32 %v1145, %v1223
  %v1225 = vpop.f32.mrb[0].mxu0
  %1226 = vmatprep.mubr.f32.mxu0 0.0
  %1227 = vmatmul.mubr.f32.gmra.mrb[0].mxu0 %v1152
  %v1228 = vpop.f32.mrb[0].mxu0
  %v1229 = vadd.f32 %v1145, %v1228
  %v1230 = vpop.f32.mrb[0].mxu0
  %1231 = vdwg.mxu0
  %1232 = vmatprep.subr.mxu0 0.0
  %1233 = vmatpush1.msra.mxu0 %v1129
  %1234 = vmatprep.subr.mxu0 0.0
  %1235 = vmatpush1.msra.mxu0 %v1130
  %1236 = vmatprep.subr.mxu0 0.0
  %1237 = vmatpush1.msra.mxu0 %v1131
  %1238 = vmatprep.subr.mxu0 0.0
  %1239 = vmatpush1.msra.mxu0 %v1132
  %1240 = vmatprep.subr.mxu0 0.0
  %1241 = vmatpush1.msra.mxu0 0.0
  %1242 = vmatprep.subr.mxu0 0.0
  %1243 = vmatpush1.msra.mxu0 0.0
  %1244 = vmatprep.subr.mxu0 0.0
  %1245 = vmatpush1.msra.mxu0 0.0
  %1246 = vmatprep.subr.mxu0 0.0
  %1247 = vmatpush1.msra.mxu0 0.0
  %1248 = vmatprep.subr.mxu0 0.0
  %1249 = vmatpush1.msra.mxu0 0.0
  %1250 = vmatprep.subr.mxu0 0.0
  %1251 = vmatpush1.msra.mxu0 0.0
  %1252 = vmatprep.subr.mxu0 0.0
  %1253 = vmatpush1.msra.mxu0 0.0
  %1254 = vmatprep.subr.mxu0 0.0
  %1255 = vmatpush1.msra.mxu0 0.0
  %1256 = vmatprep.subr.mxu0 0.0
  %1257 = vmatpush1.msra.mxu0 0.0
  %1258 = vmatprep.subr.mxu0 0.0
  %1259 = vmatpush1.msra.mxu0 0.0
  %1260 = vmatprep.subr.mxu0 0.0
  %1261 = vmatpush1.msra.mxu0 0.0
  %1262 = vmatprep.subr.mxu0 0.0
  %1263 = vmatpush1.msra.mxu0 0.0
  %1264 = vmatprep.subr.mxu0 0.0
  %1265 = vmatpush1.msra.mxu0 0.0
  %1266 = vmatprep.subr.mxu0 0.0
  %1267 = vmatpush1.msra.mxu0 0.0
  %1268 = vmatprep.subr.mxu0 0.0
  %1269 = vmatpush1.msra.mxu0 0.0
  %1270 = vmatprep.subr.mxu0 0.0
  %1271 = vmatpush1.msra.mxu0 0.0
  %1272 = vmatprep.subr.mxu0 0.0
  %1273 = vmatpush1.msra.mxu0 0.0
  %1274 = vmatprep.subr.mxu0 0.0
  %1275 = vmatpush1.msra.mxu0 0.0
  %1276 = vmatprep.subr.mxu0 0.0
  %1277 = vmatpush1.msra.mxu0 0.0
  %1278 = vmatprep.subr.mxu0 0.0
  %1279 = vmatpush1.msra.mxu0 0.0
  %1280 = vmatprep.subr.mxu0 0.0
  %1281 = vmatpush1.msra.mxu0 0.0
  %1282 = vmatprep.subr.mxu0 0.0
  %1283 = vmatpush1.msra.mxu0 0.0
  %1284 = vmatprep.subr.mxu0 0.0
  %1285 = vmatpush1.msra.mxu0 0.0
  %1286 = vmatprep.subr.mxu0 0.0
  %1287 = vmatpush1.msra.mxu0 0.0
  %1288 = vmatprep.subr.mxu0 0.0
  %1289 = vmatpush1.msra.mxu0 0.0
  %1290 = vmatprep.subr.mxu0 0.0
  %1291 = vmatpush1.msra.mxu0 0.0
  %1292 = vmatprep.subr.mxu0 0.0
  %1293 = vmatpush1.msra.mxu0 0.0
  %1294 = vmatprep.subr.mxu0 0.0
  %1295 = vmatpush1.msra.mxu0 0.0
  %1296 = vmatprep.mubr.f32.mxu0 0.0
  %1297 = vmatmul.mubr.f32.gmra.mrb[0].mxu0 %v262
  %v1298 = vpop.f32.mrb[0].mxu0
  %v1299 = vadd.f32 0.0, %v1298
  %v1300 = vpop.f32.mrb[0].mxu0
  %1301 = vdwg.mxu0
  %v1302 = vadd.f32 %v1224, %v1299
  %v1303 = vxor.u32 %v1302, 2147483648
  %v1304 = vmul.f32 %v1303, 1.442695
  %v1305 = vpow.pop %v1304
  %v1306 = vadd.f32 %v1305, 1.0
  %v1307 = vrcp.pop %v1306
  %v1308 = vmul.f32 1.0, %v1307
  %v1309 = vtanh.pop %v1302
  %v1310 = vmul.f32 %v1308, 0.0
  %1312 = vrot.lane.b32.xlu0 %v1309, 64
  %v1313 = vpop.permute.xlu0 %1312
  %v1315 = vmul.f32 %v1308, %v1313
  %1317 = vrot.lane.b32.xlu0 %v1315, 32
  %v1318 = vpop.permute.xlu0 %1317
  %v1320 = vadd.f32 %v1310, %v1318
  %v1321 = vtanh.pop %v1320
  %1323 = vrot.lane.b32.xlu0 %v1321, 64
  %v1324 = vpop.permute.xlu0 %1323
  %v1326 = vmul.f32 %v1308, %v1324
  %1328 = vrot.lane.b32.xlu0 %v1326, 32
  %v1329 = vpop.permute.xlu0 %1328
  %v1330 = vsel %vm260, %v1329, 0
  %1332 = vmatprep.subr.mxu0 0.0
  %1333 = vmatpush1.msra.mxu0 %v1129
  %1334 = vmatprep.subr.mxu0 0.0
  %1335 = vmatpush1.msra.mxu0 %v1130
  %1336 = vmatprep.subr.mxu0 0.0
  %1337 = vmatpush1.msra.mxu0 %v1131
  %1338 = vmatprep.subr.mxu0 0.0
  %1339 = vmatpush1.msra.mxu0 %v1132
  %1340 = vmatprep.subr.mxu0 0.0
  %1341 = vmatpush1.msra.mxu0 0.0
  %1342 = vmatprep.subr.mxu0 0.0
  %1343 = vmatpush1.msra.mxu0 0.0
  %1344 = vmatprep.subr.mxu0 0.0
  %1345 = vmatpush1.msra.mxu0 0.0
  %1346 = vmatprep.subr.mxu0 0.0
  %1347 = vmatpush1.msra.mxu0 0.0
  %1348 = vmatprep.subr.mxu0 0.0
  %1349 = vmatpush1.msra.mxu0 0.0
  %1350 = vmatprep.subr.mxu0 0.0
  %1351 = vmatpush1.msra.mxu0 0.0
  %1352 = vmatprep.subr.mxu0 0.0
  %1353 = vmatpush1.msra.mxu0 0.0
  %1354 = vmatprep.subr.mxu0 0.0
  %1355 = vmatpush1.msra.mxu0 0.0
  %1356 = vmatprep.subr.mxu0 0.0
  %1357 = vmatpush1.msra.mxu0 0.0
  %1358 = vmatprep.subr.mxu0 0.0
  %1359 = vmatpush1.msra.mxu0 0.0
  %1360 = vmatprep.subr.mxu0 0.0
  %1361 = vmatpush1.msra.mxu0 0.0
  %1362 = vmatprep.subr.mxu0 0.0
  %1363 = vmatpush1.msra.mxu0 0.0
  %1364 = vmatprep.subr.mxu0 0.0
  %1365 = vmatpush1.msra.mxu0 0.0
  %1366 = vmatprep.subr.mxu0 0.0
  %1367 = vmatpush1.msra.mxu0 0.0
  %1368 = vmatprep.subr.mxu0 0.0
  %1369 = vmatpush1.msra.mxu0 0.0
  %1370 = vmatprep.subr.mxu0 0.0
  %1371 = vmatpush1.msra.mxu0 0.0
  %1372 = vmatprep.subr.mxu0 0.0
  %1373 = vmatpush1.msra.mxu0 0.0
  %1374 = vmatprep.subr.mxu0 0.0
  %1375 = vmatpush1.msra.mxu0 0.0
  %1376 = vmatprep.subr.mxu0 0.0
  %1377 = vmatpush1.msra.mxu0 0.0
  %1378 = vmatprep.subr.mxu0 0.0
  %1379 = vmatpush1.msra.mxu0 0.0
  %1380 = vmatprep.subr.mxu0 0.0
  %1381 = vmatpush1.msra.mxu0 0.0
  %1382 = vmatprep.subr.mxu0 0.0
  %1383 = vmatpush1.msra.mxu0 0.0
  %1384 = vmatprep.subr.mxu0 0.0
  %1385 = vmatpush1.msra.mxu0 0.0
  %1386 = vmatprep.subr.mxu0 0.0
  %1387 = vmatpush1.msra.mxu0 0.0
  %1388 = vmatprep.subr.mxu0 0.0
  %1389 = vmatpush1.msra.mxu0 0.0
  %1390 = vmatprep.subr.mxu0 0.0
  %1391 = vmatpush1.msra.mxu0 0.0
  %1392 = vmatprep.subr.mxu0 0.0
  %1393 = vmatpush1.msra.mxu0 0.0
  %1394 = vmatprep.subr.mxu0 0.0
  %1395 = vmatpush1.msra.mxu0 0.0
  %1396 = vmatprep.mubr.f32.mxu0 0.0
  %1397 = vmatmul.mubr.f32.gmra.mrb[0].mxu0 %v1330
  %v1398 = vpop.f32.mrb[0].mxu0
  %v1399 = vadd.f32 0.0, %v1398
  %v1400 = vpop.f32.mrb[0].mxu0
  %1401 = vdwg.mxu0
  %v1403 = vrot.slane %v1399, 6
  %v1405 = vadd.f32 %v1224, %v1403
  %v1406 = vxor.u32 %v1405, 2147483648
  %v1407 = vmul.f32 %v1406, 1.442695
  %v1408 = vpow.pop %v1407
  %v1409 = vadd.f32 %v1408, 1.0
  %v1410 = vrcp.pop %v1409
  %v1411 = vmul.f32 1.0, %v1410
  %v1412 = vtanh.pop %v1405
  %v1414 = vrot.slane %v1320, 6
  %v1416 = vmul.f32 %v1411, %v1414
  %1418 = vrot.lane.b32.xlu0 %v1412, 64
  %v1419 = vpop.permute.xlu0 %1418
  %v1421 = vmul.f32 %v1411, %v1419
  %1423 = vrot.lane.b32.xlu0 %v1421, 32
  %v1424 = vpop.permute.xlu0 %1423
  %v1426 = vadd.f32 %v1416, %v1424
  %v1427 = vtanh.pop %v1426
  %1429 = vrot.lane.b32.xlu0 %v1427, 64
  %v1430 = vpop.permute.xlu0 %1429
  %v1432 = vmul.f32 %v1411, %v1430
  %v1434 = vrot.slane %v1432, 2
  %1435 = vrot.lane.b32.xlu0 %v1434, 32
  %v1436 = vpop.permute.xlu0 %1435
  %v1437 = vsel %vm260, %v1436, 0
  %1439 = vmatprep.subr.mxu0 0.0
  %1440 = vmatpush1.msra.mxu0 %v1129
  %1441 = vmatprep.subr.mxu0 0.0
  %1442 = vmatpush1.msra.mxu0 %v1130
  %1443 = vmatprep.subr.mxu0 0.0
  %1444 = vmatpush1.msra.mxu0 %v1131
  %1445 = vmatprep.subr.mxu0 0.0
  %1446 = vmatpush1.msra.mxu0 %v1132
  %1447 = vmatprep.subr.mxu0 0.0
  %1448 = vmatpush1.msra.mxu0 0.0
  %1449 = vmatprep.subr.mxu0 0.0
  %1450 = vmatpush1.msra.mxu0 0.0
  %1451 = vmatprep.subr.mxu0 0.0
  %1452 = vmatpush1.msra.mxu0 0.0
  %1453 = vmatprep.subr.mxu0 0.0
  %1454 = vmatpush1.msra.mxu0 0.0
  %1455 = vmatprep.subr.mxu0 0.0
  %1456 = vmatpush1.msra.mxu0 0.0
  %1457 = vmatprep.subr.mxu0 0.0
  %1458 = vmatpush1.msra.mxu0 0.0
  %1459 = vmatprep.subr.mxu0 0.0
  %1460 = vmatpush1.msra.mxu0 0.0
  %1461 = vmatprep.subr.mxu0 0.0
  %1462 = vmatpush1.msra.mxu0 0.0
  %1463 = vmatprep.subr.mxu0 0.0
  %1464 = vmatpush1.msra.mxu0 0.0
  %1465 = vmatprep.subr.mxu0 0.0
  %1466 = vmatpush1.msra.mxu0 0.0
  %1467 = vmatprep.subr.mxu0 0.0
  %1468 = vmatpush1.msra.mxu0 0.0
  %1469 = vmatprep.subr.mxu0 0.0
  %1470 = vmatpush1.msra.mxu0 0.0
  %1471 = vmatprep.subr.mxu0 0.0
  %1472 = vmatpush1.msra.mxu0 0.0
  %1473 = vmatprep.subr.mxu0 0.0
  %1474 = vmatpush1.msra.mxu0 0.0
  %1475 = vmatprep.subr.mxu0 0.0
  %1476 = vmatpush1.msra.mxu0 0.0
  %1477 = vmatprep.subr.mxu0 0.0
  %1478 = vmatpush1.msra.mxu0 0.0
  %1479 = vmatprep.subr.mxu0 0.0
  %1480 = vmatpush1.msra.mxu0 0.0
  %1481 = vmatprep.subr.mxu0 0.0
  %1482 = vmatpush1.msra.mxu0 0.0
  %1483 = vmatprep.subr.mxu0 0.0
  %1484 = vmatpush1.msra.mxu0 0.0
  %1485 = vmatprep.subr.mxu0 0.0
  %1486 = vmatpush1.msra.mxu0 0.0
  %1487 = vmatprep.subr.mxu0 0.0
  %1488 = vmatpush1.msra.mxu0 0.0
  %1489 = vmatprep.subr.mxu0 0.0
  %1490 = vmatpush1.msra.mxu0 0.0
  %1491 = vmatprep.subr.mxu0 0.0
  %1492 = vmatpush1.msra.mxu0 0.0
  %1493 = vmatprep.subr.mxu0 0.0
  %1494 = vmatpush1.msra.mxu0 0.0
  %1495 = vmatprep.subr.mxu0 0.0
  %1496 = vmatpush1.msra.mxu0 0.0
  %1497 = vmatprep.subr.mxu0 0.0
  %1498 = vmatpush1.msra.mxu0 0.0
  %1499 = vmatprep.subr.mxu0 0.0
  %1500 = vmatpush1.msra.mxu0 0.0
  %1501 = vmatprep.subr.mxu0 0.0
  %1502 = vmatpush1.msra.mxu0 0.0
  %1503 = vmatprep.mubr.f32.mxu0 0.0
  %1504 = vmatmul.mubr.f32.gmra.mrb[0].mxu0 %v1437
  %v1505 = vpop.f32.mrb[0].mxu0
  %v1506 = vadd.f32 0.0, %v1505
  %v1507 = vpop.f32.mrb[0].mxu0
  %1508 = vdwg.mxu0
  %v1510 = vrot.slane %v1506, 4
  %v1512 = vadd.f32 %v1224, %v1510
  %v1513 = vxor.u32 %v1512, 2147483648
  %v1514 = vmul.f32 %v1513, 1.442695
  %v1515 = vpow.pop %v1514
  %v1516 = vadd.f32 %v1515, 1.0
  %v1517 = vrcp.pop %v1516
  %v1518 = vmul.f32 1.0, %v1517
  %v1519 = vtanh.pop %v1512
  %v1521 = vrot.slane %v1426, 6
  %v1523 = vmul.f32 %v1518, %v1521
  %1525 = vrot.lane.b32.xlu0 %v1519, 64
  %v1526 = vpop.permute.xlu0 %1525
  %v1528 = vmul.f32 %v1518, %v1526
  %1530 = vrot.lane.b32.xlu0 %v1528, 32
  %v1531 = vpop.permute.xlu0 %1530
  %v1533 = vadd.f32 %v1523, %v1531
  %v1534 = vtanh.pop %v1533
  %1536 = vrot.lane.b32.xlu0 %v1534, 64
  %v1537 = vpop.permute.xlu0 %1536
  %v1539 = vmul.f32 %v1518, %v1537
  %v1541 = vrot.slane %v1539, 4
  %1542 = vrot.lane.b32.xlu0 %v1541, 32
  %v1543 = vpop.permute.xlu0 %1542
  %v1544 = vsel %vm260, %v1543, 0
  %1546 = vmatprep.subr.mxu0 0.0
  %1547 = vmatpush1.msra.mxu0 %v1129
  %1548 = vmatprep.subr.mxu0 0.0
  %1549 = vmatpush1.msra.mxu0 %v1130
  %1550 = vmatprep.subr.mxu0 0.0
  %1551 = vmatpush1.msra.mxu0 %v1131
  %1552 = vmatprep.subr.mxu0 0.0
  %1553 = vmatpush1.msra.mxu0 %v1132
  %1554 = vmatprep.subr.mxu0 0.0
  %1555 = vmatpush1.msra.mxu0 0.0
  %1556 = vmatprep.subr.mxu0 0.0
  %1557 = vmatpush1.msra.mxu0 0.0
  %1558 = vmatprep.subr.mxu0 0.0
  %1559 = vmatpush1.msra.mxu0 0.0
  %1560 = vmatprep.subr.mxu0 0.0
  %1561 = vmatpush1.msra.mxu0 0.0
  %1562 = vmatprep.subr.mxu0 0.0
  %1563 = vmatpush1.msra.mxu0 0.0
  %1564 = vmatprep.subr.mxu0 0.0
  %1565 = vmatpush1.msra.mxu0 0.0
  %1566 = vmatprep.subr.mxu0 0.0
  %1567 = vmatpush1.msra.mxu0 0.0
  %1568 = vmatprep.subr.mxu0 0.0
  %1569 = vmatpush1.msra.mxu0 0.0
  %1570 = vmatprep.subr.mxu0 0.0
  %1571 = vmatpush1.msra.mxu0 0.0
  %1572 = vmatprep.subr.mxu0 0.0
  %1573 = vmatpush1.msra.mxu0 0.0
  %1574 = vmatprep.subr.mxu0 0.0
  %1575 = vmatpush1.msra.mxu0 0.0
  %1576 = vmatprep.subr.mxu0 0.0
  %1577 = vmatpush1.msra.mxu0 0.0
  %1578 = vmatprep.subr.mxu0 0.0
  %1579 = vmatpush1.msra.mxu0 0.0
  %1580 = vmatprep.subr.mxu0 0.0
  %1581 = vmatpush1.msra.mxu0 0.0
  %1582 = vmatprep.subr.mxu0 0.0
  %1583 = vmatpush1.msra.mxu0 0.0
  %1584 = vmatprep.subr.mxu0 0.0
  %1585 = vmatpush1.msra.mxu0 0.0
  %1586 = vmatprep.subr.mxu0 0.0
  %1587 = vmatpush1.msra.mxu0 0.0
  %1588 = vmatprep.subr.mxu0 0.0
  %1589 = vmatpush1.msra.mxu0 0.0
  %1590 = vmatprep.subr.mxu0 0.0
  %1591 = vmatpush1.msra.mxu0 0.0
  %1592 = vmatprep.subr.mxu0 0.0
  %1593 = vmatpush1.msra.mxu0 0.0
  %1594 = vmatprep.subr.mxu0 0.0
  %1595 = vmatpush1.msra.mxu0 0.0
  %1596 = vmatprep.subr.mxu0 0.0
  %1597 = vmatpush1.msra.mxu0 0.0
  %1598 = vmatprep.subr.mxu0 0.0
  %1599 = vmatpush1.msra.mxu0 0.0
  %1600 = vmatprep.subr.mxu0 0.0
  %1601 = vmatpush1.msra.mxu0 0.0
  %1602 = vmatprep.subr.mxu0 0.0
  %1603 = vmatpush1.msra.mxu0 0.0
  %1604 = vmatprep.subr.mxu0 0.0
  %1605 = vmatpush1.msra.mxu0 0.0
  %1606 = vmatprep.subr.mxu0 0.0
  %1607 = vmatpush1.msra.mxu0 0.0
  %1608 = vmatprep.subr.mxu0 0.0
  %1609 = vmatpush1.msra.mxu0 0.0
  %1610 = vmatprep.mubr.f32.mxu0 0.0
  %1611 = vmatmul.mubr.f32.gmra.mrb[0].mxu0 %v1544
  %v1612 = vpop.f32.mrb[0].mxu0
  %v1613 = vadd.f32 0.0, %v1612
  %v1614 = vpop.f32.mrb[0].mxu0
  %1615 = vdwg.mxu0
  %v1617 = vrot.slane %v1613, 2
  %v1619 = vadd.f32 %v1224, %v1617
  %v1620 = vxor.u32 %v1619, 2147483648
  %v1621 = vmul.f32 %v1620, 1.442695
  %v1622 = vpow.pop %v1621
  %v1623 = vadd.f32 %v1622, 1.0
  %v1624 = vrcp.pop %v1623
  %v1625 = vmul.f32 1.0, %v1624
  %v1626 = vtanh.pop %v1619
  %v1628 = vrot.slane %v1533, 6
  %v1630 = vmul.f32 %v1625, %v1628
  %1632 = vrot.lane.b32.xlu0 %v1626, 64
  %v1633 = vpop.permute.xlu0 %1632
  %v1635 = vmul.f32 %v1625, %v1633
  %1637 = vrot.lane.b32.xlu0 %v1635, 32
  %v1638 = vpop.permute.xlu0 %1637
  %v1640 = vadd.f32 %v1630, %v1638
  %v1641 = vtanh.pop %v1640
  %1643 = vrot.lane.b32.xlu0 %v1641, 64
  %v1644 = vpop.permute.xlu0 %1643
  %v1646 = vmul.f32 %v1625, %v1644
  %v1648 = vrot.slane %v1646, 6
  %1649 = vrot.lane.b32.xlu0 %v1648, 32
  %v1650 = vpop.permute.xlu0 %1649
  %v1651 = vsel %vm260, %v1650, 0
  %1653 = vmatprep.subr.mxu0 0.0
  %1654 = vmatpush1.msra.mxu0 %v1129
  %1655 = vmatprep.subr.mxu0 0.0
  %1656 = vmatpush1.msra.mxu0 %v1130
  %1657 = vmatprep.subr.mxu0 0.0
  %1658 = vmatpush1.msra.mxu0 %v1131
  %1659 = vmatprep.subr.mxu0 0.0
  %1660 = vmatpush1.msra.mxu0 %v1132
  %1661 = vmatprep.subr.mxu0 0.0
  %1662 = vmatpush1.msra.mxu0 0.0
  %1663 = vmatprep.subr.mxu0 0.0
  %1664 = vmatpush1.msra.mxu0 0.0
  %1665 = vmatprep.subr.mxu0 0.0
  %1666 = vmatpush1.msra.mxu0 0.0
  %1667 = vmatprep.subr.mxu0 0.0
  %1668 = vmatpush1.msra.mxu0 0.0
  %1669 = vmatprep.subr.mxu0 0.0
  %1670 = vmatpush1.msra.mxu0 0.0
  %1671 = vmatprep.subr.mxu0 0.0
  %1672 = vmatpush1.msra.mxu0 0.0
  %1673 = vmatprep.subr.mxu0 0.0
  %1674 = vmatpush1.msra.mxu0 0.0
  %1675 = vmatprep.subr.mxu0 0.0
  %1676 = vmatpush1.msra.mxu0 0.0
  %1677 = vmatprep.subr.mxu0 0.0
  %1678 = vmatpush1.msra.mxu0 0.0
  %1679 = vmatprep.subr.mxu0 0.0
  %1680 = vmatpush1.msra.mxu0 0.0
  %1681 = vmatprep.subr.mxu0 0.0
  %1682 = vmatpush1.msra.mxu0 0.0
  %1683 = vmatprep.subr.mxu0 0.0
  %1684 = vmatpush1.msra.mxu0 0.0
  %1685 = vmatprep.subr.mxu0 0.0
  %1686 = vmatpush1.msra.mxu0 0.0
  %1687 = vmatprep.subr.mxu0 0.0
  %1688 = vmatpush1.msra.mxu0 0.0
  %1689 = vmatprep.subr.mxu0 0.0
  %1690 = vmatpush1.msra.mxu0 0.0
  %1691 = vmatprep.subr.mxu0 0.0
  %1692 = vmatpush1.msra.mxu0 0.0
  %1693 = vmatprep.subr.mxu0 0.0
  %1694 = vmatpush1.msra.mxu0 0.0
  %1695 = vmatprep.subr.mxu0 0.0
  %1696 = vmatpush1.msra.mxu0 0.0
  %1697 = vmatprep.subr.mxu0 0.0
  %1698 = vmatpush1.msra.mxu0 0.0
  %1699 = vmatprep.subr.mxu0 0.0
  %1700 = vmatpush1.msra.mxu0 0.0
  %1701 = vmatprep.subr.mxu0 0.0
  %1702 = vmatpush1.msra.mxu0 0.0
  %1703 = vmatprep.subr.mxu0 0.0
  %1704 = vmatpush1.msra.mxu0 0.0
  %1705 = vmatprep.subr.mxu0 0.0
  %1706 = vmatpush1.msra.mxu0 0.0
  %1707 = vmatprep.subr.mxu0 0.0
  %1708 = vmatpush1.msra.mxu0 0.0
  %1709 = vmatprep.subr.mxu0 0.0
  %1710 = vmatpush1.msra.mxu0 0.0
  %1711 = vmatprep.subr.mxu0 0.0
  %1712 = vmatpush1.msra.mxu0 0.0
  %1713 = vmatprep.subr.mxu0 0.0
  %1714 = vmatpush1.msra.mxu0 0.0
  %1715 = vmatprep.subr.mxu0 0.0
  %1716 = vmatpush1.msra.mxu0 0.0
  %1717 = vmatprep.mubr.f32.mxu0 0.0
  %1718 = vmatmul.mubr.f32.gmra.mrb[0].mxu0 %v1651
  %v1719 = vpop.f32.mrb[0].mxu0
  %v1720 = vadd.f32 0.0, %v1719
  %v1721 = vpop.f32.mrb[0].mxu0
  %1722 = vdwg.mxu0
  %v1723 = vadd.f32 %v1229, %v1720
  %v1724 = vxor.u32 %v1723, 2147483648
  %v1725 = vmul.f32 %v1724, 1.442695
  %v1726 = vpow.pop %v1725
  %v1727 = vadd.f32 %v1726, 1.0
  %v1728 = vrcp.pop %v1727
  %v1729 = vmul.f32 1.0, %v1728
  %v1730 = vtanh.pop %v1723
  %v1732 = vrot.slane %v1640, 6
  %v1734 = vmul.f32 %v1729, %v1732
  %1736 = vrot.lane.b32.xlu0 %v1730, 64
  %v1737 = vpop.permute.xlu0 %1736
  %v1739 = vmul.f32 %v1729, %v1737
  %1741 = vrot.lane.b32.xlu0 %v1739, 32
  %v1742 = vpop.permute.xlu0 %1741
  %v1744 = vadd.f32 %v1734, %v1742
  %v1745 = vtanh.pop %v1744
  %1747 = vrot.lane.b32.xlu0 %v1745, 64
  %v1748 = vpop.permute.xlu0 %1747
  %v1750 = vmul.f32 %v1729, %v1748
  %1752 = vrot.lane.b32.xlu0 %v1750, 32
  %v1753 = vpop.permute.xlu0 %1752
  %v1754 = vsel %vm260, %v1753, 0
  %1756 = vmatprep.subr.mxu0 0.0
  %1757 = vmatpush1.msra.mxu0 %v1129
  %1758 = vmatprep.subr.mxu0 0.0
  %1759 = vmatpush1.msra.mxu0 %v1130
  %1760 = vmatprep.subr.mxu0 0.0
  %1761 = vmatpush1.msra.mxu0 %v1131
  %1762 = vmatprep.subr.mxu0 0.0
  %1763 = vmatpush1.msra.mxu0 %v1132
  %1764 = vmatprep.subr.mxu0 0.0
  %1765 = vmatpush1.msra.mxu0 0.0
  %1766 = vmatprep.subr.mxu0 0.0
  %1767 = vmatpush1.msra.mxu0 0.0
  %1768 = vmatprep.subr.mxu0 0.0
  %1769 = vmatpush1.msra.mxu0 0.0
  %1770 = vmatprep.subr.mxu0 0.0
  %1771 = vmatpush1.msra.mxu0 0.0
  %1772 = vmatprep.subr.mxu0 0.0
  %1773 = vmatpush1.msra.mxu0 0.0
  %1774 = vmatprep.subr.mxu0 0.0
  %1775 = vmatpush1.msra.mxu0 0.0
  %1776 = vmatprep.subr.mxu0 0.0
  %1777 = vmatpush1.msra.mxu0 0.0
  %1778 = vmatprep.subr.mxu0 0.0
  %1779 = vmatpush1.msra.mxu0 0.0
  %1780 = vmatprep.subr.mxu0 0.0
  %1781 = vmatpush1.msra.mxu0 0.0
  %1782 = vmatprep.subr.mxu0 0.0
  %1783 = vmatpush1.msra.mxu0 0.0
  %1784 = vmatprep.subr.mxu0 0.0
  %1785 = vmatpush1.msra.mxu0 0.0
  %1786 = vmatprep.subr.mxu0 0.0
  %1787 = vmatpush1.msra.mxu0 0.0
  %1788 = vmatprep.subr.mxu0 0.0
  %1789 = vmatpush1.msra.mxu0 0.0
  %1790 = vmatprep.subr.mxu0 0.0
  %1791 = vmatpush1.msra.mxu0 0.0
  %1792 = vmatprep.subr.mxu0 0.0
  %1793 = vmatpush1.msra.mxu0 0.0
  %1794 = vmatprep.subr.mxu0 0.0
  %1795 = vmatpush1.msra.mxu0 0.0
  %1796 = vmatprep.subr.mxu0 0.0
  %1797 = vmatpush1.msra.mxu0 0.0
  %1798 = vmatprep.subr.mxu0 0.0
  %1799 = vmatpush1.msra.mxu0 0.0
  %1800 = vmatprep.subr.mxu0 0.0
  %1801 = vmatpush1.msra.mxu0 0.0
  %1802 = vmatprep.subr.mxu0 0.0
  %1803 = vmatpush1.msra.mxu0 0.0
  %1804 = vmatprep.subr.mxu0 0.0
  %1805 = vmatpush1.msra.mxu0 0.0
  %1806 = vmatprep.subr.mxu0 0.0
  %1807 = vmatpush1.msra.mxu0 0.0
  %1808 = vmatprep.subr.mxu0 0.0
  %1809 = vmatpush1.msra.mxu0 0.0
  %1810 = vmatprep.subr.mxu0 0.0
  %1811 = vmatpush1.msra.mxu0 0.0
  %1812 = vmatprep.subr.mxu0 0.0
  %1813 = vmatpush1.msra.mxu0 0.0
  %1814 = vmatprep.subr.mxu0 0.0
  %1815 = vmatpush1.msra.mxu0 0.0
  %1816 = vmatprep.subr.mxu0 0.0
  %1817 = vmatpush1.msra.mxu0 0.0
  %1818 = vmatprep.subr.mxu0 0.0
  %1819 = vmatpush1.msra.mxu0 0.0
  %1820 = vmatprep.mubr.f32.mxu0 0.0
  %1821 = vmatmul.mubr.f32.gmra.mrb[0].mxu0 %v1754
  %v1822 = vpop.f32.mrb[0].mxu0
  %v1823 = vadd.f32 0.0, %v1822
  %v1824 = vpop.f32.mrb[0].mxu0
  %1825 = vdwg.mxu0
  %v1827 = vrot.slane %v1823, 6
  %v1829 = vadd.f32 %v1229, %v1827
  %v1830 = vxor.u32 %v1829, 2147483648
  %v1831 = vmul.f32 %v1830, 1.442695
  %v1832 = vpow.pop %v1831
  %v1833 = vadd.f32 %v1832, 1.0
  %v1834 = vrcp.pop %v1833
  %v1835 = vmul.f32 1.0, %v1834
  %v1836 = vtanh.pop %v1829
  %v1838 = vrot.slane %v1744, 6
  %v1840 = vmul.f32 %v1835, %v1838
  %1842 = vrot.lane.b32.xlu0 %v1836, 64
  %v1843 = vpop.permute.xlu0 %1842
  %v1845 = vmul.f32 %v1835, %v1843
  %1847 = vrot.lane.b32.xlu0 %v1845, 32
  %v1848 = vpop.permute.xlu0 %1847
  %v1850 = vadd.f32 %v1840, %v1848
  %v1851 = vtanh.pop %v1850
  %1853 = vrot.lane.b32.xlu0 %v1851, 64
  %v1854 = vpop.permute.xlu0 %1853
  %v1856 = vmul.f32 %v1835, %v1854
  %v1858 = vrot.slane %v1856, 2
  %1859 = vrot.lane.b32.xlu0 %v1858, 32
  %v1860 = vpop.permute.xlu0 %1859
  %v1861 = vsel %vm260, %v1860, 0
  %1863 = vmatprep.subr.mxu0 0.0
  %1864 = vmatpush1.msra.mxu0 %v1129
  %1865 = vmatprep.subr.mxu0 0.0
  %1866 = vmatpush1.msra.mxu0 %v1130
  %1867 = vmatprep.subr.mxu0 0.0
  %1868 = vmatpush1.msra.mxu0 %v1131
  %1869 = vmatprep.subr.mxu0 0.0
  %1870 = vmatpush1.msra.mxu0 %v1132
  %1871 = vmatprep.subr.mxu0 0.0
  %1872 = vmatpush1.msra.mxu0 0.0
  %1873 = vmatprep.subr.mxu0 0.0
  %1874 = vmatpush1.msra.mxu0 0.0
  %1875 = vmatprep.subr.mxu0 0.0
  %1876 = vmatpush1.msra.mxu0 0.0
  %1877 = vmatprep.subr.mxu0 0.0
  %1878 = vmatpush1.msra.mxu0 0.0
  %1879 = vmatprep.subr.mxu0 0.0
  %1880 = vmatpush1.msra.mxu0 0.0
  %1881 = vmatprep.subr.mxu0 0.0
  %1882 = vmatpush1.msra.mxu0 0.0
  %1883 = vmatprep.subr.mxu0 0.0
  %1884 = vmatpush1.msra.mxu0 0.0
  %1885 = vmatprep.subr.mxu0 0.0
  %1886 = vmatpush1.msra.mxu0 0.0
  %1887 = vmatprep.subr.mxu0 0.0
  %1888 = vmatpush1.msra.mxu0 0.0
  %1889 = vmatprep.subr.mxu0 0.0
  %1890 = vmatpush1.msra.mxu0 0.0
  %1891 = vmatprep.subr.mxu0 0.0
  %1892 = vmatpush1.msra.mxu0 0.0
  %1893 = vmatprep.subr.mxu0 0.0
  %1894 = vmatpush1.msra.mxu0 0.0
  %1895 = vmatprep.subr.mxu0 0.0
  %1896 = vmatpush1.msra.mxu0 0.0
  %1897 = vmatprep.subr.mxu0 0.0
  %1898 = vmatpush1.msra.mxu0 0.0
  %1899 = vmatprep.subr.mxu0 0.0
  %1900 = vmatpush1.msra.mxu0 0.0
  %1901 = vmatprep.subr.mxu0 0.0
  %1902 = vmatpush1.msra.mxu0 0.0
  %1903 = vmatprep.subr.mxu0 0.0
  %1904 = vmatpush1.msra.mxu0 0.0
  %1905 = vmatprep.subr.mxu0 0.0
  %1906 = vmatpush1.msra.mxu0 0.0
  %1907 = vmatprep.subr.mxu0 0.0
  %1908 = vmatpush1.msra.mxu0 0.0
  %1909 = vmatprep.subr.mxu0 0.0
  %1910 = vmatpush1.msra.mxu0 0.0
  %1911 = vmatprep.subr.mxu0 0.0
  %1912 = vmatpush1.msra.mxu0 0.0
  %1913 = vmatprep.subr.mxu0 0.0
  %1914 = vmatpush1.msra.mxu0 0.0
  %1915 = vmatprep.subr.mxu0 0.0
  %1916 = vmatpush1.msra.mxu0 0.0
  %1917 = vmatprep.subr.mxu0 0.0
  %1918 = vmatpush1.msra.mxu0 0.0
  %1919 = vmatprep.subr.mxu0 0.0
  %1920 = vmatpush1.msra.mxu0 0.0
  %1921 = vmatprep.subr.mxu0 0.0
  %1922 = vmatpush1.msra.mxu0 0.0
  %1923 = vmatprep.subr.mxu0 0.0
  %1924 = vmatpush1.msra.mxu0 0.0
  %1925 = vmatprep.subr.mxu0 0.0
  %1926 = vmatpush1.msra.mxu0 0.0
  %1927 = vmatprep.mubr.f32.mxu0 0.0
  %1928 = vmatmul.mubr.f32.gmra.mrb[0].mxu0 %v1861
  %v1929 = vpop.f32.mrb[0].mxu0
  %v1930 = vadd.f32 0.0, %v1929
  %v1931 = vpop.f32.mrb[0].mxu0
  %1932 = vdwg.mxu0
  %v1934 = vrot.slane %v1930, 4
  %v1936 = vadd.f32 %v1229, %v1934
  %v1937 = vxor.u32 %v1936, 2147483648
  %v1938 = vmul.f32 %v1937, 1.442695
  %v1939 = vpow.pop %v1938
  %v1940 = vadd.f32 %v1939, 1.0
  %v1941 = vrcp.pop %v1940
  %v1942 = vmul.f32 1.0, %v1941
  %v1943 = vtanh.pop %v1936
  %v1945 = vrot.slane %v1850, 6
  %v1947 = vmul.f32 %v1942, %v1945
  %1949 = vrot.lane.b32.xlu0 %v1943, 64
  %v1950 = vpop.permute.xlu0 %1949
  %v1952 = vmul.f32 %v1942, %v1950
  %1954 = vrot.lane.b32.xlu0 %v1952, 32
  %v1955 = vpop.permute.xlu0 %1954
  %v1957 = vadd.f32 %v1947, %v1955
  %v1958 = vtanh.pop %v1957
  %1960 = vrot.lane.b32.xlu0 %v1958, 64
  %v1961 = vpop.permute.xlu0 %1960
  %v1963 = vmul.f32 %v1942, %v1961
  %v1965 = vrot.slane %v1963, 4
  %1966 = vrot.lane.b32.xlu0 %v1965, 32
  %v1967 = vpop.permute.xlu0 %1966
  %v1968 = vsel %vm260, %v1967, 0
  %1970 = vmatprep.subr.mxu0 0.0
  %1971 = vmatpush1.msra.mxu0 %v1129
  %1972 = vmatprep.subr.mxu0 0.0
  %1973 = vmatpush1.msra.mxu0 %v1130
  %1974 = vmatprep.subr.mxu0 0.0
  %1975 = vmatpush1.msra.mxu0 %v1131
  %1976 = vmatprep.subr.mxu0 0.0
  %1977 = vmatpush1.msra.mxu0 %v1132
  %1978 = vmatprep.subr.mxu0 0.0
  %1979 = vmatpush1.msra.mxu0 0.0
  %1980 = vmatprep.subr.mxu0 0.0
  %1981 = vmatpush1.msra.mxu0 0.0
  %1982 = vmatprep.subr.mxu0 0.0
  %1983 = vmatpush1.msra.mxu0 0.0
  %1984 = vmatprep.subr.mxu0 0.0
  %1985 = vmatpush1.msra.mxu0 0.0
  %1986 = vmatprep.subr.mxu0 0.0
  %1987 = vmatpush1.msra.mxu0 0.0
  %1988 = vmatprep.subr.mxu0 0.0
  %1989 = vmatpush1.msra.mxu0 0.0
  %1990 = vmatprep.subr.mxu0 0.0
  %1991 = vmatpush1.msra.mxu0 0.0
  %1992 = vmatprep.subr.mxu0 0.0
  %1993 = vmatpush1.msra.mxu0 0.0
  %1994 = vmatprep.subr.mxu0 0.0
  %1995 = vmatpush1.msra.mxu0 0.0
  %1996 = vmatprep.subr.mxu0 0.0
  %1997 = vmatpush1.msra.mxu0 0.0
  %1998 = vmatprep.subr.mxu0 0.0
  %1999 = vmatpush1.msra.mxu0 0.0
  %2000 = vmatprep.subr.mxu0 0.0
  %2001 = vmatpush1.msra.mxu0 0.0
  %2002 = vmatprep.subr.mxu0 0.0
  %2003 = vmatpush1.msra.mxu0 0.0
  %2004 = vmatprep.subr.mxu0 0.0
  %2005 = vmatpush1.msra.mxu0 0.0
  %2006 = vmatprep.subr.mxu0 0.0
  %2007 = vmatpush1.msra.mxu0 0.0
  %2008 = vmatprep.subr.mxu0 0.0
  %2009 = vmatpush1.msra.mxu0 0.0
  %2010 = vmatprep.subr.mxu0 0.0
  %2011 = vmatpush1.msra.mxu0 0.0
  %2012 = vmatprep.subr.mxu0 0.0
  %2013 = vmatpush1.msra.mxu0 0.0
  %2014 = vmatprep.subr.mxu0 0.0
  %2015 = vmatpush1.msra.mxu0 0.0
  %2016 = vmatprep.subr.mxu0 0.0
  %2017 = vmatpush1.msra.mxu0 0.0
  %2018 = vmatprep.subr.mxu0 0.0
  %2019 = vmatpush1.msra.mxu0 0.0
  %2020 = vmatprep.subr.mxu0 0.0
  %2021 = vmatpush1.msra.mxu0 0.0
  %2022 = vmatprep.subr.mxu0 0.0
  %2023 = vmatpush1.msra.mxu0 0.0
  %2024 = vmatprep.subr.mxu0 0.0
  %2025 = vmatpush1.msra.mxu0 0.0
  %2026 = vmatprep.subr.mxu0 0.0
  %2027 = vmatpush1.msra.mxu0 0.0
  %2028 = vmatprep.subr.mxu0 0.0
  %2029 = vmatpush1.msra.mxu0 0.0
  %2030 = vmatprep.subr.mxu0 0.0
  %2031 = vmatpush1.msra.mxu0 0.0
  %2032 = vmatprep.subr.mxu0 0.0
  %2033 = vmatpush1.msra.mxu0 0.0
  %2034 = vmatprep.mubr.f32.mxu0 0.0
  %2035 = vmatmul.mubr.f32.gmra.mrb[0].mxu0 %v1968
  %v2036 = vpop.f32.mrb[0].mxu0
  %v2037 = vadd.f32 0.0, %v2036
  %v2038 = vpop.f32.mrb[0].mxu0
  %2039 = vdwg.mxu0
  %v2041 = vrot.slane %v2037, 2
  %v2043 = vadd.f32 %v1229, %v2041
  %v2044 = vxor.u32 %v2043, 2147483648
  %v2045 = vmul.f32 %v2044, 1.442695
  %v2046 = vpow.pop %v2045
  %v2047 = vadd.f32 %v2046, 1.0
  %v2048 = vrcp.pop %v2047
  %v2049 = vmul.f32 1.0, %v2048
  %v2050 = vtanh.pop %v2043
  %v2052 = vrot.slane %v1957, 6
  %v2054 = vmul.f32 %v2049, %v2052
  %2056 = vrot.lane.b32.xlu0 %v2050, 64
  %v2057 = vpop.permute.xlu0 %2056
  %v2059 = vmul.f32 %v2049, %v2057
  %2061 = vrot.lane.b32.xlu0 %v2059, 32
  %v2062 = vpop.permute.xlu0 %2061
  %v2064 = vadd.f32 %v2054, %v2062
  %v2065 = vtanh.pop %v2064
  %2067 = vrot.lane.b32.xlu0 %v2065, 64
  %v2068 = vpop.permute.xlu0 %2067
  %v2070 = vmul.f32 %v2049, %v2068
  %v2071 = vsel %vm1103, %v1326, %v1432
  %v2072 = vsel %vm181, %v2071, %v1539
  %v2073 = vsel %vm1106, %v2072, %v1646
  %v2074 = vsel %vm1103, %v1750, %v1856
  %v2075 = vsel %vm181, %v2074, %v1963
  %v2076 = vsel %vm1106, %v2075, %v2070
  %2079 = vrot.lane.b32.xlu0 %v2073, 32
  %v2080 = vpop.permute.xlu0 %2079
  %2081 = vrot.lane.b32.xlu0 %v2076, 32
  %v2082 = vpop.permute.xlu0 %2081
  %2085 = vrot.lane.b32.xlu0 %v1127, 32
  %v2086 = vpop.permute.xlu0 %2085
  %2087 = vrot.lane.b32.xlu0 %v1128, 32
  %v2088 = vpop.permute.xlu0 %2087
  %v2091 = vsel %vm260, %v2080, %v2086
  %v2092 = vsel %vm260, %v2082, %v2088
  %v2093 = vmax.f32 %v2091, 0.0
  %v2094 = vmax.f32 %v2092, 0.0
  %v2095 = vld [vmem:[%s17] sm:$0xff]
  %v2096 = vld [vmem:[%s17 + $0x8] sm:$0xff]
  %v2097 = vld [vmem:[%s17 + $0x10] sm:$0xff]
  %v2098 = vld [vmem:[%s17 + $0x18] sm:$0xff]
  %v2099 = vld [vmem:[%s17 + $0x20] sm:$0xff]
  %v2100 = vld [vmem:[%s17 + $0x28] sm:$0xff]
  %v2101 = vld [vmem:[%s17 + $0x30] sm:$0xff]
  %v2102 = vld [vmem:[%s17 + $0x38] sm:$0xff]
  %v2103 = vld [vmem:[%s17 + $0x40] sm:$0xff]
  %v2104 = vld [vmem:[%s17 + $0x48] sm:$0xff]
  %v2105 = vld [vmem:[%s17 + $0x50] sm:$0xf]
  %v2106 = vld [vmem:[%s19] sm:$0x1]
  %v2108 = vlaneseq
  %v2109 = vshrl.u32 %v2108, 7
  %v2110 = vsub.s32 0, %v2109
  %v2111 = vrot.slane %v2106, %v2110
  %vm2113 = vcmask 687104
  %v2115 = vsel %vm2113, %v2093, 0
  %v2118 = vsel %vm2113, %v2094, 0
  %v2121 = vsel %vm181, %v2105, 0
  %2123 = vmatprep.subr.mxu0 0.0
  %2124 = vmatpush1.msra.mxu0 %v2095
  %2125 = vmatprep.subr.mxu0 0.0
  %2126 = vmatpush1.msra.mxu0 %v2096
  %2127 = vmatprep.subr.mxu0 0.0
  %2128 = vmatpush1.msra.mxu0 %v2097
  %2129 = vmatprep.subr.mxu0 0.0
  %2130 = vmatpush1.msra.mxu0 %v2098
  %2131 = vmatprep.subr.mxu0 0.0
  %2132 = vmatpush1.msra.mxu0 %v2099
  %2133 = vmatprep.subr.mxu0 0.0
  %2134 = vmatpush1.msra.mxu0 %v2100
  %2135 = vmatprep.subr.mxu0 0.0
  %2136 = vmatpush1.msra.mxu0 %v2101
  %2137 = vmatprep.subr.mxu0 0.0
  %2138 = vmatpush1.msra.mxu0 %v2102
  %2139 = vmatprep.subr.mxu0 0.0
  %2140 = vmatpush1.msra.mxu0 %v2103
  %2141 = vmatprep.subr.mxu0 0.0
  %2142 = vmatpush1.msra.mxu0 %v2104
  %2143 = vmatprep.subr.mxu0 0.0
  %2144 = vmatpush1.msra.mxu0 %v2121
  %2145 = vmatprep.subr.mxu0 0.0
  %2146 = vmatpush1.msra.mxu0 0.0
  %2147 = vmatprep.subr.mxu0 0.0
  %2148 = vmatpush1.msra.mxu0 0.0
  %2149 = vmatprep.subr.mxu0 0.0
  %2150 = vmatpush1.msra.mxu0 0.0
  %2151 = vmatprep.subr.mxu0 0.0
  %2152 = vmatpush1.msra.mxu0 0.0
  %2153 = vmatprep.subr.mxu0 0.0
  %2154 = vmatpush1.msra.mxu0 0.0
  %2155 = vmatprep.subr.mxu0 0.0
  %2156 = vmatpush1.msra.mxu0 0.0
  %2157 = vmatprep.subr.mxu0 0.0
  %2158 = vmatpush1.msra.mxu0 0.0
  %2159 = vmatprep.subr.mxu0 0.0
  %2160 = vmatpush1.msra.mxu0 0.0
  %2161 = vmatprep.subr.mxu0 0.0
  %2162 = vmatpush1.msra.mxu0 0.0
  %2163 = vmatprep.subr.mxu0 0.0
  %2164 = vmatpush1.msra.mxu0 0.0
  %2165 = vmatprep.subr.mxu0 0.0
  %2166 = vmatpush1.msra.mxu0 0.0
  %2167 = vmatprep.subr.mxu0 0.0
  %2168 = vmatpush1.msra.mxu0 0.0
  %2169 = vmatprep.subr.mxu0 0.0
  %2170 = vmatpush1.msra.mxu0 0.0
  %2171 = vmatprep.subr.mxu0 0.0
  %2172 = vmatpush1.msra.mxu0 0.0
  %2173 = vmatprep.subr.mxu0 0.0
  %2174 = vmatpush1.msra.mxu0 0.0
  %2175 = vmatprep.subr.mxu0 0.0
  %2176 = vmatpush1.msra.mxu0 0.0
  %2177 = vmatprep.subr.mxu0 0.0
  %2178 = vmatpush1.msra.mxu0 0.0
  %2179 = vmatprep.subr.mxu0 0.0
  %2180 = vmatpush1.msra.mxu0 0.0
  %2181 = vmatprep.subr.mxu0 0.0
  %2182 = vmatpush1.msra.mxu0 0.0
  %2183 = vmatprep.subr.mxu0 0.0
  %2184 = vmatpush1.msra.mxu0 0.0
  %2185 = vmatprep.subr.mxu0 0.0
  %2186 = vmatpush1.msra.mxu0 0.0
  %2187 = vmatprep.mubr.f32.mxu0 0.0
  %2188 = vmatmul.mubr.f32.gmra.mrb[0].mxu0 %v2115
  %v2189 = vpop.f32.mrb[0].mxu0
  %v2190 = vadd.f32 %v2111, %v2189
  %v2191 = vpop.f32.mrb[0].mxu0
  %2192 = vmatprep.mubr.f32.mxu0 0.0
  %2193 = vmatmul.mubr.f32.gmra.mrb[0].mxu0 %v2118
  %v2194 = vpop.f32.mrb[0].mxu0
  %v2195 = vadd.f32 %v2111, %v2194
  %v2196 = vpop.f32.mrb[0].mxu0
  %2197 = vdwg.mxu0
  %v2198 = vmax.f32 %v2190, 0.0
  %v2199 = vmax.f32 %v2195, 0.0
  %v2200 = vld [vmem:[%s3] sm:$0xff]
  %v2201 = vld [vmem:[%s3 + $0x8] sm:$0xff]
  %v2202 = vld [vmem:[%s21] sm:$0xff]
  %v2203 = vld [vmem:[%s21 + $0x8] sm:$0xff]
  %v2204 = vld [vmem:[%s21 + $0x10] sm:$0xff]
  %v2205 = vld [vmem:[%s21 + $0x18] sm:$0xff]
  %v2206 = vld [vmem:[%s23] sm:$0x1]
  %v2208 = vlaneseq
  %v2209 = vshrl.u32 %v2208, 7
  %v2210 = vsub.s32 0, %v2209
  %v2211 = vrot.slane %v2206, %v2210
  %v2214 = vsel %vm260, %v2198, 0
  %v2217 = vsel %vm260, %v2199, 0
  %2219 = vmatprep.subr.mxu0 0.0
  %2220 = vmatpush1.msra.mxu0 %v2202
  %2221 = vmatprep.subr.mxu0 0.0
  %2222 = vmatpush1.msra.mxu0 %v2203
  %2223 = vmatprep.subr.mxu0 0.0
  %2224 = vmatpush1.msra.mxu0 %v2204
  %2225 = vmatprep.subr.mxu0 0.0
  %2226 = vmatpush1.msra.mxu0 %v2205
  %2227 = vmatprep.subr.mxu0 0.0
  %2228 = vmatpush1.msra.mxu0 0.0
  %2229 = vmatprep.subr.mxu0 0.0
  %2230 = vmatpush1.msra.mxu0 0.0
  %2231 = vmatprep.subr.mxu0 0.0
  %2232 = vmatpush1.msra.mxu0 0.0
  %2233 = vmatprep.subr.mxu0 0.0
  %2234 = vmatpush1.msra.mxu0 0.0
  %2235 = vmatprep.subr.mxu0 0.0
  %2236 = vmatpush1.msra.mxu0 0.0
  %2237 = vmatprep.subr.mxu0 0.0
  %2238 = vmatpush1.msra.mxu0 0.0
  %2239 = vmatprep.subr.mxu0 0.0
  %2240 = vmatpush1.msra.mxu0 0.0
  %2241 = vmatprep.subr.mxu0 0.0
  %2242 = vmatpush1.msra.mxu0 0.0
  %2243 = vmatprep.subr.mxu0 0.0
  %2244 = vmatpush1.msra.mxu0 0.0
  %2245 = vmatprep.subr.mxu0 0.0
  %2246 = vmatpush1.msra.mxu0 0.0
  %2247 = vmatprep.subr.mxu0 0.0
  %2248 = vmatpush1.msra.mxu0 0.0
  %2249 = vmatprep.subr.mxu0 0.0
  %2250 = vmatpush1.msra.mxu0 0.0
  %2251 = vmatprep.subr.mxu0 0.0
  %2252 = vmatpush1.msra.mxu0 0.0
  %2253 = vmatprep.subr.mxu0 0.0
  %2254 = vmatpush1.msra.mxu0 0.0
  %2255 = vmatprep.subr.mxu0 0.0
  %2256 = vmatpush1.msra.mxu0 0.0
  %2257 = vmatprep.subr.mxu0 0.0
  %2258 = vmatpush1.msra.mxu0 0.0
  %2259 = vmatprep.subr.mxu0 0.0
  %2260 = vmatpush1.msra.mxu0 0.0
  %2261 = vmatprep.subr.mxu0 0.0
  %2262 = vmatpush1.msra.mxu0 0.0
  %2263 = vmatprep.subr.mxu0 0.0
  %2264 = vmatpush1.msra.mxu0 0.0
  %2265 = vmatprep.subr.mxu0 0.0
  %2266 = vmatpush1.msra.mxu0 0.0
  %2267 = vmatprep.subr.mxu0 0.0
  %2268 = vmatpush1.msra.mxu0 0.0
  %2269 = vmatprep.subr.mxu0 0.0
  %2270 = vmatpush1.msra.mxu0 0.0
  %2271 = vmatprep.subr.mxu0 0.0
  %2272 = vmatpush1.msra.mxu0 0.0
  %2273 = vmatprep.subr.mxu0 0.0
  %2274 = vmatpush1.msra.mxu0 0.0
  %2275 = vmatprep.subr.mxu0 0.0
  %2276 = vmatpush1.msra.mxu0 0.0
  %2277 = vmatprep.subr.mxu0 0.0
  %2278 = vmatpush1.msra.mxu0 0.0
  %2279 = vmatprep.subr.mxu0 0.0
  %2280 = vmatpush1.msra.mxu0 0.0
  %2281 = vmatprep.subr.mxu0 0.0
  %2282 = vmatpush1.msra.mxu0 0.0
  %2283 = vmatprep.mubr.f32.mxu0 0.0
  %2284 = vmatmul.mubr.f32.gmra.mrb[0].mxu0 %v2214
  %v2285 = vpop.f32.mrb[0].mxu0
  %v2286 = vadd.f32 %v2211, %v2285
  %v2287 = vpop.f32.mrb[0].mxu0
  %2288 = vmatprep.mubr.f32.mxu0 0.0
  %2289 = vmatmul.mubr.f32.gmra.mrb[0].mxu0 %v2217
  %v2290 = vpop.f32.mrb[0].mxu0
  %v2291 = vadd.f32 %v2211, %v2290
  %v2292 = vpop.f32.mrb[0].mxu0
  %2293 = vdwg.mxu0
  %2296 = vrot.lane.b32.xlu0 %v2286, 96
  %v2297 = vpop.permute.xlu0 %2296
  %2298 = vrot.lane.b32.xlu0 %v2291, 96
  %v2299 = vpop.permute.xlu0 %2298
  %vm2300 = vcmask 64512
  %v2301 = vsel %vm2300, %v2286, 0
  %v2303 = vsel %vm2300, %v2291, 0
  %v2305 = vsel %vm2300, %v2297, 0
  %v2307 = vsel %vm2300, %v2299, 0
  %2309 = vmatprep.subr.mxu0 0.0
  %2310 = vmatpush1.xpose.msra.mxu0 %v2305
  %2311 = vmatprep.subr.mxu0 0.0
  %2312 = vmatpush1.xpose.msra.mxu0 %v2307
  %2313 = vmatprep.subr.mxu0 0.0
  %2314 = vmatpush1.xpose.msra.mxu0 0.0
  %2315 = vmatprep.subr.mxu0 0.0
  %2316 = vmatpush1.xpose.msra.mxu0 0.0
  %2317 = vmatprep.subr.mxu0 0.0
  %2318 = vmatpush1.xpose.msra.mxu0 0.0
  %2319 = vmatprep.subr.mxu0 0.0
  %2320 = vmatpush1.xpose.msra.mxu0 0.0
  %2321 = vmatprep.subr.mxu0 0.0
  %2322 = vmatpush1.xpose.msra.mxu0 0.0
  %2323 = vmatprep.subr.mxu0 0.0
  %2324 = vmatpush1.xpose.msra.mxu0 0.0
  %2325 = vmatprep.subr.mxu0 0.0
  %2326 = vmatpush1.xpose.msra.mxu0 0.0
  %2327 = vmatprep.subr.mxu0 0.0
  %2328 = vmatpush1.xpose.msra.mxu0 0.0
  %2329 = vmatprep.subr.mxu0 0.0
  %2330 = vmatpush1.xpose.msra.mxu0 0.0
  %2331 = vmatprep.subr.mxu0 0.0
  %2332 = vmatpush1.xpose.msra.mxu0 0.0
  %2333 = vmatprep.subr.mxu0 0.0
  %2334 = vmatpush1.xpose.msra.mxu0 0.0
  %2335 = vmatprep.subr.mxu0 0.0
  %2336 = vmatpush1.xpose.msra.mxu0 0.0
  %2337 = vmatprep.subr.mxu0 0.0
  %2338 = vmatpush1.xpose.msra.mxu0 0.0
  %2339 = vmatprep.subr.mxu0 0.0
  %2340 = vmatpush1.xpose.msra.mxu0 0.0
  %2341 = vmatprep.subr.mxu0 0.0
  %2342 = vmatpush1.xpose.msra.mxu0 0.0
  %2343 = vmatprep.subr.mxu0 0.0
  %2344 = vmatpush1.xpose.msra.mxu0 0.0
  %2345 = vmatprep.subr.mxu0 0.0
  %2346 = vmatpush1.xpose.msra.mxu0 0.0
  %2347 = vmatprep.subr.mxu0 0.0
  %2348 = vmatpush1.xpose.msra.mxu0 0.0
  %2349 = vmatprep.subr.mxu0 0.0
  %2350 = vmatpush1.xpose.msra.mxu0 0.0
  %2351 = vmatprep.subr.mxu0 0.0
  %2352 = vmatpush1.xpose.msra.mxu0 0.0
  %2353 = vmatprep.subr.mxu0 0.0
  %2354 = vmatpush1.xpose.msra.mxu0 0.0
  %2355 = vmatprep.subr.mxu0 0.0
  %2356 = vmatpush1.xpose.msra.mxu0 0.0
  %2357 = vmatprep.subr.mxu0 0.0
  %2358 = vmatpush1.xpose.msra.mxu0 0.0
  %2359 = vmatprep.subr.mxu0 0.0
  %2360 = vmatpush1.xpose.msra.mxu0 0.0
  %2361 = vmatprep.subr.mxu0 0.0
  %2362 = vmatpush1.xpose.msra.mxu0 0.0
  %2363 = vmatprep.subr.mxu0 0.0
  %2364 = vmatpush1.xpose.msra.mxu0 0.0
  %2365 = vmatprep.subr.mxu0 0.0
  %2366 = vmatpush1.xpose.msra.mxu0 0.0
  %2367 = vmatprep.subr.mxu0 0.0
  %2368 = vmatpush1.xpose.msra.mxu0 0.0
  %2369 = vmatprep.subr.mxu0 0.0
  %2370 = vmatpush1.xpose.msra.mxu0 0.0
  %2371 = vmatprep.subr.mxu0 0.0
  %2372 = vmatpush1.xpose.msra.mxu0 0.0
  %2373 = vmatprep.mubr.f32.mxu0 0.0
  %2374 = vmatmul.mubr.f32.gmra.mrb[0].mxu0 %v2301
  %v2375 = vpop.f32.mrb[0].mxu0
  %v2376 = vadd.f32 0.0, %v2375
  %v2377 = vpop.f32.mrb[0].mxu0
  %2378 = vmatprep.mubr.f32.mxu0 0.0
  %2379 = vmatmul.mubr.f32.gmra.mrb[0].mxu0 %v2303
  %v2380 = vpop.f32.mrb[0].mxu0
  %v2381 = vadd.f32 0.0, %v2380
  %v2382 = vpop.f32.mrb[0].mxu0
  %2383 = vdwg.mxu0
  %v2384 = vmul.f32 %v2376, 0.35355338
  %v2385 = vmul.f32 %v2381, 0.35355338
  %v2386 = vadd.f32 %v2384, %v2200
  %v2387 = vadd.f32 %v2385, %v2201
  %vm2388 = vcmask 130048
  %v2389 = vsel %vm2388, %v2386, -inf
  %2390 = vmax.xlane.f32.xlu0 %v2389
  %v2391 = vpop.xlane.xlu0 %2390
  %v2392 = vsel %vm2388, %v2387, -inf
  %2393 = vmax.xlane.f32.xlu0 %v2392
  %v2394 = vpop.xlane.xlu0 %2393
  %v2395 = vsub.f32 %v2386, %v2391
  %v2396 = vsub.f32 %v2387, %v2394
  %v2397 = vmul.f32 %v2395, 1.442695
  %v2398 = vpow.pop %v2397
  %v2399 = vmul.f32 %v2396, 1.442695
  %v2400 = vpow.pop %v2399
  %v2401 = vsel %vm2388, %v2398, 0.0
  %2402 = vadd.xlane.f32.xlu0 %v2401
  %v2403 = vpop.xlane.xlu0 %2402
  %v2404 = vsel %vm2388, %v2400, 0.0
  %2405 = vadd.xlane.f32.xlu0 %v2404
  %v2406 = vpop.xlane.xlu0 %2405
  %v2407 = vrcp.pop %v2403
  %v2408 = vrcp.pop %v2406
  %v2409 = vmul.f32 %v2398, %v2407
  %v2410 = vmul.f32 %v2400, %v2408
  %2411 = vrot.lane.b32.xlu0 %v2286, 64
  %v2412 = vpop.permute.xlu0 %2411
  %2413 = vrot.lane.b32.xlu0 %v2291, 64
  %v2414 = vpop.permute.xlu0 %2413
  %v2418 = vsel %vm2388, %v2409, 0
  %v2421 = vsel %vm2388, %v2410, 0
  %2423 = vmatprep.subr.mxu0 0.0
  %2424 = vmatpush1.msra.mxu0 %v2412
  %2425 = vmatprep.subr.mxu0 0.0
  %2426 = vmatpush1.msra.mxu0 %v2414
  %2427 = vmatprep.subr.mxu0 0.0
  %2428 = vmatpush1.msra.mxu0 0.0
  %2429 = vmatprep.subr.mxu0 0.0
  %2430 = vmatpush1.msra.mxu0 0.0
  %2431 = vmatprep.subr.mxu0 0.0
  %2432 = vmatpush1.msra.mxu0 0.0
  %2433 = vmatprep.subr.mxu0 0.0
  %2434 = vmatpush1.msra.mxu0 0.0
  %2435 = vmatprep.subr.mxu0 0.0
  %2436 = vmatpush1.msra.mxu0 0.0
  %2437 = vmatprep.subr.mxu0 0.0
  %2438 = vmatpush1.msra.mxu0 0.0
  %2439 = vmatprep.subr.mxu0 0.0
  %2440 = vmatpush1.msra.mxu0 0.0
  %2441 = vmatprep.subr.mxu0 0.0
  %2442 = vmatpush1.msra.mxu0 0.0
  %2443 = vmatprep.subr.mxu0 0.0
  %2444 = vmatpush1.msra.mxu0 0.0
  %2445 = vmatprep.subr.mxu0 0.0
  %2446 = vmatpush1.msra.mxu0 0.0
  %2447 = vmatprep.subr.mxu0 0.0
  %2448 = vmatpush1.msra.mxu0 0.0
  %2449 = vmatprep.subr.mxu0 0.0
  %2450 = vmatpush1.msra.mxu0 0.0
  %2451 = vmatprep.subr.mxu0 0.0
  %2452 = vmatpush1.msra.mxu0 0.0
  %2453 = vmatprep.subr.mxu0 0.0
  %2454 = vmatpush1.msra.mxu0 0.0
  %2455 = vmatprep.subr.mxu0 0.0
  %2456 = vmatpush1.msra.mxu0 0.0
  %2457 = vmatprep.subr.mxu0 0.0
  %2458 = vmatpush1.msra.mxu0 0.0
  %2459 = vmatprep.subr.mxu0 0.0
  %2460 = vmatpush1.msra.mxu0 0.0
  %2461 = vmatprep.subr.mxu0 0.0
  %2462 = vmatpush1.msra.mxu0 0.0
  %2463 = vmatprep.subr.mxu0 0.0
  %2464 = vmatpush1.msra.mxu0 0.0
  %2465 = vmatprep.subr.mxu0 0.0
  %2466 = vmatpush1.msra.mxu0 0.0
  %2467 = vmatprep.subr.mxu0 0.0
  %2468 = vmatpush1.msra.mxu0 0.0
  %2469 = vmatprep.subr.mxu0 0.0
  %2470 = vmatpush1.msra.mxu0 0.0
  %2471 = vmatprep.subr.mxu0 0.0
  %2472 = vmatpush1.msra.mxu0 0.0
  %2473 = vmatprep.subr.mxu0 0.0
  %2474 = vmatpush1.msra.mxu0 0.0
  %2475 = vmatprep.subr.mxu0 0.0
  %2476 = vmatpush1.msra.mxu0 0.0
  %2477 = vmatprep.subr.mxu0 0.0
  %2478 = vmatpush1.msra.mxu0 0.0
  %2479 = vmatprep.subr.mxu0 0.0
  %2480 = vmatpush1.msra.mxu0 0.0
  %2481 = vmatprep.subr.mxu0 0.0
  %2482 = vmatpush1.msra.mxu0 0.0
  %2483 = vmatprep.subr.mxu0 0.0
  %2484 = vmatpush1.msra.mxu0 0.0
  %2485 = vmatprep.subr.mxu0 0.0
  %2486 = vmatpush1.msra.mxu0 0.0
  %2487 = vmatprep.mubr.f32.mxu0 0.0
  %2488 = vmatmul.mubr.f32.gmra.mrb[0].mxu0 %v2418
  %v2489 = vpop.f32.mrb[0].mxu0
  %v2490 = vadd.f32 0.0, %v2489
  %v2491 = vpop.f32.mrb[0].mxu0
  %2492 = vmatprep.mubr.f32.mxu0 0.0
  %2493 = vmatmul.mubr.f32.gmra.mrb[0].mxu0 %v2421
  %v2494 = vpop.f32.mrb[0].mxu0
  %v2495 = vadd.f32 0.0, %v2494
  %v2496 = vpop.f32.mrb[0].mxu0
  %2497 = vdwg.mxu0
  %2498 = vrot.lane.b32.xlu0 %v2286, 120
  %v2499 = vpop.permute.xlu0 %2498
  %2500 = vrot.lane.b32.xlu0 %v2291, 120
  %v2501 = vpop.permute.xlu0 %2500
  %2502 = vrot.lane.b32.xlu0 %v2286, 88
  %v2503 = vpop.permute.xlu0 %2502
  %2504 = vrot.lane.b32.xlu0 %v2291, 88
  %v2505 = vpop.permute.xlu0 %2504
  %v2506 = vsel %vm2300, %v2499, 0
  %v2508 = vsel %vm2300, %v2501, 0
  %v2510 = vsel %vm2300, %v2503, 0
  %v2512 = vsel %vm2300, %v2505, 0
  %2514 = vmatprep.subr.mxu0 0.0
  %2515 = vmatpush1.xpose.msra.mxu0 %v2510
  %2516 = vmatprep.subr.mxu0 0.0
  %2517 = vmatpush1.xpose.msra.mxu0 %v2512
  %2518 = vmatprep.subr.mxu0 0.0
  %2519 = vmatpush1.xpose.msra.mxu0 0.0
  %2520 = vmatprep.subr.mxu0 0.0
  %2521 = vmatpush1.xpose.msra.mxu0 0.0
  %2522 = vmatprep.subr.mxu0 0.0
  %2523 = vmatpush1.xpose.msra.mxu0 0.0
  %2524 = vmatprep.subr.mxu0 0.0
  %2525 = vmatpush1.xpose.msra.mxu0 0.0
  %2526 = vmatprep.subr.mxu0 0.0
  %2527 = vmatpush1.xpose.msra.mxu0 0.0
  %2528 = vmatprep.subr.mxu0 0.0
  %2529 = vmatpush1.xpose.msra.mxu0 0.0
  %2530 = vmatprep.subr.mxu0 0.0
  %2531 = vmatpush1.xpose.msra.mxu0 0.0
  %2532 = vmatprep.subr.mxu0 0.0
  %2533 = vmatpush1.xpose.msra.mxu0 0.0
  %2534 = vmatprep.subr.mxu0 0.0
  %2535 = vmatpush1.xpose.msra.mxu0 0.0
  %2536 = vmatprep.subr.mxu0 0.0
  %2537 = vmatpush1.xpose.msra.mxu0 0.0
  %2538 = vmatprep.subr.mxu0 0.0
  %2539 = vmatpush1.xpose.msra.mxu0 0.0
  %2540 = vmatprep.subr.mxu0 0.0
  %2541 = vmatpush1.xpose.msra.mxu0 0.0
  %2542 = vmatprep.subr.mxu0 0.0
  %2543 = vmatpush1.xpose.msra.mxu0 0.0
  %2544 = vmatprep.subr.mxu0 0.0
  %2545 = vmatpush1.xpose.msra.mxu0 0.0
  %2546 = vmatprep.subr.mxu0 0.0
  %2547 = vmatpush1.xpose.msra.mxu0 0.0
  %2548 = vmatprep.subr.mxu0 0.0
  %2549 = vmatpush1.xpose.msra.mxu0 0.0
  %2550 = vmatprep.subr.mxu0 0.0
  %2551 = vmatpush1.xpose.msra.mxu0 0.0
  %2552 = vmatprep.subr.mxu0 0.0
  %2553 = vmatpush1.xpose.msra.mxu0 0.0
  %2554 = vmatprep.subr.mxu0 0.0
  %2555 = vmatpush1.xpose.msra.mxu0 0.0
  %2556 = vmatprep.subr.mxu0 0.0
  %2557 = vmatpush1.xpose.msra.mxu0 0.0
  %2558 = vmatprep.subr.mxu0 0.0
  %2559 = vmatpush1.xpose.msra.mxu0 0.0
  %2560 = vmatprep.subr.mxu0 0.0
  %2561 = vmatpush1.xpose.msra.mxu0 0.0
  %2562 = vmatprep.subr.mxu0 0.0
  %2563 = vmatpush1.xpose.msra.mxu0 0.0
  %2564 = vmatprep.subr.mxu0 0.0
  %2565 = vmatpush1.xpose.msra.mxu0 0.0
  %2566 = vmatprep.subr.mxu0 0.0
  %2567 = vmatpush1.xpose.msra.mxu0 0.0
  %2568 = vmatprep.subr.mxu0 0.0
  %2569 = vmatpush1.xpose.msra.mxu0 0.0
  %2570 = vmatprep.subr.mxu0 0.0
  %2571 = vmatpush1.xpose.msra.mxu0 0.0
  %2572 = vmatprep.subr.mxu0 0.0
  %2573 = vmatpush1.xpose.msra.mxu0 0.0
  %2574 = vmatprep.subr.mxu0 0.0
  %2575 = vmatpush1.xpose.msra.mxu0 0.0
  %2576 = vmatprep.subr.mxu0 0.0
  %2577 = vmatpush1.xpose.msra.mxu0 0.0
  %2578 = vmatprep.mubr.f32.mxu0 0.0
  %2579 = vmatmul.mubr.f32.gmra.mrb[0].mxu0 %v2506
  %v2580 = vpop.f32.mrb[0].mxu0
  %v2581 = vadd.f32 0.0, %v2580
  %v2582 = vpop.f32.mrb[0].mxu0
  %2583 = vmatprep.mubr.f32.mxu0 0.0
  %2584 = vmatmul.mubr.f32.gmra.mrb[0].mxu0 %v2508
  %v2585 = vpop.f32.mrb[0].mxu0
  %v2586 = vadd.f32 0.0, %v2585
  %v2587 = vpop.f32.mrb[0].mxu0
  %2588 = vdwg.mxu0
  %v2589 = vmul.f32 %v2581, 0.35355338
  %v2590 = vmul.f32 %v2586, 0.35355338
  %v2591 = vadd.f32 %v2589, %v2200
  %v2592 = vadd.f32 %v2590, %v2201
  %v2593 = vsel %vm2388, %v2591, -inf
  %2594 = vmax.xlane.f32.xlu0 %v2593
  %v2595 = vpop.xlane.xlu0 %2594
  %v2596 = vsel %vm2388, %v2592, -inf
  %2597 = vmax.xlane.f32.xlu0 %v2596
  %v2598 = vpop.xlane.xlu0 %2597
  %v2599 = vsub.f32 %v2591, %v2595
  %v2600 = vsub.f32 %v2592, %v2598
  %v2601 = vmul.f32 %v2599, 1.442695
  %v2602 = vpow.pop %v2601
  %v2603 = vmul.f32 %v2600, 1.442695
  %v2604 = vpow.pop %v2603
  %v2605 = vsel %vm2388, %v2602, 0.0
  %2606 = vadd.xlane.f32.xlu0 %v2605
  %v2607 = vpop.xlane.xlu0 %2606
  %v2608 = vsel %vm2388, %v2604, 0.0
  %2609 = vadd.xlane.f32.xlu0 %v2608
  %v2610 = vpop.xlane.xlu0 %2609
  %v2611 = vrcp.pop %v2607
  %v2612 = vrcp.pop %v2610
  %v2613 = vmul.f32 %v2602, %v2611
  %v2614 = vmul.f32 %v2604, %v2612
  %2615 = vrot.lane.b32.xlu0 %v2286, 56
  %v2616 = vpop.permute.xlu0 %2615
  %2617 = vrot.lane.b32.xlu0 %v2291, 56
  %v2618 = vpop.permute.xlu0 %2617
  %v2622 = vsel %vm2388, %v2613, 0
  %v2625 = vsel %vm2388, %v2614, 0
  %2627 = vmatprep.subr.mxu0 0.0
  %2628 = vmatpush1.msra.mxu0 %v2616
  %2629 = vmatprep.subr.mxu0 0.0
  %2630 = vmatpush1.msra.mxu0 %v2618
  %2631 = vmatprep.subr.mxu0 0.0
  %2632 = vmatpush1.msra.mxu0 0.0
  %2633 = vmatprep.subr.mxu0 0.0
  %2634 = vmatpush1.msra.mxu0 0.0
  %2635 = vmatprep.subr.mxu0 0.0
  %2636 = vmatpush1.msra.mxu0 0.0
  %2637 = vmatprep.subr.mxu0 0.0
  %2638 = vmatpush1.msra.mxu0 0.0
  %2639 = vmatprep.subr.mxu0 0.0
  %2640 = vmatpush1.msra.mxu0 0.0
  %2641 = vmatprep.subr.mxu0 0.0
  %2642 = vmatpush1.msra.mxu0 0.0
  %2643 = vmatprep.subr.mxu0 0.0
  %2644 = vmatpush1.msra.mxu0 0.0
  %2645 = vmatprep.subr.mxu0 0.0
  %2646 = vmatpush1.msra.mxu0 0.0
  %2647 = vmatprep.subr.mxu0 0.0
  %2648 = vmatpush1.msra.mxu0 0.0
  %2649 = vmatprep.subr.mxu0 0.0
  %2650 = vmatpush1.msra.mxu0 0.0
  %2651 = vmatprep.subr.mxu0 0.0
  %2652 = vmatpush1.msra.mxu0 0.0
  %2653 = vmatprep.subr.mxu0 0.0
  %2654 = vmatpush1.msra.mxu0 0.0
  %2655 = vmatprep.subr.mxu0 0.0
  %2656 = vmatpush1.msra.mxu0 0.0
  %2657 = vmatprep.subr.mxu0 0.0
  %2658 = vmatpush1.msra.mxu0 0.0
  %2659 = vmatprep.subr.mxu0 0.0
  %2660 = vmatpush1.msra.mxu0 0.0
  %2661 = vmatprep.subr.mxu0 0.0
  %2662 = vmatpush1.msra.mxu0 0.0
  %2663 = vmatprep.subr.mxu0 0.0
  %2664 = vmatpush1.msra.mxu0 0.0
  %2665 = vmatprep.subr.mxu0 0.0
  %2666 = vmatpush1.msra.mxu0 0.0
  %2667 = vmatprep.subr.mxu0 0.0
  %2668 = vmatpush1.msra.mxu0 0.0
  %2669 = vmatprep.subr.mxu0 0.0
  %2670 = vmatpush1.msra.mxu0 0.0
  %2671 = vmatprep.subr.mxu0 0.0
  %2672 = vmatpush1.msra.mxu0 0.0
  %2673 = vmatprep.subr.mxu0 0.0
  %2674 = vmatpush1.msra.mxu0 0.0
  %2675 = vmatprep.subr.mxu0 0.0
  %2676 = vmatpush1.msra.mxu0 0.0
  %2677 = vmatprep.subr.mxu0 0.0
  %2678 = vmatpush1.msra.mxu0 0.0
  %2679 = vmatprep.subr.mxu0 0.0
  %2680 = vmatpush1.msra.mxu0 0.0
  %2681 = vmatprep.subr.mxu0 0.0
  %2682 = vmatpush1.msra.mxu0 0.0
  %2683 = vmatprep.subr.mxu0 0.0
  %2684 = vmatpush1.msra.mxu0 0.0
  %2685 = vmatprep.subr.mxu0 0.0
  %2686 = vmatpush1.msra.mxu0 0.0
  %2687 = vmatprep.subr.mxu0 0.0
  %2688 = vmatpush1.msra.mxu0 0.0
  %2689 = vmatprep.subr.mxu0 0.0
  %2690 = vmatpush1.msra.mxu0 0.0
  %2691 = vmatprep.mubr.f32.mxu0 0.0
  %2692 = vmatmul.mubr.f32.gmra.mrb[0].mxu0 %v2622
  %v2693 = vpop.f32.mrb[0].mxu0
  %v2694 = vadd.f32 0.0, %v2693
  %v2695 = vpop.f32.mrb[0].mxu0
  %2696 = vmatprep.mubr.f32.mxu0 0.0
  %2697 = vmatmul.mubr.f32.gmra.mrb[0].mxu0 %v2625
  %v2698 = vpop.f32.mrb[0].mxu0
  %v2699 = vadd.f32 0.0, %v2698
  %v2700 = vpop.f32.mrb[0].mxu0
  %2701 = vdwg.mxu0
  %2702 = vrot.lane.b32.xlu0 %v2286, 112
  %v2703 = vpop.permute.xlu0 %2702
  %2704 = vrot.lane.b32.xlu0 %v2291, 112
  %v2705 = vpop.permute.xlu0 %2704
  %2706 = vrot.lane.b32.xlu0 %v2286, 80
  %v2707 = vpop.permute.xlu0 %2706
  %2708 = vrot.lane.b32.xlu0 %v2291, 80
  %v2709 = vpop.permute.xlu0 %2708
  %v2710 = vsel %vm2300, %v2703, 0
  %v2712 = vsel %vm2300, %v2705, 0
  %v2714 = vsel %vm2300, %v2707, 0
  %v2716 = vsel %vm2300, %v2709, 0
  %2718 = vmatprep.subr.mxu0 0.0
  %2719 = vmatpush1.xpose.msra.mxu0 %v2714
  %2720 = vmatprep.subr.mxu0 0.0
  %2721 = vmatpush1.xpose.msra.mxu0 %v2716
  %2722 = vmatprep.subr.mxu0 0.0
  %2723 = vmatpush1.xpose.msra.mxu0 0.0
  %2724 = vmatprep.subr.mxu0 0.0
  %2725 = vmatpush1.xpose.msra.mxu0 0.0
  %2726 = vmatprep.subr.mxu0 0.0
  %2727 = vmatpush1.xpose.msra.mxu0 0.0
  %2728 = vmatprep.subr.mxu0 0.0
  %2729 = vmatpush1.xpose.msra.mxu0 0.0
  %2730 = vmatprep.subr.mxu0 0.0
  %2731 = vmatpush1.xpose.msra.mxu0 0.0
  %2732 = vmatprep.subr.mxu0 0.0
  %2733 = vmatpush1.xpose.msra.mxu0 0.0
  %2734 = vmatprep.subr.mxu0 0.0
  %2735 = vmatpush1.xpose.msra.mxu0 0.0
  %2736 = vmatprep.subr.mxu0 0.0
  %2737 = vmatpush1.xpose.msra.mxu0 0.0
  %2738 = vmatprep.subr.mxu0 0.0
  %2739 = vmatpush1.xpose.msra.mxu0 0.0
  %2740 = vmatprep.subr.mxu0 0.0
  %2741 = vmatpush1.xpose.msra.mxu0 0.0
  %2742 = vmatprep.subr.mxu0 0.0
  %2743 = vmatpush1.xpose.msra.mxu0 0.0
  %2744 = vmatprep.subr.mxu0 0.0
  %2745 = vmatpush1.xpose.msra.mxu0 0.0
  %2746 = vmatprep.subr.mxu0 0.0
  %2747 = vmatpush1.xpose.msra.mxu0 0.0
  %2748 = vmatprep.subr.mxu0 0.0
  %2749 = vmatpush1.xpose.msra.mxu0 0.0
  %2750 = vmatprep.subr.mxu0 0.0
  %2751 = vmatpush1.xpose.msra.mxu0 0.0
  %2752 = vmatprep.subr.mxu0 0.0
  %2753 = vmatpush1.xpose.msra.mxu0 0.0
  %2754 = vmatprep.subr.mxu0 0.0
  %2755 = vmatpush1.xpose.msra.mxu0 0.0
  %2756 = vmatprep.subr.mxu0 0.0
  %2757 = vmatpush1.xpose.msra.mxu0 0.0
  %2758 = vmatprep.subr.mxu0 0.0
  %2759 = vmatpush1.xpose.msra.mxu0 0.0
  %2760 = vmatprep.subr.mxu0 0.0
  %2761 = vmatpush1.xpose.msra.mxu0 0.0
  %2762 = vmatprep.subr.mxu0 0.0
  %2763 = vmatpush1.xpose.msra.mxu0 0.0
  %2764 = vmatprep.subr.mxu0 0.0
  %2765 = vmatpush1.xpose.msra.mxu0 0.0
  %2766 = vmatprep.subr.mxu0 0.0
  %2767 = vmatpush1.xpose.msra.mxu0 0.0
  %2768 = vmatprep.subr.mxu0 0.0
  %2769 = vmatpush1.xpose.msra.mxu0 0.0
  %2770 = vmatprep.subr.mxu0 0.0
  %2771 = vmatpush1.xpose.msra.mxu0 0.0
  %2772 = vmatprep.subr.mxu0 0.0
  %2773 = vmatpush1.xpose.msra.mxu0 0.0
  %2774 = vmatprep.subr.mxu0 0.0
  %2775 = vmatpush1.xpose.msra.mxu0 0.0
  %2776 = vmatprep.subr.mxu0 0.0
  %2777 = vmatpush1.xpose.msra.mxu0 0.0
  %2778 = vmatprep.subr.mxu0 0.0
  %2779 = vmatpush1.xpose.msra.mxu0 0.0
  %2780 = vmatprep.subr.mxu0 0.0
  %2781 = vmatpush1.xpose.msra.mxu0 0.0
  %2782 = vmatprep.mubr.f32.mxu0 0.0
  %2783 = vmatmul.mubr.f32.gmra.mrb[0].mxu0 %v2710
  %v2784 = vpop.f32.mrb[0].mxu0
  %v2785 = vadd.f32 0.0, %v2784
  %v2786 = vpop.f32.mrb[0].mxu0
  %2787 = vmatprep.mubr.f32.mxu0 0.0
  %2788 = vmatmul.mubr.f32.gmra.mrb[0].mxu0 %v2712
  %v2789 = vpop.f32.mrb[0].mxu0
  %v2790 = vadd.f32 0.0, %v2789
  %v2791 = vpop.f32.mrb[0].mxu0
  %2792 = vdwg.mxu0
  %v2793 = vmul.f32 %v2785, 0.35355338
  %v2794 = vmul.f32 %v2790, 0.35355338
  %v2795 = vadd.f32 %v2793, %v2200
  %v2796 = vadd.f32 %v2794, %v2201
  %v2797 = vsel %vm2388, %v2795, -inf
  %2798 = vmax.xlane.f32.xlu0 %v2797
  %v2799 = vpop.xlane.xlu0 %2798
  %v2800 = vsel %vm2388, %v2796, -inf
  %2801 = vmax.xlane.f32.xlu0 %v2800
  %v2802 = vpop.xlane.xlu0 %2801
  %v2803 = vsub.f32 %v2795, %v2799
  %v2804 = vsub.f32 %v2796, %v2802
  %v2805 = vmul.f32 %v2803, 1.442695
  %v2806 = vpow.pop %v2805
  %v2807 = vmul.f32 %v2804, 1.442695
  %v2808 = vpow.pop %v2807
  %v2809 = vsel %vm2388, %v2806, 0.0
  %2810 = vadd.xlane.f32.xlu0 %v2809
  %v2811 = vpop.xlane.xlu0 %2810
  %v2812 = vsel %vm2388, %v2808, 0.0
  %2813 = vadd.xlane.f32.xlu0 %v2812
  %v2814 = vpop.xlane.xlu0 %2813
  %v2815 = vrcp.pop %v2811
  %v2816 = vrcp.pop %v2814
  %v2817 = vmul.f32 %v2806, %v2815
  %v2818 = vmul.f32 %v2808, %v2816
  %2819 = vrot.lane.b32.xlu0 %v2286, 48
  %v2820 = vpop.permute.xlu0 %2819
  %2821 = vrot.lane.b32.xlu0 %v2291, 48
  %v2822 = vpop.permute.xlu0 %2821
  %v2826 = vsel %vm2388, %v2817, 0
  %v2829 = vsel %vm2388, %v2818, 0
  %2831 = vmatprep.subr.mxu0 0.0
  %2832 = vmatpush1.msra.mxu0 %v2820
  %2833 = vmatprep.subr.mxu0 0.0
  %2834 = vmatpush1.msra.mxu0 %v2822
  %2835 = vmatprep.subr.mxu0 0.0
  %2836 = vmatpush1.msra.mxu0 0.0
  %2837 = vmatprep.subr.mxu0 0.0
  %2838 = vmatpush1.msra.mxu0 0.0
  %2839 = vmatprep.subr.mxu0 0.0
  %2840 = vmatpush1.msra.mxu0 0.0
  %2841 = vmatprep.subr.mxu0 0.0
  %2842 = vmatpush1.msra.mxu0 0.0
  %2843 = vmatprep.subr.mxu0 0.0
  %2844 = vmatpush1.msra.mxu0 0.0
  %2845 = vmatprep.subr.mxu0 0.0
  %2846 = vmatpush1.msra.mxu0 0.0
  %2847 = vmatprep.subr.mxu0 0.0
  %2848 = vmatpush1.msra.mxu0 0.0
  %2849 = vmatprep.subr.mxu0 0.0
  %2850 = vmatpush1.msra.mxu0 0.0
  %2851 = vmatprep.subr.mxu0 0.0
  %2852 = vmatpush1.msra.mxu0 0.0
  %2853 = vmatprep.subr.mxu0 0.0
  %2854 = vmatpush1.msra.mxu0 0.0
  %2855 = vmatprep.subr.mxu0 0.0
  %2856 = vmatpush1.msra.mxu0 0.0
  %2857 = vmatprep.subr.mxu0 0.0
  %2858 = vmatpush1.msra.mxu0 0.0
  %2859 = vmatprep.subr.mxu0 0.0
  %2860 = vmatpush1.msra.mxu0 0.0
  %2861 = vmatprep.subr.mxu0 0.0
  %2862 = vmatpush1.msra.mxu0 0.0
  %2863 = vmatprep.subr.mxu0 0.0
  %2864 = vmatpush1.msra.mxu0 0.0
  %2865 = vmatprep.subr.mxu0 0.0
  %2866 = vmatpush1.msra.mxu0 0.0
  %2867 = vmatprep.subr.mxu0 0.0
  %2868 = vmatpush1.msra.mxu0 0.0
  %2869 = vmatprep.subr.mxu0 0.0
  %2870 = vmatpush1.msra.mxu0 0.0
  %2871 = vmatprep.subr.mxu0 0.0
  %2872 = vmatpush1.msra.mxu0 0.0
  %2873 = vmatprep.subr.mxu0 0.0
  %2874 = vmatpush1.msra.mxu0 0.0
  %2875 = vmatprep.subr.mxu0 0.0
  %2876 = vmatpush1.msra.mxu0 0.0
  %2877 = vmatprep.subr.mxu0 0.0
  %2878 = vmatpush1.msra.mxu0 0.0
  %2879 = vmatprep.subr.mxu0 0.0
  %2880 = vmatpush1.msra.mxu0 0.0
  %2881 = vmatprep.subr.mxu0 0.0
  %2882 = vmatpush1.msra.mxu0 0.0
  %2883 = vmatprep.subr.mxu0 0.0
  %2884 = vmatpush1.msra.mxu0 0.0
  %2885 = vmatprep.subr.mxu0 0.0
  %2886 = vmatpush1.msra.mxu0 0.0
  %2887 = vmatprep.subr.mxu0 0.0
  %2888 = vmatpush1.msra.mxu0 0.0
  %2889 = vmatprep.subr.mxu0 0.0
  %2890 = vmatpush1.msra.mxu0 0.0
  %2891 = vmatprep.subr.mxu0 0.0
  %2892 = vmatpush1.msra.mxu0 0.0
  %2893 = vmatprep.subr.mxu0 0.0
  %2894 = vmatpush1.msra.mxu0 0.0
  %2895 = vmatprep.mubr.f32.mxu0 0.0
  %2896 = vmatmul.mubr.f32.gmra.mrb[0].mxu0 %v2826
  %v2897 = vpop.f32.mrb[0].mxu0
  %v2898 = vadd.f32 0.0, %v2897
  %v2899 = vpop.f32.mrb[0].mxu0
  %2900 = vmatprep.mubr.f32.mxu0 0.0
  %2901 = vmatmul.mubr.f32.gmra.mrb[0].mxu0 %v2829
  %v2902 = vpop.f32.mrb[0].mxu0
  %v2903 = vadd.f32 0.0, %v2902
  %v2904 = vpop.f32.mrb[0].mxu0
  %2905 = vdwg.mxu0
  %2906 = vrot.lane.b32.xlu0 %v2286, 104
  %v2907 = vpop.permute.xlu0 %2906
  %2908 = vrot.lane.b32.xlu0 %v2291, 104
  %v2909 = vpop.permute.xlu0 %2908
  %2910 = vrot.lane.b32.xlu0 %v2286, 72
  %v2911 = vpop.permute.xlu0 %2910
  %2912 = vrot.lane.b32.xlu0 %v2291, 72
  %v2913 = vpop.permute.xlu0 %2912
  %v2914 = vsel %vm2300, %v2907, 0
  %v2916 = vsel %vm2300, %v2909, 0
  %v2918 = vsel %vm2300, %v2911, 0
  %v2920 = vsel %vm2300, %v2913, 0
  %2922 = vmatprep.subr.mxu0 0.0
  %2923 = vmatpush1.xpose.msra.mxu0 %v2918
  %2924 = vmatprep.subr.mxu0 0.0
  %2925 = vmatpush1.xpose.msra.mxu0 %v2920
  %2926 = vmatprep.subr.mxu0 0.0
  %2927 = vmatpush1.xpose.msra.mxu0 0.0
  %2928 = vmatprep.subr.mxu0 0.0
  %2929 = vmatpush1.xpose.msra.mxu0 0.0
  %2930 = vmatprep.subr.mxu0 0.0
  %2931 = vmatpush1.xpose.msra.mxu0 0.0
  %2932 = vmatprep.subr.mxu0 0.0
  %2933 = vmatpush1.xpose.msra.mxu0 0.0
  %2934 = vmatprep.subr.mxu0 0.0
  %2935 = vmatpush1.xpose.msra.mxu0 0.0
  %2936 = vmatprep.subr.mxu0 0.0
  %2937 = vmatpush1.xpose.msra.mxu0 0.0
  %2938 = vmatprep.subr.mxu0 0.0
  %2939 = vmatpush1.xpose.msra.mxu0 0.0
  %2940 = vmatprep.subr.mxu0 0.0
  %2941 = vmatpush1.xpose.msra.mxu0 0.0
  %2942 = vmatprep.subr.mxu0 0.0
  %2943 = vmatpush1.xpose.msra.mxu0 0.0
  %2944 = vmatprep.subr.mxu0 0.0
  %2945 = vmatpush1.xpose.msra.mxu0 0.0
  %2946 = vmatprep.subr.mxu0 0.0
  %2947 = vmatpush1.xpose.msra.mxu0 0.0
  %2948 = vmatprep.subr.mxu0 0.0
  %2949 = vmatpush1.xpose.msra.mxu0 0.0
  %2950 = vmatprep.subr.mxu0 0.0
  %2951 = vmatpush1.xpose.msra.mxu0 0.0
  %2952 = vmatprep.subr.mxu0 0.0
  %2953 = vmatpush1.xpose.msra.mxu0 0.0
  %2954 = vmatprep.subr.mxu0 0.0
  %2955 = vmatpush1.xpose.msra.mxu0 0.0
  %2956 = vmatprep.subr.mxu0 0.0
  %2957 = vmatpush1.xpose.msra.mxu0 0.0
  %2958 = vmatprep.subr.mxu0 0.0
  %2959 = vmatpush1.xpose.msra.mxu0 0.0
  %2960 = vmatprep.subr.mxu0 0.0
  %2961 = vmatpush1.xpose.msra.mxu0 0.0
  %2962 = vmatprep.subr.mxu0 0.0
  %2963 = vmatpush1.xpose.msra.mxu0 0.0
  %2964 = vmatprep.subr.mxu0 0.0
  %2965 = vmatpush1.xpose.msra.mxu0 0.0
  %2966 = vmatprep.subr.mxu0 0.0
  %2967 = vmatpush1.xpose.msra.mxu0 0.0
  %2968 = vmatprep.subr.mxu0 0.0
  %2969 = vmatpush1.xpose.msra.mxu0 0.0
  %2970 = vmatprep.subr.mxu0 0.0
  %2971 = vmatpush1.xpose.msra.mxu0 0.0
  %2972 = vmatprep.subr.mxu0 0.0
  %2973 = vmatpush1.xpose.msra.mxu0 0.0
  %2974 = vmatprep.subr.mxu0 0.0
  %2975 = vmatpush1.xpose.msra.mxu0 0.0
  %2976 = vmatprep.subr.mxu0 0.0
  %2977 = vmatpush1.xpose.msra.mxu0 0.0
  %2978 = vmatprep.subr.mxu0 0.0
  %2979 = vmatpush1.xpose.msra.mxu0 0.0
  %2980 = vmatprep.subr.mxu0 0.0
  %2981 = vmatpush1.xpose.msra.mxu0 0.0
  %2982 = vmatprep.subr.mxu0 0.0
  %2983 = vmatpush1.xpose.msra.mxu0 0.0
  %2984 = vmatprep.subr.mxu0 0.0
  %2985 = vmatpush1.xpose.msra.mxu0 0.0
  %2986 = vmatprep.mubr.f32.mxu0 0.0
  %2987 = vmatmul.mubr.f32.gmra.mrb[0].mxu0 %v2914
  %v2988 = vpop.f32.mrb[0].mxu0
  %v2989 = vadd.f32 0.0, %v2988
  %v2990 = vpop.f32.mrb[0].mxu0
  %2991 = vmatprep.mubr.f32.mxu0 0.0
  %2992 = vmatmul.mubr.f32.gmra.mrb[0].mxu0 %v2916
  %v2993 = vpop.f32.mrb[0].mxu0
  %v2994 = vadd.f32 0.0, %v2993
  %v2995 = vpop.f32.mrb[0].mxu0
  %2996 = vdwg.mxu0
  %v2997 = vmul.f32 %v2989, 0.35355338
  %v2998 = vmul.f32 %v2994, 0.35355338
  %v2999 = vadd.f32 %v2997, %v2200
  %v3000 = vadd.f32 %v2998, %v2201
  %v3001 = vsel %vm2388, %v2999, -inf
  %3002 = vmax.xlane.f32.xlu0 %v3001
  %v3003 = vpop.xlane.xlu0 %3002
  %v3004 = vsel %vm2388, %v3000, -inf
  %3005 = vmax.xlane.f32.xlu0 %v3004
  %v3006 = vpop.xlane.xlu0 %3005
  %v3007 = vsub.f32 %v2999, %v3003
  %v3008 = vsub.f32 %v3000, %v3006
  %v3009 = vmul.f32 %v3007, 1.442695
  %v3010 = vpow.pop %v3009
  %v3011 = vmul.f32 %v3008, 1.442695
  %v3012 = vpow.pop %v3011
  %v3013 = vsel %vm2388, %v3010, 0.0
  %3014 = vadd.xlane.f32.xlu0 %v3013
  %v3015 = vpop.xlane.xlu0 %3014
  %v3016 = vsel %vm2388, %v3012, 0.0
  %3017 = vadd.xlane.f32.xlu0 %v3016
  %v3018 = vpop.xlane.xlu0 %3017
  %v3019 = vrcp.pop %v3015
  %v3020 = vrcp.pop %v3018
  %v3021 = vmul.f32 %v3010, %v3019
  %v3022 = vmul.f32 %v3012, %v3020
  %3023 = vrot.lane.b32.xlu0 %v2286, 40
  %v3024 = vpop.permute.xlu0 %3023
  %3025 = vrot.lane.b32.xlu0 %v2291, 40
  %v3026 = vpop.permute.xlu0 %3025
  %v3030 = vsel %vm2388, %v3021, 0
  %v3033 = vsel %vm2388, %v3022, 0
  %3035 = vmatprep.subr.mxu0 0.0
  %3036 = vmatpush1.msra.mxu0 %v3024
  %3037 = vmatprep.subr.mxu0 0.0
  %3038 = vmatpush1.msra.mxu0 %v3026
  %3039 = vmatprep.subr.mxu0 0.0
  %3040 = vmatpush1.msra.mxu0 0.0
  %3041 = vmatprep.subr.mxu0 0.0
  %3042 = vmatpush1.msra.mxu0 0.0
  %3043 = vmatprep.subr.mxu0 0.0
  %3044 = vmatpush1.msra.mxu0 0.0
  %3045 = vmatprep.subr.mxu0 0.0
  %3046 = vmatpush1.msra.mxu0 0.0
  %3047 = vmatprep.subr.mxu0 0.0
  %3048 = vmatpush1.msra.mxu0 0.0
  %3049 = vmatprep.subr.mxu0 0.0
  %3050 = vmatpush1.msra.mxu0 0.0
  %3051 = vmatprep.subr.mxu0 0.0
  %3052 = vmatpush1.msra.mxu0 0.0
  %3053 = vmatprep.subr.mxu0 0.0
  %3054 = vmatpush1.msra.mxu0 0.0
  %3055 = vmatprep.subr.mxu0 0.0
  %3056 = vmatpush1.msra.mxu0 0.0
  %3057 = vmatprep.subr.mxu0 0.0
  %3058 = vmatpush1.msra.mxu0 0.0
  %3059 = vmatprep.subr.mxu0 0.0
  %3060 = vmatpush1.msra.mxu0 0.0
  %3061 = vmatprep.subr.mxu0 0.0
  %3062 = vmatpush1.msra.mxu0 0.0
  %3063 = vmatprep.subr.mxu0 0.0
  %3064 = vmatpush1.msra.mxu0 0.0
  %3065 = vmatprep.subr.mxu0 0.0
  %3066 = vmatpush1.msra.mxu0 0.0
  %3067 = vmatprep.subr.mxu0 0.0
  %3068 = vmatpush1.msra.mxu0 0.0
  %3069 = vmatprep.subr.mxu0 0.0
  %3070 = vmatpush1.msra.mxu0 0.0
  %3071 = vmatprep.subr.mxu0 0.0
  %3072 = vmatpush1.msra.mxu0 0.0
  %3073 = vmatprep.subr.mxu0 0.0
  %3074 = vmatpush1.msra.mxu0 0.0
  %3075 = vmatprep.subr.mxu0 0.0
  %3076 = vmatpush1.msra.mxu0 0.0
  %3077 = vmatprep.subr.mxu0 0.0
  %3078 = vmatpush1.msra.mxu0 0.0
  %3079 = vmatprep.subr.mxu0 0.0
  %3080 = vmatpush1.msra.mxu0 0.0
  %3081 = vmatprep.subr.mxu0 0.0
  %3082 = vmatpush1.msra.mxu0 0.0
  %3083 = vmatprep.subr.mxu0 0.0
  %3084 = vmatpush1.msra.mxu0 0.0
  %3085 = vmatprep.subr.mxu0 0.0
  %3086 = vmatpush1.msra.mxu0 0.0
  %3087 = vmatprep.subr.mxu0 0.0
  %3088 = vmatpush1.msra.mxu0 0.0
  %3089 = vmatprep.subr.mxu0 0.0
  %3090 = vmatpush1.msra.mxu0 0.0
  %3091 = vmatprep.subr.mxu0 0.0
  %3092 = vmatpush1.msra.mxu0 0.0
  %3093 = vmatprep.subr.mxu0 0.0
  %3094 = vmatpush1.msra.mxu0 0.0
  %3095 = vmatprep.subr.mxu0 0.0
  %3096 = vmatpush1.msra.mxu0 0.0
  %3097 = vmatprep.subr.mxu0 0.0
  %3098 = vmatpush1.msra.mxu0 0.0
  %3099 = vmatprep.mubr.f32.mxu0 0.0
  %3100 = vmatmul.mubr.f32.gmra.mrb[0].mxu0 %v3030
  %v3101 = vpop.f32.mrb[0].mxu0
  %v3102 = vadd.f32 0.0, %v3101
  %v3103 = vpop.f32.mrb[0].mxu0
  %3104 = vmatprep.mubr.f32.mxu0 0.0
  %3105 = vmatmul.mubr.f32.gmra.mrb[0].mxu0 %v3033
  %v3106 = vpop.f32.mrb[0].mxu0
  %v3107 = vadd.f32 0.0, %v3106
  %v3108 = vpop.f32.mrb[0].mxu0
  %3109 = vdwg.mxu0
  %3112 = vrot.lane.b32.xlu0 %v2694, 8
  %v3113 = vpop.permute.xlu0 %3112
  %3114 = vrot.lane.b32.xlu0 %v2699, 8
  %v3115 = vpop.permute.xlu0 %3114
  %3120 = vrot.lane.b32.xlu0 %v2898, 16
  %v3121 = vpop.permute.xlu0 %3120
  %3122 = vrot.lane.b32.xlu0 %v2903, 16
  %v3123 = vpop.permute.xlu0 %3122
  %3128 = vrot.lane.b32.xlu0 %v3102, 24
  %v3129 = vpop.permute.xlu0 %3128
  %3130 = vrot.lane.b32.xlu0 %v3107, 24
  %v3131 = vpop.permute.xlu0 %3130
  %v3134 = vsel %vm2300, %v2490, %v3113
  %v3135 = vsel %vm2300, %v2495, %v3115
  %v3136 = vsel %vm2388, %v3134, %v3121
  %v3137 = vsel %vm2388, %v3135, %v3123
  %vm3138 = vcmask 195584
  %v3139 = vsel %vm3138, %v3136, %v3129
  %v3140 = vsel %vm3138, %v3137, %v3131
  %v3141 = vld [vmem:[%s25] sm:$0xff]
  %v3142 = vld [vmem:[%s25 + $0x8] sm:$0xff]
  %v3143 = vld [vmem:[%s25 + $0x10] sm:$0xff]
  %v3144 = vld [vmem:[%s25 + $0x18] sm:$0xff]
  %v3145 = vld [vmem:[%s27] sm:$0x1]
  %v3147 = vlaneseq
  %v3148 = vshrl.u32 %v3147, 7
  %v3149 = vsub.s32 0, %v3148
  %v3150 = vrot.slane %v3145, %v3149
  %v3153 = vsel %vm260, %v3139, 0
  %v3156 = vsel %vm260, %v3140, 0
  %3158 = vmatprep.subr.mxu0 0.0
  %3159 = vmatpush1.msra.mxu0 %v3141
  %3160 = vmatprep.subr.mxu0 0.0
  %3161 = vmatpush1.msra.mxu0 %v3142
  %3162 = vmatprep.subr.mxu0 0.0
  %3163 = vmatpush1.msra.mxu0 %v3143
  %3164 = vmatprep.subr.mxu0 0.0
  %3165 = vmatpush1.msra.mxu0 %v3144
  %3166 = vmatprep.subr.mxu0 0.0
  %3167 = vmatpush1.msra.mxu0 0.0
  %3168 = vmatprep.subr.mxu0 0.0
  %3169 = vmatpush1.msra.mxu0 0.0
  %3170 = vmatprep.subr.mxu0 0.0
  %3171 = vmatpush1.msra.mxu0 0.0
  %3172 = vmatprep.subr.mxu0 0.0
  %3173 = vmatpush1.msra.mxu0 0.0
  %3174 = vmatprep.subr.mxu0 0.0
  %3175 = vmatpush1.msra.mxu0 0.0
  %3176 = vmatprep.subr.mxu0 0.0
  %3177 = vmatpush1.msra.mxu0 0.0
  %3178 = vmatprep.subr.mxu0 0.0
  %3179 = vmatpush1.msra.mxu0 0.0
  %3180 = vmatprep.subr.mxu0 0.0
  %3181 = vmatpush1.msra.mxu0 0.0
  %3182 = vmatprep.subr.mxu0 0.0
  %3183 = vmatpush1.msra.mxu0 0.0
  %3184 = vmatprep.subr.mxu0 0.0
  %3185 = vmatpush1.msra.mxu0 0.0
  %3186 = vmatprep.subr.mxu0 0.0
  %3187 = vmatpush1.msra.mxu0 0.0
  %3188 = vmatprep.subr.mxu0 0.0
  %3189 = vmatpush1.msra.mxu0 0.0
  %3190 = vmatprep.subr.mxu0 0.0
  %3191 = vmatpush1.msra.mxu0 0.0
  %3192 = vmatprep.subr.mxu0 0.0
  %3193 = vmatpush1.msra.mxu0 0.0
  %3194 = vmatprep.subr.mxu0 0.0
  %3195 = vmatpush1.msra.mxu0 0.0
  %3196 = vmatprep.subr.mxu0 0.0
  %3197 = vmatpush1.msra.mxu0 0.0
  %3198 = vmatprep.subr.mxu0 0.0
  %3199 = vmatpush1.msra.mxu0 0.0
  %3200 = vmatprep.subr.mxu0 0.0
  %3201 = vmatpush1.msra.mxu0 0.0
  %3202 = vmatprep.subr.mxu0 0.0
  %3203 = vmatpush1.msra.mxu0 0.0
  %3204 = vmatprep.subr.mxu0 0.0
  %3205 = vmatpush1.msra.mxu0 0.0
  %3206 = vmatprep.subr.mxu0 0.0
  %3207 = vmatpush1.msra.mxu0 0.0
  %3208 = vmatprep.subr.mxu0 0.0
  %3209 = vmatpush1.msra.mxu0 0.0
  %3210 = vmatprep.subr.mxu0 0.0
  %3211 = vmatpush1.msra.mxu0 0.0
  %3212 = vmatprep.subr.mxu0 0.0
  %3213 = vmatpush1.msra.mxu0 0.0
  %3214 = vmatprep.subr.mxu0 0.0
  %3215 = vmatpush1.msra.mxu0 0.0
  %3216 = vmatprep.subr.mxu0 0.0
  %3217 = vmatpush1.msra.mxu0 0.0
  %3218 = vmatprep.subr.mxu0 0.0
  %3219 = vmatpush1.msra.mxu0 0.0
  %3220 = vmatprep.subr.mxu0 0.0
  %3221 = vmatpush1.msra.mxu0 0.0
  %3222 = vmatprep.mubr.f32.mxu0 0.0
  %3223 = vmatmul.mubr.f32.gmra.mrb[0].mxu0 %v3153
  %v3224 = vpop.f32.mrb[0].mxu0
  %v3225 = vadd.f32 %v3150, %v3224
  %v3226 = vpop.f32.mrb[0].mxu0
  %3227 = vmatprep.mubr.f32.mxu0 0.0
  %3228 = vmatmul.mubr.f32.gmra.mrb[0].mxu0 %v3156
  %v3229 = vpop.f32.mrb[0].mxu0
  %v3230 = vadd.f32 %v3150, %v3229
  %v3231 = vpop.f32.mrb[0].mxu0
  %3232 = vdwg.mxu0
  %v3233 = vadd.f32 %v2198, %v3225
  %v3234 = vadd.f32 %v2199, %v3230
  %v3235 = vsel %vm260, %v3233, 0.0
  %3236 = vadd.xlane.f32.xlu0 %v3235
  %v3237 = vpop.xlane.xlu0 %3236
  %v3238 = vsel %vm260, %v3234, 0.0
  %3239 = vadd.xlane.f32.xlu0 %v3238
  %v3240 = vpop.xlane.xlu0 %3239
  %v3241 = vrcp.pop 32.0
  %v3242 = vmul.f32 %v3237, %v3241
  %v3243 = vmul.f32 %v3240, %v3241
  %v3244 = vsub.f32 %v3233, %v3242
  %v3245 = vsub.f32 %v3234, %v3243
  %v3246 = vmul.f32 %v3244, %v3244
  %v3247 = vmul.f32 %v3245, %v3245
  %v3248 = vsel %vm260, %v3246, 0.0
  %3249 = vadd.xlane.f32.xlu0 %v3248
  %v3250 = vpop.xlane.xlu0 %3249
  %v3251 = vsel %vm260, %v3247, 0.0
  %3252 = vadd.xlane.f32.xlu0 %v3251
  %v3253 = vpop.xlane.xlu0 %3252
  %v3254 = vmul.f32 %v3250, %v3241
  %v3255 = vmul.f32 %v3253, %v3241
  %v3256 = vadd.f32 %v3254, 1e-05
  %v3257 = vadd.f32 %v3255, 1e-05
  %v3258 = vrsqrt.pop %v3256
  %v3259 = vrsqrt.pop %v3257
  %v3260 = vmul.f32 %v3244, %v3258
  %v3261 = vmul.f32 %v3245, %v3259
  %v3262 = vld [vmem:[%s29] sm:$0x1]
  %v3264 = vlaneseq
  %v3265 = vshrl.u32 %v3264, 7
  %v3266 = vsub.s32 0, %v3265
  %v3267 = vrot.slane %v3262, %v3266
  %v3269 = vmul.f32 %v3260, %v3267
  %v3270 = vmul.f32 %v3261, %v3267
  %v3271 = vld [vmem:[%s31] sm:$0x1]
  %v3273 = vlaneseq
  %v3274 = vshrl.u32 %v3273, 7
  %v3275 = vsub.s32 0, %v3274
  %v3276 = vrot.slane %v3271, %v3275
  %v3278 = vadd.f32 %v3269, %v3276
  %v3279 = vadd.f32 %v3270, %v3276
  %v3280 = vld [vmem:[%s33] sm:$0xff]
  %v3281 = vld [vmem:[%s33 + $0x8] sm:$0xff]
  %v3282 = vld [vmem:[%s33 + $0x10] sm:$0xff]
  %v3283 = vld [vmem:[%s33 + $0x18] sm:$0xff]
  %v3284 = vld [vmem:[%s35] sm:$0x1]
  %v3286 = vlaneseq
  %v3287 = vshrl.u32 %v3286, 7
  %v3288 = vsub.s32 0, %v3287
  %v3289 = vrot.slane %v3284, %v3288
  %v3292 = vsel %vm260, %v3278, 0
  %v3295 = vsel %vm260, %v3279, 0
  %3297 = vmatprep.subr.mxu0 0.0
  %3298 = vmatpush1.msra.mxu0 %v3280
  %3299 = vmatprep.subr.mxu0 0.0
  %3300 = vmatpush1.msra.mxu0 %v3281
  %3301 = vmatprep.subr.mxu0 0.0
  %3302 = vmatpush1.msra.mxu0 %v3282
  %3303 = vmatprep.subr.mxu0 0.0
  %3304 = vmatpush1.msra.mxu0 %v3283
  %3305 = vmatprep.subr.mxu0 0.0
  %3306 = vmatpush1.msra.mxu0 0.0
  %3307 = vmatprep.subr.mxu0 0.0
  %3308 = vmatpush1.msra.mxu0 0.0
  %3309 = vmatprep.subr.mxu0 0.0
  %3310 = vmatpush1.msra.mxu0 0.0
  %3311 = vmatprep.subr.mxu0 0.0
  %3312 = vmatpush1.msra.mxu0 0.0
  %3313 = vmatprep.subr.mxu0 0.0
  %3314 = vmatpush1.msra.mxu0 0.0
  %3315 = vmatprep.subr.mxu0 0.0
  %3316 = vmatpush1.msra.mxu0 0.0
  %3317 = vmatprep.subr.mxu0 0.0
  %3318 = vmatpush1.msra.mxu0 0.0
  %3319 = vmatprep.subr.mxu0 0.0
  %3320 = vmatpush1.msra.mxu0 0.0
  %3321 = vmatprep.subr.mxu0 0.0
  %3322 = vmatpush1.msra.mxu0 0.0
  %3323 = vmatprep.subr.mxu0 0.0
  %3324 = vmatpush1.msra.mxu0 0.0
  %3325 = vmatprep.subr.mxu0 0.0
  %3326 = vmatpush1.msra.mxu0 0.0
  %3327 = vmatprep.subr.mxu0 0.0
  %3328 = vmatpush1.msra.mxu0 0.0
  %3329 = vmatprep.subr.mxu0 0.0
  %3330 = vmatpush1.msra.mxu0 0.0
  %3331 = vmatprep.subr.mxu0 0.0
  %3332 = vmatpush1.msra.mxu0 0.0
  %3333 = vmatprep.subr.mxu0 0.0
  %3334 = vmatpush1.msra.mxu0 0.0
  %3335 = vmatprep.subr.mxu0 0.0
  %3336 = vmatpush1.msra.mxu0 0.0
  %3337 = vmatprep.subr.mxu0 0.0
  %3338 = vmatpush1.msra.mxu0 0.0
  %3339 = vmatprep.subr.mxu0 0.0
  %3340 = vmatpush1.msra.mxu0 0.0
  %3341 = vmatprep.subr.mxu0 0.0
  %3342 = vmatpush1.msra.mxu0 0.0
  %3343 = vmatprep.subr.mxu0 0.0
  %3344 = vmatpush1.msra.mxu0 0.0
  %3345 = vmatprep.subr.mxu0 0.0
  %3346 = vmatpush1.msra.mxu0 0.0
  %3347 = vmatprep.subr.mxu0 0.0
  %3348 = vmatpush1.msra.mxu0 0.0
  %3349 = vmatprep.subr.mxu0 0.0
  %3350 = vmatpush1.msra.mxu0 0.0
  %3351 = vmatprep.subr.mxu0 0.0
  %3352 = vmatpush1.msra.mxu0 0.0
  %3353 = vmatprep.subr.mxu0 0.0
  %3354 = vmatpush1.msra.mxu0 0.0
  %3355 = vmatprep.subr.mxu0 0.0
  %3356 = vmatpush1.msra.mxu0 0.0
  %3357 = vmatprep.subr.mxu0 0.0
  %3358 = vmatpush1.msra.mxu0 0.0
  %3359 = vmatprep.subr.mxu0 0.0
  %3360 = vmatpush1.msra.mxu0 0.0
  %3361 = vmatprep.mubr.f32.mxu0 0.0
  %3362 = vmatmul.mubr.f32.gmra.mrb[0].mxu0 %v3292
  %v3363 = vpop.f32.mrb[0].mxu0
  %v3364 = vadd.f32 %v3289, %v3363
  %v3365 = vpop.f32.mrb[0].mxu0
  %3366 = vmatprep.mubr.f32.mxu0 0.0
  %3367 = vmatmul.mubr.f32.gmra.mrb[0].mxu0 %v3295
  %v3368 = vpop.f32.mrb[0].mxu0
  %v3369 = vadd.f32 %v3289, %v3368
  %v3370 = vpop.f32.mrb[0].mxu0
  %3371 = vdwg.mxu0
  %v3372 = vmax.f32 %v3364, 0.0
  %v3373 = vmax.f32 %v3369, 0.0
  %v3374 = vld [vmem:[%s37] sm:$0xff]
  %v3375 = vld [vmem:[%s37 + $0x8] sm:$0xff]
  %v3376 = vld [vmem:[%s37 + $0x10] sm:$0xff]
  %v3377 = vld [vmem:[%s37 + $0x18] sm:$0xff]
  %v3378 = vld [vmem:[%s37 + $0x20] sm:$0xff]
  %v3379 = vld [vmem:[%s37 + $0x28] sm:$0xff]
  %v3380 = vld [vmem:[%s37 + $0x30] sm:$0xff]
  %v3381 = vld [vmem:[%s37 + $0x38] sm:$0xff]
  %v3382 = vld [vmem:[%s39] sm:$0x1]
  %v3384 = vlaneseq
  %v3385 = vshrl.u32 %v3384, 7
  %v3386 = vsub.s32 0, %v3385
  %v3387 = vrot.slane %v3382, %v3386
  %vm3389 = vcmask 523264
  %v3391 = vsel %vm3389, %v3372, 0
  %v3394 = vsel %vm3389, %v3373, 0
  %3396 = vmatprep.subr.mxu0 0.0
  %3397 = vmatpush1.msra.mxu0 %v3374
  %3398 = vmatprep.subr.mxu0 0.0
  %3399 = vmatpush1.msra.mxu0 %v3375
  %3400 = vmatprep.subr.mxu0 0.0
  %3401 = vmatpush1.msra.mxu0 %v3376
  %3402 = vmatprep.subr.mxu0 0.0
  %3403 = vmatpush1.msra.mxu0 %v3377
  %3404 = vmatprep.subr.mxu0 0.0
  %3405 = vmatpush1.msra.mxu0 %v3378
  %3406 = vmatprep.subr.mxu0 0.0
  %3407 = vmatpush1.msra.mxu0 %v3379
  %3408 = vmatprep.subr.mxu0 0.0
  %3409 = vmatpush1.msra.mxu0 %v3380
  %3410 = vmatprep.subr.mxu0 0.0
  %3411 = vmatpush1.msra.mxu0 %v3381
  %3412 = vmatprep.subr.mxu0 0.0
  %3413 = vmatpush1.msra.mxu0 0.0
  %3414 = vmatprep.subr.mxu0 0.0
  %3415 = vmatpush1.msra.mxu0 0.0
  %3416 = vmatprep.subr.mxu0 0.0
  %3417 = vmatpush1.msra.mxu0 0.0
  %3418 = vmatprep.subr.mxu0 0.0
  %3419 = vmatpush1.msra.mxu0 0.0
  %3420 = vmatprep.subr.mxu0 0.0
  %3421 = vmatpush1.msra.mxu0 0.0
  %3422 = vmatprep.subr.mxu0 0.0
  %3423 = vmatpush1.msra.mxu0 0.0
  %3424 = vmatprep.subr.mxu0 0.0
  %3425 = vmatpush1.msra.mxu0 0.0
  %3426 = vmatprep.subr.mxu0 0.0
  %3427 = vmatpush1.msra.mxu0 0.0
  %3428 = vmatprep.subr.mxu0 0.0
  %3429 = vmatpush1.msra.mxu0 0.0
  %3430 = vmatprep.subr.mxu0 0.0
  %3431 = vmatpush1.msra.mxu0 0.0
  %3432 = vmatprep.subr.mxu0 0.0
  %3433 = vmatpush1.msra.mxu0 0.0
  %3434 = vmatprep.subr.mxu0 0.0
  %3435 = vmatpush1.msra.mxu0 0.0
  %3436 = vmatprep.subr.mxu0 0.0
  %3437 = vmatpush1.msra.mxu0 0.0
  %3438 = vmatprep.subr.mxu0 0.0
  %3439 = vmatpush1.msra.mxu0 0.0
  %3440 = vmatprep.subr.mxu0 0.0
  %3441 = vmatpush1.msra.mxu0 0.0
  %3442 = vmatprep.subr.mxu0 0.0
  %3443 = vmatpush1.msra.mxu0 0.0
  %3444 = vmatprep.subr.mxu0 0.0
  %3445 = vmatpush1.msra.mxu0 0.0
  %3446 = vmatprep.subr.mxu0 0.0
  %3447 = vmatpush1.msra.mxu0 0.0
  %3448 = vmatprep.subr.mxu0 0.0
  %3449 = vmatpush1.msra.mxu0 0.0
  %3450 = vmatprep.subr.mxu0 0.0
  %3451 = vmatpush1.msra.mxu0 0.0
  %3452 = vmatprep.subr.mxu0 0.0
  %3453 = vmatpush1.msra.mxu0 0.0
  %3454 = vmatprep.subr.mxu0 0.0
  %3455 = vmatpush1.msra.mxu0 0.0
  %3456 = vmatprep.subr.mxu0 0.0
  %3457 = vmatpush1.msra.mxu0 0.0
  %3458 = vmatprep.subr.mxu0 0.0
  %3459 = vmatpush1.msra.mxu0 0.0
  %3460 = vmatprep.mubr.f32.mxu0 0.0
  %3461 = vmatmul.mubr.f32.gmra.mrb[0].mxu0 %v3391
  %v3462 = vpop.f32.mrb[0].mxu0
  %v3463 = vadd.f32 %v3387, %v3462
  %v3464 = vpop.f32.mrb[0].mxu0
  %3465 = vmatprep.mubr.f32.mxu0 0.0
  %3466 = vmatmul.mubr.f32.gmra.mrb[0].mxu0 %v3394
  %v3467 = vpop.f32.mrb[0].mxu0
  %v3468 = vadd.f32 %v3387, %v3467
  %v3469 = vpop.f32.mrb[0].mxu0
  %3470 = vdwg.mxu0
  %v3471 = vadd.f32 %v3278, %v3463
  %v3472 = vadd.f32 %v3279, %v3468
  %v3473 = vsel %vm260, %v3471, 0.0
  %3474 = vadd.xlane.f32.xlu0 %v3473
  %v3475 = vpop.xlane.xlu0 %3474
  %v3476 = vsel %vm260, %v3472, 0.0
  %3477 = vadd.xlane.f32.xlu0 %v3476
  %v3478 = vpop.xlane.xlu0 %3477
  %v3479 = vmul.f32 %v3475, %v3241
  %v3480 = vmul.f32 %v3478, %v3241
  %v3481 = vsub.f32 %v3471, %v3479
  %v3482 = vsub.f32 %v3472, %v3480
  %v3483 = vmul.f32 %v3481, %v3481
  %v3484 = vmul.f32 %v3482, %v3482
  %v3485 = vsel %vm260, %v3483, 0.0
  %3486 = vadd.xlane.f32.xlu0 %v3485
  %v3487 = vpop.xlane.xlu0 %3486
  %v3488 = vsel %vm260, %v3484, 0.0
  %3489 = vadd.xlane.f32.xlu0 %v3488
  %v3490 = vpop.xlane.xlu0 %3489
  %v3491 = vmul.f32 %v3487, %v3241
  %v3492 = vmul.f32 %v3490, %v3241
  %v3493 = vadd.f32 %v3491, 1e-05
  %v3494 = vadd.f32 %v3492, 1e-05
  %v3495 = vrsqrt.pop %v3493
  %v3496 = vrsqrt.pop %v3494
  %v3497 = vmul.f32 %v3481, %v3495
  %v3498 = vmul.f32 %v3482, %v3496
  %v3499 = vld [vmem:[%s41] sm:$0x1]
  %v3501 = vlaneseq
  %v3502 = vshrl.u32 %v3501, 7
  %v3503 = vsub.s32 0, %v3502
  %v3504 = vrot.slane %v3499, %v3503
  %v3506 = vmul.f32 %v3497, %v3504
  %v3507 = vmul.f32 %v3498, %v3504
  %v3508 = vld [vmem:[%s43] sm:$0x1]
  %v3510 = vlaneseq
  %v3511 = vshrl.u32 %v3510, 7
  %v3512 = vsub.s32 0, %v3511
  %v3513 = vrot.slane %v3508, %v3512
  %v3515 = vadd.f32 %v3506, %v3513
  %v3516 = vadd.f32 %v3507, %v3513
  %v3517 = vld [vmem:[%s45] sm:$0xff]
  %v3518 = vld [vmem:[%s45 + $0x8] sm:$0xff]
  %v3519 = vld [vmem:[%s45 + $0x10] sm:$0xff]
  %v3520 = vld [vmem:[%s45 + $0x18] sm:$0xff]
  %v3521 = vld [vmem:[%s47] sm:$0x1]
  %v3523 = vlaneseq
  %v3524 = vshrl.u32 %v3523, 7
  %v3525 = vsub.s32 0, %v3524
  %v3526 = vrot.slane %v3521, %v3525
  %v3529 = vsel %vm260, %v3515, 0
  %v3532 = vsel %vm260, %v3516, 0
  %3534 = vmatprep.subr.mxu0 0.0
  %3535 = vmatpush1.msra.mxu0 %v3517
  %3536 = vmatprep.subr.mxu0 0.0
  %3537 = vmatpush1.msra.mxu0 %v3518
  %3538 = vmatprep.subr.mxu0 0.0
  %3539 = vmatpush1.msra.mxu0 %v3519
  %3540 = vmatprep.subr.mxu0 0.0
  %3541 = vmatpush1.msra.mxu0 %v3520
  %3542 = vmatprep.subr.mxu0 0.0
  %3543 = vmatpush1.msra.mxu0 0.0
  %3544 = vmatprep.subr.mxu0 0.0
  %3545 = vmatpush1.msra.mxu0 0.0
  %3546 = vmatprep.subr.mxu0 0.0
  %3547 = vmatpush1.msra.mxu0 0.0
  %3548 = vmatprep.subr.mxu0 0.0
  %3549 = vmatpush1.msra.mxu0 0.0
  %3550 = vmatprep.subr.mxu0 0.0
  %3551 = vmatpush1.msra.mxu0 0.0
  %3552 = vmatprep.subr.mxu0 0.0
  %3553 = vmatpush1.msra.mxu0 0.0
  %3554 = vmatprep.subr.mxu0 0.0
  %3555 = vmatpush1.msra.mxu0 0.0
  %3556 = vmatprep.subr.mxu0 0.0
  %3557 = vmatpush1.msra.mxu0 0.0
  %3558 = vmatprep.subr.mxu0 0.0
  %3559 = vmatpush1.msra.mxu0 0.0
  %3560 = vmatprep.subr.mxu0 0.0
  %3561 = vmatpush1.msra.mxu0 0.0
  %3562 = vmatprep.subr.mxu0 0.0
  %3563 = vmatpush1.msra.mxu0 0.0
  %3564 = vmatprep.subr.mxu0 0.0
  %3565 = vmatpush1.msra.mxu0 0.0
  %3566 = vmatprep.subr.mxu0 0.0
  %3567 = vmatpush1.msra.mxu0 0.0
  %3568 = vmatprep.subr.mxu0 0.0
  %3569 = vmatpush1.msra.mxu0 0.0
  %3570 = vmatprep.subr.mxu0 0.0
  %3571 = vmatpush1.msra.mxu0 0.0
  %3572 = vmatprep.subr.mxu0 0.0
  %3573 = vmatpush1.msra.mxu0 0.0
  %3574 = vmatprep.subr.mxu0 0.0
  %3575 = vmatpush1.msra.mxu0 0.0
  %3576 = vmatprep.subr.mxu0 0.0
  %3577 = vmatpush1.msra.mxu0 0.0
  %3578 = vmatprep.subr.mxu0 0.0
  %3579 = vmatpush1.msra.mxu0 0.0
  %3580 = vmatprep.subr.mxu0 0.0
  %3581 = vmatpush1.msra.mxu0 0.0
  %3582 = vmatprep.subr.mxu0 0.0
  %3583 = vmatpush1.msra.mxu0 0.0
  %3584 = vmatprep.subr.mxu0 0.0
  %3585 = vmatpush1.msra.mxu0 0.0
  %3586 = vmatprep.subr.mxu0 0.0
  %3587 = vmatpush1.msra.mxu0 0.0
  %3588 = vmatprep.subr.mxu0 0.0
  %3589 = vmatpush1.msra.mxu0 0.0
  %3590 = vmatprep.subr.mxu0 0.0
  %3591 = vmatpush1.msra.mxu0 0.0
  %3592 = vmatprep.subr.mxu0 0.0
  %3593 = vmatpush1.msra.mxu0 0.0
  %3594 = vmatprep.subr.mxu0 0.0
  %3595 = vmatpush1.msra.mxu0 0.0
  %3596 = vmatprep.subr.mxu0 0.0
  %3597 = vmatpush1.msra.mxu0 0.0
  %3598 = vmatprep.mubr.f32.mxu0 0.0
  %3599 = vmatmul.mubr.f32.gmra.mrb[0].mxu0 %v3529
  %v3600 = vpop.f32.mrb[0].mxu0
  %v3601 = vadd.f32 %v3526, %v3600
  %v3602 = vpop.f32.mrb[0].mxu0
  %3603 = vmatprep.mubr.f32.mxu0 0.0
  %3604 = vmatmul.mubr.f32.gmra.mrb[0].mxu0 %v3532
  %v3605 = vpop.f32.mrb[0].mxu0
  %v3606 = vadd.f32 %v3526, %v3605
  %v3607 = vpop.f32.mrb[0].mxu0
  %3608 = vdwg.mxu0
  %3611 = vrot.lane.b32.xlu0 %v3601, 96
  %v3612 = vpop.permute.xlu0 %3611
  %3613 = vrot.lane.b32.xlu0 %v3606, 96
  %v3614 = vpop.permute.xlu0 %3613
  %v3615 = vsel %vm2300, %v3601, 0
  %v3617 = vsel %vm2300, %v3606, 0
  %v3619 = vsel %vm2300, %v3612, 0
  %v3621 = vsel %vm2300, %v3614, 0
  %3623 = vmatprep.subr.mxu0 0.0
  %3624 = vmatpush1.xpose.msra.mxu0 %v3619
  %3625 = vmatprep.subr.mxu0 0.0
  %3626 = vmatpush1.xpose.msra.mxu0 %v3621
  %3627 = vmatprep.subr.mxu0 0.0
  %3628 = vmatpush1.xpose.msra.mxu0 0.0
  %3629 = vmatprep.subr.mxu0 0.0
  %3630 = vmatpush1.xpose.msra.mxu0 0.0
  %3631 = vmatprep.subr.mxu0 0.0
  %3632 = vmatpush1.xpose.msra.mxu0 0.0
  %3633 = vmatprep.subr.mxu0 0.0
  %3634 = vmatpush1.xpose.msra.mxu0 0.0
  %3635 = vmatprep.subr.mxu0 0.0
  %3636 = vmatpush1.xpose.msra.mxu0 0.0
  %3637 = vmatprep.subr.mxu0 0.0
  %3638 = vmatpush1.xpose.msra.mxu0 0.0
  %3639 = vmatprep.subr.mxu0 0.0
  %3640 = vmatpush1.xpose.msra.mxu0 0.0
  %3641 = vmatprep.subr.mxu0 0.0
  %3642 = vmatpush1.xpose.msra.mxu0 0.0
  %3643 = vmatprep.subr.mxu0 0.0
  %3644 = vmatpush1.xpose.msra.mxu0 0.0
  %3645 = vmatprep.subr.mxu0 0.0
  %3646 = vmatpush1.xpose.msra.mxu0 0.0
  %3647 = vmatprep.subr.mxu0 0.0
  %3648 = vmatpush1.xpose.msra.mxu0 0.0
  %3649 = vmatprep.subr.mxu0 0.0
  %3650 = vmatpush1.xpose.msra.mxu0 0.0
  %3651 = vmatprep.subr.mxu0 0.0
  %3652 = vmatpush1.xpose.msra.mxu0 0.0
  %3653 = vmatprep.subr.mxu0 0.0
  %3654 = vmatpush1.xpose.msra.mxu0 0.0
  %3655 = vmatprep.subr.mxu0 0.0
  %3656 = vmatpush1.xpose.msra.mxu0 0.0
  %3657 = vmatprep.subr.mxu0 0.0
  %3658 = vmatpush1.xpose.msra.mxu0 0.0
  %3659 = vmatprep.subr.mxu0 0.0
  %3660 = vmatpush1.xpose.msra.mxu0 0.0
  %3661 = vmatprep.subr.mxu0 0.0
  %3662 = vmatpush1.xpose.msra.mxu0 0.0
  %3663 = vmatprep.subr.mxu0 0.0
  %3664 = vmatpush1.xpose.msra.mxu0 0.0
  %3665 = vmatprep.subr.mxu0 0.0
  %3666 = vmatpush1.xpose.msra.mxu0 0.0
  %3667 = vmatprep.subr.mxu0 0.0
  %3668 = vmatpush1.xpose.msra.mxu0 0.0
  %3669 = vmatprep.subr.mxu0 0.0
  %3670 = vmatpush1.xpose.msra.mxu0 0.0
  %3671 = vmatprep.subr.mxu0 0.0
  %3672 = vmatpush1.xpose.msra.mxu0 0.0
  %3673 = vmatprep.subr.mxu0 0.0
  %3674 = vmatpush1.xpose.msra.mxu0 0.0
  %3675 = vmatprep.subr.mxu0 0.0
  %3676 = vmatpush1.xpose.msra.mxu0 0.0
  %3677 = vmatprep.subr.mxu0 0.0
  %3678 = vmatpush1.xpose.msra.mxu0 0.0
  %3679 = vmatprep.subr.mxu0 0.0
  %3680 = vmatpush1.xpose.msra.mxu0 0.0
  %3681 = vmatprep.subr.mxu0 0.0
  %3682 = vmatpush1.xpose.msra.mxu0 0.0
  %3683 = vmatprep.subr.mxu0 0.0
  %3684 = vmatpush1.xpose.msra.mxu0 0.0
  %3685 = vmatprep.subr.mxu0 0.0
  %3686 = vmatpush1.xpose.msra.mxu0 0.0
  %3687 = vmatprep.mubr.f32.mxu0 0.0
  %3688 = vmatmul.mubr.f32.gmra.mrb[0].mxu0 %v3615
  %v3689 = vpop.f32.mrb[0].mxu0
  %v3690 = vadd.f32 0.0, %v3689
  %v3691 = vpop.f32.mrb[0].mxu0
  %3692 = vmatprep.mubr.f32.mxu0 0.0
  %3693 = vmatmul.mubr.f32.gmra.mrb[0].mxu0 %v3617
  %v3694 = vpop.f32.mrb[0].mxu0
  %v3695 = vadd.f32 0.0, %v3694
  %v3696 = vpop.f32.mrb[0].mxu0
  %3697 = vdwg.mxu0
  %v3698 = vmul.f32 %v3690, 0.35355338
  %v3699 = vmul.f32 %v3695, 0.35355338
  %v3700 = vadd.f32 %v3698, %v2200
  %v3701 = vadd.f32 %v3699, %v2201
  %v3702 = vsel %vm2388, %v3700, -inf
  %3703 = vmax.xlane.f32.xlu0 %v3702
  %v3704 = vpop.xlane.xlu0 %3703
  %v3705 = vsel %vm2388, %v3701, -inf
  %3706 = vmax.xlane.f32.xlu0 %v3705
  %v3707 = vpop.xlane.xlu0 %3706
  %v3708 = vsub.f32 %v3700, %v3704
  %v3709 = vsub.f32 %v3701, %v3707
  %v3710 = vmul.f32 %v3708, 1.442695
  %v3711 = vpow.pop %v3710
  %v3712 = vmul.f32 %v3709, 1.442695
  %v3713 = vpow.pop %v3712
  %v3714 = vsel %vm2388, %v3711, 0.0
  %3715 = vadd.xlane.f32.xlu0 %v3714
  %v3716 = vpop.xlane.xlu0 %3715
  %v3717 = vsel %vm2388, %v3713, 0.0
  %3718 = vadd.xlane.f32.xlu0 %v3717
  %v3719 = vpop.xlane.xlu0 %3718
  %v3720 = vrcp.pop %v3716
  %v3721 = vrcp.pop %v3719
  %v3722 = vmul.f32 %v3711, %v3720
  %v3723 = vmul.f32 %v3713, %v3721
  %3724 = vrot.lane.b32.xlu0 %v3601, 64
  %v3725 = vpop.permute.xlu0 %3724
  %3726 = vrot.lane.b32.xlu0 %v3606, 64
  %v3727 = vpop.permute.xlu0 %3726
  %v3731 = vsel %vm2388, %v3722, 0
  %v3734 = vsel %vm2388, %v3723, 0
  %3736 = vmatprep.subr.mxu0 0.0
  %3737 = vmatpush1.msra.mxu0 %v3725
  %3738 = vmatprep.subr.mxu0 0.0
  %3739 = vmatpush1.msra.mxu0 %v3727
  %3740 = vmatprep.subr.mxu0 0.0
  %3741 = vmatpush1.msra.mxu0 0.0
  %3742 = vmatprep.subr.mxu0 0.0
  %3743 = vmatpush1.msra.mxu0 0.0
  %3744 = vmatprep.subr.mxu0 0.0
  %3745 = vmatpush1.msra.mxu0 0.0
  %3746 = vmatprep.subr.mxu0 0.0
  %3747 = vmatpush1.msra.mxu0 0.0
  %3748 = vmatprep.subr.mxu0 0.0
  %3749 = vmatpush1.msra.mxu0 0.0
  %3750 = vmatprep.subr.mxu0 0.0
  %3751 = vmatpush1.msra.mxu0 0.0
  %3752 = vmatprep.subr.mxu0 0.0
  %3753 = vmatpush1.msra.mxu0 0.0
  %3754 = vmatprep.subr.mxu0 0.0
  %3755 = vmatpush1.msra.mxu0 0.0
  %3756 = vmatprep.subr.mxu0 0.0
  %3757 = vmatpush1.msra.mxu0 0.0
  %3758 = vmatprep.subr.mxu0 0.0
  %3759 = vmatpush1.msra.mxu0 0.0
  %3760 = vmatprep.subr.mxu0 0.0
  %3761 = vmatpush1.msra.mxu0 0.0
  %3762 = vmatprep.subr.mxu0 0.0
  %3763 = vmatpush1.msra.mxu0 0.0
  %3764 = vmatprep.subr.mxu0 0.0
  %3765 = vmatpush1.msra.mxu0 0.0
  %3766 = vmatprep.subr.mxu0 0.0
  %3767 = vmatpush1.msra.mxu0 0.0
  %3768 = vmatprep.subr.mxu0 0.0
  %3769 = vmatpush1.msra.mxu0 0.0
  %3770 = vmatprep.subr.mxu0 0.0
  %3771 = vmatpush1.msra.mxu0 0.0
  %3772 = vmatprep.subr.mxu0 0.0
  %3773 = vmatpush1.msra.mxu0 0.0
  %3774 = vmatprep.subr.mxu0 0.0
  %3775 = vmatpush1.msra.mxu0 0.0
  %3776 = vmatprep.subr.mxu0 0.0
  %3777 = vmatpush1.msra.mxu0 0.0
  %3778 = vmatprep.subr.mxu0 0.0
  %3779 = vmatpush1.msra.mxu0 0.0
  %3780 = vmatprep.subr.mxu0 0.0
  %3781 = vmatpush1.msra.mxu0 0.0
  %3782 = vmatprep.subr.mxu0 0.0
  %3783 = vmatpush1.msra.mxu0 0.0
  %3784 = vmatprep.subr.mxu0 0.0
  %3785 = vmatpush1.msra.mxu0 0.0
  %3786 = vmatprep.subr.mxu0 0.0
  %3787 = vmatpush1.msra.mxu0 0.0
  %3788 = vmatprep.subr.mxu0 0.0
  %3789 = vmatpush1.msra.mxu0 0.0
  %3790 = vmatprep.subr.mxu0 0.0
  %3791 = vmatpush1.msra.mxu0 0.0
  %3792 = vmatprep.subr.mxu0 0.0
  %3793 = vmatpush1.msra.mxu0 0.0
  %3794 = vmatprep.subr.mxu0 0.0
  %3795 = vmatpush1.msra.mxu0 0.0
  %3796 = vmatprep.subr.mxu0 0.0
  %3797 = vmatpush1.msra.mxu0 0.0
  %3798 = vmatprep.subr.mxu0 0.0
  %3799 = vmatpush1.msra.mxu0 0.0
  %3800 = vmatprep.mubr.f32.mxu0 0.0
  %3801 = vmatmul.mubr.f32.gmra.mrb[0].mxu0 %v3731
  %v3802 = vpop.f32.mrb[0].mxu0
  %v3803 = vadd.f32 0.0, %v3802
  %v3804 = vpop.f32.mrb[0].mxu0
  %3805 = vmatprep.mubr.f32.mxu0 0.0
  %3806 = vmatmul.mubr.f32.gmra.mrb[0].mxu0 %v3734
  %v3807 = vpop.f32.mrb[0].mxu0
  %v3808 = vadd.f32 0.0, %v3807
  %v3809 = vpop.f32.mrb[0].mxu0
  %3810 = vdwg.mxu0
  %3811 = vrot.lane.b32.xlu0 %v3601, 120
  %v3812 = vpop.permute.xlu0 %3811
  %3813 = vrot.lane.b32.xlu0 %v3606, 120
  %v3814 = vpop.permute.xlu0 %3813
  %3815 = vrot.lane.b32.xlu0 %v3601, 88
  %v3816 = vpop.permute.xlu0 %3815
  %3817 = vrot.lane.b32.xlu0 %v3606, 88
  %v3818 = vpop.permute.xlu0 %3817
  %v3819 = vsel %vm2300, %v3812, 0
  %v3821 = vsel %vm2300, %v3814, 0
  %v3823 = vsel %vm2300, %v3816, 0
  %v3825 = vsel %vm2300, %v3818, 0
  %3827 = vmatprep.subr.mxu0 0.0
  %3828 = vmatpush1.xpose.msra.mxu0 %v3823
  %3829 = vmatprep.subr.mxu0 0.0
  %3830 = vmatpush1.xpose.msra.mxu0 %v3825
  %3831 = vmatprep.subr.mxu0 0.0
  %3832 = vmatpush1.xpose.msra.mxu0 0.0
  %3833 = vmatprep.subr.mxu0 0.0
  %3834 = vmatpush1.xpose.msra.mxu0 0.0
  %3835 = vmatprep.subr.mxu0 0.0
  %3836 = vmatpush1.xpose.msra.mxu0 0.0
  %3837 = vmatprep.subr.mxu0 0.0
  %3838 = vmatpush1.xpose.msra.mxu0 0.0
  %3839 = vmatprep.subr.mxu0 0.0
  %3840 = vmatpush1.xpose.msra.mxu0 0.0
  %3841 = vmatprep.subr.mxu0 0.0
  %3842 = vmatpush1.xpose.msra.mxu0 0.0
  %3843 = vmatprep.subr.mxu0 0.0
  %3844 = vmatpush1.xpose.msra.mxu0 0.0
  %3845 = vmatprep.subr.mxu0 0.0
  %3846 = vmatpush1.xpose.msra.mxu0 0.0
  %3847 = vmatprep.subr.mxu0 0.0
  %3848 = vmatpush1.xpose.msra.mxu0 0.0
  %3849 = vmatprep.subr.mxu0 0.0
  %3850 = vmatpush1.xpose.msra.mxu0 0.0
  %3851 = vmatprep.subr.mxu0 0.0
  %3852 = vmatpush1.xpose.msra.mxu0 0.0
  %3853 = vmatprep.subr.mxu0 0.0
  %3854 = vmatpush1.xpose.msra.mxu0 0.0
  %3855 = vmatprep.subr.mxu0 0.0
  %3856 = vmatpush1.xpose.msra.mxu0 0.0
  %3857 = vmatprep.subr.mxu0 0.0
  %3858 = vmatpush1.xpose.msra.mxu0 0.0
  %3859 = vmatprep.subr.mxu0 0.0
  %3860 = vmatpush1.xpose.msra.mxu0 0.0
  %3861 = vmatprep.subr.mxu0 0.0
  %3862 = vmatpush1.xpose.msra.mxu0 0.0
  %3863 = vmatprep.subr.mxu0 0.0
  %3864 = vmatpush1.xpose.msra.mxu0 0.0
  %3865 = vmatprep.subr.mxu0 0.0
  %3866 = vmatpush1.xpose.msra.mxu0 0.0
  %3867 = vmatprep.subr.mxu0 0.0
  %3868 = vmatpush1.xpose.msra.mxu0 0.0
  %3869 = vmatprep.subr.mxu0 0.0
  %3870 = vmatpush1.xpose.msra.mxu0 0.0
  %3871 = vmatprep.subr.mxu0 0.0
  %3872 = vmatpush1.xpose.msra.mxu0 0.0
  %3873 = vmatprep.subr.mxu0 0.0
  %3874 = vmatpush1.xpose.msra.mxu0 0.0
  %3875 = vmatprep.subr.mxu0 0.0
  %3876 = vmatpush1.xpose.msra.mxu0 0.0
  %3877 = vmatprep.subr.mxu0 0.0
  %3878 = vmatpush1.xpose.msra.mxu0 0.0
  %3879 = vmatprep.subr.mxu0 0.0
  %3880 = vmatpush1.xpose.msra.mxu0 0.0
  %3881 = vmatprep.subr.mxu0 0.0
  %3882 = vmatpush1.xpose.msra.mxu0 0.0
  %3883 = vmatprep.subr.mxu0 0.0
  %3884 = vmatpush1.xpose.msra.mxu0 0.0
  %3885 = vmatprep.subr.mxu0 0.0
  %3886 = vmatpush1.xpose.msra.mxu0 0.0
  %3887 = vmatprep.subr.mxu0 0.0
  %3888 = vmatpush1.xpose.msra.mxu0 0.0
  %3889 = vmatprep.subr.mxu0 0.0
  %3890 = vmatpush1.xpose.msra.mxu0 0.0
  %3891 = vmatprep.mubr.f32.mxu0 0.0
  %3892 = vmatmul.mubr.f32.gmra.mrb[0].mxu0 %v3819
  %v3893 = vpop.f32.mrb[0].mxu0
  %v3894 = vadd.f32 0.0, %v3893
  %v3895 = vpop.f32.mrb[0].mxu0
  %3896 = vmatprep.mubr.f32.mxu0 0.0
  %3897 = vmatmul.mubr.f32.gmra.mrb[0].mxu0 %v3821
  %v3898 = vpop.f32.mrb[0].mxu0
  %v3899 = vadd.f32 0.0, %v3898
  %v3900 = vpop.f32.mrb[0].mxu0
  %3901 = vdwg.mxu0
  %v3902 = vmul.f32 %v3894, 0.35355338
  %v3903 = vmul.f32 %v3899, 0.35355338
  %v3904 = vadd.f32 %v3902, %v2200
  %v3905 = vadd.f32 %v3903, %v2201
  %v3906 = vsel %vm2388, %v3904, -inf
  %3907 = vmax.xlane.f32.xlu0 %v3906
  %v3908 = vpop.xlane.xlu0 %3907
  %v3909 = vsel %vm2388, %v3905, -inf
  %3910 = vmax.xlane.f32.xlu0 %v3909
  %v3911 = vpop.xlane.xlu0 %3910
  %v3912 = vsub.f32 %v3904, %v3908
  %v3913 = vsub.f32 %v3905, %v3911
  %v3914 = vmul.f32 %v3912, 1.442695
  %v3915 = vpow.pop %v3914
  %v3916 = vmul.f32 %v3913, 1.442695
  %v3917 = vpow.pop %v3916
  %v3918 = vsel %vm2388, %v3915, 0.0
  %3919 = vadd.xlane.f32.xlu0 %v3918
  %v3920 = vpop.xlane.xlu0 %3919
  %v3921 = vsel %vm2388, %v3917, 0.0
  %3922 = vadd.xlane.f32.xlu0 %v3921
  %v3923 = vpop.xlane.xlu0 %3922
  %v3924 = vrcp.pop %v3920
  %v3925 = vrcp.pop %v3923
  %v3926 = vmul.f32 %v3915, %v3924
  %v3927 = vmul.f32 %v3917, %v3925
  %3928 = vrot.lane.b32.xlu0 %v3601, 56
  %v3929 = vpop.permute.xlu0 %3928
  %3930 = vrot.lane.b32.xlu0 %v3606, 56
  %v3931 = vpop.permute.xlu0 %3930
  %v3935 = vsel %vm2388, %v3926, 0
  %v3938 = vsel %vm2388, %v3927, 0
  %3940 = vmatprep.subr.mxu0 0.0
  %3941 = vmatpush1.msra.mxu0 %v3929
  %3942 = vmatprep.subr.mxu0 0.0
  %3943 = vmatpush1.msra.mxu0 %v3931
  %3944 = vmatprep.subr.mxu0 0.0
  %3945 = vmatpush1.msra.mxu0 0.0
  %3946 = vmatprep.subr.mxu0 0.0
  %3947 = vmatpush1.msra.mxu0 0.0
  %3948 = vmatprep.subr.mxu0 0.0
  %3949 = vmatpush1.msra.mxu0 0.0
  %3950 = vmatprep.subr.mxu0 0.0
  %3951 = vmatpush1.msra.mxu0 0.0
  %3952 = vmatprep.subr.mxu0 0.0
  %3953 = vmatpush1.msra.mxu0 0.0
  %3954 = vmatprep.subr.mxu0 0.0
  %3955 = vmatpush1.msra.mxu0 0.0
  %3956 = vmatprep.subr.mxu0 0.0
  %3957 = vmatpush1.msra.mxu0 0.0
  %3958 = vmatprep.subr.mxu0 0.0
  %3959 = vmatpush1.msra.mxu0 0.0
  %3960 = vmatprep.subr.mxu0 0.0
  %3961 = vmatpush1.msra.mxu0 0.0
  %3962 = vmatprep.subr.mxu0 0.0
  %3963 = vmatpush1.msra.mxu0 0.0
  %3964 = vmatprep.subr.mxu0 0.0
  %3965 = vmatpush1.msra.mxu0 0.0
  %3966 = vmatprep.subr.mxu0 0.0
  %3967 = vmatpush1.msra.mxu0 0.0
  %3968 = vmatprep.subr.mxu0 0.0
  %3969 = vmatpush1.msra.mxu0 0.0
  %3970 = vmatprep.subr.mxu0 0.0
  %3971 = vmatpush1.msra.mxu0 0.0
  %3972 = vmatprep.subr.mxu0 0.0
  %3973 = vmatpush1.msra.mxu0 0.0
  %3974 = vmatprep.subr.mxu0 0.0
  %3975 = vmatpush1.msra.mxu0 0.0
  %3976 = vmatprep.subr.mxu0 0.0
  %3977 = vmatpush1.msra.mxu0 0.0
  %3978 = vmatprep.subr.mxu0 0.0
  %3979 = vmatpush1.msra.mxu0 0.0
  %3980 = vmatprep.subr.mxu0 0.0
  %3981 = vmatpush1.msra.mxu0 0.0
  %3982 = vmatprep.subr.mxu0 0.0
  %3983 = vmatpush1.msra.mxu0 0.0
  %3984 = vmatprep.subr.mxu0 0.0
  %3985 = vmatpush1.msra.mxu0 0.0
  %3986 = vmatprep.subr.mxu0 0.0
  %3987 = vmatpush1.msra.mxu0 0.0
  %3988 = vmatprep.subr.mxu0 0.0
  %3989 = vmatpush1.msra.mxu0 0.0
  %3990 = vmatprep.subr.mxu0 0.0
  %3991 = vmatpush1.msra.mxu0 0.0
  %3992 = vmatprep.subr.mxu0 0.0
  %3993 = vmatpush1.msra.mxu0 0.0
  %3994 = vmatprep.subr.mxu0 0.0
  %3995 = vmatpush1.msra.mxu0 0.0
  %3996 = vmatprep.subr.mxu0 0.0
  %3997 = vmatpush1.msra.mxu0 0.0
  %3998 = vmatprep.subr.mxu0 0.0
  %3999 = vmatpush1.msra.mxu0 0.0
  %4000 = vmatprep.subr.mxu0 0.0
  %4001 = vmatpush1.msra.mxu0 0.0
  %4002 = vmatprep.subr.mxu0 0.0
  %4003 = vmatpush1.msra.mxu0 0.0
  %4004 = vmatprep.mubr.f32.mxu0 0.0
  %4005 = vmatmul.mubr.f32.gmra.mrb[0].mxu0 %v3935
  %v4006 = vpop.f32.mrb[0].mxu0
  %v4007 = vadd.f32 0.0, %v4006
  %v4008 = vpop.f32.mrb[0].mxu0
  %4009 = vmatprep.mubr.f32.mxu0 0.0
  %4010 = vmatmul.mubr.f32.gmra.mrb[0].mxu0 %v3938
  %v4011 = vpop.f32.mrb[0].mxu0
  %v4012 = vadd.f32 0.0, %v4011
  %v4013 = vpop.f32.mrb[0].mxu0
  %4014 = vdwg.mxu0
  %4015 = vrot.lane.b32.xlu0 %v3601, 112
  %v4016 = vpop.permute.xlu0 %4015
  %4017 = vrot.lane.b32.xlu0 %v3606, 112
  %v4018 = vpop.permute.xlu0 %4017
  %4019 = vrot.lane.b32.xlu0 %v3601, 80
  %v4020 = vpop.permute.xlu0 %4019
  %4021 = vrot.lane.b32.xlu0 %v3606, 80
  %v4022 = vpop.permute.xlu0 %4021
  %v4023 = vsel %vm2300, %v4016, 0
  %v4025 = vsel %vm2300, %v4018, 0
  %v4027 = vsel %vm2300, %v4020, 0
  %v4029 = vsel %vm2300, %v4022, 0
  %4031 = vmatprep.subr.mxu0 0.0
  %4032 = vmatpush1.xpose.msra.mxu0 %v4027
  %4033 = vmatprep.subr.mxu0 0.0
  %4034 = vmatpush1.xpose.msra.mxu0 %v4029
  %4035 = vmatprep.subr.mxu0 0.0
  %4036 = vmatpush1.xpose.msra.mxu0 0.0
  %4037 = vmatprep.subr.mxu0 0.0
  %4038 = vmatpush1.xpose.msra.mxu0 0.0
  %4039 = vmatprep.subr.mxu0 0.0
  %4040 = vmatpush1.xpose.msra.mxu0 0.0
  %4041 = vmatprep.subr.mxu0 0.0
  %4042 = vmatpush1.xpose.msra.mxu0 0.0
  %4043 = vmatprep.subr.mxu0 0.0
  %4044 = vmatpush1.xpose.msra.mxu0 0.0
  %4045 = vmatprep.subr.mxu0 0.0
  %4046 = vmatpush1.xpose.msra.mxu0 0.0
  %4047 = vmatprep.subr.mxu0 0.0
  %4048 = vmatpush1.xpose.msra.mxu0 0.0
  %4049 = vmatprep.subr.mxu0 0.0
  %4050 = vmatpush1.xpose.msra.mxu0 0.0
  %4051 = vmatprep.subr.mxu0 0.0
  %4052 = vmatpush1.xpose.msra.mxu0 0.0
  %4053 = vmatprep.subr.mxu0 0.0
  %4054 = vmatpush1.xpose.msra.mxu0 0.0
  %4055 = vmatprep.subr.mxu0 0.0
  %4056 = vmatpush1.xpose.msra.mxu0 0.0
  %4057 = vmatprep.subr.mxu0 0.0
  %4058 = vmatpush1.xpose.msra.mxu0 0.0
  %4059 = vmatprep.subr.mxu0 0.0
  %4060 = vmatpush1.xpose.msra.mxu0 0.0
  %4061 = vmatprep.subr.mxu0 0.0
  %4062 = vmatpush1.xpose.msra.mxu0 0.0
  %4063 = vmatprep.subr.mxu0 0.0
  %4064 = vmatpush1.xpose.msra.mxu0 0.0
  %4065 = vmatprep.subr.mxu0 0.0
  %4066 = vmatpush1.xpose.msra.mxu0 0.0
  %4067 = vmatprep.subr.mxu0 0.0
  %4068 = vmatpush1.xpose.msra.mxu0 0.0
  %4069 = vmatprep.subr.mxu0 0.0
  %4070 = vmatpush1.xpose.msra.mxu0 0.0
  %4071 = vmatprep.subr.mxu0 0.0
  %4072 = vmatpush1.xpose.msra.mxu0 0.0
  %4073 = vmatprep.subr.mxu0 0.0
  %4074 = vmatpush1.xpose.msra.mxu0 0.0
  %4075 = vmatprep.subr.mxu0 0.0
  %4076 = vmatpush1.xpose.msra.mxu0 0.0
  %4077 = vmatprep.subr.mxu0 0.0
  %4078 = vmatpush1.xpose.msra.mxu0 0.0
  %4079 = vmatprep.subr.mxu0 0.0
  %4080 = vmatpush1.xpose.msra.mxu0 0.0
  %4081 = vmatprep.subr.mxu0 0.0
  %4082 = vmatpush1.xpose.msra.mxu0 0.0
  %4083 = vmatprep.subr.mxu0 0.0
  %4084 = vmatpush1.xpose.msra.mxu0 0.0
  %4085 = vmatprep.subr.mxu0 0.0
  %4086 = vmatpush1.xpose.msra.mxu0 0.0
  %4087 = vmatprep.subr.mxu0 0.0
  %4088 = vmatpush1.xpose.msra.mxu0 0.0
  %4089 = vmatprep.subr.mxu0 0.0
  %4090 = vmatpush1.xpose.msra.mxu0 0.0
  %4091 = vmatprep.subr.mxu0 0.0
  %4092 = vmatpush1.xpose.msra.mxu0 0.0
  %4093 = vmatprep.subr.mxu0 0.0
  %4094 = vmatpush1.xpose.msra.mxu0 0.0
  %4095 = vmatprep.mubr.f32.mxu0 0.0
  %4096 = vmatmul.mubr.f32.gmra.mrb[0].mxu0 %v4023
  %v4097 = vpop.f32.mrb[0].mxu0
  %v4098 = vadd.f32 0.0, %v4097
  %v4099 = vpop.f32.mrb[0].mxu0
  %4100 = vmatprep.mubr.f32.mxu0 0.0
  %4101 = vmatmul.mubr.f32.gmra.mrb[0].mxu0 %v4025
  %v4102 = vpop.f32.mrb[0].mxu0
  %v4103 = vadd.f32 0.0, %v4102
  %v4104 = vpop.f32.mrb[0].mxu0
  %4105 = vdwg.mxu0
  %v4106 = vmul.f32 %v4098, 0.35355338
  %v4107 = vmul.f32 %v4103, 0.35355338
  %v4108 = vadd.f32 %v4106, %v2200
  %v4109 = vadd.f32 %v4107, %v2201
  %v4110 = vsel %vm2388, %v4108, -inf
  %4111 = vmax.xlane.f32.xlu0 %v4110
  %v4112 = vpop.xlane.xlu0 %4111
  %v4113 = vsel %vm2388, %v4109, -inf
  %4114 = vmax.xlane.f32.xlu0 %v4113
  %v4115 = vpop.xlane.xlu0 %4114
  %v4116 = vsub.f32 %v4108, %v4112
  %v4117 = vsub.f32 %v4109, %v4115
  %v4118 = vmul.f32 %v4116, 1.442695
  %v4119 = vpow.pop %v4118
  %v4120 = vmul.f32 %v4117, 1.442695
  %v4121 = vpow.pop %v4120
  %v4122 = vsel %vm2388, %v4119, 0.0
  %4123 = vadd.xlane.f32.xlu0 %v4122
  %v4124 = vpop.xlane.xlu0 %4123
  %v4125 = vsel %vm2388, %v4121, 0.0
  %4126 = vadd.xlane.f32.xlu0 %v4125
  %v4127 = vpop.xlane.xlu0 %4126
  %v4128 = vrcp.pop %v4124
  %v4129 = vrcp.pop %v4127
  %v4130 = vmul.f32 %v4119, %v4128
  %v4131 = vmul.f32 %v4121, %v4129
  %4132 = vrot.lane.b32.xlu0 %v3601, 48
  %v4133 = vpop.permute.xlu0 %4132
  %4134 = vrot.lane.b32.xlu0 %v3606, 48
  %v4135 = vpop.permute.xlu0 %4134
  %v4139 = vsel %vm2388, %v4130, 0
  %v4142 = vsel %vm2388, %v4131, 0
  %4144 = vmatprep.subr.mxu0 0.0
  %4145 = vmatpush1.msra.mxu0 %v4133
  %4146 = vmatprep.subr.mxu0 0.0
  %4147 = vmatpush1.msra.mxu0 %v4135
  %4148 = vmatprep.subr.mxu0 0.0
  %4149 = vmatpush1.msra.mxu0 0.0
  %4150 = vmatprep.subr.mxu0 0.0
  %4151 = vmatpush1.msra.mxu0 0.0
  %4152 = vmatprep.subr.mxu0 0.0
  %4153 = vmatpush1.msra.mxu0 0.0
  %4154 = vmatprep.subr.mxu0 0.0
  %4155 = vmatpush1.msra.mxu0 0.0
  %4156 = vmatprep.subr.mxu0 0.0
  %4157 = vmatpush1.msra.mxu0 0.0
  %4158 = vmatprep.subr.mxu0 0.0
  %4159 = vmatpush1.msra.mxu0 0.0
  %4160 = vmatprep.subr.mxu0 0.0
  %4161 = vmatpush1.msra.mxu0 0.0
  %4162 = vmatprep.subr.mxu0 0.0
  %4163 = vmatpush1.msra.mxu0 0.0
  %4164 = vmatprep.subr.mxu0 0.0
  %4165 = vmatpush1.msra.mxu0 0.0
  %4166 = vmatprep.subr.mxu0 0.0
  %4167 = vmatpush1.msra.mxu0 0.0
  %4168 = vmatprep.subr.mxu0 0.0
  %4169 = vmatpush1.msra.mxu0 0.0
  %4170 = vmatprep.subr.mxu0 0.0
  %4171 = vmatpush1.msra.mxu0 0.0
  %4172 = vmatprep.subr.mxu0 0.0
  %4173 = vmatpush1.msra.mxu0 0.0
  %4174 = vmatprep.subr.mxu0 0.0
  %4175 = vmatpush1.msra.mxu0 0.0
  %4176 = vmatprep.subr.mxu0 0.0
  %4177 = vmatpush1.msra.mxu0 0.0
  %4178 = vmatprep.subr.mxu0 0.0
  %4179 = vmatpush1.msra.mxu0 0.0
  %4180 = vmatprep.subr.mxu0 0.0
  %4181 = vmatpush1.msra.mxu0 0.0
  %4182 = vmatprep.subr.mxu0 0.0
  %4183 = vmatpush1.msra.mxu0 0.0
  %4184 = vmatprep.subr.mxu0 0.0
  %4185 = vmatpush1.msra.mxu0 0.0
  %4186 = vmatprep.subr.mxu0 0.0
  %4187 = vmatpush1.msra.mxu0 0.0
  %4188 = vmatprep.subr.mxu0 0.0
  %4189 = vmatpush1.msra.mxu0 0.0
  %4190 = vmatprep.subr.mxu0 0.0
  %4191 = vmatpush1.msra.mxu0 0.0
  %4192 = vmatprep.subr.mxu0 0.0
  %4193 = vmatpush1.msra.mxu0 0.0
  %4194 = vmatprep.subr.mxu0 0.0
  %4195 = vmatpush1.msra.mxu0 0.0
  %4196 = vmatprep.subr.mxu0 0.0
  %4197 = vmatpush1.msra.mxu0 0.0
  %4198 = vmatprep.subr.mxu0 0.0
  %4199 = vmatpush1.msra.mxu0 0.0
  %4200 = vmatprep.subr.mxu0 0.0
  %4201 = vmatpush1.msra.mxu0 0.0
  %4202 = vmatprep.subr.mxu0 0.0
  %4203 = vmatpush1.msra.mxu0 0.0
  %4204 = vmatprep.subr.mxu0 0.0
  %4205 = vmatpush1.msra.mxu0 0.0
  %4206 = vmatprep.subr.mxu0 0.0
  %4207 = vmatpush1.msra.mxu0 0.0
  %4208 = vmatprep.mubr.f32.mxu0 0.0
  %4209 = vmatmul.mubr.f32.gmra.mrb[0].mxu0 %v4139
  %v4210 = vpop.f32.mrb[0].mxu0
  %v4211 = vadd.f32 0.0, %v4210
  %v4212 = vpop.f32.mrb[0].mxu0
  %4213 = vmatprep.mubr.f32.mxu0 0.0
  %4214 = vmatmul.mubr.f32.gmra.mrb[0].mxu0 %v4142
  %v4215 = vpop.f32.mrb[0].mxu0
  %v4216 = vadd.f32 0.0, %v4215
  %v4217 = vpop.f32.mrb[0].mxu0
  %4218 = vdwg.mxu0
  %4219 = vrot.lane.b32.xlu0 %v3601, 104
  %v4220 = vpop.permute.xlu0 %4219
  %4221 = vrot.lane.b32.xlu0 %v3606, 104
  %v4222 = vpop.permute.xlu0 %4221
  %4223 = vrot.lane.b32.xlu0 %v3601, 72
  %v4224 = vpop.permute.xlu0 %4223
  %4225 = vrot.lane.b32.xlu0 %v3606, 72
  %v4226 = vpop.permute.xlu0 %4225
  %v4227 = vsel %vm2300, %v4220, 0
  %v4229 = vsel %vm2300, %v4222, 0
  %v4231 = vsel %vm2300, %v4224, 0
  %v4233 = vsel %vm2300, %v4226, 0
  %4235 = vmatprep.subr.mxu0 0.0
  %4236 = vmatpush1.xpose.msra.mxu0 %v4231
  %4237 = vmatprep.subr.mxu0 0.0
  %4238 = vmatpush1.xpose.msra.mxu0 %v4233
  %4239 = vmatprep.subr.mxu0 0.0
  %4240 = vmatpush1.xpose.msra.mxu0 0.0
  %4241 = vmatprep.subr.mxu0 0.0
  %4242 = vmatpush1.xpose.msra.mxu0 0.0
  %4243 = vmatprep.subr.mxu0 0.0
  %4244 = vmatpush1.xpose.msra.mxu0 0.0
  %4245 = vmatprep.subr.mxu0 0.0
  %4246 = vmatpush1.xpose.msra.mxu0 0.0
  %4247 = vmatprep.subr.mxu0 0.0
  %4248 = vmatpush1.xpose.msra.mxu0 0.0
  %4249 = vmatprep.subr.mxu0 0.0
  %4250 = vmatpush1.xpose.msra.mxu0 0.0
  %4251 = vmatprep.subr.mxu0 0.0
  %4252 = vmatpush1.xpose.msra.mxu0 0.0
  %4253 = vmatprep.subr.mxu0 0.0
  %4254 = vmatpush1.xpose.msra.mxu0 0.0
  %4255 = vmatprep.subr.mxu0 0.0
  %4256 = vmatpush1.xpose.msra.mxu0 0.0
  %4257 = vmatprep.subr.mxu0 0.0
  %4258 = vmatpush1.xpose.msra.mxu0 0.0
  %4259 = vmatprep.subr.mxu0 0.0
  %4260 = vmatpush1.xpose.msra.mxu0 0.0
  %4261 = vmatprep.subr.mxu0 0.0
  %4262 = vmatpush1.xpose.msra.mxu0 0.0
  %4263 = vmatprep.subr.mxu0 0.0
  %4264 = vmatpush1.xpose.msra.mxu0 0.0
  %4265 = vmatprep.subr.mxu0 0.0
  %4266 = vmatpush1.xpose.msra.mxu0 0.0
  %4267 = vmatprep.subr.mxu0 0.0
  %4268 = vmatpush1.xpose.msra.mxu0 0.0
  %4269 = vmatprep.subr.mxu0 0.0
  %4270 = vmatpush1.xpose.msra.mxu0 0.0
  %4271 = vmatprep.subr.mxu0 0.0
  %4272 = vmatpush1.xpose.msra.mxu0 0.0
  %4273 = vmatprep.subr.mxu0 0.0
  %4274 = vmatpush1.xpose.msra.mxu0 0.0
  %4275 = vmatprep.subr.mxu0 0.0
  %4276 = vmatpush1.xpose.msra.mxu0 0.0
  %4277 = vmatprep.subr.mxu0 0.0
  %4278 = vmatpush1.xpose.msra.mxu0 0.0
  %4279 = vmatprep.subr.mxu0 0.0
  %4280 = vmatpush1.xpose.msra.mxu0 0.0
  %4281 = vmatprep.subr.mxu0 0.0
  %4282 = vmatpush1.xpose.msra.mxu0 0.0
  %4283 = vmatprep.subr.mxu0 0.0
  %4284 = vmatpush1.xpose.msra.mxu0 0.0
  %4285 = vmatprep.subr.mxu0 0.0
  %4286 = vmatpush1.xpose.msra.mxu0 0.0
  %4287 = vmatprep.subr.mxu0 0.0
  %4288 = vmatpush1.xpose.msra.mxu0 0.0
  %4289 = vmatprep.subr.mxu0 0.0
  %4290 = vmatpush1.xpose.msra.mxu0 0.0
  %4291 = vmatprep.subr.mxu0 0.0
  %4292 = vmatpush1.xpose.msra.mxu0 0.0
  %4293 = vmatprep.subr.mxu0 0.0
  %4294 = vmatpush1.xpose.msra.mxu0 0.0
  %4295 = vmatprep.subr.mxu0 0.0
  %4296 = vmatpush1.xpose.msra.mxu0 0.0
  %4297 = vmatprep.subr.mxu0 0.0
  %4298 = vmatpush1.xpose.msra.mxu0 0.0
  %4299 = vmatprep.mubr.f32.mxu0 0.0
  %4300 = vmatmul.mubr.f32.gmra.mrb[0].mxu0 %v4227
  %v4301 = vpop.f32.mrb[0].mxu0
  %v4302 = vadd.f32 0.0, %v4301
  %v4303 = vpop.f32.mrb[0].mxu0
  %4304 = vmatprep.mubr.f32.mxu0 0.0
  %4305 = vmatmul.mubr.f32.gmra.mrb[0].mxu0 %v4229
  %v4306 = vpop.f32.mrb[0].mxu0
  %v4307 = vadd.f32 0.0, %v4306
  %v4308 = vpop.f32.mrb[0].mxu0
  %4309 = vdwg.mxu0
  %v4310 = vmul.f32 %v4302, 0.35355338
  %v4311 = vmul.f32 %v4307, 0.35355338
  %v4312 = vadd.f32 %v4310, %v2200
  %v4313 = vadd.f32 %v4311, %v2201
  %v4314 = vsel %vm2388, %v4312, -inf
  %4315 = vmax.xlane.f32.xlu0 %v4314
  %v4316 = vpop.xlane.xlu0 %4315
  %v4317 = vsel %vm2388, %v4313, -inf
  %4318 = vmax.xlane.f32.xlu0 %v4317
  %v4319 = vpop.xlane.xlu0 %4318
  %v4320 = vsub.f32 %v4312, %v4316
  %v4321 = vsub.f32 %v4313, %v4319
  %v4322 = vmul.f32 %v4320, 1.442695
  %v4323 = vpow.pop %v4322
  %v4324 = vmul.f32 %v4321, 1.442695
  %v4325 = vpow.pop %v4324
  %v4326 = vsel %vm2388, %v4323, 0.0
  %4327 = vadd.xlane.f32.xlu0 %v4326
  %v4328 = vpop.xlane.xlu0 %4327
  %v4329 = vsel %vm2388, %v4325, 0.0
  %4330 = vadd.xlane.f32.xlu0 %v4329
  %v4331 = vpop.xlane.xlu0 %4330
  %v4332 = vrcp.pop %v4328
  %v4333 = vrcp.pop %v4331
  %v4334 = vmul.f32 %v4323, %v4332
  %v4335 = vmul.f32 %v4325, %v4333
  %4336 = vrot.lane.b32.xlu0 %v3601, 40
  %v4337 = vpop.permute.xlu0 %4336
  %4338 = vrot.lane.b32.xlu0 %v3606, 40
  %v4339 = vpop.permute.xlu0 %4338
  %v4343 = vsel %vm2388, %v4334, 0
  %v4346 = vsel %vm2388, %v4335, 0
  %4348 = vmatprep.subr.mxu0 0.0
  %4349 = vmatpush1.msra.mxu0 %v4337
  %4350 = vmatprep.subr.mxu0 0.0
  %4351 = vmatpush1.msra.mxu0 %v4339
  %4352 = vmatprep.subr.mxu0 0.0
  %4353 = vmatpush1.msra.mxu0 0.0
  %4354 = vmatprep.subr.mxu0 0.0
  %4355 = vmatpush1.msra.mxu0 0.0
  %4356 = vmatprep.subr.mxu0 0.0
  %4357 = vmatpush1.msra.mxu0 0.0
  %4358 = vmatprep.subr.mxu0 0.0
  %4359 = vmatpush1.msra.mxu0 0.0
  %4360 = vmatprep.subr.mxu0 0.0
  %4361 = vmatpush1.msra.mxu0 0.0
  %4362 = vmatprep.subr.mxu0 0.0
  %4363 = vmatpush1.msra.mxu0 0.0
  %4364 = vmatprep.subr.mxu0 0.0
  %4365 = vmatpush1.msra.mxu0 0.0
  %4366 = vmatprep.subr.mxu0 0.0
  %4367 = vmatpush1.msra.mxu0 0.0
  %4368 = vmatprep.subr.mxu0 0.0
  %4369 = vmatpush1.msra.mxu0 0.0
  %4370 = vmatprep.subr.mxu0 0.0
  %4371 = vmatpush1.msra.mxu0 0.0
  %4372 = vmatprep.subr.mxu0 0.0
  %4373 = vmatpush1.msra.mxu0 0.0
  %4374 = vmatprep.subr.mxu0 0.0
  %4375 = vmatpush1.msra.mxu0 0.0
  %4376 = vmatprep.subr.mxu0 0.0
  %4377 = vmatpush1.msra.mxu0 0.0
  %4378 = vmatprep.subr.mxu0 0.0
  %4379 = vmatpush1.msra.mxu0 0.0
  %4380 = vmatprep.subr.mxu0 0.0
  %4381 = vmatpush1.msra.mxu0 0.0
  %4382 = vmatprep.subr.mxu0 0.0
  %4383 = vmatpush1.msra.mxu0 0.0
  %4384 = vmatprep.subr.mxu0 0.0
  %4385 = vmatpush1.msra.mxu0 0.0
  %4386 = vmatprep.subr.mxu0 0.0
  %4387 = vmatpush1.msra.mxu0 0.0
  %4388 = vmatprep.subr.mxu0 0.0
  %4389 = vmatpush1.msra.mxu0 0.0
  %4390 = vmatprep.subr.mxu0 0.0
  %4391 = vmatpush1.msra.mxu0 0.0
  %4392 = vmatprep.subr.mxu0 0.0
  %4393 = vmatpush1.msra.mxu0 0.0
  %4394 = vmatprep.subr.mxu0 0.0
  %4395 = vmatpush1.msra.mxu0 0.0
  %4396 = vmatprep.subr.mxu0 0.0
  %4397 = vmatpush1.msra.mxu0 0.0
  %4398 = vmatprep.subr.mxu0 0.0
  %4399 = vmatpush1.msra.mxu0 0.0
  %4400 = vmatprep.subr.mxu0 0.0
  %4401 = vmatpush1.msra.mxu0 0.0
  %4402 = vmatprep.subr.mxu0 0.0
  %4403 = vmatpush1.msra.mxu0 0.0
  %4404 = vmatprep.subr.mxu0 0.0
  %4405 = vmatpush1.msra.mxu0 0.0
  %4406 = vmatprep.subr.mxu0 0.0
  %4407 = vmatpush1.msra.mxu0 0.0
  %4408 = vmatprep.subr.mxu0 0.0
  %4409 = vmatpush1.msra.mxu0 0.0
  %4410 = vmatprep.subr.mxu0 0.0
  %4411 = vmatpush1.msra.mxu0 0.0
  %4412 = vmatprep.mubr.f32.mxu0 0.0
  %4413 = vmatmul.mubr.f32.gmra.mrb[0].mxu0 %v4343
  %v4414 = vpop.f32.mrb[0].mxu0
  %v4415 = vadd.f32 0.0, %v4414
  %v4416 = vpop.f32.mrb[0].mxu0
  %4417 = vmatprep.mubr.f32.mxu0 0.0
  %4418 = vmatmul.mubr.f32.gmra.mrb[0].mxu0 %v4346
  %v4419 = vpop.f32.mrb[0].mxu0
  %v4420 = vadd.f32 0.0, %v4419
  %v4421 = vpop.f32.mrb[0].mxu0
  %4422 = vdwg.mxu0
  %4425 = vrot.lane.b32.xlu0 %v4007, 8
  %v4426 = vpop.permute.xlu0 %4425
  %4427 = vrot.lane.b32.xlu0 %v4012, 8
  %v4428 = vpop.permute.xlu0 %4427
  %4433 = vrot.lane.b32.xlu0 %v4211, 16
  %v4434 = vpop.permute.xlu0 %4433
  %4435 = vrot.lane.b32.xlu0 %v4216, 16
  %v4436 = vpop.permute.xlu0 %4435
  %4441 = vrot.lane.b32.xlu0 %v4415, 24
  %v4442 = vpop.permute.xlu0 %4441
  %4443 = vrot.lane.b32.xlu0 %v4420, 24
  %v4444 = vpop.permute.xlu0 %4443
  %v4447 = vsel %vm2300, %v3803, %v4426
  %v4448 = vsel %vm2300, %v3808, %v4428
  %v4449 = vsel %vm2388, %v4447, %v4434
  %v4450 = vsel %vm2388, %v4448, %v4436
  %v4451 = vsel %vm3138, %v4449, %v4442
  %v4452 = vsel %vm3138, %v4450, %v4444
  %v4453 = vld [vmem:[%s49] sm:$0xff]
  %v4454 = vld [vmem:[%s49 + $0x8] sm:$0xff]
  %v4455 = vld [vmem:[%s49 + $0x10] sm:$0xff]
  %v4456 = vld [vmem:[%s49 + $0x18] sm:$0xff]
  %v4457 = vld [vmem:[%s51] sm:$0x1]
  %v4459 = vlaneseq
  %v4460 = vshrl.u32 %v4459, 7
  %v4461 = vsub.s32 0, %v4460
  %v4462 = vrot.slane %v4457, %v4461
  %v4465 = vsel %vm260, %v4451, 0
  %v4468 = vsel %vm260, %v4452, 0
  %4470 = vmatprep.subr.mxu0 0.0
  %4471 = vmatpush1.msra.mxu0 %v4453
  %4472 = vmatprep.subr.mxu0 0.0
  %4473 = vmatpush1.msra.mxu0 %v4454
  %4474 = vmatprep.subr.mxu0 0.0
  %4475 = vmatpush1.msra.mxu0 %v4455
  %4476 = vmatprep.subr.mxu0 0.0
  %4477 = vmatpush1.msra.mxu0 %v4456
  %4478 = vmatprep.subr.mxu0 0.0
  %4479 = vmatpush1.msra.mxu0 0.0
  %4480 = vmatprep.subr.mxu0 0.0
  %4481 = vmatpush1.msra.mxu0 0.0
  %4482 = vmatprep.subr.mxu0 0.0
  %4483 = vmatpush1.msra.mxu0 0.0
  %4484 = vmatprep.subr.mxu0 0.0
  %4485 = vmatpush1.msra.mxu0 0.0
  %4486 = vmatprep.subr.mxu0 0.0
  %4487 = vmatpush1.msra.mxu0 0.0
  %4488 = vmatprep.subr.mxu0 0.0
  %4489 = vmatpush1.msra.mxu0 0.0
  %4490 = vmatprep.subr.mxu0 0.0
  %4491 = vmatpush1.msra.mxu0 0.0
  %4492 = vmatprep.subr.mxu0 0.0
  %4493 = vmatpush1.msra.mxu0 0.0
  %4494 = vmatprep.subr.mxu0 0.0
  %4495 = vmatpush1.msra.mxu0 0.0
  %4496 = vmatprep.subr.mxu0 0.0
  %4497 = vmatpush1.msra.mxu0 0.0
  %4498 = vmatprep.subr.mxu0 0.0
  %4499 = vmatpush1.msra.mxu0 0.0
  %4500 = vmatprep.subr.mxu0 0.0
  %4501 = vmatpush1.msra.mxu0 0.0
  %4502 = vmatprep.subr.mxu0 0.0
  %4503 = vmatpush1.msra.mxu0 0.0
  %4504 = vmatprep.subr.mxu0 0.0
  %4505 = vmatpush1.msra.mxu0 0.0
  %4506 = vmatprep.subr.mxu0 0.0
  %4507 = vmatpush1.msra.mxu0 0.0
  %4508 = vmatprep.subr.mxu0 0.0
  %4509 = vmatpush1.msra.mxu0 0.0
  %4510 = vmatprep.subr.mxu0 0.0
  %4511 = vmatpush1.msra.mxu0 0.0
  %4512 = vmatprep.subr.mxu0 0.0
  %4513 = vmatpush1.msra.mxu0 0.0
  %4514 = vmatprep.subr.mxu0 0.0
  %4515 = vmatpush1.msra.mxu0 0.0
  %4516 = vmatprep.subr.mxu0 0.0
  %4517 = vmatpush1.msra.mxu0 0.0
  %4518 = vmatprep.subr.mxu0 0.0
  %4519 = vmatpush1.msra.mxu0 0.0
  %4520 = vmatprep.subr.mxu0 0.0
  %4521 = vmatpush1.msra.mxu0 0.0
  %4522 = vmatprep.subr.mxu0 0.0
  %4523 = vmatpush1.msra.mxu0 0.0
  %4524 = vmatprep.subr.mxu0 0.0
  %4525 = vmatpush1.msra.mxu0 0.0
  %4526 = vmatprep.subr.mxu0 0.0
  %4527 = vmatpush1.msra.mxu0 0.0
  %4528 = vmatprep.subr.mxu0 0.0
  %4529 = vmatpush1.msra.mxu0 0.0
  %4530 = vmatprep.subr.mxu0 0.0
  %4531 = vmatpush1.msra.mxu0 0.0
  %4532 = vmatprep.subr.mxu0 0.0
  %4533 = vmatpush1.msra.mxu0 0.0
  %4534 = vmatprep.mubr.f32.mxu0 0.0
  %4535 = vmatmul.mubr.f32.gmra.mrb[0].mxu0 %v4465
  %v4536 = vpop.f32.mrb[0].mxu0
  %v4537 = vadd.f32 %v4462, %v4536
  %v4538 = vpop.f32.mrb[0].mxu0
  %4539 = vmatprep.mubr.f32.mxu0 0.0
  %4540 = vmatmul.mubr.f32.gmra.mrb[0].mxu0 %v4468
  %v4541 = vpop.f32.mrb[0].mxu0
  %v4542 = vadd.f32 %v4462, %v4541
  %v4543 = vpop.f32.mrb[0].mxu0
  %4544 = vdwg.mxu0
  %v4545 = vadd.f32 %v3515, %v4537
  %v4546 = vadd.f32 %v3516, %v4542
  %v4547 = vsel %vm260, %v4545, 0.0
  %4548 = vadd.xlane.f32.xlu0 %v4547
  %v4549 = vpop.xlane.xlu0 %4548
  %v4550 = vsel %vm260, %v4546, 0.0
  %4551 = vadd.xlane.f32.xlu0 %v4550
  %v4552 = vpop.xlane.xlu0 %4551
  %v4553 = vmul.f32 %v4549, %v3241
  %v4554 = vmul.f32 %v4552, %v3241
  %v4555 = vsub.f32 %v4545, %v4553
  %v4556 = vsub.f32 %v4546, %v4554
  %v4557 = vmul.f32 %v4555, %v4555
  %v4558 = vmul.f32 %v4556, %v4556
  %v4559 = vsel %vm260, %v4557, 0.0
  %4560 = vadd.xlane.f32.xlu0 %v4559
  %v4561 = vpop.xlane.xlu0 %4560
  %v4562 = vsel %vm260, %v4558, 0.0
  %4563 = vadd.xlane.f32.xlu0 %v4562
  %v4564 = vpop.xlane.xlu0 %4563
  %v4565 = vmul.f32 %v4561, %v3241
  %v4566 = vmul.f32 %v4564, %v3241
  %v4567 = vadd.f32 %v4565, 1e-05
  %v4568 = vadd.f32 %v4566, 1e-05
  %v4569 = vrsqrt.pop %v4567
  %v4570 = vrsqrt.pop %v4568
  %v4571 = vmul.f32 %v4555, %v4569
  %v4572 = vmul.f32 %v4556, %v4570
  %v4573 = vld [vmem:[%s53] sm:$0x1]
  %v4575 = vlaneseq
  %v4576 = vshrl.u32 %v4575, 7
  %v4577 = vsub.s32 0, %v4576
  %v4578 = vrot.slane %v4573, %v4577
  %v4580 = vmul.f32 %v4571, %v4578
  %v4581 = vmul.f32 %v4572, %v4578
  %v4582 = vld [vmem:[%s55] sm:$0x1]
  %v4584 = vlaneseq
  %v4585 = vshrl.u32 %v4584, 7
  %v4586 = vsub.s32 0, %v4585
  %v4587 = vrot.slane %v4582, %v4586
  %v4589 = vadd.f32 %v4580, %v4587
  %v4590 = vadd.f32 %v4581, %v4587
  %v4591 = vld [vmem:[%s57] sm:$0xff]
  %v4592 = vld [vmem:[%s57 + $0x8] sm:$0xff]
  %v4593 = vld [vmem:[%s57 + $0x10] sm:$0xff]
  %v4594 = vld [vmem:[%s57 + $0x18] sm:$0xff]
  %v4595 = vld [vmem:[%s59] sm:$0x1]
  %v4597 = vlaneseq
  %v4598 = vshrl.u32 %v4597, 7
  %v4599 = vsub.s32 0, %v4598
  %v4600 = vrot.slane %v4595, %v4599
  %v4603 = vsel %vm260, %v4589, 0
  %v4606 = vsel %vm260, %v4590, 0
  %4608 = vmatprep.subr.mxu0 0.0
  %4609 = vmatpush1.msra.mxu0 %v4591
  %4610 = vmatprep.subr.mxu0 0.0
  %4611 = vmatpush1.msra.mxu0 %v4592
  %4612 = vmatprep.subr.mxu0 0.0
  %4613 = vmatpush1.msra.mxu0 %v4593
  %4614 = vmatprep.subr.mxu0 0.0
  %4615 = vmatpush1.msra.mxu0 %v4594
  %4616 = vmatprep.subr.mxu0 0.0
  %4617 = vmatpush1.msra.mxu0 0.0
  %4618 = vmatprep.subr.mxu0 0.0
  %4619 = vmatpush1.msra.mxu0 0.0
  %4620 = vmatprep.subr.mxu0 0.0
  %4621 = vmatpush1.msra.mxu0 0.0
  %4622 = vmatprep.subr.mxu0 0.0
  %4623 = vmatpush1.msra.mxu0 0.0
  %4624 = vmatprep.subr.mxu0 0.0
  %4625 = vmatpush1.msra.mxu0 0.0
  %4626 = vmatprep.subr.mxu0 0.0
  %4627 = vmatpush1.msra.mxu0 0.0
  %4628 = vmatprep.subr.mxu0 0.0
  %4629 = vmatpush1.msra.mxu0 0.0
  %4630 = vmatprep.subr.mxu0 0.0
  %4631 = vmatpush1.msra.mxu0 0.0
  %4632 = vmatprep.subr.mxu0 0.0
  %4633 = vmatpush1.msra.mxu0 0.0
  %4634 = vmatprep.subr.mxu0 0.0
  %4635 = vmatpush1.msra.mxu0 0.0
  %4636 = vmatprep.subr.mxu0 0.0
  %4637 = vmatpush1.msra.mxu0 0.0
  %4638 = vmatprep.subr.mxu0 0.0
  %4639 = vmatpush1.msra.mxu0 0.0
  %4640 = vmatprep.subr.mxu0 0.0
  %4641 = vmatpush1.msra.mxu0 0.0
  %4642 = vmatprep.subr.mxu0 0.0
  %4643 = vmatpush1.msra.mxu0 0.0
  %4644 = vmatprep.subr.mxu0 0.0
  %4645 = vmatpush1.msra.mxu0 0.0
  %4646 = vmatprep.subr.mxu0 0.0
  %4647 = vmatpush1.msra.mxu0 0.0
  %4648 = vmatprep.subr.mxu0 0.0
  %4649 = vmatpush1.msra.mxu0 0.0
  %4650 = vmatprep.subr.mxu0 0.0
  %4651 = vmatpush1.msra.mxu0 0.0
  %4652 = vmatprep.subr.mxu0 0.0
  %4653 = vmatpush1.msra.mxu0 0.0
  %4654 = vmatprep.subr.mxu0 0.0
  %4655 = vmatpush1.msra.mxu0 0.0
  %4656 = vmatprep.subr.mxu0 0.0
  %4657 = vmatpush1.msra.mxu0 0.0
  %4658 = vmatprep.subr.mxu0 0.0
  %4659 = vmatpush1.msra.mxu0 0.0
  %4660 = vmatprep.subr.mxu0 0.0
  %4661 = vmatpush1.msra.mxu0 0.0
  %4662 = vmatprep.subr.mxu0 0.0
  %4663 = vmatpush1.msra.mxu0 0.0
  %4664 = vmatprep.subr.mxu0 0.0
  %4665 = vmatpush1.msra.mxu0 0.0
  %4666 = vmatprep.subr.mxu0 0.0
  %4667 = vmatpush1.msra.mxu0 0.0
  %4668 = vmatprep.subr.mxu0 0.0
  %4669 = vmatpush1.msra.mxu0 0.0
  %4670 = vmatprep.subr.mxu0 0.0
  %4671 = vmatpush1.msra.mxu0 0.0
  %4672 = vmatprep.mubr.f32.mxu0 0.0
  %4673 = vmatmul.mubr.f32.gmra.mrb[0].mxu0 %v4603
  %v4674 = vpop.f32.mrb[0].mxu0
  %v4675 = vadd.f32 %v4600, %v4674
  %v4676 = vpop.f32.mrb[0].mxu0
  %4677 = vmatprep.mubr.f32.mxu0 0.0
  %4678 = vmatmul.mubr.f32.gmra.mrb[0].mxu0 %v4606
  %v4679 = vpop.f32.mrb[0].mxu0
  %v4680 = vadd.f32 %v4600, %v4679
  %v4681 = vpop.f32.mrb[0].mxu0
  %4682 = vdwg.mxu0
  %v4683 = vmax.f32 %v4675, 0.0
  %v4684 = vmax.f32 %v4680, 0.0
  %v4685 = vld [vmem:[%s61] sm:$0xff]
  %v4686 = vld [vmem:[%s61 + $0x8] sm:$0xff]
  %v4687 = vld [vmem:[%s61 + $0x10] sm:$0xff]
  %v4688 = vld [vmem:[%s61 + $0x18] sm:$0xff]
  %v4689 = vld [vmem:[%s61 + $0x20] sm:$0xff]
  %v4690 = vld [vmem:[%s61 + $0x28] sm:$0xff]
  %v4691 = vld [vmem:[%s61 + $0x30] sm:$0xff]
  %v4692 = vld [vmem:[%s61 + $0x38] sm:$0xff]
  %v4693 = vld [vmem:[%s63] sm:$0x1]
  %v4695 = vlaneseq
  %v4696 = vshrl.u32 %v4695, 7
  %v4697 = vsub.s32 0, %v4696
  %v4698 = vrot.slane %v4693, %v4697
  %v4701 = vsel %vm3389, %v4683, 0
  %v4704 = vsel %vm3389, %v4684, 0
  %4706 = vmatprep.subr.mxu0 0.0
  %4707 = vmatpush1.msra.mxu0 %v4685
  %4708 = vmatprep.subr.mxu0 0.0
  %4709 = vmatpush1.msra.mxu0 %v4686
  %4710 = vmatprep.subr.mxu0 0.0
  %4711 = vmatpush1.msra.mxu0 %v4687
  %4712 = vmatprep.subr.mxu0 0.0
  %4713 = vmatpush1.msra.mxu0 %v4688
  %4714 = vmatprep.subr.mxu0 0.0
  %4715 = vmatpush1.msra.mxu0 %v4689
  %4716 = vmatprep.subr.mxu0 0.0
  %4717 = vmatpush1.msra.mxu0 %v4690
  %4718 = vmatprep.subr.mxu0 0.0
  %4719 = vmatpush1.msra.mxu0 %v4691
  %4720 = vmatprep.subr.mxu0 0.0
  %4721 = vmatpush1.msra.mxu0 %v4692
  %4722 = vmatprep.subr.mxu0 0.0
  %4723 = vmatpush1.msra.mxu0 0.0
  %4724 = vmatprep.subr.mxu0 0.0
  %4725 = vmatpush1.msra.mxu0 0.0
  %4726 = vmatprep.subr.mxu0 0.0
  %4727 = vmatpush1.msra.mxu0 0.0
  %4728 = vmatprep.subr.mxu0 0.0
  %4729 = vmatpush1.msra.mxu0 0.0
  %4730 = vmatprep.subr.mxu0 0.0
  %4731 = vmatpush1.msra.mxu0 0.0
  %4732 = vmatprep.subr.mxu0 0.0
  %4733 = vmatpush1.msra.mxu0 0.0
  %4734 = vmatprep.subr.mxu0 0.0
  %4735 = vmatpush1.msra.mxu0 0.0
  %4736 = vmatprep.subr.mxu0 0.0
  %4737 = vmatpush1.msra.mxu0 0.0
  %4738 = vmatprep.subr.mxu0 0.0
  %4739 = vmatpush1.msra.mxu0 0.0
  %4740 = vmatprep.subr.mxu0 0.0
  %4741 = vmatpush1.msra.mxu0 0.0
  %4742 = vmatprep.subr.mxu0 0.0
  %4743 = vmatpush1.msra.mxu0 0.0
  %4744 = vmatprep.subr.mxu0 0.0
  %4745 = vmatpush1.msra.mxu0 0.0
  %4746 = vmatprep.subr.mxu0 0.0
  %4747 = vmatpush1.msra.mxu0 0.0
  %4748 = vmatprep.subr.mxu0 0.0
  %4749 = vmatpush1.msra.mxu0 0.0
  %4750 = vmatprep.subr.mxu0 0.0
  %4751 = vmatpush1.msra.mxu0 0.0
  %4752 = vmatprep.subr.mxu0 0.0
  %4753 = vmatpush1.msra.mxu0 0.0
  %4754 = vmatprep.subr.mxu0 0.0
  %4755 = vmatpush1.msra.mxu0 0.0
  %4756 = vmatprep.subr.mxu0 0.0
  %4757 = vmatpush1.msra.mxu0 0.0
  %4758 = vmatprep.subr.mxu0 0.0
  %4759 = vmatpush1.msra.mxu0 0.0
  %4760 = vmatprep.subr.mxu0 0.0
  %4761 = vmatpush1.msra.mxu0 0.0
  %4762 = vmatprep.subr.mxu0 0.0
  %4763 = vmatpush1.msra.mxu0 0.0
  %4764 = vmatprep.subr.mxu0 0.0
  %4765 = vmatpush1.msra.mxu0 0.0
  %4766 = vmatprep.subr.mxu0 0.0
  %4767 = vmatpush1.msra.mxu0 0.0
  %4768 = vmatprep.subr.mxu0 0.0
  %4769 = vmatpush1.msra.mxu0 0.0
  %4770 = vmatprep.mubr.f32.mxu0 0.0
  %4771 = vmatmul.mubr.f32.gmra.mrb[0].mxu0 %v4701
  %v4772 = vpop.f32.mrb[0].mxu0
  %v4773 = vadd.f32 %v4698, %v4772
  %v4774 = vpop.f32.mrb[0].mxu0
  %4775 = vmatprep.mubr.f32.mxu0 0.0
  %4776 = vmatmul.mubr.f32.gmra.mrb[0].mxu0 %v4704
  %v4777 = vpop.f32.mrb[0].mxu0
  %v4778 = vadd.f32 %v4698, %v4777
  %v4779 = vpop.f32.mrb[0].mxu0
  %4780 = vdwg.mxu0
  %v4781 = vadd.f32 %v4589, %v4773
  %v4782 = vadd.f32 %v4590, %v4778
  %v4783 = vsel %vm260, %v4781, 0.0
  %4784 = vadd.xlane.f32.xlu0 %v4783
  %v4785 = vpop.xlane.xlu0 %4784
  %v4786 = vsel %vm260, %v4782, 0.0
  %4787 = vadd.xlane.f32.xlu0 %v4786
  %v4788 = vpop.xlane.xlu0 %4787
  %v4789 = vmul.f32 %v4785, %v3241
  %v4790 = vmul.f32 %v4788, %v3241
  %v4791 = vsub.f32 %v4781, %v4789
  %v4792 = vsub.f32 %v4782, %v4790
  %v4793 = vmul.f32 %v4791, %v4791
  %v4794 = vmul.f32 %v4792, %v4792
  %v4795 = vsel %vm260, %v4793, 0.0
  %4796 = vadd.xlane.f32.xlu0 %v4795
  %v4797 = vpop.xlane.xlu0 %4796
  %v4798 = vsel %vm260, %v4794, 0.0
  %4799 = vadd.xlane.f32.xlu0 %v4798
  %v4800 = vpop.xlane.xlu0 %4799
  %v4801 = vmul.f32 %v4797, %v3241
  %v4802 = vmul.f32 %v4800, %v3241
  %v4803 = vadd.f32 %v4801, 1e-05
  %v4804 = vadd.f32 %v4802, 1e-05
  %v4805 = vrsqrt.pop %v4803
  %v4806 = vrsqrt.pop %v4804
  %v4807 = vmul.f32 %v4791, %v4805
  %v4808 = vmul.f32 %v4792, %v4806
  %v4809 = vld [vmem:[%s65] sm:$0x1]
  %v4811 = vlaneseq
  %v4812 = vshrl.u32 %v4811, 7
  %v4813 = vsub.s32 0, %v4812
  %v4814 = vrot.slane %v4809, %v4813
  %v4816 = vmul.f32 %v4807, %v4814
  %v4817 = vmul.f32 %v4808, %v4814
  %v4818 = vld [vmem:[%s67] sm:$0x1]
  %v4820 = vlaneseq
  %v4821 = vshrl.u32 %v4820, 7
  %v4822 = vsub.s32 0, %v4821
  %v4823 = vrot.slane %v4818, %v4822
  %v4825 = vadd.f32 %v4816, %v4823
  %v4826 = vadd.f32 %v4817, %v4823
  %v4827 = vld [vmem:[%s69] sm:$0xff]
  %v4828 = vld [vmem:[%s69 + $0x8] sm:$0xff]
  %v4829 = vld [vmem:[%s69 + $0x10] sm:$0xff]
  %v4830 = vld [vmem:[%s69 + $0x18] sm:$0xff]
  %v4831 = vld [vmem:[%s69 + $0x20] sm:$0xff]
  %v4832 = vld [vmem:[%s69 + $0x28] sm:$0xff]
  %v4833 = vld [vmem:[%s69 + $0x30] sm:$0xff]
  %v4834 = vld [vmem:[%s69 + $0x38] sm:$0xff]
  %v4835 = vld [vmem:[%s69 + $0x40] sm:$0xff]
  %v4836 = vld [vmem:[%s69 + $0x48] sm:$0xff]
  %v4837 = vld [vmem:[%s69 + $0x50] sm:$0xff]
  %v4838 = vld [vmem:[%s69 + $0x58] sm:$0xff]
  %v4839 = vld [vmem:[%s69 + $0x60] sm:$0xff]
  %v4840 = vld [vmem:[%s69 + $0x68] sm:$0xff]
  %v4841 = vld [vmem:[%s69 + $0x70] sm:$0xff]
  %v4842 = vld [vmem:[%s69 + $0x78] sm:$0xff]
  %v4843 = vld [vmem:[%s71] sm:$0xf]
  %v4845 = vlaneseq
  %v4846 = vshrl.u32 %v4845, 7
  %v4847 = vsub.s32 0, %v4846
  %v4848 = vrot.slane %v4843, %v4847
  %v4849 = vlaneseq
  %v4850 = vshrl.u32 %v4849, 7
  %v4851 = vsub.s32 1, %v4850
  %v4852 = vrot.slane %v4843, %v4851
  %v4853 = vlaneseq
  %v4854 = vshrl.u32 %v4853, 7
  %v4855 = vsub.s32 2, %v4854
  %v4856 = vrot.slane %v4843, %v4855
  %v4857 = vlaneseq
  %v4858 = vshrl.u32 %v4857, 7
  %v4859 = vsub.s32 3, %v4858
  %v4860 = vrot.slane %v4843, %v4859
  %v4866 = vsel %vm260, %v4825, 0
  %v4869 = vsel %vm260, %v4826, 0
  %4871 = vmatprep.subr.mxu0 %v4828
  %4872 = vmatpush1.msra.mxu0 %v4827
  %4873 = vmatprep.subr.mxu0 %v4832
  %4874 = vmatpush1.msra.mxu0 %v4831
  %4875 = vmatprep.subr.mxu0 %v4836
  %4876 = vmatpush1.msra.mxu0 %v4835
  %4877 = vmatprep.subr.mxu0 %v4840
  %4878 = vmatpush1.msra.mxu0 %v4839
  %4879 = vmatprep.subr.mxu0 0.0
  %4880 = vmatpush1.msra.mxu0 0.0
  %4881 = vmatprep.subr.mxu0 0.0
  %4882 = vmatpush1.msra.mxu0 0.0
  %4883 = vmatprep.subr.mxu0 0.0
  %4884 = vmatpush1.msra.mxu0 0.0
  %4885 = vmatprep.subr.mxu0 0.0
  %4886 = vmatpush1.msra.mxu0 0.0
  %4887 = vmatprep.subr.mxu0 0.0
  %4888 = vmatpush1.msra.mxu0 0.0
  %4889 = vmatprep.subr.mxu0 0.0
  %4890 = vmatpush1.msra.mxu0 0.0
  %4891 = vmatprep.subr.mxu0 0.0
  %4892 = vmatpush1.msra.mxu0 0.0
  %4893 = vmatprep.subr.mxu0 0.0
  %4894 = vmatpush1.msra.mxu0 0.0
  %4895 = vmatprep.subr.mxu0 0.0
  %4896 = vmatpush1.msra.mxu0 0.0
  %4897 = vmatprep.subr.mxu0 0.0
  %4898 = vmatpush1.msra.mxu0 0.0
  %4899 = vmatprep.subr.mxu0 0.0
  %4900 = vmatpush1.msra.mxu0 0.0
  %4901 = vmatprep.subr.mxu0 0.0
  %4902 = vmatpush1.msra.mxu0 0.0
  %4903 = vmatprep.subr.mxu0 0.0
  %4904 = vmatpush1.msra.mxu0 0.0
  %4905 = vmatprep.subr.mxu0 0.0
  %4906 = vmatpush1.msra.mxu0 0.0
  %4907 = vmatprep.subr.mxu0 0.0
  %4908 = vmatpush1.msra.mxu0 0.0
  %4909 = vmatprep.subr.mxu0 0.0
  %4910 = vmatpush1.msra.mxu0 0.0
  %4911 = vmatprep.subr.mxu0 0.0
  %4912 = vmatpush1.msra.mxu0 0.0
  %4913 = vmatprep.subr.mxu0 0.0
  %4914 = vmatpush1.msra.mxu0 0.0
  %4915 = vmatprep.subr.mxu0 0.0
  %4916 = vmatpush1.msra.mxu0 0.0
  %4917 = vmatprep.subr.mxu0 0.0
  %4918 = vmatpush1.msra.mxu0 0.0
  %4919 = vmatprep.subr.mxu0 0.0
  %4920 = vmatpush1.msra.mxu0 0.0
  %4921 = vmatprep.subr.mxu0 0.0
  %4922 = vmatpush1.msra.mxu0 0.0
  %4923 = vmatprep.subr.mxu0 0.0
  %4924 = vmatpush1.msra.mxu0 0.0
  %4925 = vmatprep.subr.mxu0 0.0
  %4926 = vmatpush1.msra.mxu0 0.0
  %4927 = vmatprep.subr.mxu0 0.0
  %4928 = vmatpush1.msra.mxu0 0.0
  %4929 = vmatprep.subr.mxu0 0.0
  %4930 = vmatpush1.msra.mxu0 0.0
  %4931 = vmatprep.subr.mxu0 0.0
  %4932 = vmatpush1.msra.mxu0 0.0
  %4933 = vmatprep.subr.mxu0 0.0
  %4934 = vmatpush1.msra.mxu0 0.0
  %4935 = vmatprep.mubr.f32.mxu0 0.0
  %4936 = vmatmul.mubr.f32.gmra.mrb[0].mxu0 %v4866
  %v4937 = vpop.f32.mrb[0].mxu0
  %v4938 = vadd.f32 %v4848, %v4937
  %v4939 = vpop.f32.mrb[0].mxu0
  %v4940 = vadd.f32 %v4852, %v4939
  %4941 = vmatprep.mubr.f32.mxu0 0.0
  %4942 = vmatmul.mubr.f32.gmra.mrb[0].mxu0 %v4869
  %v4943 = vpop.f32.mrb[0].mxu0
  %v4944 = vadd.f32 %v4848, %v4943
  %v4945 = vpop.f32.mrb[0].mxu0
  %v4946 = vadd.f32 %v4852, %v4945
  %4947 = vdwg.mxu0
  %4948 = vmatprep.subr.mxu0 %v4830
  %4949 = vmatpush1.msra.mxu0 %v4829
  %4950 = vmatprep.subr.mxu0 %v4834
  %4951 = vmatpush1.msra.mxu0 %v4833
  %4952 = vmatprep.subr.mxu0 %v4838
  %4953 = vmatpush1.msra.mxu0 %v4837
  %4954 = vmatprep.subr.mxu0 %v4842
  %4955 = vmatpush1.msra.mxu0 %v4841
  %4956 = vmatprep.subr.mxu0 0.0
  %4957 = vmatpush1.msra.mxu0 0.0
  %4958 = vmatprep.subr.mxu0 0.0
  %4959 = vmatpush1.msra.mxu0 0.0
  %4960 = vmatprep.subr.mxu0 0.0
  %4961 = vmatpush1.msra.mxu0 0.0
  %4962 = vmatprep.subr.mxu0 0.0
  %4963 = vmatpush1.msra.mxu0 0.0
  %4964 = vmatprep.subr.mxu0 0.0
  %4965 = vmatpush1.msra.mxu0 0.0
  %4966 = vmatprep.subr.mxu0 0.0
  %4967 = vmatpush1.msra.mxu0 0.0
  %4968 = vmatprep.subr.mxu0 0.0
  %4969 = vmatpush1.msra.mxu0 0.0
  %4970 = vmatprep.subr.mxu0 0.0
  %4971 = vmatpush1.msra.mxu0 0.0
  %4972 = vmatprep.subr.mxu0 0.0
  %4973 = vmatpush1.msra.mxu0 0.0
  %4974 = vmatprep.subr.mxu0 0.0
  %4975 = vmatpush1.msra.mxu0 0.0
  %4976 = vmatprep.subr.mxu0 0.0
  %4977 = vmatpush1.msra.mxu0 0.0
  %4978 = vmatprep.subr.mxu0 0.0
  %4979 = vmatpush1.msra.mxu0 0.0
  %4980 = vmatprep.subr.mxu0 0.0
  %4981 = vmatpush1.msra.mxu0 0.0
  %4982 = vmatprep.subr.mxu0 0.0
  %4983 = vmatpush1.msra.mxu0 0.0
  %4984 = vmatprep.subr.mxu0 0.0
  %4985 = vmatpush1.msra.mxu0 0.0
  %4986 = vmatprep.subr.mxu0 0.0
  %4987 = vmatpush1.msra.mxu0 0.0
  %4988 = vmatprep.subr.mxu0 0.0
  %4989 = vmatpush1.msra.mxu0 0.0
  %4990 = vmatprep.subr.mxu0 0.0
  %4991 = vmatpush1.msra.mxu0 0.0
  %4992 = vmatprep.subr.mxu0 0.0
  %4993 = vmatpush1.msra.mxu0 0.0
  %4994 = vmatprep.subr.mxu0 0.0
  %4995 = vmatpush1.msra.mxu0 0.0
  %4996 = vmatprep.subr.mxu0 0.0
  %4997 = vmatpush1.msra.mxu0 0.0
  %4998 = vmatprep.subr.mxu0 0.0
  %4999 = vmatpush1.msra.mxu0 0.0
  %5000 = vmatprep.subr.mxu0 0.0
  %5001 = vmatpush1.msra.mxu0 0.0
  %5002 = vmatprep.subr.mxu0 0.0
  %5003 = vmatpush1.msra.mxu0 0.0
  %5004 = vmatprep.subr.mxu0 0.0
  %5005 = vmatpush1.msra.mxu0 0.0
  %5006 = vmatprep.subr.mxu0 0.0
  %5007 = vmatpush1.msra.mxu0 0.0
  %5008 = vmatprep.subr.mxu0 0.0
  %5009 = vmatpush1.msra.mxu0 0.0
  %5010 = vmatprep.subr.mxu0 0.0
  %5011 = vmatpush1.msra.mxu0 0.0
  %5012 = vmatprep.mubr.f32.mxu0 0.0
  %5013 = vmatmul.mubr.f32.gmra.mrb[0].mxu0 %v4866
  %v5014 = vpop.f32.mrb[0].mxu0
  %v5015 = vadd.f32 %v4856, %v5014
  %v5016 = vpop.f32.mrb[0].mxu0
  %v5017 = vadd.f32 %v4860, %v5016
  %5018 = vmatprep.mubr.f32.mxu0 0.0
  %5019 = vmatmul.mubr.f32.gmra.mrb[0].mxu0 %v4869
  %v5020 = vpop.f32.mrb[0].mxu0
  %v5021 = vadd.f32 %v4856, %v5020
  %v5022 = vpop.f32.mrb[0].mxu0
  %v5023 = vadd.f32 %v4860, %v5022
  %5024 = vdwg.mxu0
  %v5025 = vmax.f32 %v4938, 0.0
  %v5026 = vmax.f32 %v4940, 0.0
  %v5027 = vmax.f32 %v5015, 0.0
  %v5028 = vmax.f32 %v5017, 0.0
  %v5029 = vmax.f32 %v4944, 0.0
  %v5030 = vmax.f32 %v4946, 0.0
  %v5031 = vmax.f32 %v5021, 0.0
  %v5032 = vmax.f32 %v5023, 0.0
  %v5033 = vld [vmem:[%s73] sm:$0xff]
  %v5034 = vld [vmem:[%s73 + $0x8] sm:$0xff]
  %v5035 = vld [vmem:[%s73 + $0x10] sm:$0xff]
  %v5036 = vld [vmem:[%s73 + $0x18] sm:$0xff]
  %v5037 = vld [vmem:[%s73 + $0x20] sm:$0xff]
  %v5038 = vld [vmem:[%s73 + $0x28] sm:$0xff]
  %v5039 = vld [vmem:[%s73 + $0x30] sm:$0xff]
  %v5040 = vld [vmem:[%s73 + $0x38] sm:$0xff]
  %v5041 = vld [vmem:[%s73 + $0x40] sm:$0xff]
  %v5042 = vld [vmem:[%s73 + $0x48] sm:$0xff]
  %v5043 = vld [vmem:[%s73 + $0x50] sm:$0xff]
  %v5044 = vld [vmem:[%s73 + $0x58] sm:$0xff]
  %v5045 = vld [vmem:[%s73 + $0x60] sm:$0xff]
  %v5046 = vld [vmem:[%s73 + $0x68] sm:$0xff]
  %v5047 = vld [vmem:[%s73 + $0x70] sm:$0xff]
  %v5048 = vld [vmem:[%s73 + $0x78] sm:$0xff]
  %v5049 = vld [vmem:[%s73 + $0x80] sm:$0xff]
  %v5050 = vld [vmem:[%s73 + $0x88] sm:$0xff]
  %v5051 = vld [vmem:[%s73 + $0x90] sm:$0xff]
  %v5052 = vld [vmem:[%s73 + $0x98] sm:$0xff]
  %v5053 = vld [vmem:[%s73 + $0xa0] sm:$0xff]
  %v5054 = vld [vmem:[%s73 + $0xa8] sm:$0xff]
  %v5055 = vld [vmem:[%s73 + $0xb0] sm:$0xff]
  %v5056 = vld [vmem:[%s73 + $0xb8] sm:$0xff]
  %v5057 = vld [vmem:[%s73 + $0xc0] sm:$0xff]
  %v5058 = vld [vmem:[%s73 + $0xc8] sm:$0xff]
  %v5059 = vld [vmem:[%s73 + $0xd0] sm:$0xff]
  %v5060 = vld [vmem:[%s73 + $0xd8] sm:$0xff]
  %v5061 = vld [vmem:[%s73 + $0xe0] sm:$0xff]
  %v5062 = vld [vmem:[%s73 + $0xe8] sm:$0xff]
  %v5063 = vld [vmem:[%s73 + $0xf0] sm:$0xff]
  %v5064 = vld [vmem:[%s73 + $0xf8] sm:$0xff]
  %v5065 = vld [vmem:[%s73 + $0x100] sm:$0xff]
  %v5066 = vld [vmem:[%s73 + $0x108] sm:$0xff]
  %v5067 = vld [vmem:[%s73 + $0x110] sm:$0xff]
  %v5068 = vld [vmem:[%s73 + $0x118] sm:$0xff]
  %v5069 = vld [vmem:[%s73 + $0x120] sm:$0xff]
  %v5070 = vld [vmem:[%s73 + $0x128] sm:$0xff]
  %v5071 = vld [vmem:[%s73 + $0x130] sm:$0xff]
  %v5072 = vld [vmem:[%s73 + $0x138] sm:$0xff]
  %v5073 = vld [vmem:[%s73 + $0x140] sm:$0xff]
  %v5074 = vld [vmem:[%s73 + $0x148] sm:$0xff]
  %v5075 = vld [vmem:[%s73 + $0x150] sm:$0xff]
  %v5076 = vld [vmem:[%s73 + $0x158] sm:$0xff]
  %v5077 = vld [vmem:[%s73 + $0x160] sm:$0xff]
  %v5078 = vld [vmem:[%s73 + $0x168] sm:$0xff]
  %v5079 = vld [vmem:[%s73 + $0x170] sm:$0xff]
  %v5080 = vld [vmem:[%s73 + $0x178] sm:$0xff]
  %v5081 = vld [vmem:[%s73 + $0x180] sm:$0xff]
  %v5082 = vld [vmem:[%s73 + $0x188] sm:$0xff]
  %v5083 = vld [vmem:[%s73 + $0x190] sm:$0xff]
  %v5084 = vld [vmem:[%s73 + $0x198] sm:$0xff]
  %v5085 = vld [vmem:[%s73 + $0x1a0] sm:$0xff]
  %v5086 = vld [vmem:[%s73 + $0x1a8] sm:$0xff]
  %v5087 = vld [vmem:[%s73 + $0x1b0] sm:$0xff]
  %v5088 = vld [vmem:[%s73 + $0x1b8] sm:$0xff]
  %v5089 = vld [vmem:[%s73 + $0x1c0] sm:$0xff]
  %v5090 = vld [vmem:[%s73 + $0x1c8] sm:$0xff]
  %v5091 = vld [vmem:[%s73 + $0x1d0] sm:$0xff]
  %v5092 = vld [vmem:[%s73 + $0x1d8] sm:$0xff]
  %v5093 = vld [vmem:[%s73 + $0x1e0] sm:$0xff]
  %v5094 = vld [vmem:[%s73 + $0x1e8] sm:$0xff]
  %v5095 = vld [vmem:[%s73 + $0x1f0] sm:$0xff]
  %v5096 = vld [vmem:[%s73 + $0x1f8] sm:$0xff]
  %v5097 = vld [vmem:[%s75] sm:$0x1]
  %v5099 = vlaneseq
  %v5100 = vshrl.u32 %v5099, 7
  %v5101 = vsub.s32 0, %v5100
  %v5102 = vrot.slane %v5097, %v5101
  %5104 = vmatprep.subr.mxu0 0.0
  %5105 = vmatpush1.msra.mxu0 %v5033
  %5106 = vmatprep.subr.mxu0 0.0
  %5107 = vmatpush1.msra.mxu0 %v5034
  %5108 = vmatprep.subr.mxu0 0.0
  %5109 = vmatpush1.msra.mxu0 %v5035
  %5110 = vmatprep.subr.mxu0 0.0
  %5111 = vmatpush1.msra.mxu0 %v5036
  %5112 = vmatprep.subr.mxu0 0.0
  %5113 = vmatpush1.msra.mxu0 %v5037
  %5114 = vmatprep.subr.mxu0 0.0
  %5115 = vmatpush1.msra.mxu0 %v5038
  %5116 = vmatprep.subr.mxu0 0.0
  %5117 = vmatpush1.msra.mxu0 %v5039
  %5118 = vmatprep.subr.mxu0 0.0
  %5119 = vmatpush1.msra.mxu0 %v5040
  %5120 = vmatprep.subr.mxu0 0.0
  %5121 = vmatpush1.msra.mxu0 %v5041
  %5122 = vmatprep.subr.mxu0 0.0
  %5123 = vmatpush1.msra.mxu0 %v5042
  %5124 = vmatprep.subr.mxu0 0.0
  %5125 = vmatpush1.msra.mxu0 %v5043
  %5126 = vmatprep.subr.mxu0 0.0
  %5127 = vmatpush1.msra.mxu0 %v5044
  %5128 = vmatprep.subr.mxu0 0.0
  %5129 = vmatpush1.msra.mxu0 %v5045
  %5130 = vmatprep.subr.mxu0 0.0
  %5131 = vmatpush1.msra.mxu0 %v5046
  %5132 = vmatprep.subr.mxu0 0.0
  %5133 = vmatpush1.msra.mxu0 %v5047
  %5134 = vmatprep.subr.mxu0 0.0
  %5135 = vmatpush1.msra.mxu0 %v5048
  %5136 = vmatprep.subr.mxu0 0.0
  %5137 = vmatpush1.msra.mxu0 %v5049
  %5138 = vmatprep.subr.mxu0 0.0
  %5139 = vmatpush1.msra.mxu0 %v5050
  %5140 = vmatprep.subr.mxu0 0.0
  %5141 = vmatpush1.msra.mxu0 %v5051
  %5142 = vmatprep.subr.mxu0 0.0
  %5143 = vmatpush1.msra.mxu0 %v5052
  %5144 = vmatprep.subr.mxu0 0.0
  %5145 = vmatpush1.msra.mxu0 %v5053
  %5146 = vmatprep.subr.mxu0 0.0
  %5147 = vmatpush1.msra.mxu0 %v5054
  %5148 = vmatprep.subr.mxu0 0.0
  %5149 = vmatpush1.msra.mxu0 %v5055
  %5150 = vmatprep.subr.mxu0 0.0
  %5151 = vmatpush1.msra.mxu0 %v5056
  %5152 = vmatprep.subr.mxu0 0.0
  %5153 = vmatpush1.msra.mxu0 %v5057
  %5154 = vmatprep.subr.mxu0 0.0
  %5155 = vmatpush1.msra.mxu0 %v5058
  %5156 = vmatprep.subr.mxu0 0.0
  %5157 = vmatpush1.msra.mxu0 %v5059
  %5158 = vmatprep.subr.mxu0 0.0
  %5159 = vmatpush1.msra.mxu0 %v5060
  %5160 = vmatprep.subr.mxu0 0.0
  %5161 = vmatpush1.msra.mxu0 %v5061
  %5162 = vmatprep.subr.mxu0 0.0
  %5163 = vmatpush1.msra.mxu0 %v5062
  %5164 = vmatprep.subr.mxu0 0.0
  %5165 = vmatpush1.msra.mxu0 %v5063
  %5166 = vmatprep.subr.mxu0 0.0
  %5167 = vmatpush1.msra.mxu0 %v5064
  %5168 = vmatprep.mubr.f32.mxu0 %v5026
  %5169 = vmatmul.mubr.f32.gmra.mrb[0].mxu0 %v5025
  %v5170 = vpop.f32.mrb[0].mxu0
  %v5171 = vadd.f32 %v5102, %v5170
  %v5172 = vpop.f32.mrb[0].mxu0
  %5173 = vmatprep.mubr.f32.mxu0 %v5030
  %5174 = vmatmul.mubr.f32.gmra.mrb[0].mxu0 %v5029
  %v5175 = vpop.f32.mrb[0].mxu0
  %v5176 = vadd.f32 %v5102, %v5175
  %v5177 = vpop.f32.mrb[0].mxu0
  %5178 = vdwg.mxu0
  %5179 = vmatprep.subr.mxu0 0.0
  %5180 = vmatpush1.msra.mxu0 %v5065
  %5181 = vmatprep.subr.mxu0 0.0
  %5182 = vmatpush1.msra.mxu0 %v5066
  %5183 = vmatprep.subr.mxu0 0.0
  %5184 = vmatpush1.msra.mxu0 %v5067
  %5185 = vmatprep.subr.mxu0 0.0
  %5186 = vmatpush1.msra.mxu0 %v5068
  %5187 = vmatprep.subr.mxu0 0.0
  %5188 = vmatpush1.msra.mxu0 %v5069
  %5189 = vmatprep.subr.mxu0 0.0
  %5190 = vmatpush1.msra.mxu0 %v5070
  %5191 = vmatprep.subr.mxu0 0.0
  %5192 = vmatpush1.msra.mxu0 %v5071
  %5193 = vmatprep.subr.mxu0 0.0
  %5194 = vmatpush1.msra.mxu0 %v5072
  %5195 = vmatprep.subr.mxu0 0.0
  %5196 = vmatpush1.msra.mxu0 %v5073
  %5197 = vmatprep.subr.mxu0 0.0
  %5198 = vmatpush1.msra.mxu0 %v5074
  %5199 = vmatprep.subr.mxu0 0.0
  %5200 = vmatpush1.msra.mxu0 %v5075
  %5201 = vmatprep.subr.mxu0 0.0
  %5202 = vmatpush1.msra.mxu0 %v5076
  %5203 = vmatprep.subr.mxu0 0.0
  %5204 = vmatpush1.msra.mxu0 %v5077
  %5205 = vmatprep.subr.mxu0 0.0
  %5206 = vmatpush1.msra.mxu0 %v5078
  %5207 = vmatprep.subr.mxu0 0.0
  %5208 = vmatpush1.msra.mxu0 %v5079
  %5209 = vmatprep.subr.mxu0 0.0
  %5210 = vmatpush1.msra.mxu0 %v5080
  %5211 = vmatprep.subr.mxu0 0.0
  %5212 = vmatpush1.msra.mxu0 %v5081
  %5213 = vmatprep.subr.mxu0 0.0
  %5214 = vmatpush1.msra.mxu0 %v5082
  %5215 = vmatprep.subr.mxu0 0.0
  %5216 = vmatpush1.msra.mxu0 %v5083
  %5217 = vmatprep.subr.mxu0 0.0
  %5218 = vmatpush1.msra.mxu0 %v5084
  %5219 = vmatprep.subr.mxu0 0.0
  %5220 = vmatpush1.msra.mxu0 %v5085
  %5221 = vmatprep.subr.mxu0 0.0
  %5222 = vmatpush1.msra.mxu0 %v5086
  %5223 = vmatprep.subr.mxu0 0.0
  %5224 = vmatpush1.msra.mxu0 %v5087
  %5225 = vmatprep.subr.mxu0 0.0
  %5226 = vmatpush1.msra.mxu0 %v5088
  %5227 = vmatprep.subr.mxu0 0.0
  %5228 = vmatpush1.msra.mxu0 %v5089
  %5229 = vmatprep.subr.mxu0 0.0
  %5230 = vmatpush1.msra.mxu0 %v5090
  %5231 = vmatprep.subr.mxu0 0.0
  %5232 = vmatpush1.msra.mxu0 %v5091
  %5233 = vmatprep.subr.mxu0 0.0
  %5234 = vmatpush1.msra.mxu0 %v5092
  %5235 = vmatprep.subr.mxu0 0.0
  %5236 = vmatpush1.msra.mxu0 %v5093
  %5237 = vmatprep.subr.mxu0 0.0
  %5238 = vmatpush1.msra.mxu0 %v5094
  %5239 = vmatprep.subr.mxu0 0.0
  %5240 = vmatpush1.msra.mxu0 %v5095
  %5241 = vmatprep.subr.mxu0 0.0
  %5242 = vmatpush1.msra.mxu0 %v5096
  %5243 = vmatprep.mubr.f32.mxu0 %v5028
  %5244 = vmatmul.mubr.f32.gmra.mrb[0].mxu0 %v5027
  %v5245 = vpop.f32.mrb[0].mxu0
  %v5246 = vadd.f32 %v5171, %v5245
  %v5247 = vpop.f32.mrb[0].mxu0
  %5248 = vmatprep.mubr.f32.mxu0 %v5032
  %5249 = vmatmul.mubr.f32.gmra.mrb[0].mxu0 %v5031
  %v5250 = vpop.f32.mrb[0].mxu0
  %v5251 = vadd.f32 %v5176, %v5250
  %v5252 = vpop.f32.mrb[0].mxu0
  %5253 = vdwg.mxu0
  %v5254 = vmax.f32 %v5246, 0.0
  %v5255 = vmax.f32 %v5251, 0.0
  %5256 = vst [vmem:[%s77] sm:$0xff] %v5254
  %5257 = vst [vmem:[%s77 + $0x8] sm:$0xff] %v5255
  // Predicated region
  $region154: #{forward.1} parent=0 // pred_check
    _
  $region155: #{forward.1} parent=0 // pred_check_branch
    %5259 = sbr.rel (0) target = $region157
  $region156: #{forward.1} parent=0 // pred_region
    _
  $region157: #{forward.1} parent=0 // pred_fallthru
    _
  // Predicated region
  $region158: #{forward.1} parent=0 // pred_check
    _
  $region159: #{forward.1} parent=0 // pred_check_branch
    %5261 = sbr.rel (0) target = $region161
  $region160: #{forward.1} parent=0 // pred_region
    _
  $region161: #{forward.1} parent=0 // pred_fallthru
    _

</llo_original>
